<compile_context>
chip_gen: v5e
topology: v5e:2x2
jax: 0.10.0
libtpu: 0.0.40
codegen_flags: <defaults>
</compile_context>

<pallas_src>
import math

import jax
import jax.numpy as jnp
from jax import lax
from jax.experimental import pallas as pl
from jax.experimental.pallas import tpu as pltpu

# ---------------- model hyper-parameters (small synthetic BERT) ------------
VOCAB = 64
MAX_POS = 16
TYPE_VOCAB = 2
HIDDEN = 32
NUM_HEADS = 4
HEAD_DIM = HIDDEN // NUM_HEADS
FFN = 64
BERT_LAYERS = 2
HIER_LAYERS = 2          # constant.hop
LABEL_NUM = 4
NUM_SENT = 3             # input_ids[:, 0..2]
BATCH = 2
SEQ = 8
LN_EPS = 1e-12

MATMUL_DTYPE = jnp.bfloat16   # MXU-native everywhere; accumulation stays f32


# --------------------------- in-kernel helpers ------------------------------
def _mm(x, w):
    """MXU matmul: cast the activation to the (bf16) weight dtype, f32 acc."""
    return jnp.dot(x.astype(w.dtype), w, preferred_element_type=jnp.float32)


def _ln(x, g, b, eps=LN_EPS):
    mu = jnp.mean(x, axis=-1, keepdims=True)
    var = jnp.mean((x - mu) ** 2, axis=-1, keepdims=True)
    return (x - mu) * lax.rsqrt(var + eps) * g + b


def _gelu(x):
    # TODO(synk): PyTorch BERT uses the exact erf GELU; tanh approximation is
    # kept (<=1e-3 divergence) since erf has no guaranteed Mosaic lowering.
    c = math.sqrt(2.0 / math.pi)
    return 0.5 * x * (1.0 + jnp.tanh(c * (x + 0.044715 * x * x * x)))


def _mha(x, bias, bn, s, wqkv, bqkv, wo_h, bo, scale):
    """Multi-head self-attention on a (bn*s, H) slab.

    Heads stay packed on the lane axis of the fused QKV projection; the
    per-head output projection wo_h: (heads, dh, H) is accumulated inside the
    head loop so no lane-axis concatenation is needed.
    bias: (bn, 1, s) additive key mask, or None.
    """
    n, h = x.shape
    dh = HEAD_DIM
    qkv = _mm(x, wqkv) + bqkv                                   # (n, 3h), f32
    acc = bo                                                    # (1, h), broadcasts
    for hd in range(NUM_HEADS):
        q = qkv[:, hd * dh:(hd + 1) * dh].reshape(bn, s, dh)
        k = qkv[:, h + hd * dh:h + (hd + 1) * dh].reshape(bn, s, dh)
        v = qkv[:, 2 * h + hd * dh:2 * h + (hd + 1) * dh].reshape(bn, s, dh)
        sc = jnp.einsum("bqd,bkd->bqk", q, k,
                        preferred_element_type=jnp.float32) * scale
        if bias is not None:
            sc = sc + bias
        m = jnp.max(sc, axis=-1, keepdims=True)
        p = jnp.exp(sc - m)
        p = p * pl.reciprocal(jnp.sum(p, axis=-1, keepdims=True), approx=True)
        ctx = jnp.einsum("bqk,bkd->bqd", p, v,
                         preferred_element_type=jnp.float32)    # (bn, s, dh)
        acc = acc + _mm(ctx.reshape(n, dh), wo_h[hd])           # (n, h)
    return acc


def _transformer_layer(x, bias, bn, s, lw, scale):
    """Post-LN (BERT-style) transformer layer on a 2-D activation slab."""
    (wqkv, bqkv, wo_h, bo, ln1_g, ln1_b,
     w1, b1, w2, b2, ln2_g, ln2_b) = lw
    attn = _mha(x, bias, bn, s, wqkv, bqkv, wo_h, bo, scale)
    x = _ln(x + attn, ln1_g, ln1_b)
    ffn = _mm(_gelu(_mm(x, w1) + b1), w2) + b2
    x = _ln(x + ffn, ln2_g, ln2_b)
    return x


# ----------------------------- Pallas kernels ------------------------------
def _bert_encoder_kernel(emb_ref, bias_ref, emb_ln_g_ref, emb_ln_b_ref,
                         wqkv_ref, bqkv_ref, wo_ref, bo_ref,
                         ln1_g_ref, ln1_b_ref, w1_ref, b1_ref,
                         w2_ref, b2_ref, ln2_g_ref, ln2_b_ref,
                         pool_w_ref, pool_b_ref, pooled_ref):
    """One grid step = one batch element = NUM_SENT sentences of SEQ tokens,
    processed as a single (NUM_SENT*SEQ, HIDDEN) slab, everything in VMEM."""
    ns, s, h = NUM_SENT, SEQ, HIDDEN
    n = ns * s
    scale = 1.0 / math.sqrt(HEAD_DIM)
    layer_refs = (wqkv_ref, bqkv_ref, wo_ref, bo_ref, ln1_g_ref, ln1_b_ref,
                  w1_ref, b1_ref, w2_ref, b2_ref, ln2_g_ref, ln2_b_ref)

    x = _ln(emb_ref[0].astype(jnp.float32),
            emb_ln_g_ref[...], emb_ln_b_ref[...])               # (n, h)
    bias = bias_ref[0].astype(jnp.float32)                      # (ns, 1, s)

    for l in range(BERT_LAYERS):                                # static unroll
        lw = tuple(r[l] for r in layer_refs)
        x = _transformer_layer(x, bias, ns, s, lw, scale)

    # tanh pooler over the [CLS] rows; row selection via a one-hot matmul
    # (avoids a sublane gather).
    col = lax.broadcasted_iota(jnp.int32, (ns, n), 1)
    row = lax.broadcasted_iota(jnp.int32, (ns, n), 0)
    sel = (col == row * s).astype(jnp.float32)                  # (ns, n)
    cls = jnp.dot(sel, x, preferred_element_type=jnp.float32)   # (ns, h)
    pooled = jnp.tanh(_mm(cls, pool_w_ref[...]) + pool_b_ref[...])
    pooled_ref[0] = pooled.astype(pooled_ref.dtype)


def _hier_classifier_kernel(ctx_ref, pos_ref,
                            wqkv_ref, bqkv_ref, wo_ref, bo_ref,
                            ln1_g_ref, ln1_b_ref, w1_ref, b1_ref,
                            w2_ref, b2_ref, ln2_g_ref, ln2_b_ref,
                            cls_w_ref, cls_b_ref, logits_ref):
    """One grid step = one batch element's 3-long hier sequence.  The hier
    transformer, mean pooling and classifier all run inside this kernel."""
    s = NUM_SENT
    scale = 1.0 / math.sqrt(HEAD_DIM)
    layer_refs = (wqkv_ref, bqkv_ref, wo_ref, bo_ref, ln1_g_ref, ln1_b_ref,
                  w1_ref, b1_ref, w2_ref, b2_ref, ln2_g_ref, ln2_b_ref)

    x = ctx_ref[0].astype(jnp.float32) + pos_ref[...]           # (s, h)
    for l in range(HIER_LAYERS):
        lw = tuple(r[l] for r in layer_refs)
        x = _transformer_layer(x, None, 1, s, lw, scale)        # use_mask=False

    # classifier( sum(sum_pool, dim=1) / seq_len ) — mean via matmul.
    mean_w = jnp.full((1, s), 1.0 / s, dtype=jnp.float32)
    mean = jnp.dot(mean_w, x, preferred_element_type=jnp.float32)   # (1, h)
    logits = _mm(mean, cls_w_ref[...]) + cls_b_ref[...]
    logits_ref[0] = logits.astype(logits_ref.dtype)


# --------------------------- pallas_call wrappers ---------------------------
def _const_spec(shape):
    nd = len(shape)
    return pl.BlockSpec(tuple(shape), lambda b: (0,) * nd)


def bert_encode_batched(emb, bias, bert_w):
    """emb: (B, NUM_SENT*SEQ, H) f32; bias: (B, NUM_SENT, 1, SEQ) additive."""
    B = emb.shape[0]
    in_specs = [
        pl.BlockSpec((1, NUM_SENT * SEQ, HIDDEN), lambda b: (b, 0, 0)),
        pl.BlockSpec((1, NUM_SENT, 1, SEQ), lambda b: (b, 0, 0, 0)),
    ] + [_const_spec(a.shape) for a in bert_w]
    return pl.pallas_call(
        _bert_encoder_kernel,
        grid=(B,),
        in_specs=in_specs,
        out_specs=pl.BlockSpec((1, NUM_SENT, HIDDEN), lambda b: (b, 0, 0)),
        out_shape=jax.ShapeDtypeStruct((B, NUM_SENT, HIDDEN), jnp.float32),
        compiler_params=pltpu.CompilerParams(
            dimension_semantics=("parallel",)),
    )(emb, bias, *bert_w)


def hier_classify(ctx, hier_w):
    """ctx: (B, NUM_SENT, H) pooled sentence vectors -> (B, LABEL_NUM)."""
    B = ctx.shape[0]
    in_specs = [pl.BlockSpec((1, NUM_SENT, HIDDEN), lambda b: (b, 0, 0))] + \
               [_const_spec(a.shape) for a in hier_w]
    out = pl.pallas_call(
        _hier_classifier_kernel,
        grid=(B,),
        in_specs=in_specs,
        out_specs=pl.BlockSpec((1, 1, LABEL_NUM), lambda b: (b, 0, 0)),
        out_shape=jax.ShapeDtypeStruct((B, 1, LABEL_NUM), jnp.float32),
        compiler_params=pltpu.CompilerParams(
            dimension_semantics=("parallel",)),
    )(ctx, *hier_w)
    return out.reshape(B, LABEL_NUM)


# --------------------------- parameter packing ------------------------------
def _stack_layers(layers):
    """Stack per-layer dicts into layer-major arrays; fuse Q|K|V; split Wo by
    head; matmul weights in bf16, biases/LN params in f32."""
    def st(key):
        return jnp.stack([lp[key] for lp in layers])

    wqkv = jnp.stack([jnp.concatenate([lp["wq"], lp["wk"], lp["wv"]], axis=1)
                      for lp in layers]).astype(MATMUL_DTYPE)       # (L,H,3H)
    bqkv = jnp.stack([jnp.concatenate([lp["bq"], lp["bk"], lp["bv"]])
                      for lp in layers])[:, None, :]                # (L,1,3H)
    wo_h = jnp.stack([lp["wo"].reshape(NUM_HEADS, HEAD_DIM, HIDDEN)
                      for lp in layers]).astype(MATMUL_DTYPE)       # (L,NH,dh,H)
    return (wqkv, bqkv,
            wo_h, st("bo")[:, None, :],
            st("ln1_g")[:, None, :], st("ln1_b")[:, None, :],
            st("w1").astype(MATMUL_DTYPE), st("b1")[:, None, :],
            st("w2").astype(MATMUL_DTYPE), st("b2")[:, None, :],
            st("ln2_g")[:, None, :], st("ln2_b")[:, None, :])


# ------------------------------- forward ------------------------------------
def hier_bert_forward(params, input_ids, token_type_ids, attention_mask):
    """HierBertModel.forward (sum_tensor=False, emoji=None, dropout=0)."""
    B = input_ids.shape[0]
    bp = params["bert"]

    # Embedding gathers stay in XLA; the 3 sentences are folded into rows.
    ids = input_ids.reshape(B * NUM_SENT, SEQ)
    typ = token_type_ids.reshape(B * NUM_SENT, SEQ)
    msk = attention_mask.reshape(B * NUM_SENT, SEQ)
    emb = (bp["word_emb"][ids]
           + bp["pos_emb"][jnp.arange(SEQ)][None, :, :]
           + bp["type_emb"][typ])                                   # (B*3, S, H)
    emb = emb.reshape(B, NUM_SENT * SEQ, HIDDEN)
    bias = ((1.0 - msk.astype(jnp.float32)) * -1e9
            ).reshape(B, NUM_SENT, 1, SEQ)                          # key mask

    bert_w = ((bp["emb_ln_g"].reshape(1, HIDDEN),
               bp["emb_ln_b"].reshape(1, HIDDEN))
              + _stack_layers(bp["layers"])
              + (bp["pool_w"].astype(MATMUL_DTYPE),
                 bp["pool_b"].reshape(1, HIDDEN)))

    pooled = bert_encode_batched(emb, bias, bert_w)                 # (B, 3, H)

    hier_w = ((params["hier_pos"],)
              + _stack_layers(params["hier_layers"])
              + (params["cls_w"].astype(MATMUL_DTYPE),
                 params["cls_b"].reshape(1, LABEL_NUM)))
    return hier_classify(pooled, hier_w)                            # (B, L)


# ----------------------- deterministic parameter init ----------------------
def make_params(key):
    keys = iter(jax.random.split(key, 512))

    def nrm(shape, scale=0.02):
        return scale * jax.random.normal(next(keys), shape, jnp.float32)

    def layer_params():
        return {
            "wq": nrm((HIDDEN, HIDDEN)), "bq": jnp.zeros((HIDDEN,), jnp.float32),
            "wk": nrm((HIDDEN, HIDDEN)), "bk": jnp.zeros((HIDDEN,), jnp.float32),
            "wv": nrm((HIDDEN, HIDDEN)), "bv": jnp.zeros((HIDDEN,), jnp.float32),
            "wo": nrm((HIDDEN, HIDDEN)), "bo": jnp.zeros((HIDDEN,), jnp.float32),
            "ln1_g": jnp.ones((HIDDEN,), jnp.float32),
            "ln1_b": jnp.zeros((HIDDEN,), jnp.float32),
            "w1": nrm((HIDDEN, FFN)), "b1": jnp.zeros((FFN,), jnp.float32),
            "w2": nrm((FFN, HIDDEN)), "b2": jnp.zeros((HIDDEN,), jnp.float32),
            "ln2_g": jnp.ones((HIDDEN,), jnp.float32),
            "ln2_b": jnp.zeros((HIDDEN,), jnp.float32),
        }

    bert = {
        "word_emb": nrm((VOCAB, HIDDEN)),
        "pos_emb": nrm((MAX_POS, HIDDEN)),
        "type_emb": nrm((TYPE_VOCAB, HIDDEN)),
        "emb_ln_g": jnp.ones((HIDDEN,), jnp.float32),
        "emb_ln_b": jnp.zeros((HIDDEN,), jnp.float32),
        "layers": [layer_params() for _ in range(BERT_LAYERS)],
        "pool_w": nrm((HIDDEN, HIDDEN)),
        "pool_b": jnp.zeros((HIDDEN,), jnp.float32),
    }
    params = {
        "bert": bert,
        "hier_pos": nrm((NUM_SENT, HIDDEN)),
        "hier_layers": [layer_params() for _ in range(HIER_LAYERS)],
        "cls_w": nrm((HIDDEN, LABEL_NUM)),
        "cls_b": jnp.zeros((LABEL_NUM,), jnp.float32),
    }
    return params


# ----------------------------------- main -----------------------------------
if __name__ == "__main__":
    root = jax.random.PRNGKey(0)
    k_par, k_ids, k_typ, k_msk = jax.random.split(root, 4)

    params = make_params(k_par)

    input_ids = jax.random.randint(k_ids, (BATCH, NUM_SENT, SEQ), 0, VOCAB, jnp.int32)
    token_type_ids = jax.random.randint(k_typ, (BATCH, NUM_SENT, SEQ), 0, TYPE_VOCAB, jnp.int32)
    # valid lengths >= 5 so every query row has at least one unmasked key
    lengths = jax.random.randint(k_msk, (BATCH, NUM_SENT), 5, SEQ + 1, jnp.int32)
    attention_mask = (jnp.arange(SEQ)[None, None, :] < lengths[:, :, None]).astype(jnp.int32)

    fwd = jax.jit(hier_bert_forward)
    logits = fwd(params, input_ids, token_type_ids, attention_mask)
    logits = jax.block_until_ready(logits)

    assert logits.shape == (BATCH, LABEL_NUM)
    assert bool(jnp.all(jnp.isfinite(logits)))
    print("KERNEL_OK")
</pallas_src>

<mosaic_0001>
module attributes {stable_mosaic.version = 11 : i64} {
  func.func @_hier_classifier_kernel(%arg0: i32, %arg1: memref<1x3x32xf32, #tpu.memory_space<vmem>>, %arg2: memref<3x32xf32, #tpu.memory_space<vmem>>, %arg3: memref<2x32x96xbf16, #tpu.memory_space<vmem>>, %arg4: memref<2x1x96xf32, #tpu.memory_space<vmem>>, %arg5: memref<2x4x8x32xbf16, #tpu.memory_space<vmem>>, %arg6: memref<2x1x32xf32, #tpu.memory_space<vmem>>, %arg7: memref<2x1x32xf32, #tpu.memory_space<vmem>>, %arg8: memref<2x1x32xf32, #tpu.memory_space<vmem>>, %arg9: memref<2x32x64xbf16, #tpu.memory_space<vmem>>, %arg10: memref<2x1x64xf32, #tpu.memory_space<vmem>>, %arg11: memref<2x64x32xbf16, #tpu.memory_space<vmem>>, %arg12: memref<2x1x32xf32, #tpu.memory_space<vmem>>, %arg13: memref<2x1x32xf32, #tpu.memory_space<vmem>>, %arg14: memref<2x1x32xf32, #tpu.memory_space<vmem>>, %arg15: memref<32x4xbf16, #tpu.memory_space<vmem>>, %arg16: memref<1x4xf32, #tpu.memory_space<vmem>>, %arg17: memref<1x1x4xf32, #tpu.memory_space<vmem>>) attributes {dimension_semantics = [#tpu.dimension_semantics<parallel>], iteration_bounds = array<i64: 2>, scalar_prefetch = 0 : i64, scratch_operands = 0 : i64, tpu.core_type = #tpu.core_type<tc>, window_params = [{transform_indices = @transform_0, window_bounds = array<i64: 1, 3, 32>}, {pipeline_mode = #tpu.pipeline_mode<synchronous>, transform_indices = @transform_1, window_bounds = array<i64: 3, 32>}, {pipeline_mode = #tpu.pipeline_mode<synchronous>, transform_indices = @transform_2, window_bounds = array<i64: 2, 32, 96>}, {pipeline_mode = #tpu.pipeline_mode<synchronous>, transform_indices = @transform_3, window_bounds = array<i64: 2, 1, 96>}, {pipeline_mode = #tpu.pipeline_mode<synchronous>, transform_indices = @transform_4, window_bounds = array<i64: 2, 4, 8, 32>}, {pipeline_mode = #tpu.pipeline_mode<synchronous>, transform_indices = @transform_5, window_bounds = array<i64: 2, 1, 32>}, {pipeline_mode = #tpu.pipeline_mode<synchronous>, transform_indices = @transform_6, window_bounds = array<i64: 2, 1, 32>}, {pipeline_mode = #tpu.pipeline_mode<synchronous>, transform_indices = @transform_7, window_bounds = array<i64: 2, 1, 32>}, {pipeline_mode = #tpu.pipeline_mode<synchronous>, transform_indices = @transform_8, window_bounds = array<i64: 2, 32, 64>}, {pipeline_mode = #tpu.pipeline_mode<synchronous>, transform_indices = @transform_9, window_bounds = array<i64: 2, 1, 64>}, {pipeline_mode = #tpu.pipeline_mode<synchronous>, transform_indices = @transform_10, window_bounds = array<i64: 2, 64, 32>}, {pipeline_mode = #tpu.pipeline_mode<synchronous>, transform_indices = @transform_11, window_bounds = array<i64: 2, 1, 32>}, {pipeline_mode = #tpu.pipeline_mode<synchronous>, transform_indices = @transform_12, window_bounds = array<i64: 2, 1, 32>}, {pipeline_mode = #tpu.pipeline_mode<synchronous>, transform_indices = @transform_13, window_bounds = array<i64: 2, 1, 32>}, {pipeline_mode = #tpu.pipeline_mode<synchronous>, transform_indices = @transform_14, window_bounds = array<i64: 32, 4>}, {pipeline_mode = #tpu.pipeline_mode<synchronous>, transform_indices = @transform_15, window_bounds = array<i64: 1, 4>}, {transform_indices = @transform_16, window_bounds = array<i64: 1, 1, 4>}]} {
    %c0 = arith.constant 0 : index
    %c0_0 = arith.constant 0 : index
    %c0_1 = arith.constant 0 : index
    %0 = vector.load %arg1[%c0, %c0_0, %c0_1] : memref<1x3x32xf32, #tpu.memory_space<vmem>>, vector<1x3x32xf32>
    %1 = vector.shape_cast %0 : vector<1x3x32xf32> to vector<3x32xf32>
    %c0_2 = arith.constant 0 : index
    %c0_3 = arith.constant 0 : index
    %2 = vector.load %arg2[%c0_2, %c0_3] : memref<3x32xf32, #tpu.memory_space<vmem>>, vector<3x32xf32>
    %3 = arith.addf %1, %2 : vector<3x32xf32>
    %c0_4 = arith.constant 0 : index
    %c0_5 = arith.constant 0 : index
    %c0_6 = arith.constant 0 : index
    %4 = vector.load %arg3[%c0_4, %c0_5, %c0_6] : memref<2x32x96xbf16, #tpu.memory_space<vmem>>, vector<1x32x96xbf16>
    %5 = vector.shape_cast %4 : vector<1x32x96xbf16> to vector<32x96xbf16>
    %c0_7 = arith.constant 0 : index
    %c0_8 = arith.constant 0 : index
    %c0_9 = arith.constant 0 : index
    %6 = vector.load %arg4[%c0_7, %c0_8, %c0_9] : memref<2x1x96xf32, #tpu.memory_space<vmem>>, vector<1x1x96xf32>
    %7 = vector.shape_cast %6 : vector<1x1x96xf32> to vector<1x96xf32>
    %c0_10 = arith.constant 0 : index
    %c0_11 = arith.constant 0 : index
    %c0_12 = arith.constant 0 : index
    %c0_13 = arith.constant 0 : index
    %8 = vector.load %arg5[%c0_10, %c0_11, %c0_12, %c0_13] : memref<2x4x8x32xbf16, #tpu.memory_space<vmem>>, vector<1x4x8x32xbf16>
    %9 = vector.shape_cast %8 : vector<1x4x8x32xbf16> to vector<4x8x32xbf16>
    %c0_14 = arith.constant 0 : index
    %c0_15 = arith.constant 0 : index
    %c0_16 = arith.constant 0 : index
    %10 = vector.load %arg6[%c0_14, %c0_15, %c0_16] : memref<2x1x32xf32, #tpu.memory_space<vmem>>, vector<1x1x32xf32>
    %11 = vector.shape_cast %10 : vector<1x1x32xf32> to vector<1x32xf32>
    %c0_17 = arith.constant 0 : index
    %c0_18 = arith.constant 0 : index
    %c0_19 = arith.constant 0 : index
    %12 = vector.load %arg7[%c0_17, %c0_18, %c0_19] : memref<2x1x32xf32, #tpu.memory_space<vmem>>, vector<1x1x32xf32>
    %13 = vector.shape_cast %12 : vector<1x1x32xf32> to vector<1x32xf32>
    %c0_20 = arith.constant 0 : index
    %c0_21 = arith.constant 0 : index
    %c0_22 = arith.constant 0 : index
    %14 = vector.load %arg8[%c0_20, %c0_21, %c0_22] : memref<2x1x32xf32, #tpu.memory_space<vmem>>, vector<1x1x32xf32>
    %15 = vector.shape_cast %14 : vector<1x1x32xf32> to vector<1x32xf32>
    %c0_23 = arith.constant 0 : index
    %c0_24 = arith.constant 0 : index
    %c0_25 = arith.constant 0 : index
    %16 = vector.load %arg9[%c0_23, %c0_24, %c0_25] : memref<2x32x64xbf16, #tpu.memory_space<vmem>>, vector<1x32x64xbf16>
    %17 = vector.shape_cast %16 : vector<1x32x64xbf16> to vector<32x64xbf16>
    %c0_26 = arith.constant 0 : index
    %c0_27 = arith.constant 0 : index
    %c0_28 = arith.constant 0 : index
    %18 = vector.load %arg10[%c0_26, %c0_27, %c0_28] : memref<2x1x64xf32, #tpu.memory_space<vmem>>, vector<1x1x64xf32>
    %19 = vector.shape_cast %18 : vector<1x1x64xf32> to vector<1x64xf32>
    %c0_29 = arith.constant 0 : index
    %c0_30 = arith.constant 0 : index
    %c0_31 = arith.constant 0 : index
    %20 = vector.load %arg11[%c0_29, %c0_30, %c0_31] : memref<2x64x32xbf16, #tpu.memory_space<vmem>>, vector<1x64x32xbf16>
    %21 = vector.shape_cast %20 : vector<1x64x32xbf16> to vector<64x32xbf16>
    %c0_32 = arith.constant 0 : index
    %c0_33 = arith.constant 0 : index
    %c0_34 = arith.constant 0 : index
    %22 = vector.load %arg12[%c0_32, %c0_33, %c0_34] : memref<2x1x32xf32, #tpu.memory_space<vmem>>, vector<1x1x32xf32>
    %23 = vector.shape_cast %22 : vector<1x1x32xf32> to vector<1x32xf32>
    %c0_35 = arith.constant 0 : index
    %c0_36 = arith.constant 0 : index
    %c0_37 = arith.constant 0 : index
    %24 = vector.load %arg13[%c0_35, %c0_36, %c0_37] : memref<2x1x32xf32, #tpu.memory_space<vmem>>, vector<1x1x32xf32>
    %25 = vector.shape_cast %24 : vector<1x1x32xf32> to vector<1x32xf32>
    %c0_38 = arith.constant 0 : index
    %c0_39 = arith.constant 0 : index
    %c0_40 = arith.constant 0 : index
    %26 = vector.load %arg14[%c0_38, %c0_39, %c0_40] : memref<2x1x32xf32, #tpu.memory_space<vmem>>, vector<1x1x32xf32>
    %27 = vector.shape_cast %26 : vector<1x1x32xf32> to vector<1x32xf32>
    %28 = arith.truncf %3 : vector<3x32xf32> to vector<3x32xbf16>
    %cst = arith.constant dense<0.000000e+00> : vector<3x96xf32>
    %29 = tpu.matmul %28, %5, %cst {dimension_numbers = #tpu.dot_dimension_numbers<[1], [0], [0], [1], [0, 0, 1, 1], [], []>} : vector<3x32xbf16>, vector<32x96xbf16>, vector<3x96xf32> -> vector<3x96xf32>
    %30 = vector.broadcast %7 : vector<1x96xf32> to vector<3x96xf32>
    %31 = arith.addf %29, %30 : vector<3x96xf32>
    %32 = vector.extract_strided_slice %31 {offsets = [0, 0], sizes = [3, 8], strides = [1, 1]} : vector<3x96xf32> to vector<3x8xf32>
    %33 = vector.shape_cast %32 : vector<3x8xf32> to vector<1x3x8xf32>
    %34 = vector.extract_strided_slice %31 {offsets = [0, 32], sizes = [3, 8], strides = [1, 1]} : vector<3x96xf32> to vector<3x8xf32>
    %35 = vector.shape_cast %34 : vector<3x8xf32> to vector<1x3x8xf32>
    %36 = vector.extract_strided_slice %31 {offsets = [0, 64], sizes = [3, 8], strides = [1, 1]} : vector<3x96xf32> to vector<3x8xf32>
    %37 = vector.shape_cast %36 : vector<3x8xf32> to vector<1x3x8xf32>
    "tpu.trace_start"() <{level = 10 : i32, message = "bqd,bkd->bqk"}> : () -> ()
    %cst_41 = arith.constant dense<0.000000e+00> : vector<1x3x3xf32>
    %38 = tpu.matmul %33, %35, %cst_41 {dimension_numbers = #tpu.dot_dimension_numbers<[2], [2], [1], [1], [0, 0, 0, 1, 1, 1], [0], [0]>} : vector<1x3x8xf32>, vector<1x3x8xf32>, vector<1x3x3xf32> -> vector<1x3x3xf32>
    "tpu.trace_stop"() : () -> ()
    %cst_42 = arith.constant 0.353553385 : f32
    %39 = vector.broadcast %cst_42 : f32 to vector<1x3x3xf32>
    %40 = arith.mulf %38, %39 : vector<1x3x3xf32>
    %cst_43 = arith.constant dense<0xFF800000> : vector<1x3xf32>
    %41 = vector.multi_reduction <maximumf>, %40, %cst_43 [2] : vector<1x3x3xf32> to vector<1x3xf32>
    %42 = vector.shape_cast %41 : vector<1x3xf32> to vector<1x3x1xf32>
    %43 = vector.broadcast %42 : vector<1x3x1xf32> to vector<1x3x3xf32>
    %44 = arith.subf %40, %43 : vector<1x3x3xf32>
    %45 = math.exp %44 : vector<1x3x3xf32>
    %cst_44 = arith.constant dense<0.000000e+00> : vector<1x3xf32>
    %46 = vector.multi_reduction <add>, %45, %cst_44 [2] : vector<1x3x3xf32> to vector<1x3xf32>
    %47 = vector.shape_cast %46 : vector<1x3xf32> to vector<1x3x1xf32>
    %48 = tpu.reciprocal %47 {approx = true} : vector<1x3x1xf32> -> vector<1x3x1xf32>
    %49 = vector.broadcast %48 : vector<1x3x1xf32> to vector<1x3x3xf32>
    %50 = arith.mulf %45, %49 : vector<1x3x3xf32>
    "tpu.trace_start"() <{level = 10 : i32, message = "bqk,bkd->bqd"}> : () -> ()
    %cst_45 = arith.constant dense<0.000000e+00> : vector<1x3x8xf32>
    %51 = tpu.matmul %50, %37, %cst_45 {dimension_numbers = #tpu.dot_dimension_numbers<[2], [1], [1], [2], [0, 0, 0, 1, 1, 2], [0], [0]>} : vector<1x3x3xf32>, vector<1x3x8xf32>, vector<1x3x8xf32> -> vector<1x3x8xf32>
    "tpu.trace_stop"() : () -> ()
    %52 = vector.shape_cast %51 : vector<1x3x8xf32> to vector<3x8xf32>
    %53 = vector.extract_strided_slice %9 {offsets = [0, 0, 0], sizes = [1, 8, 32], strides = [1, 1, 1]} : vector<4x8x32xbf16> to vector<1x8x32xbf16>
    %54 = vector.shape_cast %53 : vector<1x8x32xbf16> to vector<8x32xbf16>
    %55 = arith.truncf %52 : vector<3x8xf32> to vector<3x8xbf16>
    %cst_46 = arith.constant dense<0.000000e+00> : vector<3x32xf32>
    %56 = tpu.matmul %55, %54, %cst_46 {dimension_numbers = #tpu.dot_dimension_numbers<[1], [0], [0], [1], [0, 0, 1, 1], [], []>} : vector<3x8xbf16>, vector<8x32xbf16>, vector<3x32xf32> -> vector<3x32xf32>
    %57 = vector.broadcast %11 : vector<1x32xf32> to vector<3x32xf32>
    %58 = arith.addf %57, %56 : vector<3x32xf32>
    %59 = vector.extract_strided_slice %31 {offsets = [0, 8], sizes = [3, 8], strides = [1, 1]} : vector<3x96xf32> to vector<3x8xf32>
    %60 = vector.shape_cast %59 : vector<3x8xf32> to vector<1x3x8xf32>
    %61 = vector.extract_strided_slice %31 {offsets = [0, 40], sizes = [3, 8], strides = [1, 1]} : vector<3x96xf32> to vector<3x8xf32>
    %62 = vector.shape_cast %61 : vector<3x8xf32> to vector<1x3x8xf32>
    %63 = vector.extract_strided_slice %31 {offsets = [0, 72], sizes = [3, 8], strides = [1, 1]} : vector<3x96xf32> to vector<3x8xf32>
    %64 = vector.shape_cast %63 : vector<3x8xf32> to vector<1x3x8xf32>
    "tpu.trace_start"() <{level = 10 : i32, message = "bqd,bkd->bqk"}> : () -> ()
    %cst_47 = arith.constant dense<0.000000e+00> : vector<1x3x3xf32>
    %65 = tpu.matmul %60, %62, %cst_47 {dimension_numbers = #tpu.dot_dimension_numbers<[2], [2], [1], [1], [0, 0, 0, 1, 1, 1], [0], [0]>} : vector<1x3x8xf32>, vector<1x3x8xf32>, vector<1x3x3xf32> -> vector<1x3x3xf32>
    "tpu.trace_stop"() : () -> ()
    %cst_48 = arith.constant 0.353553385 : f32
    %66 = vector.broadcast %cst_48 : f32 to vector<1x3x3xf32>
    %67 = arith.mulf %65, %66 : vector<1x3x3xf32>
    %cst_49 = arith.constant dense<0xFF800000> : vector<1x3xf32>
    %68 = vector.multi_reduction <maximumf>, %67, %cst_49 [2] : vector<1x3x3xf32> to vector<1x3xf32>
    %69 = vector.shape_cast %68 : vector<1x3xf32> to vector<1x3x1xf32>
    %70 = vector.broadcast %69 : vector<1x3x1xf32> to vector<1x3x3xf32>
    %71 = arith.subf %67, %70 : vector<1x3x3xf32>
    %72 = math.exp %71 : vector<1x3x3xf32>
    %cst_50 = arith.constant dense<0.000000e+00> : vector<1x3xf32>
    %73 = vector.multi_reduction <add>, %72, %cst_50 [2] : vector<1x3x3xf32> to vector<1x3xf32>
    %74 = vector.shape_cast %73 : vector<1x3xf32> to vector<1x3x1xf32>
    %75 = tpu.reciprocal %74 {approx = true} : vector<1x3x1xf32> -> vector<1x3x1xf32>
    %76 = vector.broadcast %75 : vector<1x3x1xf32> to vector<1x3x3xf32>
    %77 = arith.mulf %72, %76 : vector<1x3x3xf32>
    "tpu.trace_start"() <{level = 10 : i32, message = "bqk,bkd->bqd"}> : () -> ()
    %cst_51 = arith.constant dense<0.000000e+00> : vector<1x3x8xf32>
    %78 = tpu.matmul %77, %64, %cst_51 {dimension_numbers = #tpu.dot_dimension_numbers<[2], [1], [1], [2], [0, 0, 0, 1, 1, 2], [0], [0]>} : vector<1x3x3xf32>, vector<1x3x8xf32>, vector<1x3x8xf32> -> vector<1x3x8xf32>
    "tpu.trace_stop"() : () -> ()
    %79 = vector.shape_cast %78 : vector<1x3x8xf32> to vector<3x8xf32>
    %80 = vector.extract_strided_slice %9 {offsets = [1, 0, 0], sizes = [1, 8, 32], strides = [1, 1, 1]} : vector<4x8x32xbf16> to vector<1x8x32xbf16>
    %81 = vector.shape_cast %80 : vector<1x8x32xbf16> to vector<8x32xbf16>
    %82 = arith.truncf %79 : vector<3x8xf32> to vector<3x8xbf16>
    %cst_52 = arith.constant dense<0.000000e+00> : vector<3x32xf32>
    %83 = tpu.matmul %82, %81, %cst_52 {dimension_numbers = #tpu.dot_dimension_numbers<[1], [0], [0], [1], [0, 0, 1, 1], [], []>} : vector<3x8xbf16>, vector<8x32xbf16>, vector<3x32xf32> -> vector<3x32xf32>
    %84 = arith.addf %58, %83 : vector<3x32xf32>
    %85 = vector.extract_strided_slice %31 {offsets = [0, 16], sizes = [3, 8], strides = [1, 1]} : vector<3x96xf32> to vector<3x8xf32>
    %86 = vector.shape_cast %85 : vector<3x8xf32> to vector<1x3x8xf32>
    %87 = vector.extract_strided_slice %31 {offsets = [0, 48], sizes = [3, 8], strides = [1, 1]} : vector<3x96xf32> to vector<3x8xf32>
    %88 = vector.shape_cast %87 : vector<3x8xf32> to vector<1x3x8xf32>
    %89 = vector.extract_strided_slice %31 {offsets = [0, 80], sizes = [3, 8], strides = [1, 1]} : vector<3x96xf32> to vector<3x8xf32>
    %90 = vector.shape_cast %89 : vector<3x8xf32> to vector<1x3x8xf32>
    "tpu.trace_start"() <{level = 10 : i32, message = "bqd,bkd->bqk"}> : () -> ()
    %cst_53 = arith.constant dense<0.000000e+00> : vector<1x3x3xf32>
    %91 = tpu.matmul %86, %88, %cst_53 {dimension_numbers = #tpu.dot_dimension_numbers<[2], [2], [1], [1], [0, 0, 0, 1, 1, 1], [0], [0]>} : vector<1x3x8xf32>, vector<1x3x8xf32>, vector<1x3x3xf32> -> vector<1x3x3xf32>
    "tpu.trace_stop"() : () -> ()
    %cst_54 = arith.constant 0.353553385 : f32
    %92 = vector.broadcast %cst_54 : f32 to vector<1x3x3xf32>
    %93 = arith.mulf %91, %92 : vector<1x3x3xf32>
    %cst_55 = arith.constant dense<0xFF800000> : vector<1x3xf32>
    %94 = vector.multi_reduction <maximumf>, %93, %cst_55 [2] : vector<1x3x3xf32> to vector<1x3xf32>
    %95 = vector.shape_cast %94 : vector<1x3xf32> to vector<1x3x1xf32>
    %96 = vector.broadcast %95 : vector<1x3x1xf32> to vector<1x3x3xf32>
    %97 = arith.subf %93, %96 : vector<1x3x3xf32>
    %98 = math.exp %97 : vector<1x3x3xf32>
    %cst_56 = arith.constant dense<0.000000e+00> : vector<1x3xf32>
    %99 = vector.multi_reduction <add>, %98, %cst_56 [2] : vector<1x3x3xf32> to vector<1x3xf32>
    %100 = vector.shape_cast %99 : vector<1x3xf32> to vector<1x3x1xf32>
    %101 = tpu.reciprocal %100 {approx = true} : vector<1x3x1xf32> -> vector<1x3x1xf32>
    %102 = vector.broadcast %101 : vector<1x3x1xf32> to vector<1x3x3xf32>
    %103 = arith.mulf %98, %102 : vector<1x3x3xf32>
    "tpu.trace_start"() <{level = 10 : i32, message = "bqk,bkd->bqd"}> : () -> ()
    %cst_57 = arith.constant dense<0.000000e+00> : vector<1x3x8xf32>
    %104 = tpu.matmul %103, %90, %cst_57 {dimension_numbers = #tpu.dot_dimension_numbers<[2], [1], [1], [2], [0, 0, 0, 1, 1, 2], [0], [0]>} : vector<1x3x3xf32>, vector<1x3x8xf32>, vector<1x3x8xf32> -> vector<1x3x8xf32>
    "tpu.trace_stop"() : () -> ()
    %105 = vector.shape_cast %104 : vector<1x3x8xf32> to vector<3x8xf32>
    %106 = vector.extract_strided_slice %9 {offsets = [2, 0, 0], sizes = [1, 8, 32], strides = [1, 1, 1]} : vector<4x8x32xbf16> to vector<1x8x32xbf16>
    %107 = vector.shape_cast %106 : vector<1x8x32xbf16> to vector<8x32xbf16>
    %108 = arith.truncf %105 : vector<3x8xf32> to vector<3x8xbf16>
    %cst_58 = arith.constant dense<0.000000e+00> : vector<3x32xf32>
    %109 = tpu.matmul %108, %107, %cst_58 {dimension_numbers = #tpu.dot_dimension_numbers<[1], [0], [0], [1], [0, 0, 1, 1], [], []>} : vector<3x8xbf16>, vector<8x32xbf16>, vector<3x32xf32> -> vector<3x32xf32>
    %110 = arith.addf %84, %109 : vector<3x32xf32>
    %111 = vector.extract_strided_slice %31 {offsets = [0, 24], sizes = [3, 8], strides = [1, 1]} : vector<3x96xf32> to vector<3x8xf32>
    %112 = vector.shape_cast %111 : vector<3x8xf32> to vector<1x3x8xf32>
    %113 = vector.extract_strided_slice %31 {offsets = [0, 56], sizes = [3, 8], strides = [1, 1]} : vector<3x96xf32> to vector<3x8xf32>
    %114 = vector.shape_cast %113 : vector<3x8xf32> to vector<1x3x8xf32>
    %115 = vector.extract_strided_slice %31 {offsets = [0, 88], sizes = [3, 8], strides = [1, 1]} : vector<3x96xf32> to vector<3x8xf32>
    %116 = vector.shape_cast %115 : vector<3x8xf32> to vector<1x3x8xf32>
    "tpu.trace_start"() <{level = 10 : i32, message = "bqd,bkd->bqk"}> : () -> ()
    %cst_59 = arith.constant dense<0.000000e+00> : vector<1x3x3xf32>
    %117 = tpu.matmul %112, %114, %cst_59 {dimension_numbers = #tpu.dot_dimension_numbers<[2], [2], [1], [1], [0, 0, 0, 1, 1, 1], [0], [0]>} : vector<1x3x8xf32>, vector<1x3x8xf32>, vector<1x3x3xf32> -> vector<1x3x3xf32>
    "tpu.trace_stop"() : () -> ()
    %cst_60 = arith.constant 0.353553385 : f32
    %118 = vector.broadcast %cst_60 : f32 to vector<1x3x3xf32>
    %119 = arith.mulf %117, %118 : vector<1x3x3xf32>
    %cst_61 = arith.constant dense<0xFF800000> : vector<1x3xf32>
    %120 = vector.multi_reduction <maximumf>, %119, %cst_61 [2] : vector<1x3x3xf32> to vector<1x3xf32>
    %121 = vector.shape_cast %120 : vector<1x3xf32> to vector<1x3x1xf32>
    %122 = vector.broadcast %121 : vector<1x3x1xf32> to vector<1x3x3xf32>
    %123 = arith.subf %119, %122 : vector<1x3x3xf32>
    %124 = math.exp %123 : vector<1x3x3xf32>
    %cst_62 = arith.constant dense<0.000000e+00> : vector<1x3xf32>
    %125 = vector.multi_reduction <add>, %124, %cst_62 [2] : vector<1x3x3xf32> to vector<1x3xf32>
    %126 = vector.shape_cast %125 : vector<1x3xf32> to vector<1x3x1xf32>
    %127 = tpu.reciprocal %126 {approx = true} : vector<1x3x1xf32> -> vector<1x3x1xf32>
    %128 = vector.broadcast %127 : vector<1x3x1xf32> to vector<1x3x3xf32>
    %129 = arith.mulf %124, %128 : vector<1x3x3xf32>
    "tpu.trace_start"() <{level = 10 : i32, message = "bqk,bkd->bqd"}> : () -> ()
    %cst_63 = arith.constant dense<0.000000e+00> : vector<1x3x8xf32>
    %130 = tpu.matmul %129, %116, %cst_63 {dimension_numbers = #tpu.dot_dimension_numbers<[2], [1], [1], [2], [0, 0, 0, 1, 1, 2], [0], [0]>} : vector<1x3x3xf32>, vector<1x3x8xf32>, vector<1x3x8xf32> -> vector<1x3x8xf32>
    "tpu.trace_stop"() : () -> ()
    %131 = vector.shape_cast %130 : vector<1x3x8xf32> to vector<3x8xf32>
    %132 = vector.extract_strided_slice %9 {offsets = [3, 0, 0], sizes = [1, 8, 32], strides = [1, 1, 1]} : vector<4x8x32xbf16> to vector<1x8x32xbf16>
    %133 = vector.shape_cast %132 : vector<1x8x32xbf16> to vector<8x32xbf16>
    %134 = arith.truncf %131 : vector<3x8xf32> to vector<3x8xbf16>
    %cst_64 = arith.constant dense<0.000000e+00> : vector<3x32xf32>
    %135 = tpu.matmul %134, %133, %cst_64 {dimension_numbers = #tpu.dot_dimension_numbers<[1], [0], [0], [1], [0, 0, 1, 1], [], []>} : vector<3x8xbf16>, vector<8x32xbf16>, vector<3x32xf32> -> vector<3x32xf32>
    %136 = arith.addf %110, %135 : vector<3x32xf32>
    %137 = arith.addf %3, %136 : vector<3x32xf32>
    %cst_65 = arith.constant dense<0.000000e+00> : vector<3xf32>
    %138 = vector.multi_reduction <add>, %137, %cst_65 [1] : vector<3x32xf32> to vector<3xf32>
    %139 = vector.shape_cast %138 : vector<3xf32> to vector<3x1xf32>
    %cst_66 = arith.constant 3.200000e+01 : f32
    %140 = vector.broadcast %cst_66 : f32 to vector<3x1xf32>
    %141 = arith.divf %139, %140 : vector<3x1xf32>
    %142 = vector.broadcast %141 : vector<3x1xf32> to vector<3x32xf32>
    %143 = arith.subf %137, %142 : vector<3x32xf32>
    %144 = arith.mulf %143, %143 : vector<3x32xf32>
    %cst_67 = arith.constant dense<0.000000e+00> : vector<3xf32>
    %145 = vector.multi_reduction <add>, %144, %cst_67 [1] : vector<3x32xf32> to vector<3xf32>
    %146 = vector.shape_cast %145 : vector<3xf32> to vector<3x1xf32>
    %cst_68 = arith.constant 3.200000e+01 : f32
    %147 = vector.broadcast %cst_68 : f32 to vector<3x1xf32>
    %148 = arith.divf %146, %147 : vector<3x1xf32>
    %149 = vector.broadcast %141 : vector<3x1xf32> to vector<3x32xf32>
    %150 = arith.subf %137, %149 : vector<3x32xf32>
    %cst_69 = arith.constant 9.99999996E-13 : f32
    %151 = vector.broadcast %cst_69 : f32 to vector<3x1xf32>
    %152 = arith.addf %148, %151 : vector<3x1xf32>
    %153 = math.rsqrt %152 : vector<3x1xf32>
    %154 = vector.broadcast %153 : vector<3x1xf32> to vector<3x32xf32>
    %155 = arith.mulf %150, %154 : vector<3x32xf32>
    %156 = vector.broadcast %13 : vector<1x32xf32> to vector<3x32xf32>
    %157 = arith.mulf %155, %156 : vector<3x32xf32>
    %158 = vector.broadcast %15 : vector<1x32xf32> to vector<3x32xf32>
    %159 = arith.addf %157, %158 : vector<3x32xf32>
    %160 = arith.truncf %159 : vector<3x32xf32> to vector<3x32xbf16>
    %cst_70 = arith.constant dense<0.000000e+00> : vector<3x64xf32>
    %161 = tpu.matmul %160, %17, %cst_70 {dimension_numbers = #tpu.dot_dimension_numbers<[1], [0], [0], [1], [0, 0, 1, 1], [], []>} : vector<3x32xbf16>, vector<32x64xbf16>, vector<3x64xf32> -> vector<3x64xf32>
    %162 = vector.broadcast %19 : vector<1x64xf32> to vector<3x64xf32>
    %163 = arith.addf %161, %162 : vector<3x64xf32>
    %cst_71 = arith.constant 5.000000e-01 : f32
    %164 = vector.broadcast %cst_71 : f32 to vector<3x64xf32>
    %165 = arith.mulf %164, %163 : vector<3x64xf32>
    %cst_72 = arith.constant 4.471500e-02 : f32
    %166 = vector.broadcast %cst_72 : f32 to vector<3x64xf32>
    %167 = arith.mulf %166, %163 : vector<3x64xf32>
    %168 = arith.mulf %167, %163 : vector<3x64xf32>
    %169 = arith.mulf %168, %163 : vector<3x64xf32>
    %170 = arith.addf %163, %169 : vector<3x64xf32>
    %cst_73 = arith.constant 0.797884583 : f32
    %171 = vector.broadcast %cst_73 : f32 to vector<3x64xf32>
    %172 = arith.mulf %171, %170 : vector<3x64xf32>
    %173 = math.tanh %172 : vector<3x64xf32>
    %cst_74 = arith.constant 1.000000e+00 : f32
    %174 = vector.broadcast %cst_74 : f32 to vector<3x64xf32>
    %175 = arith.addf %174, %173 : vector<3x64xf32>
    %176 = arith.mulf %165, %175 : vector<3x64xf32>
    %177 = arith.truncf %176 : vector<3x64xf32> to vector<3x64xbf16>
    %cst_75 = arith.constant dense<0.000000e+00> : vector<3x32xf32>
    %178 = tpu.matmul %177, %21, %cst_75 {dimension_numbers = #tpu.dot_dimension_numbers<[1], [0], [0], [1], [0, 0, 1, 1], [], []>} : vector<3x64xbf16>, vector<64x32xbf16>, vector<3x32xf32> -> vector<3x32xf32>
    %179 = vector.broadcast %23 : vector<1x32xf32> to vector<3x32xf32>
    %180 = arith.addf %178, %179 : vector<3x32xf32>
    %181 = arith.addf %159, %180 : vector<3x32xf32>
    %cst_76 = arith.constant dense<0.000000e+00> : vector<3xf32>
    %182 = vector.multi_reduction <add>, %181, %cst_76 [1] : vector<3x32xf32> to vector<3xf32>
    %183 = vector.shape_cast %182 : vector<3xf32> to vector<3x1xf32>
    %cst_77 = arith.constant 3.200000e+01 : f32
    %184 = vector.broadcast %cst_77 : f32 to vector<3x1xf32>
    %185 = arith.divf %183, %184 : vector<3x1xf32>
    %186 = vector.broadcast %185 : vector<3x1xf32> to vector<3x32xf32>
    %187 = arith.subf %181, %186 : vector<3x32xf32>
    %188 = arith.mulf %187, %187 : vector<3x32xf32>
    %cst_78 = arith.constant dense<0.000000e+00> : vector<3xf32>
    %189 = vector.multi_reduction <add>, %188, %cst_78 [1] : vector<3x32xf32> to vector<3xf32>
    %190 = vector.shape_cast %189 : vector<3xf32> to vector<3x1xf32>
    %cst_79 = arith.constant 3.200000e+01 : f32
    %191 = vector.broadcast %cst_79 : f32 to vector<3x1xf32>
    %192 = arith.divf %190, %191 : vector<3x1xf32>
    %193 = vector.broadcast %185 : vector<3x1xf32> to vector<3x32xf32>
    %194 = arith.subf %181, %193 : vector<3x32xf32>
    %cst_80 = arith.constant 9.99999996E-13 : f32
    %195 = vector.broadcast %cst_80 : f32 to vector<3x1xf32>
    %196 = arith.addf %192, %195 : vector<3x1xf32>
    %197 = math.rsqrt %196 : vector<3x1xf32>
    %198 = vector.broadcast %197 : vector<3x1xf32> to vector<3x32xf32>
    %199 = arith.mulf %194, %198 : vector<3x32xf32>
    %200 = vector.broadcast %25 : vector<1x32xf32> to vector<3x32xf32>
    %201 = arith.mulf %199, %200 : vector<3x32xf32>
    %202 = vector.broadcast %27 : vector<1x32xf32> to vector<3x32xf32>
    %203 = arith.addf %201, %202 : vector<3x32xf32>
    %c1 = arith.constant 1 : index
    %c0_81 = arith.constant 0 : index
    %c0_82 = arith.constant 0 : index
    %204 = vector.load %arg3[%c1, %c0_81, %c0_82] : memref<2x32x96xbf16, #tpu.memory_space<vmem>>, vector<1x32x96xbf16>
    %205 = vector.shape_cast %204 : vector<1x32x96xbf16> to vector<32x96xbf16>
    %c1_83 = arith.constant 1 : index
    %c0_84 = arith.constant 0 : index
    %c0_85 = arith.constant 0 : index
    %206 = vector.load %arg4[%c1_83, %c0_84, %c0_85] : memref<2x1x96xf32, #tpu.memory_space<vmem>>, vector<1x1x96xf32>
    %207 = vector.shape_cast %206 : vector<1x1x96xf32> to vector<1x96xf32>
    %c1_86 = arith.constant 1 : index
    %c0_87 = arith.constant 0 : index
    %c0_88 = arith.constant 0 : index
    %c0_89 = arith.constant 0 : index
    %208 = vector.load %arg5[%c1_86, %c0_87, %c0_88, %c0_89] : memref<2x4x8x32xbf16, #tpu.memory_space<vmem>>, vector<1x4x8x32xbf16>
    %209 = vector.shape_cast %208 : vector<1x4x8x32xbf16> to vector<4x8x32xbf16>
    %c1_90 = arith.constant 1 : index
    %c0_91 = arith.constant 0 : index
    %c0_92 = arith.constant 0 : index
    %210 = vector.load %arg6[%c1_90, %c0_91, %c0_92] : memref<2x1x32xf32, #tpu.memory_space<vmem>>, vector<1x1x32xf32>
    %211 = vector.shape_cast %210 : vector<1x1x32xf32> to vector<1x32xf32>
    %c1_93 = arith.constant 1 : index
    %c0_94 = arith.constant 0 : index
    %c0_95 = arith.constant 0 : index
    %212 = vector.load %arg7[%c1_93, %c0_94, %c0_95] : memref<2x1x32xf32, #tpu.memory_space<vmem>>, vector<1x1x32xf32>
    %213 = vector.shape_cast %212 : vector<1x1x32xf32> to vector<1x32xf32>
    %c1_96 = arith.constant 1 : index
    %c0_97 = arith.constant 0 : index
    %c0_98 = arith.constant 0 : index
    %214 = vector.load %arg8[%c1_96, %c0_97, %c0_98] : memref<2x1x32xf32, #tpu.memory_space<vmem>>, vector<1x1x32xf32>
    %215 = vector.shape_cast %214 : vector<1x1x32xf32> to vector<1x32xf32>
    %c1_99 = arith.constant 1 : index
    %c0_100 = arith.constant 0 : index
    %c0_101 = arith.constant 0 : index
    %216 = vector.load %arg9[%c1_99, %c0_100, %c0_101] : memref<2x32x64xbf16, #tpu.memory_space<vmem>>, vector<1x32x64xbf16>
    %217 = vector.shape_cast %216 : vector<1x32x64xbf16> to vector<32x64xbf16>
    %c1_102 = arith.constant 1 : index
    %c0_103 = arith.constant 0 : index
    %c0_104 = arith.constant 0 : index
    %218 = vector.load %arg10[%c1_102, %c0_103, %c0_104] : memref<2x1x64xf32, #tpu.memory_space<vmem>>, vector<1x1x64xf32>
    %219 = vector.shape_cast %218 : vector<1x1x64xf32> to vector<1x64xf32>
    %c1_105 = arith.constant 1 : index
    %c0_106 = arith.constant 0 : index
    %c0_107 = arith.constant 0 : index
    %220 = vector.load %arg11[%c1_105, %c0_106, %c0_107] : memref<2x64x32xbf16, #tpu.memory_space<vmem>>, vector<1x64x32xbf16>
    %221 = vector.shape_cast %220 : vector<1x64x32xbf16> to vector<64x32xbf16>
    %c1_108 = arith.constant 1 : index
    %c0_109 = arith.constant 0 : index
    %c0_110 = arith.constant 0 : index
    %222 = vector.load %arg12[%c1_108, %c0_109, %c0_110] : memref<2x1x32xf32, #tpu.memory_space<vmem>>, vector<1x1x32xf32>
    %223 = vector.shape_cast %222 : vector<1x1x32xf32> to vector<1x32xf32>
    %c1_111 = arith.constant 1 : index
    %c0_112 = arith.constant 0 : index
    %c0_113 = arith.constant 0 : index
    %224 = vector.load %arg13[%c1_111, %c0_112, %c0_113] : memref<2x1x32xf32, #tpu.memory_space<vmem>>, vector<1x1x32xf32>
    %225 = vector.shape_cast %224 : vector<1x1x32xf32> to vector<1x32xf32>
    %c1_114 = arith.constant 1 : index
    %c0_115 = arith.constant 0 : index
    %c0_116 = arith.constant 0 : index
    %226 = vector.load %arg14[%c1_114, %c0_115, %c0_116] : memref<2x1x32xf32, #tpu.memory_space<vmem>>, vector<1x1x32xf32>
    %227 = vector.shape_cast %226 : vector<1x1x32xf32> to vector<1x32xf32>
    %228 = arith.truncf %203 : vector<3x32xf32> to vector<3x32xbf16>
    %cst_117 = arith.constant dense<0.000000e+00> : vector<3x96xf32>
    %229 = tpu.matmul %228, %205, %cst_117 {dimension_numbers = #tpu.dot_dimension_numbers<[1], [0], [0], [1], [0, 0, 1, 1], [], []>} : vector<3x32xbf16>, vector<32x96xbf16>, vector<3x96xf32> -> vector<3x96xf32>
    %230 = vector.broadcast %207 : vector<1x96xf32> to vector<3x96xf32>
    %231 = arith.addf %229, %230 : vector<3x96xf32>
    %232 = vector.extract_strided_slice %231 {offsets = [0, 0], sizes = [3, 8], strides = [1, 1]} : vector<3x96xf32> to vector<3x8xf32>
    %233 = vector.shape_cast %232 : vector<3x8xf32> to vector<1x3x8xf32>
    %234 = vector.extract_strided_slice %231 {offsets = [0, 32], sizes = [3, 8], strides = [1, 1]} : vector<3x96xf32> to vector<3x8xf32>
    %235 = vector.shape_cast %234 : vector<3x8xf32> to vector<1x3x8xf32>
    %236 = vector.extract_strided_slice %231 {offsets = [0, 64], sizes = [3, 8], strides = [1, 1]} : vector<3x96xf32> to vector<3x8xf32>
    %237 = vector.shape_cast %236 : vector<3x8xf32> to vector<1x3x8xf32>
    "tpu.trace_start"() <{level = 10 : i32, message = "bqd,bkd->bqk"}> : () -> ()
    %cst_118 = arith.constant dense<0.000000e+00> : vector<1x3x3xf32>
    %238 = tpu.matmul %233, %235, %cst_118 {dimension_numbers = #tpu.dot_dimension_numbers<[2], [2], [1], [1], [0, 0, 0, 1, 1, 1], [0], [0]>} : vector<1x3x8xf32>, vector<1x3x8xf32>, vector<1x3x3xf32> -> vector<1x3x3xf32>
    "tpu.trace_stop"() : () -> ()
    %cst_119 = arith.constant 0.353553385 : f32
    %239 = vector.broadcast %cst_119 : f32 to vector<1x3x3xf32>
    %240 = arith.mulf %238, %239 : vector<1x3x3xf32>
    %cst_120 = arith.constant dense<0xFF800000> : vector<1x3xf32>
    %241 = vector.multi_reduction <maximumf>, %240, %cst_120 [2] : vector<1x3x3xf32> to vector<1x3xf32>
    %242 = vector.shape_cast %241 : vector<1x3xf32> to vector<1x3x1xf32>
    %243 = vector.broadcast %242 : vector<1x3x1xf32> to vector<1x3x3xf32>
    %244 = arith.subf %240, %243 : vector<1x3x3xf32>
    %245 = math.exp %244 : vector<1x3x3xf32>
    %cst_121 = arith.constant dense<0.000000e+00> : vector<1x3xf32>
    %246 = vector.multi_reduction <add>, %245, %cst_121 [2] : vector<1x3x3xf32> to vector<1x3xf32>
    %247 = vector.shape_cast %246 : vector<1x3xf32> to vector<1x3x1xf32>
    %248 = tpu.reciprocal %247 {approx = true} : vector<1x3x1xf32> -> vector<1x3x1xf32>
    %249 = vector.broadcast %248 : vector<1x3x1xf32> to vector<1x3x3xf32>
    %250 = arith.mulf %245, %249 : vector<1x3x3xf32>
    "tpu.trace_start"() <{level = 10 : i32, message = "bqk,bkd->bqd"}> : () -> ()
    %cst_122 = arith.constant dense<0.000000e+00> : vector<1x3x8xf32>
    %251 = tpu.matmul %250, %237, %cst_122 {dimension_numbers = #tpu.dot_dimension_numbers<[2], [1], [1], [2], [0, 0, 0, 1, 1, 2], [0], [0]>} : vector<1x3x3xf32>, vector<1x3x8xf32>, vector<1x3x8xf32> -> vector<1x3x8xf32>
    "tpu.trace_stop"() : () -> ()
    %252 = vector.shape_cast %251 : vector<1x3x8xf32> to vector<3x8xf32>
    %253 = vector.extract_strided_slice %209 {offsets = [0, 0, 0], sizes = [1, 8, 32], strides = [1, 1, 1]} : vector<4x8x32xbf16> to vector<1x8x32xbf16>
    %254 = vector.shape_cast %253 : vector<1x8x32xbf16> to vector<8x32xbf16>
    %255 = arith.truncf %252 : vector<3x8xf32> to vector<3x8xbf16>
    %cst_123 = arith.constant dense<0.000000e+00> : vector<3x32xf32>
    %256 = tpu.matmul %255, %254, %cst_123 {dimension_numbers = #tpu.dot_dimension_numbers<[1], [0], [0], [1], [0, 0, 1, 1], [], []>} : vector<3x8xbf16>, vector<8x32xbf16>, vector<3x32xf32> -> vector<3x32xf32>
    %257 = vector.broadcast %211 : vector<1x32xf32> to vector<3x32xf32>
    %258 = arith.addf %257, %256 : vector<3x32xf32>
    %259 = vector.extract_strided_slice %231 {offsets = [0, 8], sizes = [3, 8], strides = [1, 1]} : vector<3x96xf32> to vector<3x8xf32>
    %260 = vector.shape_cast %259 : vector<3x8xf32> to vector<1x3x8xf32>
    %261 = vector.extract_strided_slice %231 {offsets = [0, 40], sizes = [3, 8], strides = [1, 1]} : vector<3x96xf32> to vector<3x8xf32>
    %262 = vector.shape_cast %261 : vector<3x8xf32> to vector<1x3x8xf32>
    %263 = vector.extract_strided_slice %231 {offsets = [0, 72], sizes = [3, 8], strides = [1, 1]} : vector<3x96xf32> to vector<3x8xf32>
    %264 = vector.shape_cast %263 : vector<3x8xf32> to vector<1x3x8xf32>
    "tpu.trace_start"() <{level = 10 : i32, message = "bqd,bkd->bqk"}> : () -> ()
    %cst_124 = arith.constant dense<0.000000e+00> : vector<1x3x3xf32>
    %265 = tpu.matmul %260, %262, %cst_124 {dimension_numbers = #tpu.dot_dimension_numbers<[2], [2], [1], [1], [0, 0, 0, 1, 1, 1], [0], [0]>} : vector<1x3x8xf32>, vector<1x3x8xf32>, vector<1x3x3xf32> -> vector<1x3x3xf32>
    "tpu.trace_stop"() : () -> ()
    %cst_125 = arith.constant 0.353553385 : f32
    %266 = vector.broadcast %cst_125 : f32 to vector<1x3x3xf32>
    %267 = arith.mulf %265, %266 : vector<1x3x3xf32>
    %cst_126 = arith.constant dense<0xFF800000> : vector<1x3xf32>
    %268 = vector.multi_reduction <maximumf>, %267, %cst_126 [2] : vector<1x3x3xf32> to vector<1x3xf32>
    %269 = vector.shape_cast %268 : vector<1x3xf32> to vector<1x3x1xf32>
    %270 = vector.broadcast %269 : vector<1x3x1xf32> to vector<1x3x3xf32>
    %271 = arith.subf %267, %270 : vector<1x3x3xf32>
    %272 = math.exp %271 : vector<1x3x3xf32>
    %cst_127 = arith.constant dense<0.000000e+00> : vector<1x3xf32>
    %273 = vector.multi_reduction <add>, %272, %cst_127 [2] : vector<1x3x3xf32> to vector<1x3xf32>
    %274 = vector.shape_cast %273 : vector<1x3xf32> to vector<1x3x1xf32>
    %275 = tpu.reciprocal %274 {approx = true} : vector<1x3x1xf32> -> vector<1x3x1xf32>
    %276 = vector.broadcast %275 : vector<1x3x1xf32> to vector<1x3x3xf32>
    %277 = arith.mulf %272, %276 : vector<1x3x3xf32>
    "tpu.trace_start"() <{level = 10 : i32, message = "bqk,bkd->bqd"}> : () -> ()
    %cst_128 = arith.constant dense<0.000000e+00> : vector<1x3x8xf32>
    %278 = tpu.matmul %277, %264, %cst_128 {dimension_numbers = #tpu.dot_dimension_numbers<[2], [1], [1], [2], [0, 0, 0, 1, 1, 2], [0], [0]>} : vector<1x3x3xf32>, vector<1x3x8xf32>, vector<1x3x8xf32> -> vector<1x3x8xf32>
    "tpu.trace_stop"() : () -> ()
    %279 = vector.shape_cast %278 : vector<1x3x8xf32> to vector<3x8xf32>
    %280 = vector.extract_strided_slice %209 {offsets = [1, 0, 0], sizes = [1, 8, 32], strides = [1, 1, 1]} : vector<4x8x32xbf16> to vector<1x8x32xbf16>
    %281 = vector.shape_cast %280 : vector<1x8x32xbf16> to vector<8x32xbf16>
    %282 = arith.truncf %279 : vector<3x8xf32> to vector<3x8xbf16>
    %cst_129 = arith.constant dense<0.000000e+00> : vector<3x32xf32>
    %283 = tpu.matmul %282, %281, %cst_129 {dimension_numbers = #tpu.dot_dimension_numbers<[1], [0], [0], [1], [0, 0, 1, 1], [], []>} : vector<3x8xbf16>, vector<8x32xbf16>, vector<3x32xf32> -> vector<3x32xf32>
    %284 = arith.addf %258, %283 : vector<3x32xf32>
    %285 = vector.extract_strided_slice %231 {offsets = [0, 16], sizes = [3, 8], strides = [1, 1]} : vector<3x96xf32> to vector<3x8xf32>
    %286 = vector.shape_cast %285 : vector<3x8xf32> to vector<1x3x8xf32>
    %287 = vector.extract_strided_slice %231 {offsets = [0, 48], sizes = [3, 8], strides = [1, 1]} : vector<3x96xf32> to vector<3x8xf32>
    %288 = vector.shape_cast %287 : vector<3x8xf32> to vector<1x3x8xf32>
    %289 = vector.extract_strided_slice %231 {offsets = [0, 80], sizes = [3, 8], strides = [1, 1]} : vector<3x96xf32> to vector<3x8xf32>
    %290 = vector.shape_cast %289 : vector<3x8xf32> to vector<1x3x8xf32>
    "tpu.trace_start"() <{level = 10 : i32, message = "bqd,bkd->bqk"}> : () -> ()
    %cst_130 = arith.constant dense<0.000000e+00> : vector<1x3x3xf32>
    %291 = tpu.matmul %286, %288, %cst_130 {dimension_numbers = #tpu.dot_dimension_numbers<[2], [2], [1], [1], [0, 0, 0, 1, 1, 1], [0], [0]>} : vector<1x3x8xf32>, vector<1x3x8xf32>, vector<1x3x3xf32> -> vector<1x3x3xf32>
    "tpu.trace_stop"() : () -> ()
    %cst_131 = arith.constant 0.353553385 : f32
    %292 = vector.broadcast %cst_131 : f32 to vector<1x3x3xf32>
    %293 = arith.mulf %291, %292 : vector<1x3x3xf32>
    %cst_132 = arith.constant dense<0xFF800000> : vector<1x3xf32>
    %294 = vector.multi_reduction <maximumf>, %293, %cst_132 [2] : vector<1x3x3xf32> to vector<1x3xf32>
    %295 = vector.shape_cast %294 : vector<1x3xf32> to vector<1x3x1xf32>
    %296 = vector.broadcast %295 : vector<1x3x1xf32> to vector<1x3x3xf32>
    %297 = arith.subf %293, %296 : vector<1x3x3xf32>
    %298 = math.exp %297 : vector<1x3x3xf32>
    %cst_133 = arith.constant dense<0.000000e+00> : vector<1x3xf32>
    %299 = vector.multi_reduction <add>, %298, %cst_133 [2] : vector<1x3x3xf32> to vector<1x3xf32>
    %300 = vector.shape_cast %299 : vector<1x3xf32> to vector<1x3x1xf32>
    %301 = tpu.reciprocal %300 {approx = true} : vector<1x3x1xf32> -> vector<1x3x1xf32>
    %302 = vector.broadcast %301 : vector<1x3x1xf32> to vector<1x3x3xf32>
    %303 = arith.mulf %298, %302 : vector<1x3x3xf32>
    "tpu.trace_start"() <{level = 10 : i32, message = "bqk,bkd->bqd"}> : () -> ()
    %cst_134 = arith.constant dense<0.000000e+00> : vector<1x3x8xf32>
    %304 = tpu.matmul %303, %290, %cst_134 {dimension_numbers = #tpu.dot_dimension_numbers<[2], [1], [1], [2], [0, 0, 0, 1, 1, 2], [0], [0]>} : vector<1x3x3xf32>, vector<1x3x8xf32>, vector<1x3x8xf32> -> vector<1x3x8xf32>
    "tpu.trace_stop"() : () -> ()
    %305 = vector.shape_cast %304 : vector<1x3x8xf32> to vector<3x8xf32>
    %306 = vector.extract_strided_slice %209 {offsets = [2, 0, 0], sizes = [1, 8, 32], strides = [1, 1, 1]} : vector<4x8x32xbf16> to vector<1x8x32xbf16>
    %307 = vector.shape_cast %306 : vector<1x8x32xbf16> to vector<8x32xbf16>
    %308 = arith.truncf %305 : vector<3x8xf32> to vector<3x8xbf16>
    %cst_135 = arith.constant dense<0.000000e+00> : vector<3x32xf32>
    %309 = tpu.matmul %308, %307, %cst_135 {dimension_numbers = #tpu.dot_dimension_numbers<[1], [0], [0], [1], [0, 0, 1, 1], [], []>} : vector<3x8xbf16>, vector<8x32xbf16>, vector<3x32xf32> -> vector<3x32xf32>
    %310 = arith.addf %284, %309 : vector<3x32xf32>
    %311 = vector.extract_strided_slice %231 {offsets = [0, 24], sizes = [3, 8], strides = [1, 1]} : vector<3x96xf32> to vector<3x8xf32>
    %312 = vector.shape_cast %311 : vector<3x8xf32> to vector<1x3x8xf32>
    %313 = vector.extract_strided_slice %231 {offsets = [0, 56], sizes = [3, 8], strides = [1, 1]} : vector<3x96xf32> to vector<3x8xf32>
    %314 = vector.shape_cast %313 : vector<3x8xf32> to vector<1x3x8xf32>
    %315 = vector.extract_strided_slice %231 {offsets = [0, 88], sizes = [3, 8], strides = [1, 1]} : vector<3x96xf32> to vector<3x8xf32>
    %316 = vector.shape_cast %315 : vector<3x8xf32> to vector<1x3x8xf32>
    "tpu.trace_start"() <{level = 10 : i32, message = "bqd,bkd->bqk"}> : () -> ()
    %cst_136 = arith.constant dense<0.000000e+00> : vector<1x3x3xf32>
    %317 = tpu.matmul %312, %314, %cst_136 {dimension_numbers = #tpu.dot_dimension_numbers<[2], [2], [1], [1], [0, 0, 0, 1, 1, 1], [0], [0]>} : vector<1x3x8xf32>, vector<1x3x8xf32>, vector<1x3x3xf32> -> vector<1x3x3xf32>
    "tpu.trace_stop"() : () -> ()
    %cst_137 = arith.constant 0.353553385 : f32
    %318 = vector.broadcast %cst_137 : f32 to vector<1x3x3xf32>
    %319 = arith.mulf %317, %318 : vector<1x3x3xf32>
    %cst_138 = arith.constant dense<0xFF800000> : vector<1x3xf32>
    %320 = vector.multi_reduction <maximumf>, %319, %cst_138 [2] : vector<1x3x3xf32> to vector<1x3xf32>
    %321 = vector.shape_cast %320 : vector<1x3xf32> to vector<1x3x1xf32>
    %322 = vector.broadcast %321 : vector<1x3x1xf32> to vector<1x3x3xf32>
    %323 = arith.subf %319, %322 : vector<1x3x3xf32>
    %324 = math.exp %323 : vector<1x3x3xf32>
    %cst_139 = arith.constant dense<0.000000e+00> : vector<1x3xf32>
    %325 = vector.multi_reduction <add>, %324, %cst_139 [2] : vector<1x3x3xf32> to vector<1x3xf32>
    %326 = vector.shape_cast %325 : vector<1x3xf32> to vector<1x3x1xf32>
    %327 = tpu.reciprocal %326 {approx = true} : vector<1x3x1xf32> -> vector<1x3x1xf32>
    %328 = vector.broadcast %327 : vector<1x3x1xf32> to vector<1x3x3xf32>
    %329 = arith.mulf %324, %328 : vector<1x3x3xf32>
    "tpu.trace_start"() <{level = 10 : i32, message = "bqk,bkd->bqd"}> : () -> ()
    %cst_140 = arith.constant dense<0.000000e+00> : vector<1x3x8xf32>
    %330 = tpu.matmul %329, %316, %cst_140 {dimension_numbers = #tpu.dot_dimension_numbers<[2], [1], [1], [2], [0, 0, 0, 1, 1, 2], [0], [0]>} : vector<1x3x3xf32>, vector<1x3x8xf32>, vector<1x3x8xf32> -> vector<1x3x8xf32>
    "tpu.trace_stop"() : () -> ()
    %331 = vector.shape_cast %330 : vector<1x3x8xf32> to vector<3x8xf32>
    %332 = vector.extract_strided_slice %209 {offsets = [3, 0, 0], sizes = [1, 8, 32], strides = [1, 1, 1]} : vector<4x8x32xbf16> to vector<1x8x32xbf16>
    %333 = vector.shape_cast %332 : vector<1x8x32xbf16> to vector<8x32xbf16>
    %334 = arith.truncf %331 : vector<3x8xf32> to vector<3x8xbf16>
    %cst_141 = arith.constant dense<0.000000e+00> : vector<3x32xf32>
    %335 = tpu.matmul %334, %333, %cst_141 {dimension_numbers = #tpu.dot_dimension_numbers<[1], [0], [0], [1], [0, 0, 1, 1], [], []>} : vector<3x8xbf16>, vector<8x32xbf16>, vector<3x32xf32> -> vector<3x32xf32>
    %336 = arith.addf %310, %335 : vector<3x32xf32>
    %337 = arith.addf %203, %336 : vector<3x32xf32>
    %cst_142 = arith.constant dense<0.000000e+00> : vector<3xf32>
    %338 = vector.multi_reduction <add>, %337, %cst_142 [1] : vector<3x32xf32> to vector<3xf32>
    %339 = vector.shape_cast %338 : vector<3xf32> to vector<3x1xf32>
    %cst_143 = arith.constant 3.200000e+01 : f32
    %340 = vector.broadcast %cst_143 : f32 to vector<3x1xf32>
    %341 = arith.divf %339, %340 : vector<3x1xf32>
    %342 = vector.broadcast %341 : vector<3x1xf32> to vector<3x32xf32>
    %343 = arith.subf %337, %342 : vector<3x32xf32>
    %344 = arith.mulf %343, %343 : vector<3x32xf32>
    %cst_144 = arith.constant dense<0.000000e+00> : vector<3xf32>
    %345 = vector.multi_reduction <add>, %344, %cst_144 [1] : vector<3x32xf32> to vector<3xf32>
    %346 = vector.shape_cast %345 : vector<3xf32> to vector<3x1xf32>
    %cst_145 = arith.constant 3.200000e+01 : f32
    %347 = vector.broadcast %cst_145 : f32 to vector<3x1xf32>
    %348 = arith.divf %346, %347 : vector<3x1xf32>
    %349 = vector.broadcast %341 : vector<3x1xf32> to vector<3x32xf32>
    %350 = arith.subf %337, %349 : vector<3x32xf32>
    %cst_146 = arith.constant 9.99999996E-13 : f32
    %351 = vector.broadcast %cst_146 : f32 to vector<3x1xf32>
    %352 = arith.addf %348, %351 : vector<3x1xf32>
    %353 = math.rsqrt %352 : vector<3x1xf32>
    %354 = vector.broadcast %353 : vector<3x1xf32> to vector<3x32xf32>
    %355 = arith.mulf %350, %354 : vector<3x32xf32>
    %356 = vector.broadcast %213 : vector<1x32xf32> to vector<3x32xf32>
    %357 = arith.mulf %355, %356 : vector<3x32xf32>
    %358 = vector.broadcast %215 : vector<1x32xf32> to vector<3x32xf32>
    %359 = arith.addf %357, %358 : vector<3x32xf32>
    %360 = arith.truncf %359 : vector<3x32xf32> to vector<3x32xbf16>
    %cst_147 = arith.constant dense<0.000000e+00> : vector<3x64xf32>
    %361 = tpu.matmul %360, %217, %cst_147 {dimension_numbers = #tpu.dot_dimension_numbers<[1], [0], [0], [1], [0, 0, 1, 1], [], []>} : vector<3x32xbf16>, vector<32x64xbf16>, vector<3x64xf32> -> vector<3x64xf32>
    %362 = vector.broadcast %219 : vector<1x64xf32> to vector<3x64xf32>
    %363 = arith.addf %361, %362 : vector<3x64xf32>
    %cst_148 = arith.constant 5.000000e-01 : f32
    %364 = vector.broadcast %cst_148 : f32 to vector<3x64xf32>
    %365 = arith.mulf %364, %363 : vector<3x64xf32>
    %cst_149 = arith.constant 4.471500e-02 : f32
    %366 = vector.broadcast %cst_149 : f32 to vector<3x64xf32>
    %367 = arith.mulf %366, %363 : vector<3x64xf32>
    %368 = arith.mulf %367, %363 : vector<3x64xf32>
    %369 = arith.mulf %368, %363 : vector<3x64xf32>
    %370 = arith.addf %363, %369 : vector<3x64xf32>
    %cst_150 = arith.constant 0.797884583 : f32
    %371 = vector.broadcast %cst_150 : f32 to vector<3x64xf32>
    %372 = arith.mulf %371, %370 : vector<3x64xf32>
    %373 = math.tanh %372 : vector<3x64xf32>
    %cst_151 = arith.constant 1.000000e+00 : f32
    %374 = vector.broadcast %cst_151 : f32 to vector<3x64xf32>
    %375 = arith.addf %374, %373 : vector<3x64xf32>
    %376 = arith.mulf %365, %375 : vector<3x64xf32>
    %377 = arith.truncf %376 : vector<3x64xf32> to vector<3x64xbf16>
    %cst_152 = arith.constant dense<0.000000e+00> : vector<3x32xf32>
    %378 = tpu.matmul %377, %221, %cst_152 {dimension_numbers = #tpu.dot_dimension_numbers<[1], [0], [0], [1], [0, 0, 1, 1], [], []>} : vector<3x64xbf16>, vector<64x32xbf16>, vector<3x32xf32> -> vector<3x32xf32>
    %379 = vector.broadcast %223 : vector<1x32xf32> to vector<3x32xf32>
    %380 = arith.addf %378, %379 : vector<3x32xf32>
    %381 = arith.addf %359, %380 : vector<3x32xf32>
    %cst_153 = arith.constant dense<0.000000e+00> : vector<3xf32>
    %382 = vector.multi_reduction <add>, %381, %cst_153 [1] : vector<3x32xf32> to vector<3xf32>
    %383 = vector.shape_cast %382 : vector<3xf32> to vector<3x1xf32>
    %cst_154 = arith.constant 3.200000e+01 : f32
    %384 = vector.broadcast %cst_154 : f32 to vector<3x1xf32>
    %385 = arith.divf %383, %384 : vector<3x1xf32>
    %386 = vector.broadcast %385 : vector<3x1xf32> to vector<3x32xf32>
    %387 = arith.subf %381, %386 : vector<3x32xf32>
    %388 = arith.mulf %387, %387 : vector<3x32xf32>
    %cst_155 = arith.constant dense<0.000000e+00> : vector<3xf32>
    %389 = vector.multi_reduction <add>, %388, %cst_155 [1] : vector<3x32xf32> to vector<3xf32>
    %390 = vector.shape_cast %389 : vector<3xf32> to vector<3x1xf32>
    %cst_156 = arith.constant 3.200000e+01 : f32
    %391 = vector.broadcast %cst_156 : f32 to vector<3x1xf32>
    %392 = arith.divf %390, %391 : vector<3x1xf32>
    %393 = vector.broadcast %385 : vector<3x1xf32> to vector<3x32xf32>
    %394 = arith.subf %381, %393 : vector<3x32xf32>
    %cst_157 = arith.constant 9.99999996E-13 : f32
    %395 = vector.broadcast %cst_157 : f32 to vector<3x1xf32>
    %396 = arith.addf %392, %395 : vector<3x1xf32>
    %397 = math.rsqrt %396 : vector<3x1xf32>
    %398 = vector.broadcast %397 : vector<3x1xf32> to vector<3x32xf32>
    %399 = arith.mulf %394, %398 : vector<3x32xf32>
    %400 = vector.broadcast %225 : vector<1x32xf32> to vector<3x32xf32>
    %401 = arith.mulf %399, %400 : vector<3x32xf32>
    %402 = vector.broadcast %227 : vector<1x32xf32> to vector<3x32xf32>
    %403 = arith.addf %401, %402 : vector<3x32xf32>
    %cst_158 = arith.constant 0.333333343 : f32
    %404 = vector.broadcast %cst_158 : f32 to vector<1x3xf32>
    %cst_159 = arith.constant dense<0.000000e+00> : vector<1x32xf32>
    %405 = tpu.matmul %404, %403, %cst_159 {dimension_numbers = #tpu.dot_dimension_numbers<[1], [0], [0], [1], [0, 0, 1, 1], [], []>} : vector<1x3xf32>, vector<3x32xf32>, vector<1x32xf32> -> vector<1x32xf32>
    %c0_160 = arith.constant 0 : index
    %c0_161 = arith.constant 0 : index
    %406 = vector.load %arg15[%c0_160, %c0_161] : memref<32x4xbf16, #tpu.memory_space<vmem>>, vector<32x4xbf16>
    %407 = arith.truncf %405 : vector<1x32xf32> to vector<1x32xbf16>
    %cst_162 = arith.constant dense<0.000000e+00> : vector<1x4xf32>
    %408 = tpu.matmul %407, %406, %cst_162 {dimension_numbers = #tpu.dot_dimension_numbers<[1], [0], [0], [1], [0, 0, 1, 1], [], []>} : vector<1x32xbf16>, vector<32x4xbf16>, vector<1x4xf32> -> vector<1x4xf32>
    %c0_163 = arith.constant 0 : index
    %c0_164 = arith.constant 0 : index
    %409 = vector.load %arg16[%c0_163, %c0_164] : memref<1x4xf32, #tpu.memory_space<vmem>>, vector<1x4xf32>
    %410 = arith.addf %408, %409 : vector<1x4xf32>
    %c0_165 = arith.constant 0 : index
    %c0_166 = arith.constant 0 : index
    %c0_167 = arith.constant 0 : index
    %411 = vector.load %arg17[%c0_165, %c0_166, %c0_167] : memref<1x1x4xf32, #tpu.memory_space<vmem>>, vector<1x1x4xf32>
    %412 = vector.shape_cast %411 : vector<1x1x4xf32> to vector<1x4xf32>
    %413 = vector.shape_cast %410 : vector<1x4xf32> to vector<1x1x4xf32>
    tpu.vector_store %arg17[%c0_165, %c0_166, %c0_167], %413 {strides = array<i32>} : memref<1x1x4xf32, #tpu.memory_space<vmem>>, vector<1x1x4xf32>,
    return
  }
  func.func @transform_0(%arg0: i32) -> (i32, i32, i32) {
    %c0_i32 = arith.constant 0 : i32
    %c0_i32_0 = arith.constant 0 : i32
    %c0_i32_1 = arith.constant 0 : i32
    return %arg0, %c0_i32, %c0_i32_0 : i32, i32, i32
  }
  func.func @transform_1(%arg0: i32) -> (i32, i32) {
    %c0_i32 = arith.constant 0 : i32
    %c0_i32_0 = arith.constant 0 : i32
    %c0_i32_1 = arith.constant 0 : i32
    return %c0_i32, %c0_i32_0 : i32, i32
  }
  func.func @transform_2(%arg0: i32) -> (i32, i32, i32) {
    %c0_i32 = arith.constant 0 : i32
    %c0_i32_0 = arith.constant 0 : i32
    %c0_i32_1 = arith.constant 0 : i32
    %c0_i32_2 = arith.constant 0 : i32
    return %c0_i32, %c0_i32_0, %c0_i32_1 : i32, i32, i32
  }
  func.func @transform_3(%arg0: i32) -> (i32, i32, i32) {
    %c0_i32 = arith.constant 0 : i32
    %c0_i32_0 = arith.constant 0 : i32
    %c0_i32_1 = arith.constant 0 : i32
    %c0_i32_2 = arith.constant 0 : i32
    return %c0_i32, %c0_i32_0, %c0_i32_1 : i32, i32, i32
  }
  func.func @transform_4(%arg0: i32) -> (i32, i32, i32, i32) {
    %c0_i32 = arith.constant 0 : i32
    %c0_i32_0 = arith.constant 0 : i32
    %c0_i32_1 = arith.constant 0 : i32
    %c0_i32_2 = arith.constant 0 : i32
    %c0_i32_3 = arith.constant 0 : i32
    return %c0_i32, %c0_i32_0, %c0_i32_1, %c0_i32_2 : i32, i32, i32, i32
  }
  func.func @transform_5(%arg0: i32) -> (i32, i32, i32) {
    %c0_i32 = arith.constant 0 : i32
    %c0_i32_0 = arith.constant 0 : i32
    %c0_i32_1 = arith.constant 0 : i32
    %c0_i32_2 = arith.constant 0 : i32
    return %c0_i32, %c0_i32_0, %c0_i32_1 : i32, i32, i32
  }
  func.func @transform_6(%arg0: i32) -> (i32, i32, i32) {
    %c0_i32 = arith.constant 0 : i32
    %c0_i32_0 = arith.constant 0 : i32
    %c0_i32_1 = arith.constant 0 : i32
    %c0_i32_2 = arith.constant 0 : i32
    return %c0_i32, %c0_i32_0, %c0_i32_1 : i32, i32, i32
  }
  func.func @transform_7(%arg0: i32) -> (i32, i32, i32) {
    %c0_i32 = arith.constant 0 : i32
    %c0_i32_0 = arith.constant 0 : i32
    %c0_i32_1 = arith.constant 0 : i32
    %c0_i32_2 = arith.constant 0 : i32
    return %c0_i32, %c0_i32_0, %c0_i32_1 : i32, i32, i32
  }
  func.func @transform_8(%arg0: i32) -> (i32, i32, i32) {
    %c0_i32 = arith.constant 0 : i32
    %c0_i32_0 = arith.constant 0 : i32
    %c0_i32_1 = arith.constant 0 : i32
    %c0_i32_2 = arith.constant 0 : i32
    return %c0_i32, %c0_i32_0, %c0_i32_1 : i32, i32, i32
  }
  func.func @transform_9(%arg0: i32) -> (i32, i32, i32) {
    %c0_i32 = arith.constant 0 : i32
    %c0_i32_0 = arith.constant 0 : i32
    %c0_i32_1 = arith.constant 0 : i32
    %c0_i32_2 = arith.constant 0 : i32
    return %c0_i32, %c0_i32_0, %c0_i32_1 : i32, i32, i32
  }
  func.func @transform_10(%arg0: i32) -> (i32, i32, i32) {
    %c0_i32 = arith.constant 0 : i32
    %c0_i32_0 = arith.constant 0 : i32
    %c0_i32_1 = arith.constant 0 : i32
    %c0_i32_2 = arith.constant 0 : i32
    return %c0_i32, %c0_i32_0, %c0_i32_1 : i32, i32, i32
  }
  func.func @transform_11(%arg0: i32) -> (i32, i32, i32) {
    %c0_i32 = arith.constant 0 : i32
    %c0_i32_0 = arith.constant 0 : i32
    %c0_i32_1 = arith.constant 0 : i32
    %c0_i32_2 = arith.constant 0 : i32
    return %c0_i32, %c0_i32_0, %c0_i32_1 : i32, i32, i32
  }
  func.func @transform_12(%arg0: i32) -> (i32, i32, i32) {
    %c0_i32 = arith.constant 0 : i32
    %c0_i32_0 = arith.constant 0 : i32
    %c0_i32_1 = arith.constant 0 : i32
    %c0_i32_2 = arith.constant 0 : i32
    return %c0_i32, %c0_i32_0, %c0_i32_1 : i32, i32, i32
  }
  func.func @transform_13(%arg0: i32) -> (i32, i32, i32) {
    %c0_i32 = arith.constant 0 : i32
    %c0_i32_0 = arith.constant 0 : i32
    %c0_i32_1 = arith.constant 0 : i32
    %c0_i32_2 = arith.constant 0 : i32
    return %c0_i32, %c0_i32_0, %c0_i32_1 : i32, i32, i32
  }
  func.func @transform_14(%arg0: i32) -> (i32, i32) {
    %c0_i32 = arith.constant 0 : i32
    %c0_i32_0 = arith.constant 0 : i32
    %c0_i32_1 = arith.constant 0 : i32
    return %c0_i32, %c0_i32_0 : i32, i32
  }
  func.func @transform_15(%arg0: i32) -> (i32, i32) {
    %c0_i32 = arith.constant 0 : i32
    %c0_i32_0 = arith.constant 0 : i32
    %c0_i32_1 = arith.constant 0 : i32
    return %c0_i32, %c0_i32_0 : i32, i32
  }
  func.func @transform_16(%arg0: i32) -> (i32, i32, i32) {
    %c0_i32 = arith.constant 0 : i32
    %c0_i32_0 = arith.constant 0 : i32
    %c0_i32_1 = arith.constant 0 : i32
    return %arg0, %c0_i32, %c0_i32_0 : i32, i32, i32
  }
}

module attributes {stable_mosaic.version = 11 : i64} {
  func.func @_bert_encoder_kernel(%arg0: i32, %arg1: memref<1x24x32xf32, #tpu.memory_space<vmem>>, %arg2: memref<1x3x1x8xf32, #tpu.memory_space<vmem>>, %arg3: memref<1x32xf32, #tpu.memory_space<vmem>>, %arg4: memref<1x32xf32, #tpu.memory_space<vmem>>, %arg5: memref<2x32x96xbf16, #tpu.memory_space<vmem>>, %arg6: memref<2x1x96xf32, #tpu.memory_space<vmem>>, %arg7: memref<2x4x8x32xbf16, #tpu.memory_space<vmem>>, %arg8: memref<2x1x32xf32, #tpu.memory_space<vmem>>, %arg9: memref<2x1x32xf32, #tpu.memory_space<vmem>>, %arg10: memref<2x1x32xf32, #tpu.memory_space<vmem>>, %arg11: memref<2x32x64xbf16, #tpu.memory_space<vmem>>, %arg12: memref<2x1x64xf32, #tpu.memory_space<vmem>>, %arg13: memref<2x64x32xbf16, #tpu.memory_space<vmem>>, %arg14: memref<2x1x32xf32, #tpu.memory_space<vmem>>, %arg15: memref<2x1x32xf32, #tpu.memory_space<vmem>>, %arg16: memref<2x1x32xf32, #tpu.memory_space<vmem>>, %arg17: memref<32x32xbf16, #tpu.memory_space<vmem>>, %arg18: memref<1x32xf32, #tpu.memory_space<vmem>>, %arg19: memref<1x3x32xf32, #tpu.memory_space<vmem>>) attributes {dimension_semantics = [#tpu.dimension_semantics<parallel>], iteration_bounds = array<i64: 2>, scalar_prefetch = 0 : i64, scratch_operands = 0 : i64, tpu.core_type = #tpu.core_type<tc>, window_params = [{transform_indices = @transform_0, window_bounds = array<i64: 1, 24, 32>}, {transform_indices = @transform_1, window_bounds = array<i64: 1, 3, 1, 8>}, {pipeline_mode = #tpu.pipeline_mode<synchronous>, transform_indices = @transform_2, window_bounds = array<i64: 1, 32>}, {pipeline_mode = #tpu.pipeline_mode<synchronous>, transform_indices = @transform_3, window_bounds = array<i64: 1, 32>}, {pipeline_mode = #tpu.pipeline_mode<synchronous>, transform_indices = @transform_4, window_bounds = array<i64: 2, 32, 96>}, {pipeline_mode = #tpu.pipeline_mode<synchronous>, transform_indices = @transform_5, window_bounds = array<i64: 2, 1, 96>}, {pipeline_mode = #tpu.pipeline_mode<synchronous>, transform_indices = @transform_6, window_bounds = array<i64: 2, 4, 8, 32>}, {pipeline_mode = #tpu.pipeline_mode<synchronous>, transform_indices = @transform_7, window_bounds = array<i64: 2, 1, 32>}, {pipeline_mode = #tpu.pipeline_mode<synchronous>, transform_indices = @transform_8, window_bounds = array<i64: 2, 1, 32>}, {pipeline_mode = #tpu.pipeline_mode<synchronous>, transform_indices = @transform_9, window_bounds = array<i64: 2, 1, 32>}, {pipeline_mode = #tpu.pipeline_mode<synchronous>, transform_indices = @transform_10, window_bounds = array<i64: 2, 32, 64>}, {pipeline_mode = #tpu.pipeline_mode<synchronous>, transform_indices = @transform_11, window_bounds = array<i64: 2, 1, 64>}, {pipeline_mode = #tpu.pipeline_mode<synchronous>, transform_indices = @transform_12, window_bounds = array<i64: 2, 64, 32>}, {pipeline_mode = #tpu.pipeline_mode<synchronous>, transform_indices = @transform_13, window_bounds = array<i64: 2, 1, 32>}, {pipeline_mode = #tpu.pipeline_mode<synchronous>, transform_indices = @transform_14, window_bounds = array<i64: 2, 1, 32>}, {pipeline_mode = #tpu.pipeline_mode<synchronous>, transform_indices = @transform_15, window_bounds = array<i64: 2, 1, 32>}, {pipeline_mode = #tpu.pipeline_mode<synchronous>, transform_indices = @transform_16, window_bounds = array<i64: 32, 32>}, {pipeline_mode = #tpu.pipeline_mode<synchronous>, transform_indices = @transform_17, window_bounds = array<i64: 1, 32>}, {transform_indices = @transform_18, window_bounds = array<i64: 1, 3, 32>}]} {
    %c0 = arith.constant 0 : index
    %c0_0 = arith.constant 0 : index
    %c0_1 = arith.constant 0 : index
    %0 = vector.load %arg1[%c0, %c0_0, %c0_1] : memref<1x24x32xf32, #tpu.memory_space<vmem>>, vector<1x24x32xf32>
    %1 = vector.shape_cast %0 : vector<1x24x32xf32> to vector<24x32xf32>
    %c0_2 = arith.constant 0 : index
    %c0_3 = arith.constant 0 : index
    %2 = vector.load %arg3[%c0_2, %c0_3] : memref<1x32xf32, #tpu.memory_space<vmem>>, vector<1x32xf32>
    %c0_4 = arith.constant 0 : index
    %c0_5 = arith.constant 0 : index
    %3 = vector.load %arg4[%c0_4, %c0_5] : memref<1x32xf32, #tpu.memory_space<vmem>>, vector<1x32xf32>
    %cst = arith.constant dense<0.000000e+00> : vector<24xf32>
    %4 = vector.multi_reduction <add>, %1, %cst [1] : vector<24x32xf32> to vector<24xf32>
    %5 = vector.shape_cast %4 : vector<24xf32> to vector<24x1xf32>
    %cst_6 = arith.constant 3.200000e+01 : f32
    %6 = vector.broadcast %cst_6 : f32 to vector<24x1xf32>
    %7 = arith.divf %5, %6 : vector<24x1xf32>
    %8 = vector.broadcast %7 : vector<24x1xf32> to vector<24x32xf32>
    %9 = arith.subf %1, %8 : vector<24x32xf32>
    %10 = arith.mulf %9, %9 : vector<24x32xf32>
    %cst_7 = arith.constant dense<0.000000e+00> : vector<24xf32>
    %11 = vector.multi_reduction <add>, %10, %cst_7 [1] : vector<24x32xf32> to vector<24xf32>
    %12 = vector.shape_cast %11 : vector<24xf32> to vector<24x1xf32>
    %cst_8 = arith.constant 3.200000e+01 : f32
    %13 = vector.broadcast %cst_8 : f32 to vector<24x1xf32>
    %14 = arith.divf %12, %13 : vector<24x1xf32>
    %15 = vector.broadcast %7 : vector<24x1xf32> to vector<24x32xf32>
    %16 = arith.subf %1, %15 : vector<24x32xf32>
    %cst_9 = arith.constant 9.99999996E-13 : f32
    %17 = vector.broadcast %cst_9 : f32 to vector<24x1xf32>
    %18 = arith.addf %14, %17 : vector<24x1xf32>
    %19 = math.rsqrt %18 : vector<24x1xf32>
    %20 = vector.broadcast %19 : vector<24x1xf32> to vector<24x32xf32>
    %21 = arith.mulf %16, %20 : vector<24x32xf32>
    %22 = vector.broadcast %2 : vector<1x32xf32> to vector<24x32xf32>
    %23 = arith.mulf %21, %22 : vector<24x32xf32>
    %24 = vector.broadcast %3 : vector<1x32xf32> to vector<24x32xf32>
    %25 = arith.addf %23, %24 : vector<24x32xf32>
    %c0_10 = arith.constant 0 : index
    %c0_11 = arith.constant 0 : index
    %c0_12 = arith.constant 0 : index
    %c0_13 = arith.constant 0 : index
    %26 = vector.load %arg2[%c0_10, %c0_11, %c0_12, %c0_13] : memref<1x3x1x8xf32, #tpu.memory_space<vmem>>, vector<1x3x1x8xf32>
    %27 = vector.shape_cast %26 : vector<1x3x1x8xf32> to vector<3x1x8xf32>
    %c0_14 = arith.constant 0 : index
    %c0_15 = arith.constant 0 : index
    %c0_16 = arith.constant 0 : index
    %28 = vector.load %arg5[%c0_14, %c0_15, %c0_16] : memref<2x32x96xbf16, #tpu.memory_space<vmem>>, vector<1x32x96xbf16>
    %29 = vector.shape_cast %28 : vector<1x32x96xbf16> to vector<32x96xbf16>
    %c0_17 = arith.constant 0 : index
    %c0_18 = arith.constant 0 : index
    %c0_19 = arith.constant 0 : index
    %30 = vector.load %arg6[%c0_17, %c0_18, %c0_19] : memref<2x1x96xf32, #tpu.memory_space<vmem>>, vector<1x1x96xf32>
    %31 = vector.shape_cast %30 : vector<1x1x96xf32> to vector<1x96xf32>
    %c0_20 = arith.constant 0 : index
    %c0_21 = arith.constant 0 : index
    %c0_22 = arith.constant 0 : index
    %c0_23 = arith.constant 0 : index
    %32 = vector.load %arg7[%c0_20, %c0_21, %c0_22, %c0_23] : memref<2x4x8x32xbf16, #tpu.memory_space<vmem>>, vector<1x4x8x32xbf16>
    %33 = vector.shape_cast %32 : vector<1x4x8x32xbf16> to vector<4x8x32xbf16>
    %c0_24 = arith.constant 0 : index
    %c0_25 = arith.constant 0 : index
    %c0_26 = arith.constant 0 : index
    %34 = vector.load %arg8[%c0_24, %c0_25, %c0_26] : memref<2x1x32xf32, #tpu.memory_space<vmem>>, vector<1x1x32xf32>
    %35 = vector.shape_cast %34 : vector<1x1x32xf32> to vector<1x32xf32>
    %c0_27 = arith.constant 0 : index
    %c0_28 = arith.constant 0 : index
    %c0_29 = arith.constant 0 : index
    %36 = vector.load %arg9[%c0_27, %c0_28, %c0_29] : memref<2x1x32xf32, #tpu.memory_space<vmem>>, vector<1x1x32xf32>
    %37 = vector.shape_cast %36 : vector<1x1x32xf32> to vector<1x32xf32>
    %c0_30 = arith.constant 0 : index
    %c0_31 = arith.constant 0 : index
    %c0_32 = arith.constant 0 : index
    %38 = vector.load %arg10[%c0_30, %c0_31, %c0_32] : memref<2x1x32xf32, #tpu.memory_space<vmem>>, vector<1x1x32xf32>
    %39 = vector.shape_cast %38 : vector<1x1x32xf32> to vector<1x32xf32>
    %c0_33 = arith.constant 0 : index
    %c0_34 = arith.constant 0 : index
    %c0_35 = arith.constant 0 : index
    %40 = vector.load %arg11[%c0_33, %c0_34, %c0_35] : memref<2x32x64xbf16, #tpu.memory_space<vmem>>, vector<1x32x64xbf16>
    %41 = vector.shape_cast %40 : vector<1x32x64xbf16> to vector<32x64xbf16>
    %c0_36 = arith.constant 0 : index
    %c0_37 = arith.constant 0 : index
    %c0_38 = arith.constant 0 : index
    %42 = vector.load %arg12[%c0_36, %c0_37, %c0_38] : memref<2x1x64xf32, #tpu.memory_space<vmem>>, vector<1x1x64xf32>
    %43 = vector.shape_cast %42 : vector<1x1x64xf32> to vector<1x64xf32>
    %c0_39 = arith.constant 0 : index
    %c0_40 = arith.constant 0 : index
    %c0_41 = arith.constant 0 : index
    %44 = vector.load %arg13[%c0_39, %c0_40, %c0_41] : memref<2x64x32xbf16, #tpu.memory_space<vmem>>, vector<1x64x32xbf16>
    %45 = vector.shape_cast %44 : vector<1x64x32xbf16> to vector<64x32xbf16>
    %c0_42 = arith.constant 0 : index
    %c0_43 = arith.constant 0 : index
    %c0_44 = arith.constant 0 : index
    %46 = vector.load %arg14[%c0_42, %c0_43, %c0_44] : memref<2x1x32xf32, #tpu.memory_space<vmem>>, vector<1x1x32xf32>
    %47 = vector.shape_cast %46 : vector<1x1x32xf32> to vector<1x32xf32>
    %c0_45 = arith.constant 0 : index
    %c0_46 = arith.constant 0 : index
    %c0_47 = arith.constant 0 : index
    %48 = vector.load %arg15[%c0_45, %c0_46, %c0_47] : memref<2x1x32xf32, #tpu.memory_space<vmem>>, vector<1x1x32xf32>
    %49 = vector.shape_cast %48 : vector<1x1x32xf32> to vector<1x32xf32>
    %c0_48 = arith.constant 0 : index
    %c0_49 = arith.constant 0 : index
    %c0_50 = arith.constant 0 : index
    %50 = vector.load %arg16[%c0_48, %c0_49, %c0_50] : memref<2x1x32xf32, #tpu.memory_space<vmem>>, vector<1x1x32xf32>
    %51 = vector.shape_cast %50 : vector<1x1x32xf32> to vector<1x32xf32>
    %52 = arith.truncf %25 : vector<24x32xf32> to vector<24x32xbf16>
    %cst_51 = arith.constant dense<0.000000e+00> : vector<24x96xf32>
    %53 = tpu.matmul %52, %29, %cst_51 {dimension_numbers = #tpu.dot_dimension_numbers<[1], [0], [0], [1], [0, 0, 1, 1], [], []>} : vector<24x32xbf16>, vector<32x96xbf16>, vector<24x96xf32> -> vector<24x96xf32>
    %54 = vector.broadcast %31 : vector<1x96xf32> to vector<24x96xf32>
    %55 = arith.addf %53, %54 : vector<24x96xf32>
    %56 = vector.extract_strided_slice %55 {offsets = [0, 0], sizes = [24, 8], strides = [1, 1]} : vector<24x96xf32> to vector<24x8xf32>
    %57 = vector.shape_cast %56 : vector<24x8xf32> to vector<3x8x8xf32>
    %58 = vector.extract_strided_slice %55 {offsets = [0, 32], sizes = [24, 8], strides = [1, 1]} : vector<24x96xf32> to vector<24x8xf32>
    %59 = vector.shape_cast %58 : vector<24x8xf32> to vector<3x8x8xf32>
    %60 = vector.extract_strided_slice %55 {offsets = [0, 64], sizes = [24, 8], strides = [1, 1]} : vector<24x96xf32> to vector<24x8xf32>
    %61 = vector.shape_cast %60 : vector<24x8xf32> to vector<3x8x8xf32>
    "tpu.trace_start"() <{level = 10 : i32, message = "bqd,bkd->bqk"}> : () -> ()
    %cst_52 = arith.constant dense<0.000000e+00> : vector<3x8x8xf32>
    %62 = tpu.matmul %57, %59, %cst_52 {dimension_numbers = #tpu.dot_dimension_numbers<[2], [2], [1], [1], [0, 0, 0, 1, 1, 1], [0], [0]>} : vector<3x8x8xf32>, vector<3x8x8xf32>, vector<3x8x8xf32> -> vector<3x8x8xf32>
    "tpu.trace_stop"() : () -> ()
    %cst_53 = arith.constant 0.353553385 : f32
    %63 = vector.broadcast %cst_53 : f32 to vector<3x8x8xf32>
    %64 = arith.mulf %62, %63 : vector<3x8x8xf32>
    %65 = vector.broadcast %27 : vector<3x1x8xf32> to vector<3x8x8xf32>
    %66 = arith.addf %64, %65 : vector<3x8x8xf32>
    %cst_54 = arith.constant dense<0xFF800000> : vector<3x8xf32>
    %67 = vector.multi_reduction <maximumf>, %66, %cst_54 [2] : vector<3x8x8xf32> to vector<3x8xf32>
    %68 = vector.shape_cast %67 : vector<3x8xf32> to vector<3x8x1xf32>
    %69 = vector.broadcast %68 : vector<3x8x1xf32> to vector<3x8x8xf32>
    %70 = arith.subf %66, %69 : vector<3x8x8xf32>
    %71 = math.exp %70 : vector<3x8x8xf32>
    %cst_55 = arith.constant dense<0.000000e+00> : vector<3x8xf32>
    %72 = vector.multi_reduction <add>, %71, %cst_55 [2] : vector<3x8x8xf32> to vector<3x8xf32>
    %73 = vector.shape_cast %72 : vector<3x8xf32> to vector<3x8x1xf32>
    %74 = tpu.reciprocal %73 {approx = true} : vector<3x8x1xf32> -> vector<3x8x1xf32>
    %75 = vector.broadcast %74 : vector<3x8x1xf32> to vector<3x8x8xf32>
    %76 = arith.mulf %71, %75 : vector<3x8x8xf32>
    "tpu.trace_start"() <{level = 10 : i32, message = "bqk,bkd->bqd"}> : () -> ()
    %cst_56 = arith.constant dense<0.000000e+00> : vector<3x8x8xf32>
    %77 = tpu.matmul %76, %61, %cst_56 {dimension_numbers = #tpu.dot_dimension_numbers<[2], [1], [1], [2], [0, 0, 0, 1, 1, 2], [0], [0]>} : vector<3x8x8xf32>, vector<3x8x8xf32>, vector<3x8x8xf32> -> vector<3x8x8xf32>
    "tpu.trace_stop"() : () -> ()
    %78 = vector.shape_cast %77 : vector<3x8x8xf32> to vector<24x8xf32>
    %79 = vector.extract_strided_slice %33 {offsets = [0, 0, 0], sizes = [1, 8, 32], strides = [1, 1, 1]} : vector<4x8x32xbf16> to vector<1x8x32xbf16>
    %80 = vector.shape_cast %79 : vector<1x8x32xbf16> to vector<8x32xbf16>
    %81 = arith.truncf %78 : vector<24x8xf32> to vector<24x8xbf16>
    %cst_57 = arith.constant dense<0.000000e+00> : vector<24x32xf32>
    %82 = tpu.matmul %81, %80, %cst_57 {dimension_numbers = #tpu.dot_dimension_numbers<[1], [0], [0], [1], [0, 0, 1, 1], [], []>} : vector<24x8xbf16>, vector<8x32xbf16>, vector<24x32xf32> -> vector<24x32xf32>
    %83 = vector.broadcast %35 : vector<1x32xf32> to vector<24x32xf32>
    %84 = arith.addf %83, %82 : vector<24x32xf32>
    %85 = vector.extract_strided_slice %55 {offsets = [0, 8], sizes = [24, 8], strides = [1, 1]} : vector<24x96xf32> to vector<24x8xf32>
    %86 = vector.shape_cast %85 : vector<24x8xf32> to vector<3x8x8xf32>
    %87 = vector.extract_strided_slice %55 {offsets = [0, 40], sizes = [24, 8], strides = [1, 1]} : vector<24x96xf32> to vector<24x8xf32>
    %88 = vector.shape_cast %87 : vector<24x8xf32> to vector<3x8x8xf32>
    %89 = vector.extract_strided_slice %55 {offsets = [0, 72], sizes = [24, 8], strides = [1, 1]} : vector<24x96xf32> to vector<24x8xf32>
    %90 = vector.shape_cast %89 : vector<24x8xf32> to vector<3x8x8xf32>
    "tpu.trace_start"() <{level = 10 : i32, message = "bqd,bkd->bqk"}> : () -> ()
    %cst_58 = arith.constant dense<0.000000e+00> : vector<3x8x8xf32>
    %91 = tpu.matmul %86, %88, %cst_58 {dimension_numbers = #tpu.dot_dimension_numbers<[2], [2], [1], [1], [0, 0, 0, 1, 1, 1], [0], [0]>} : vector<3x8x8xf32>, vector<3x8x8xf32>, vector<3x8x8xf32> -> vector<3x8x8xf32>
    "tpu.trace_stop"() : () -> ()
    %cst_59 = arith.constant 0.353553385 : f32
    %92 = vector.broadcast %cst_59 : f32 to vector<3x8x8xf32>
    %93 = arith.mulf %91, %92 : vector<3x8x8xf32>
    %94 = vector.broadcast %27 : vector<3x1x8xf32> to vector<3x8x8xf32>
    %95 = arith.addf %93, %94 : vector<3x8x8xf32>
    %cst_60 = arith.constant dense<0xFF800000> : vector<3x8xf32>
    %96 = vector.multi_reduction <maximumf>, %95, %cst_60 [2] : vector<3x8x8xf32> to vector<3x8xf32>
    %97 = vector.shape_cast %96 : vector<3x8xf32> to vector<3x8x1xf32>
    %98 = vector.broadcast %97 : vector<3x8x1xf32> to vector<3x8x8xf32>
    %99 = arith.subf %95, %98 : vector<3x8x8xf32>
    %100 = math.exp %99 : vector<3x8x8xf32>
    %cst_61 = arith.constant dense<0.000000e+00> : vector<3x8xf32>
    %101 = vector.multi_reduction <add>, %100, %cst_61 [2] : vector<3x8x8xf32> to vector<3x8xf32>
    %102 = vector.shape_cast %101 : vector<3x8xf32> to vector<3x8x1xf32>
    %103 = tpu.reciprocal %102 {approx = true} : vector<3x8x1xf32> -> vector<3x8x1xf32>
    %104 = vector.broadcast %103 : vector<3x8x1xf32> to vector<3x8x8xf32>
    %105 = arith.mulf %100, %104 : vector<3x8x8xf32>
    "tpu.trace_start"() <{level = 10 : i32, message = "bqk,bkd->bqd"}> : () -> ()
    %cst_62 = arith.constant dense<0.000000e+00> : vector<3x8x8xf32>
    %106 = tpu.matmul %105, %90, %cst_62 {dimension_numbers = #tpu.dot_dimension_numbers<[2], [1], [1], [2], [0, 0, 0, 1, 1, 2], [0], [0]>} : vector<3x8x8xf32>, vector<3x8x8xf32>, vector<3x8x8xf32> -> vector<3x8x8xf32>
    "tpu.trace_stop"() : () -> ()
    %107 = vector.shape_cast %106 : vector<3x8x8xf32> to vector<24x8xf32>
    %108 = vector.extract_strided_slice %33 {offsets = [1, 0, 0], sizes = [1, 8, 32], strides = [1, 1, 1]} : vector<4x8x32xbf16> to vector<1x8x32xbf16>
    %109 = vector.shape_cast %108 : vector<1x8x32xbf16> to vector<8x32xbf16>
    %110 = arith.truncf %107 : vector<24x8xf32> to vector<24x8xbf16>
    %cst_63 = arith.constant dense<0.000000e+00> : vector<24x32xf32>
    %111 = tpu.matmul %110, %109, %cst_63 {dimension_numbers = #tpu.dot_dimension_numbers<[1], [0], [0], [1], [0, 0, 1, 1], [], []>} : vector<24x8xbf16>, vector<8x32xbf16>, vector<24x32xf32> -> vector<24x32xf32>
    %112 = arith.addf %84, %111 : vector<24x32xf32>
    %113 = vector.extract_strided_slice %55 {offsets = [0, 16], sizes = [24, 8], strides = [1, 1]} : vector<24x96xf32> to vector<24x8xf32>
    %114 = vector.shape_cast %113 : vector<24x8xf32> to vector<3x8x8xf32>
    %115 = vector.extract_strided_slice %55 {offsets = [0, 48], sizes = [24, 8], strides = [1, 1]} : vector<24x96xf32> to vector<24x8xf32>
    %116 = vector.shape_cast %115 : vector<24x8xf32> to vector<3x8x8xf32>
    %117 = vector.extract_strided_slice %55 {offsets = [0, 80], sizes = [24, 8], strides = [1, 1]} : vector<24x96xf32> to vector<24x8xf32>
    %118 = vector.shape_cast %117 : vector<24x8xf32> to vector<3x8x8xf32>
    "tpu.trace_start"() <{level = 10 : i32, message = "bqd,bkd->bqk"}> : () -> ()
    %cst_64 = arith.constant dense<0.000000e+00> : vector<3x8x8xf32>
    %119 = tpu.matmul %114, %116, %cst_64 {dimension_numbers = #tpu.dot_dimension_numbers<[2], [2], [1], [1], [0, 0, 0, 1, 1, 1], [0], [0]>} : vector<3x8x8xf32>, vector<3x8x8xf32>, vector<3x8x8xf32> -> vector<3x8x8xf32>
    "tpu.trace_stop"() : () -> ()
    %cst_65 = arith.constant 0.353553385 : f32
    %120 = vector.broadcast %cst_65 : f32 to vector<3x8x8xf32>
    %121 = arith.mulf %119, %120 : vector<3x8x8xf32>
    %122 = vector.broadcast %27 : vector<3x1x8xf32> to vector<3x8x8xf32>
    %123 = arith.addf %121, %122 : vector<3x8x8xf32>
    %cst_66 = arith.constant dense<0xFF800000> : vector<3x8xf32>
    %124 = vector.multi_reduction <maximumf>, %123, %cst_66 [2] : vector<3x8x8xf32> to vector<3x8xf32>
    %125 = vector.shape_cast %124 : vector<3x8xf32> to vector<3x8x1xf32>
    %126 = vector.broadcast %125 : vector<3x8x1xf32> to vector<3x8x8xf32>
    %127 = arith.subf %123, %126 : vector<3x8x8xf32>
    %128 = math.exp %127 : vector<3x8x8xf32>
    %cst_67 = arith.constant dense<0.000000e+00> : vector<3x8xf32>
    %129 = vector.multi_reduction <add>, %128, %cst_67 [2] : vector<3x8x8xf32> to vector<3x8xf32>
    %130 = vector.shape_cast %129 : vector<3x8xf32> to vector<3x8x1xf32>
    %131 = tpu.reciprocal %130 {approx = true} : vector<3x8x1xf32> -> vector<3x8x1xf32>
    %132 = vector.broadcast %131 : vector<3x8x1xf32> to vector<3x8x8xf32>
    %133 = arith.mulf %128, %132 : vector<3x8x8xf32>
    "tpu.trace_start"() <{level = 10 : i32, message = "bqk,bkd->bqd"}> : () -> ()
    %cst_68 = arith.constant dense<0.000000e+00> : vector<3x8x8xf32>
    %134 = tpu.matmul %133, %118, %cst_68 {dimension_numbers = #tpu.dot_dimension_numbers<[2], [1], [1], [2], [0, 0, 0, 1, 1, 2], [0], [0]>} : vector<3x8x8xf32>, vector<3x8x8xf32>, vector<3x8x8xf32> -> vector<3x8x8xf32>
    "tpu.trace_stop"() : () -> ()
    %135 = vector.shape_cast %134 : vector<3x8x8xf32> to vector<24x8xf32>
    %136 = vector.extract_strided_slice %33 {offsets = [2, 0, 0], sizes = [1, 8, 32], strides = [1, 1, 1]} : vector<4x8x32xbf16> to vector<1x8x32xbf16>
    %137 = vector.shape_cast %136 : vector<1x8x32xbf16> to vector<8x32xbf16>
    %138 = arith.truncf %135 : vector<24x8xf32> to vector<24x8xbf16>
    %cst_69 = arith.constant dense<0.000000e+00> : vector<24x32xf32>
    %139 = tpu.matmul %138, %137, %cst_69 {dimension_numbers = #tpu.dot_dimension_numbers<[1], [0], [0], [1], [0, 0, 1, 1], [], []>} : vector<24x8xbf16>, vector<8x32xbf16>, vector<24x32xf32> -> vector<24x32xf32>
    %140 = arith.addf %112, %139 : vector<24x32xf32>
    %141 = vector.extract_strided_slice %55 {offsets = [0, 24], sizes = [24, 8], strides = [1, 1]} : vector<24x96xf32> to vector<24x8xf32>
    %142 = vector.shape_cast %141 : vector<24x8xf32> to vector<3x8x8xf32>
    %143 = vector.extract_strided_slice %55 {offsets = [0, 56], sizes = [24, 8], strides = [1, 1]} : vector<24x96xf32> to vector<24x8xf32>
    %144 = vector.shape_cast %143 : vector<24x8xf32> to vector<3x8x8xf32>
    %145 = vector.extract_strided_slice %55 {offsets = [0, 88], sizes = [24, 8], strides = [1, 1]} : vector<24x96xf32> to vector<24x8xf32>
    %146 = vector.shape_cast %145 : vector<24x8xf32> to vector<3x8x8xf32>
    "tpu.trace_start"() <{level = 10 : i32, message = "bqd,bkd->bqk"}> : () -> ()
    %cst_70 = arith.constant dense<0.000000e+00> : vector<3x8x8xf32>
    %147 = tpu.matmul %142, %144, %cst_70 {dimension_numbers = #tpu.dot_dimension_numbers<[2], [2], [1], [1], [0, 0, 0, 1, 1, 1], [0], [0]>} : vector<3x8x8xf32>, vector<3x8x8xf32>, vector<3x8x8xf32> -> vector<3x8x8xf32>
    "tpu.trace_stop"() : () -> ()
    %cst_71 = arith.constant 0.353553385 : f32
    %148 = vector.broadcast %cst_71 : f32 to vector<3x8x8xf32>
    %149 = arith.mulf %147, %148 : vector<3x8x8xf32>
    %150 = vector.broadcast %27 : vector<3x1x8xf32> to vector<3x8x8xf32>
    %151 = arith.addf %149, %150 : vector<3x8x8xf32>
    %cst_72 = arith.constant dense<0xFF800000> : vector<3x8xf32>
    %152 = vector.multi_reduction <maximumf>, %151, %cst_72 [2] : vector<3x8x8xf32> to vector<3x8xf32>
    %153 = vector.shape_cast %152 : vector<3x8xf32> to vector<3x8x1xf32>
    %154 = vector.broadcast %153 : vector<3x8x1xf32> to vector<3x8x8xf32>
    %155 = arith.subf %151, %154 : vector<3x8x8xf32>
    %156 = math.exp %155 : vector<3x8x8xf32>
    %cst_73 = arith.constant dense<0.000000e+00> : vector<3x8xf32>
    %157 = vector.multi_reduction <add>, %156, %cst_73 [2] : vector<3x8x8xf32> to vector<3x8xf32>
    %158 = vector.shape_cast %157 : vector<3x8xf32> to vector<3x8x1xf32>
    %159 = tpu.reciprocal %158 {approx = true} : vector<3x8x1xf32> -> vector<3x8x1xf32>
    %160 = vector.broadcast %159 : vector<3x8x1xf32> to vector<3x8x8xf32>
    %161 = arith.mulf %156, %160 : vector<3x8x8xf32>
    "tpu.trace_start"() <{level = 10 : i32, message = "bqk,bkd->bqd"}> : () -> ()
    %cst_74 = arith.constant dense<0.000000e+00> : vector<3x8x8xf32>
    %162 = tpu.matmul %161, %146, %cst_74 {dimension_numbers = #tpu.dot_dimension_numbers<[2], [1], [1], [2], [0, 0, 0, 1, 1, 2], [0], [0]>} : vector<3x8x8xf32>, vector<3x8x8xf32>, vector<3x8x8xf32> -> vector<3x8x8xf32>
    "tpu.trace_stop"() : () -> ()
    %163 = vector.shape_cast %162 : vector<3x8x8xf32> to vector<24x8xf32>
    %164 = vector.extract_strided_slice %33 {offsets = [3, 0, 0], sizes = [1, 8, 32], strides = [1, 1, 1]} : vector<4x8x32xbf16> to vector<1x8x32xbf16>
    %165 = vector.shape_cast %164 : vector<1x8x32xbf16> to vector<8x32xbf16>
    %166 = arith.truncf %163 : vector<24x8xf32> to vector<24x8xbf16>
    %cst_75 = arith.constant dense<0.000000e+00> : vector<24x32xf32>
    %167 = tpu.matmul %166, %165, %cst_75 {dimension_numbers = #tpu.dot_dimension_numbers<[1], [0], [0], [1], [0, 0, 1, 1], [], []>} : vector<24x8xbf16>, vector<8x32xbf16>, vector<24x32xf32> -> vector<24x32xf32>
    %168 = arith.addf %140, %167 : vector<24x32xf32>
    %169 = arith.addf %25, %168 : vector<24x32xf32>
    %cst_76 = arith.constant dense<0.000000e+00> : vector<24xf32>
    %170 = vector.multi_reduction <add>, %169, %cst_76 [1] : vector<24x32xf32> to vector<24xf32>
    %171 = vector.shape_cast %170 : vector<24xf32> to vector<24x1xf32>
    %cst_77 = arith.constant 3.200000e+01 : f32
    %172 = vector.broadcast %cst_77 : f32 to vector<24x1xf32>
    %173 = arith.divf %171, %172 : vector<24x1xf32>
    %174 = vector.broadcast %173 : vector<24x1xf32> to vector<24x32xf32>
    %175 = arith.subf %169, %174 : vector<24x32xf32>
    %176 = arith.mulf %175, %175 : vector<24x32xf32>
    %cst_78 = arith.constant dense<0.000000e+00> : vector<24xf32>
    %177 = vector.multi_reduction <add>, %176, %cst_78 [1] : vector<24x32xf32> to vector<24xf32>
    %178 = vector.shape_cast %177 : vector<24xf32> to vector<24x1xf32>
    %cst_79 = arith.constant 3.200000e+01 : f32
    %179 = vector.broadcast %cst_79 : f32 to vector<24x1xf32>
    %180 = arith.divf %178, %179 : vector<24x1xf32>
    %181 = vector.broadcast %173 : vector<24x1xf32> to vector<24x32xf32>
    %182 = arith.subf %169, %181 : vector<24x32xf32>
    %cst_80 = arith.constant 9.99999996E-13 : f32
    %183 = vector.broadcast %cst_80 : f32 to vector<24x1xf32>
    %184 = arith.addf %180, %183 : vector<24x1xf32>
    %185 = math.rsqrt %184 : vector<24x1xf32>
    %186 = vector.broadcast %185 : vector<24x1xf32> to vector<24x32xf32>
    %187 = arith.mulf %182, %186 : vector<24x32xf32>
    %188 = vector.broadcast %37 : vector<1x32xf32> to vector<24x32xf32>
    %189 = arith.mulf %187, %188 : vector<24x32xf32>
    %190 = vector.broadcast %39 : vector<1x32xf32> to vector<24x32xf32>
    %191 = arith.addf %189, %190 : vector<24x32xf32>
    %192 = arith.truncf %191 : vector<24x32xf32> to vector<24x32xbf16>
    %cst_81 = arith.constant dense<0.000000e+00> : vector<24x64xf32>
    %193 = tpu.matmul %192, %41, %cst_81 {dimension_numbers = #tpu.dot_dimension_numbers<[1], [0], [0], [1], [0, 0, 1, 1], [], []>} : vector<24x32xbf16>, vector<32x64xbf16>, vector<24x64xf32> -> vector<24x64xf32>
    %194 = vector.broadcast %43 : vector<1x64xf32> to vector<24x64xf32>
    %195 = arith.addf %193, %194 : vector<24x64xf32>
    %cst_82 = arith.constant 5.000000e-01 : f32
    %196 = vector.broadcast %cst_82 : f32 to vector<24x64xf32>
    %197 = arith.mulf %196, %195 : vector<24x64xf32>
    %cst_83 = arith.constant 4.471500e-02 : f32
    %198 = vector.broadcast %cst_83 : f32 to vector<24x64xf32>
    %199 = arith.mulf %198, %195 : vector<24x64xf32>
    %200 = arith.mulf %199, %195 : vector<24x64xf32>
    %201 = arith.mulf %200, %195 : vector<24x64xf32>
    %202 = arith.addf %195, %201 : vector<24x64xf32>
    %cst_84 = arith.constant 0.797884583 : f32
    %203 = vector.broadcast %cst_84 : f32 to vector<24x64xf32>
    %204 = arith.mulf %203, %202 : vector<24x64xf32>
    %205 = math.tanh %204 : vector<24x64xf32>
    %cst_85 = arith.constant 1.000000e+00 : f32
    %206 = vector.broadcast %cst_85 : f32 to vector<24x64xf32>
    %207 = arith.addf %206, %205 : vector<24x64xf32>
    %208 = arith.mulf %197, %207 : vector<24x64xf32>
    %209 = arith.truncf %208 : vector<24x64xf32> to vector<24x64xbf16>
    %cst_86 = arith.constant dense<0.000000e+00> : vector<24x32xf32>
    %210 = tpu.matmul %209, %45, %cst_86 {dimension_numbers = #tpu.dot_dimension_numbers<[1], [0], [0], [1], [0, 0, 1, 1], [], []>} : vector<24x64xbf16>, vector<64x32xbf16>, vector<24x32xf32> -> vector<24x32xf32>
    %211 = vector.broadcast %47 : vector<1x32xf32> to vector<24x32xf32>
    %212 = arith.addf %210, %211 : vector<24x32xf32>
    %213 = arith.addf %191, %212 : vector<24x32xf32>
    %cst_87 = arith.constant dense<0.000000e+00> : vector<24xf32>
    %214 = vector.multi_reduction <add>, %213, %cst_87 [1] : vector<24x32xf32> to vector<24xf32>
    %215 = vector.shape_cast %214 : vector<24xf32> to vector<24x1xf32>
    %cst_88 = arith.constant 3.200000e+01 : f32
    %216 = vector.broadcast %cst_88 : f32 to vector<24x1xf32>
    %217 = arith.divf %215, %216 : vector<24x1xf32>
    %218 = vector.broadcast %217 : vector<24x1xf32> to vector<24x32xf32>
    %219 = arith.subf %213, %218 : vector<24x32xf32>
    %220 = arith.mulf %219, %219 : vector<24x32xf32>
    %cst_89 = arith.constant dense<0.000000e+00> : vector<24xf32>
    %221 = vector.multi_reduction <add>, %220, %cst_89 [1] : vector<24x32xf32> to vector<24xf32>
    %222 = vector.shape_cast %221 : vector<24xf32> to vector<24x1xf32>
    %cst_90 = arith.constant 3.200000e+01 : f32
    %223 = vector.broadcast %cst_90 : f32 to vector<24x1xf32>
    %224 = arith.divf %222, %223 : vector<24x1xf32>
    %225 = vector.broadcast %217 : vector<24x1xf32> to vector<24x32xf32>
    %226 = arith.subf %213, %225 : vector<24x32xf32>
    %cst_91 = arith.constant 9.99999996E-13 : f32
    %227 = vector.broadcast %cst_91 : f32 to vector<24x1xf32>
    %228 = arith.addf %224, %227 : vector<24x1xf32>
    %229 = math.rsqrt %228 : vector<24x1xf32>
    %230 = vector.broadcast %229 : vector<24x1xf32> to vector<24x32xf32>
    %231 = arith.mulf %226, %230 : vector<24x32xf32>
    %232 = vector.broadcast %49 : vector<1x32xf32> to vector<24x32xf32>
    %233 = arith.mulf %231, %232 : vector<24x32xf32>
    %234 = vector.broadcast %51 : vector<1x32xf32> to vector<24x32xf32>
    %235 = arith.addf %233, %234 : vector<24x32xf32>
    %c1 = arith.constant 1 : index
    %c0_92 = arith.constant 0 : index
    %c0_93 = arith.constant 0 : index
    %236 = vector.load %arg5[%c1, %c0_92, %c0_93] : memref<2x32x96xbf16, #tpu.memory_space<vmem>>, vector<1x32x96xbf16>
    %237 = vector.shape_cast %236 : vector<1x32x96xbf16> to vector<32x96xbf16>
    %c1_94 = arith.constant 1 : index
    %c0_95 = arith.constant 0 : index
    %c0_96 = arith.constant 0 : index
    %238 = vector.load %arg6[%c1_94, %c0_95, %c0_96] : memref<2x1x96xf32, #tpu.memory_space<vmem>>, vector<1x1x96xf32>
    %239 = vector.shape_cast %238 : vector<1x1x96xf32> to vector<1x96xf32>
    %c1_97 = arith.constant 1 : index
    %c0_98 = arith.constant 0 : index
    %c0_99 = arith.constant 0 : index
    %c0_100 = arith.constant 0 : index
    %240 = vector.load %arg7[%c1_97, %c0_98, %c0_99, %c0_100] : memref<2x4x8x32xbf16, #tpu.memory_space<vmem>>, vector<1x4x8x32xbf16>
    %241 = vector.shape_cast %240 : vector<1x4x8x32xbf16> to vector<4x8x32xbf16>
    %c1_101 = arith.constant 1 : index
    %c0_102 = arith.constant 0 : index
    %c0_103 = arith.constant 0 : index
    %242 = vector.load %arg8[%c1_101, %c0_102, %c0_103] : memref<2x1x32xf32, #tpu.memory_space<vmem>>, vector<1x1x32xf32>
    %243 = vector.shape_cast %242 : vector<1x1x32xf32> to vector<1x32xf32>
    %c1_104 = arith.constant 1 : index
    %c0_105 = arith.constant 0 : index
    %c0_106 = arith.constant 0 : index
    %244 = vector.load %arg9[%c1_104, %c0_105, %c0_106] : memref<2x1x32xf32, #tpu.memory_space<vmem>>, vector<1x1x32xf32>
    %245 = vector.shape_cast %244 : vector<1x1x32xf32> to vector<1x32xf32>
    %c1_107 = arith.constant 1 : index
    %c0_108 = arith.constant 0 : index
    %c0_109 = arith.constant 0 : index
    %246 = vector.load %arg10[%c1_107, %c0_108, %c0_109] : memref<2x1x32xf32, #tpu.memory_space<vmem>>, vector<1x1x32xf32>
    %247 = vector.shape_cast %246 : vector<1x1x32xf32> to vector<1x32xf32>
    %c1_110 = arith.constant 1 : index
    %c0_111 = arith.constant 0 : index
    %c0_112 = arith.constant 0 : index
    %248 = vector.load %arg11[%c1_110, %c0_111, %c0_112] : memref<2x32x64xbf16, #tpu.memory_space<vmem>>, vector<1x32x64xbf16>
    %249 = vector.shape_cast %248 : vector<1x32x64xbf16> to vector<32x64xbf16>
    %c1_113 = arith.constant 1 : index
    %c0_114 = arith.constant 0 : index
    %c0_115 = arith.constant 0 : index
    %250 = vector.load %arg12[%c1_113, %c0_114, %c0_115] : memref<2x1x64xf32, #tpu.memory_space<vmem>>, vector<1x1x64xf32>
    %251 = vector.shape_cast %250 : vector<1x1x64xf32> to vector<1x64xf32>
    %c1_116 = arith.constant 1 : index
    %c0_117 = arith.constant 0 : index
    %c0_118 = arith.constant 0 : index
    %252 = vector.load %arg13[%c1_116, %c0_117, %c0_118] : memref<2x64x32xbf16, #tpu.memory_space<vmem>>, vector<1x64x32xbf16>
    %253 = vector.shape_cast %252 : vector<1x64x32xbf16> to vector<64x32xbf16>
    %c1_119 = arith.constant 1 : index
    %c0_120 = arith.constant 0 : index
    %c0_121 = arith.constant 0 : index
    %254 = vector.load %arg14[%c1_119, %c0_120, %c0_121] : memref<2x1x32xf32, #tpu.memory_space<vmem>>, vector<1x1x32xf32>
    %255 = vector.shape_cast %254 : vector<1x1x32xf32> to vector<1x32xf32>
    %c1_122 = arith.constant 1 : index
    %c0_123 = arith.constant 0 : index
    %c0_124 = arith.constant 0 : index
    %256 = vector.load %arg15[%c1_122, %c0_123, %c0_124] : memref<2x1x32xf32, #tpu.memory_space<vmem>>, vector<1x1x32xf32>
    %257 = vector.shape_cast %256 : vector<1x1x32xf32> to vector<1x32xf32>
    %c1_125 = arith.constant 1 : index
    %c0_126 = arith.constant 0 : index
    %c0_127 = arith.constant 0 : index
    %258 = vector.load %arg16[%c1_125, %c0_126, %c0_127] : memref<2x1x32xf32, #tpu.memory_space<vmem>>, vector<1x1x32xf32>
    %259 = vector.shape_cast %258 : vector<1x1x32xf32> to vector<1x32xf32>
    %260 = arith.truncf %235 : vector<24x32xf32> to vector<24x32xbf16>
    %cst_128 = arith.constant dense<0.000000e+00> : vector<24x96xf32>
    %261 = tpu.matmul %260, %237, %cst_128 {dimension_numbers = #tpu.dot_dimension_numbers<[1], [0], [0], [1], [0, 0, 1, 1], [], []>} : vector<24x32xbf16>, vector<32x96xbf16>, vector<24x96xf32> -> vector<24x96xf32>
    %262 = vector.broadcast %239 : vector<1x96xf32> to vector<24x96xf32>
    %263 = arith.addf %261, %262 : vector<24x96xf32>
    %264 = vector.extract_strided_slice %263 {offsets = [0, 0], sizes = [24, 8], strides = [1, 1]} : vector<24x96xf32> to vector<24x8xf32>
    %265 = vector.shape_cast %264 : vector<24x8xf32> to vector<3x8x8xf32>
    %266 = vector.extract_strided_slice %263 {offsets = [0, 32], sizes = [24, 8], strides = [1, 1]} : vector<24x96xf32> to vector<24x8xf32>
    %267 = vector.shape_cast %266 : vector<24x8xf32> to vector<3x8x8xf32>
    %268 = vector.extract_strided_slice %263 {offsets = [0, 64], sizes = [24, 8], strides = [1, 1]} : vector<24x96xf32> to vector<24x8xf32>
    %269 = vector.shape_cast %268 : vector<24x8xf32> to vector<3x8x8xf32>
    "tpu.trace_start"() <{level = 10 : i32, message = "bqd,bkd->bqk"}> : () -> ()
    %cst_129 = arith.constant dense<0.000000e+00> : vector<3x8x8xf32>
    %270 = tpu.matmul %265, %267, %cst_129 {dimension_numbers = #tpu.dot_dimension_numbers<[2], [2], [1], [1], [0, 0, 0, 1, 1, 1], [0], [0]>} : vector<3x8x8xf32>, vector<3x8x8xf32>, vector<3x8x8xf32> -> vector<3x8x8xf32>
    "tpu.trace_stop"() : () -> ()
    %cst_130 = arith.constant 0.353553385 : f32
    %271 = vector.broadcast %cst_130 : f32 to vector<3x8x8xf32>
    %272 = arith.mulf %270, %271 : vector<3x8x8xf32>
    %273 = vector.broadcast %27 : vector<3x1x8xf32> to vector<3x8x8xf32>
    %274 = arith.addf %272, %273 : vector<3x8x8xf32>
    %cst_131 = arith.constant dense<0xFF800000> : vector<3x8xf32>
    %275 = vector.multi_reduction <maximumf>, %274, %cst_131 [2] : vector<3x8x8xf32> to vector<3x8xf32>
    %276 = vector.shape_cast %275 : vector<3x8xf32> to vector<3x8x1xf32>
    %277 = vector.broadcast %276 : vector<3x8x1xf32> to vector<3x8x8xf32>
    %278 = arith.subf %274, %277 : vector<3x8x8xf32>
    %279 = math.exp %278 : vector<3x8x8xf32>
    %cst_132 = arith.constant dense<0.000000e+00> : vector<3x8xf32>
    %280 = vector.multi_reduction <add>, %279, %cst_132 [2] : vector<3x8x8xf32> to vector<3x8xf32>
    %281 = vector.shape_cast %280 : vector<3x8xf32> to vector<3x8x1xf32>
    %282 = tpu.reciprocal %281 {approx = true} : vector<3x8x1xf32> -> vector<3x8x1xf32>
    %283 = vector.broadcast %282 : vector<3x8x1xf32> to vector<3x8x8xf32>
    %284 = arith.mulf %279, %283 : vector<3x8x8xf32>
    "tpu.trace_start"() <{level = 10 : i32, message = "bqk,bkd->bqd"}> : () -> ()
    %cst_133 = arith.constant dense<0.000000e+00> : vector<3x8x8xf32>
    %285 = tpu.matmul %284, %269, %cst_133 {dimension_numbers = #tpu.dot_dimension_numbers<[2], [1], [1], [2], [0, 0, 0, 1, 1, 2], [0], [0]>} : vector<3x8x8xf32>, vector<3x8x8xf32>, vector<3x8x8xf32> -> vector<3x8x8xf32>
    "tpu.trace_stop"() : () -> ()
    %286 = vector.shape_cast %285 : vector<3x8x8xf32> to vector<24x8xf32>
    %287 = vector.extract_strided_slice %241 {offsets = [0, 0, 0], sizes = [1, 8, 32], strides = [1, 1, 1]} : vector<4x8x32xbf16> to vector<1x8x32xbf16>
    %288 = vector.shape_cast %287 : vector<1x8x32xbf16> to vector<8x32xbf16>
    %289 = arith.truncf %286 : vector<24x8xf32> to vector<24x8xbf16>
    %cst_134 = arith.constant dense<0.000000e+00> : vector<24x32xf32>
    %290 = tpu.matmul %289, %288, %cst_134 {dimension_numbers = #tpu.dot_dimension_numbers<[1], [0], [0], [1], [0, 0, 1, 1], [], []>} : vector<24x8xbf16>, vector<8x32xbf16>, vector<24x32xf32> -> vector<24x32xf32>
    %291 = vector.broadcast %243 : vector<1x32xf32> to vector<24x32xf32>
    %292 = arith.addf %291, %290 : vector<24x32xf32>
    %293 = vector.extract_strided_slice %263 {offsets = [0, 8], sizes = [24, 8], strides = [1, 1]} : vector<24x96xf32> to vector<24x8xf32>
    %294 = vector.shape_cast %293 : vector<24x8xf32> to vector<3x8x8xf32>
    %295 = vector.extract_strided_slice %263 {offsets = [0, 40], sizes = [24, 8], strides = [1, 1]} : vector<24x96xf32> to vector<24x8xf32>
    %296 = vector.shape_cast %295 : vector<24x8xf32> to vector<3x8x8xf32>
    %297 = vector.extract_strided_slice %263 {offsets = [0, 72], sizes = [24, 8], strides = [1, 1]} : vector<24x96xf32> to vector<24x8xf32>
    %298 = vector.shape_cast %297 : vector<24x8xf32> to vector<3x8x8xf32>
    "tpu.trace_start"() <{level = 10 : i32, message = "bqd,bkd->bqk"}> : () -> ()
    %cst_135 = arith.constant dense<0.000000e+00> : vector<3x8x8xf32>
    %299 = tpu.matmul %294, %296, %cst_135 {dimension_numbers = #tpu.dot_dimension_numbers<[2], [2], [1], [1], [0, 0, 0, 1, 1, 1], [0], [0]>} : vector<3x8x8xf32>, vector<3x8x8xf32>, vector<3x8x8xf32> -> vector<3x8x8xf32>
    "tpu.trace_stop"() : () -> ()
    %cst_136 = arith.constant 0.353553385 : f32
    %300 = vector.broadcast %cst_136 : f32 to vector<3x8x8xf32>
    %301 = arith.mulf %299, %300 : vector<3x8x8xf32>
    %302 = vector.broadcast %27 : vector<3x1x8xf32> to vector<3x8x8xf32>
    %303 = arith.addf %301, %302 : vector<3x8x8xf32>
    %cst_137 = arith.constant dense<0xFF800000> : vector<3x8xf32>
    %304 = vector.multi_reduction <maximumf>, %303, %cst_137 [2] : vector<3x8x8xf32> to vector<3x8xf32>
    %305 = vector.shape_cast %304 : vector<3x8xf32> to vector<3x8x1xf32>
    %306 = vector.broadcast %305 : vector<3x8x1xf32> to vector<3x8x8xf32>
    %307 = arith.subf %303, %306 : vector<3x8x8xf32>
    %308 = math.exp %307 : vector<3x8x8xf32>
    %cst_138 = arith.constant dense<0.000000e+00> : vector<3x8xf32>
    %309 = vector.multi_reduction <add>, %308, %cst_138 [2] : vector<3x8x8xf32> to vector<3x8xf32>
    %310 = vector.shape_cast %309 : vector<3x8xf32> to vector<3x8x1xf32>
    %311 = tpu.reciprocal %310 {approx = true} : vector<3x8x1xf32> -> vector<3x8x1xf32>
    %312 = vector.broadcast %311 : vector<3x8x1xf32> to vector<3x8x8xf32>
    %313 = arith.mulf %308, %312 : vector<3x8x8xf32>
    "tpu.trace_start"() <{level = 10 : i32, message = "bqk,bkd->bqd"}> : () -> ()
    %cst_139 = arith.constant dense<0.000000e+00> : vector<3x8x8xf32>
    %314 = tpu.matmul %313, %298, %cst_139 {dimension_numbers = #tpu.dot_dimension_numbers<[2], [1], [1], [2], [0, 0, 0, 1, 1, 2], [0], [0]>} : vector<3x8x8xf32>, vector<3x8x8xf32>, vector<3x8x8xf32> -> vector<3x8x8xf32>
    "tpu.trace_stop"() : () -> ()
    %315 = vector.shape_cast %314 : vector<3x8x8xf32> to vector<24x8xf32>
    %316 = vector.extract_strided_slice %241 {offsets = [1, 0, 0], sizes = [1, 8, 32], strides = [1, 1, 1]} : vector<4x8x32xbf16> to vector<1x8x32xbf16>
    %317 = vector.shape_cast %316 : vector<1x8x32xbf16> to vector<8x32xbf16>
    %318 = arith.truncf %315 : vector<24x8xf32> to vector<24x8xbf16>
    %cst_140 = arith.constant dense<0.000000e+00> : vector<24x32xf32>
    %319 = tpu.matmul %318, %317, %cst_140 {dimension_numbers = #tpu.dot_dimension_numbers<[1], [0], [0], [1], [0, 0, 1, 1], [], []>} : vector<24x8xbf16>, vector<8x32xbf16>, vector<24x32xf32> -> vector<24x32xf32>
    %320 = arith.addf %292, %319 : vector<24x32xf32>
    %321 = vector.extract_strided_slice %263 {offsets = [0, 16], sizes = [24, 8], strides = [1, 1]} : vector<24x96xf32> to vector<24x8xf32>
    %322 = vector.shape_cast %321 : vector<24x8xf32> to vector<3x8x8xf32>
    %323 = vector.extract_strided_slice %263 {offsets = [0, 48], sizes = [24, 8], strides = [1, 1]} : vector<24x96xf32> to vector<24x8xf32>
    %324 = vector.shape_cast %323 : vector<24x8xf32> to vector<3x8x8xf32>
    %325 = vector.extract_strided_slice %263 {offsets = [0, 80], sizes = [24, 8], strides = [1, 1]} : vector<24x96xf32> to vector<24x8xf32>
    %326 = vector.shape_cast %325 : vector<24x8xf32> to vector<3x8x8xf32>
    "tpu.trace_start"() <{level = 10 : i32, message = "bqd,bkd->bqk"}> : () -> ()
    %cst_141 = arith.constant dense<0.000000e+00> : vector<3x8x8xf32>
    %327 = tpu.matmul %322, %324, %cst_141 {dimension_numbers = #tpu.dot_dimension_numbers<[2], [2], [1], [1], [0, 0, 0, 1, 1, 1], [0], [0]>} : vector<3x8x8xf32>, vector<3x8x8xf32>, vector<3x8x8xf32> -> vector<3x8x8xf32>
    "tpu.trace_stop"() : () -> ()
    %cst_142 = arith.constant 0.353553385 : f32
    %328 = vector.broadcast %cst_142 : f32 to vector<3x8x8xf32>
    %329 = arith.mulf %327, %328 : vector<3x8x8xf32>
    %330 = vector.broadcast %27 : vector<3x1x8xf32> to vector<3x8x8xf32>
    %331 = arith.addf %329, %330 : vector<3x8x8xf32>
    %cst_143 = arith.constant dense<0xFF800000> : vector<3x8xf32>
    %332 = vector.multi_reduction <maximumf>, %331, %cst_143 [2] : vector<3x8x8xf32> to vector<3x8xf32>
    %333 = vector.shape_cast %332 : vector<3x8xf32> to vector<3x8x1xf32>
    %334 = vector.broadcast %333 : vector<3x8x1xf32> to vector<3x8x8xf32>
    %335 = arith.subf %331, %334 : vector<3x8x8xf32>
    %336 = math.exp %335 : vector<3x8x8xf32>
    %cst_144 = arith.constant dense<0.000000e+00> : vector<3x8xf32>
    %337 = vector.multi_reduction <add>, %336, %cst_144 [2] : vector<3x8x8xf32> to vector<3x8xf32>
    %338 = vector.shape_cast %337 : vector<3x8xf32> to vector<3x8x1xf32>
    %339 = tpu.reciprocal %338 {approx = true} : vector<3x8x1xf32> -> vector<3x8x1xf32>
    %340 = vector.broadcast %339 : vector<3x8x1xf32> to vector<3x8x8xf32>
    %341 = arith.mulf %336, %340 : vector<3x8x8xf32>
    "tpu.trace_start"() <{level = 10 : i32, message = "bqk,bkd->bqd"}> : () -> ()
    %cst_145 = arith.constant dense<0.000000e+00> : vector<3x8x8xf32>
    %342 = tpu.matmul %341, %326, %cst_145 {dimension_numbers = #tpu.dot_dimension_numbers<[2], [1], [1], [2], [0, 0, 0, 1, 1, 2], [0], [0]>} : vector<3x8x8xf32>, vector<3x8x8xf32>, vector<3x8x8xf32> -> vector<3x8x8xf32>
    "tpu.trace_stop"() : () -> ()
    %343 = vector.shape_cast %342 : vector<3x8x8xf32> to vector<24x8xf32>
    %344 = vector.extract_strided_slice %241 {offsets = [2, 0, 0], sizes = [1, 8, 32], strides = [1, 1, 1]} : vector<4x8x32xbf16> to vector<1x8x32xbf16>
    %345 = vector.shape_cast %344 : vector<1x8x32xbf16> to vector<8x32xbf16>
    %346 = arith.truncf %343 : vector<24x8xf32> to vector<24x8xbf16>
    %cst_146 = arith.constant dense<0.000000e+00> : vector<24x32xf32>
    %347 = tpu.matmul %346, %345, %cst_146 {dimension_numbers = #tpu.dot_dimension_numbers<[1], [0], [0], [1], [0, 0, 1, 1], [], []>} : vector<24x8xbf16>, vector<8x32xbf16>, vector<24x32xf32> -> vector<24x32xf32>
    %348 = arith.addf %320, %347 : vector<24x32xf32>
    %349 = vector.extract_strided_slice %263 {offsets = [0, 24], sizes = [24, 8], strides = [1, 1]} : vector<24x96xf32> to vector<24x8xf32>
    %350 = vector.shape_cast %349 : vector<24x8xf32> to vector<3x8x8xf32>
    %351 = vector.extract_strided_slice %263 {offsets = [0, 56], sizes = [24, 8], strides = [1, 1]} : vector<24x96xf32> to vector<24x8xf32>
    %352 = vector.shape_cast %351 : vector<24x8xf32> to vector<3x8x8xf32>
    %353 = vector.extract_strided_slice %263 {offsets = [0, 88], sizes = [24, 8], strides = [1, 1]} : vector<24x96xf32> to vector<24x8xf32>
    %354 = vector.shape_cast %353 : vector<24x8xf32> to vector<3x8x8xf32>
    "tpu.trace_start"() <{level = 10 : i32, message = "bqd,bkd->bqk"}> : () -> ()
    %cst_147 = arith.constant dense<0.000000e+00> : vector<3x8x8xf32>
    %355 = tpu.matmul %350, %352, %cst_147 {dimension_numbers = #tpu.dot_dimension_numbers<[2], [2], [1], [1], [0, 0, 0, 1, 1, 1], [0], [0]>} : vector<3x8x8xf32>, vector<3x8x8xf32>, vector<3x8x8xf32> -> vector<3x8x8xf32>
    "tpu.trace_stop"() : () -> ()
    %cst_148 = arith.constant 0.353553385 : f32
    %356 = vector.broadcast %cst_148 : f32 to vector<3x8x8xf32>
    %357 = arith.mulf %355, %356 : vector<3x8x8xf32>
    %358 = vector.broadcast %27 : vector<3x1x8xf32> to vector<3x8x8xf32>
    %359 = arith.addf %357, %358 : vector<3x8x8xf32>
    %cst_149 = arith.constant dense<0xFF800000> : vector<3x8xf32>
    %360 = vector.multi_reduction <maximumf>, %359, %cst_149 [2] : vector<3x8x8xf32> to vector<3x8xf32>
    %361 = vector.shape_cast %360 : vector<3x8xf32> to vector<3x8x1xf32>
    %362 = vector.broadcast %361 : vector<3x8x1xf32> to vector<3x8x8xf32>
    %363 = arith.subf %359, %362 : vector<3x8x8xf32>
    %364 = math.exp %363 : vector<3x8x8xf32>
    %cst_150 = arith.constant dense<0.000000e+00> : vector<3x8xf32>
    %365 = vector.multi_reduction <add>, %364, %cst_150 [2] : vector<3x8x8xf32> to vector<3x8xf32>
    %366 = vector.shape_cast %365 : vector<3x8xf32> to vector<3x8x1xf32>
    %367 = tpu.reciprocal %366 {approx = true} : vector<3x8x1xf32> -> vector<3x8x1xf32>
    %368 = vector.broadcast %367 : vector<3x8x1xf32> to vector<3x8x8xf32>
    %369 = arith.mulf %364, %368 : vector<3x8x8xf32>
    "tpu.trace_start"() <{level = 10 : i32, message = "bqk,bkd->bqd"}> : () -> ()
    %cst_151 = arith.constant dense<0.000000e+00> : vector<3x8x8xf32>
    %370 = tpu.matmul %369, %354, %cst_151 {dimension_numbers = #tpu.dot_dimension_numbers<[2], [1], [1], [2], [0, 0, 0, 1, 1, 2], [0], [0]>} : vector<3x8x8xf32>, vector<3x8x8xf32>, vector<3x8x8xf32> -> vector<3x8x8xf32>
    "tpu.trace_stop"() : () -> ()
    %371 = vector.shape_cast %370 : vector<3x8x8xf32> to vector<24x8xf32>
    %372 = vector.extract_strided_slice %241 {offsets = [3, 0, 0], sizes = [1, 8, 32], strides = [1, 1, 1]} : vector<4x8x32xbf16> to vector<1x8x32xbf16>
    %373 = vector.shape_cast %372 : vector<1x8x32xbf16> to vector<8x32xbf16>
    %374 = arith.truncf %371 : vector<24x8xf32> to vector<24x8xbf16>
    %cst_152 = arith.constant dense<0.000000e+00> : vector<24x32xf32>
    %375 = tpu.matmul %374, %373, %cst_152 {dimension_numbers = #tpu.dot_dimension_numbers<[1], [0], [0], [1], [0, 0, 1, 1], [], []>} : vector<24x8xbf16>, vector<8x32xbf16>, vector<24x32xf32> -> vector<24x32xf32>
    %376 = arith.addf %348, %375 : vector<24x32xf32>
    %377 = arith.addf %235, %376 : vector<24x32xf32>
    %cst_153 = arith.constant dense<0.000000e+00> : vector<24xf32>
    %378 = vector.multi_reduction <add>, %377, %cst_153 [1] : vector<24x32xf32> to vector<24xf32>
    %379 = vector.shape_cast %378 : vector<24xf32> to vector<24x1xf32>
    %cst_154 = arith.constant 3.200000e+01 : f32
    %380 = vector.broadcast %cst_154 : f32 to vector<24x1xf32>
    %381 = arith.divf %379, %380 : vector<24x1xf32>
    %382 = vector.broadcast %381 : vector<24x1xf32> to vector<24x32xf32>
    %383 = arith.subf %377, %382 : vector<24x32xf32>
    %384 = arith.mulf %383, %383 : vector<24x32xf32>
    %cst_155 = arith.constant dense<0.000000e+00> : vector<24xf32>
    %385 = vector.multi_reduction <add>, %384, %cst_155 [1] : vector<24x32xf32> to vector<24xf32>
    %386 = vector.shape_cast %385 : vector<24xf32> to vector<24x1xf32>
    %cst_156 = arith.constant 3.200000e+01 : f32
    %387 = vector.broadcast %cst_156 : f32 to vector<24x1xf32>
    %388 = arith.divf %386, %387 : vector<24x1xf32>
    %389 = vector.broadcast %381 : vector<24x1xf32> to vector<24x32xf32>
    %390 = arith.subf %377, %389 : vector<24x32xf32>
    %cst_157 = arith.constant 9.99999996E-13 : f32
    %391 = vector.broadcast %cst_157 : f32 to vector<24x1xf32>
    %392 = arith.addf %388, %391 : vector<24x1xf32>
    %393 = math.rsqrt %392 : vector<24x1xf32>
    %394 = vector.broadcast %393 : vector<24x1xf32> to vector<24x32xf32>
    %395 = arith.mulf %390, %394 : vector<24x32xf32>
    %396 = vector.broadcast %245 : vector<1x32xf32> to vector<24x32xf32>
    %397 = arith.mulf %395, %396 : vector<24x32xf32>
    %398 = vector.broadcast %247 : vector<1x32xf32> to vector<24x32xf32>
    %399 = arith.addf %397, %398 : vector<24x32xf32>
    %400 = arith.truncf %399 : vector<24x32xf32> to vector<24x32xbf16>
    %cst_158 = arith.constant dense<0.000000e+00> : vector<24x64xf32>
    %401 = tpu.matmul %400, %249, %cst_158 {dimension_numbers = #tpu.dot_dimension_numbers<[1], [0], [0], [1], [0, 0, 1, 1], [], []>} : vector<24x32xbf16>, vector<32x64xbf16>, vector<24x64xf32> -> vector<24x64xf32>
    %402 = vector.broadcast %251 : vector<1x64xf32> to vector<24x64xf32>
    %403 = arith.addf %401, %402 : vector<24x64xf32>
    %cst_159 = arith.constant 5.000000e-01 : f32
    %404 = vector.broadcast %cst_159 : f32 to vector<24x64xf32>
    %405 = arith.mulf %404, %403 : vector<24x64xf32>
    %cst_160 = arith.constant 4.471500e-02 : f32
    %406 = vector.broadcast %cst_160 : f32 to vector<24x64xf32>
    %407 = arith.mulf %406, %403 : vector<24x64xf32>
    %408 = arith.mulf %407, %403 : vector<24x64xf32>
    %409 = arith.mulf %408, %403 : vector<24x64xf32>
    %410 = arith.addf %403, %409 : vector<24x64xf32>
    %cst_161 = arith.constant 0.797884583 : f32
    %411 = vector.broadcast %cst_161 : f32 to vector<24x64xf32>
    %412 = arith.mulf %411, %410 : vector<24x64xf32>
    %413 = math.tanh %412 : vector<24x64xf32>
    %cst_162 = arith.constant 1.000000e+00 : f32
    %414 = vector.broadcast %cst_162 : f32 to vector<24x64xf32>
    %415 = arith.addf %414, %413 : vector<24x64xf32>
    %416 = arith.mulf %405, %415 : vector<24x64xf32>
    %417 = arith.truncf %416 : vector<24x64xf32> to vector<24x64xbf16>
    %cst_163 = arith.constant dense<0.000000e+00> : vector<24x32xf32>
    %418 = tpu.matmul %417, %253, %cst_163 {dimension_numbers = #tpu.dot_dimension_numbers<[1], [0], [0], [1], [0, 0, 1, 1], [], []>} : vector<24x64xbf16>, vector<64x32xbf16>, vector<24x32xf32> -> vector<24x32xf32>
    %419 = vector.broadcast %255 : vector<1x32xf32> to vector<24x32xf32>
    %420 = arith.addf %418, %419 : vector<24x32xf32>
    %421 = arith.addf %399, %420 : vector<24x32xf32>
    %cst_164 = arith.constant dense<0.000000e+00> : vector<24xf32>
    %422 = vector.multi_reduction <add>, %421, %cst_164 [1] : vector<24x32xf32> to vector<24xf32>
    %423 = vector.shape_cast %422 : vector<24xf32> to vector<24x1xf32>
    %cst_165 = arith.constant 3.200000e+01 : f32
    %424 = vector.broadcast %cst_165 : f32 to vector<24x1xf32>
    %425 = arith.divf %423, %424 : vector<24x1xf32>
    %426 = vector.broadcast %425 : vector<24x1xf32> to vector<24x32xf32>
    %427 = arith.subf %421, %426 : vector<24x32xf32>
    %428 = arith.mulf %427, %427 : vector<24x32xf32>
    %cst_166 = arith.constant dense<0.000000e+00> : vector<24xf32>
    %429 = vector.multi_reduction <add>, %428, %cst_166 [1] : vector<24x32xf32> to vector<24xf32>
    %430 = vector.shape_cast %429 : vector<24xf32> to vector<24x1xf32>
    %cst_167 = arith.constant 3.200000e+01 : f32
    %431 = vector.broadcast %cst_167 : f32 to vector<24x1xf32>
    %432 = arith.divf %430, %431 : vector<24x1xf32>
    %433 = vector.broadcast %425 : vector<24x1xf32> to vector<24x32xf32>
    %434 = arith.subf %421, %433 : vector<24x32xf32>
    %cst_168 = arith.constant 9.99999996E-13 : f32
    %435 = vector.broadcast %cst_168 : f32 to vector<24x1xf32>
    %436 = arith.addf %432, %435 : vector<24x1xf32>
    %437 = math.rsqrt %436 : vector<24x1xf32>
    %438 = vector.broadcast %437 : vector<24x1xf32> to vector<24x32xf32>
    %439 = arith.mulf %434, %438 : vector<24x32xf32>
    %440 = vector.broadcast %257 : vector<1x32xf32> to vector<24x32xf32>
    %441 = arith.mulf %439, %440 : vector<24x32xf32>
    %442 = vector.broadcast %259 : vector<1x32xf32> to vector<24x32xf32>
    %443 = arith.addf %441, %442 : vector<24x32xf32>
    %444 = tpu.iota {dimensions = array<i32: 1>} : vector<3x24xi32>
    %445 = tpu.iota {dimensions = array<i32: 0>} : vector<3x24xi32>
    %c8_i32 = arith.constant 8 : i32
    %446 = vector.broadcast %c8_i32 : i32 to vector<3x24xi32>
    %447 = arith.muli %445, %446 : vector<3x24xi32>
    %448 = arith.cmpi eq, %444, %447 : vector<3x24xi32>
    %449 = arith.extui %448 : vector<3x24xi1> to vector<3x24xi32>
    %450 = arith.sitofp %449 : vector<3x24xi32> to vector<3x24xf32>
    %cst_169 = arith.constant dense<0.000000e+00> : vector<3x32xf32>
    %451 = tpu.matmul %450, %443, %cst_169 {dimension_numbers = #tpu.dot_dimension_numbers<[1], [0], [0], [1], [0, 0, 1, 1], [], []>} : vector<3x24xf32>, vector<24x32xf32>, vector<3x32xf32> -> vector<3x32xf32>
    %c0_170 = arith.constant 0 : index
    %c0_171 = arith.constant 0 : index
    %452 = vector.load %arg17[%c0_170, %c0_171] : memref<32x32xbf16, #tpu.memory_space<vmem>>, vector<32x32xbf16>
    %453 = arith.truncf %451 : vector<3x32xf32> to vector<3x32xbf16>
    %cst_172 = arith.constant dense<0.000000e+00> : vector<3x32xf32>
    %454 = tpu.matmul %453, %452, %cst_172 {dimension_numbers = #tpu.dot_dimension_numbers<[1], [0], [0], [1], [0, 0, 1, 1], [], []>} : vector<3x32xbf16>, vector<32x32xbf16>, vector<3x32xf32> -> vector<3x32xf32>
    %c0_173 = arith.constant 0 : index
    %c0_174 = arith.constant 0 : index
    %455 = vector.load %arg18[%c0_173, %c0_174] : memref<1x32xf32, #tpu.memory_space<vmem>>, vector<1x32xf32>
    %456 = vector.broadcast %455 : vector<1x32xf32> to vector<3x32xf32>
    %457 = arith.addf %454, %456 : vector<3x32xf32>
    %458 = math.tanh %457 : vector<3x32xf32>
    %c0_175 = arith.constant 0 : index
    %c0_176 = arith.constant 0 : index
    %c0_177 = arith.constant 0 : index
    %459 = vector.load %arg19[%c0_175, %c0_176, %c0_177] : memref<1x3x32xf32, #tpu.memory_space<vmem>>, vector<1x3x32xf32>
    %460 = vector.shape_cast %459 : vector<1x3x32xf32> to vector<3x32xf32>
    %461 = vector.shape_cast %458 : vector<3x32xf32> to vector<1x3x32xf32>
    tpu.vector_store %arg19[%c0_175, %c0_176, %c0_177], %461 {strides = array<i32>} : memref<1x3x32xf32, #tpu.memory_space<vmem>>, vector<1x3x32xf32>,
    return
  }
  func.func @transform_0(%arg0: i32) -> (i32, i32, i32) {
    %c0_i32 = arith.constant 0 : i32
    %c0_i32_0 = arith.constant 0 : i32
    %c0_i32_1 = arith.constant 0 : i32
    return %arg0, %c0_i32, %c0_i32_0 : i32, i32, i32
  }
  func.func @transform_1(%arg0: i32) -> (i32, i32, i32, i32) {
    %c0_i32 = arith.constant 0 : i32
    %c0_i32_0 = arith.constant 0 : i32
    %c0_i32_1 = arith.constant 0 : i32
    %c0_i32_2 = arith.constant 0 : i32
    return %arg0, %c0_i32, %c0_i32_0, %c0_i32_1 : i32, i32, i32, i32
  }
  func.func @transform_2(%arg0: i32) -> (i32, i32) {
    %c0_i32 = arith.constant 0 : i32
    %c0_i32_0 = arith.constant 0 : i32
    %c0_i32_1 = arith.constant 0 : i32
    return %c0_i32, %c0_i32_0 : i32, i32
  }
  func.func @transform_3(%arg0: i32) -> (i32, i32) {
    %c0_i32 = arith.constant 0 : i32
    %c0_i32_0 = arith.constant 0 : i32
    %c0_i32_1 = arith.constant 0 : i32
    return %c0_i32, %c0_i32_0 : i32, i32
  }
  func.func @transform_4(%arg0: i32) -> (i32, i32, i32) {
    %c0_i32 = arith.constant 0 : i32
    %c0_i32_0 = arith.constant 0 : i32
    %c0_i32_1 = arith.constant 0 : i32
    %c0_i32_2 = arith.constant 0 : i32
    return %c0_i32, %c0_i32_0, %c0_i32_1 : i32, i32, i32
  }
  func.func @transform_5(%arg0: i32) -> (i32, i32, i32) {
    %c0_i32 = arith.constant 0 : i32
    %c0_i32_0 = arith.constant 0 : i32
    %c0_i32_1 = arith.constant 0 : i32
    %c0_i32_2 = arith.constant 0 : i32
    return %c0_i32, %c0_i32_0, %c0_i32_1 : i32, i32, i32
  }
  func.func @transform_6(%arg0: i32) -> (i32, i32, i32, i32) {
    %c0_i32 = arith.constant 0 : i32
    %c0_i32_0 = arith.constant 0 : i32
    %c0_i32_1 = arith.constant 0 : i32
    %c0_i32_2 = arith.constant 0 : i32
    %c0_i32_3 = arith.constant 0 : i32
    return %c0_i32, %c0_i32_0, %c0_i32_1, %c0_i32_2 : i32, i32, i32, i32
  }
  func.func @transform_7(%arg0: i32) -> (i32, i32, i32) {
    %c0_i32 = arith.constant 0 : i32
    %c0_i32_0 = arith.constant 0 : i32
    %c0_i32_1 = arith.constant 0 : i32
    %c0_i32_2 = arith.constant 0 : i32
    return %c0_i32, %c0_i32_0, %c0_i32_1 : i32, i32, i32
  }
  func.func @transform_8(%arg0: i32) -> (i32, i32, i32) {
    %c0_i32 = arith.constant 0 : i32
    %c0_i32_0 = arith.constant 0 : i32
    %c0_i32_1 = arith.constant 0 : i32
    %c0_i32_2 = arith.constant 0 : i32
    return %c0_i32, %c0_i32_0, %c0_i32_1 : i32, i32, i32
  }
  func.func @transform_9(%arg0: i32) -> (i32, i32, i32) {
    %c0_i32 = arith.constant 0 : i32
    %c0_i32_0 = arith.constant 0 : i32
    %c0_i32_1 = arith.constant 0 : i32
    %c0_i32_2 = arith.constant 0 : i32
    return %c0_i32, %c0_i32_0, %c0_i32_1 : i32, i32, i32
  }
  func.func @transform_10(%arg0: i32) -> (i32, i32, i32) {
    %c0_i32 = arith.constant 0 : i32
    %c0_i32_0 = arith.constant 0 : i32
    %c0_i32_1 = arith.constant 0 : i32
    %c0_i32_2 = arith.constant 0 : i32
    return %c0_i32, %c0_i32_0, %c0_i32_1 : i32, i32, i32
  }
  func.func @transform_11(%arg0: i32) -> (i32, i32, i32) {
    %c0_i32 = arith.constant 0 : i32
    %c0_i32_0 = arith.constant 0 : i32
    %c0_i32_1 = arith.constant 0 : i32
    %c0_i32_2 = arith.constant 0 : i32
    return %c0_i32, %c0_i32_0, %c0_i32_1 : i32, i32, i32
  }
  func.func @transform_12(%arg0: i32) -> (i32, i32, i32) {
    %c0_i32 = arith.constant 0 : i32
    %c0_i32_0 = arith.constant 0 : i32
    %c0_i32_1 = arith.constant 0 : i32
    %c0_i32_2 = arith.constant 0 : i32
    return %c0_i32, %c0_i32_0, %c0_i32_1 : i32, i32, i32
  }
  func.func @transform_13(%arg0: i32) -> (i32, i32, i32) {
    %c0_i32 = arith.constant 0 : i32
    %c0_i32_0 = arith.constant 0 : i32
    %c0_i32_1 = arith.constant 0 : i32
    %c0_i32_2 = arith.constant 0 : i32
    return %c0_i32, %c0_i32_0, %c0_i32_1 : i32, i32, i32
  }
  func.func @transform_14(%arg0: i32) -> (i32, i32, i32) {
    %c0_i32 = arith.constant 0 : i32
    %c0_i32_0 = arith.constant 0 : i32
    %c0_i32_1 = arith.constant 0 : i32
    %c0_i32_2 = arith.constant 0 : i32
    return %c0_i32, %c0_i32_0, %c0_i32_1 : i32, i32, i32
  }
  func.func @transform_15(%arg0: i32) -> (i32, i32, i32) {
    %c0_i32 = arith.constant 0 : i32
    %c0_i32_0 = arith.constant 0 : i32
    %c0_i32_1 = arith.constant 0 : i32
    %c0_i32_2 = arith.constant 0 : i32
    return %c0_i32, %c0_i32_0, %c0_i32_1 : i32, i32, i32
  }
  func.func @transform_16(%arg0: i32) -> (i32, i32) {
    %c0_i32 = arith.constant 0 : i32
    %c0_i32_0 = arith.constant 0 : i32
    %c0_i32_1 = arith.constant 0 : i32
    return %c0_i32, %c0_i32_0 : i32, i32
  }
  func.func @transform_17(%arg0: i32) -> (i32, i32) {
    %c0_i32 = arith.constant 0 : i32
    %c0_i32_0 = arith.constant 0 : i32
    %c0_i32_1 = arith.constant 0 : i32
    return %c0_i32, %c0_i32_0 : i32, i32
  }
  func.func @transform_18(%arg0: i32) -> (i32, i32, i32) {
    %c0_i32 = arith.constant 0 : i32
    %c0_i32_0 = arith.constant 0 : i32
    %c0_i32_1 = arith.constant 0 : i32
    return %arg0, %c0_i32, %c0_i32_0 : i32, i32, i32
  }
}

</mosaic_0001>

<llo_original>
// kernel: hier_bert_forward.3
$region0: #{hier_bert_forward.3}
  #allocation0 [shape = 'u32[]', space=smem, size = 0x4, offset = 0x4, fixed_abs, tag = 'smem constant byte address 0x4 - core index']
  #allocation1 [shape = 'u32[72,128]{1,0:T(1,128)}', space=vmem, size = 0x9000, scoped, tag = 'internal scratch']
  %s0 = inlined_call_operand.vmem [shape: f32[2,3,32], index: 0, kind: input, shape index: {}]
  %s1 = inlined_call_operand.vmem [shape: f32[3,32], index: 1, kind: input, shape index: {}]
  %s2 = inlined_call_operand.vmem [shape: bf16[2,32,96], index: 2, kind: input, shape index: {}]
  %s3 = inlined_call_operand.vmem [shape: f32[2,1,96], index: 3, kind: input, shape index: {}]
  %s4 = inlined_call_operand.vmem [shape: bf16[2,4,8,32], index: 4, kind: input, shape index: {}]
  %s5 = inlined_call_operand.vmem [shape: f32[2,1,32], index: 5, kind: input, shape index: {}]
  %s6 = inlined_call_operand.vmem [shape: f32[2,1,32], index: 6, kind: input, shape index: {}]
  %s7 = inlined_call_operand.vmem [shape: f32[2,1,32], index: 7, kind: input, shape index: {}]
  %s8 = inlined_call_operand.vmem [shape: bf16[2,32,64], index: 8, kind: input, shape index: {}]
  %s9 = inlined_call_operand.vmem [shape: f32[2,1,64], index: 9, kind: input, shape index: {}]
  %s10 = inlined_call_operand.vmem [shape: bf16[2,64,32], index: 10, kind: input, shape index: {}]
  %s11 = inlined_call_operand.vmem [shape: f32[2,1,32], index: 11, kind: input, shape index: {}]
  %s12 = inlined_call_operand.vmem [shape: f32[2,1,32], index: 12, kind: input, shape index: {}]
  %s13 = inlined_call_operand.vmem [shape: f32[2,1,32], index: 13, kind: input, shape index: {}]
  %s14 = inlined_call_operand.vmem [shape: bf16[32,4], index: 14, kind: input, shape index: {}]
  %s15 = inlined_call_operand.vmem [shape: f32[1,4], index: 15, kind: input, shape index: {}]
  %s16 = inlined_call_operand.hbm [shape: f32[2,1,4], index: 16, kind: output, shape index: {}]
  %s17 = sld [smem:[#allocation0]]
  $region97: #{hier_bert_forward.3} parent=0
    _
  %s19 = ssub.s32 1, %s17
  %s20 = scalar_select 0, %s19, %s17
  $region1: #{hier_bert_forward.3} parent=0
    #allocation2 [shape = 'u8[1024]{0}', space=vmem, size = 0x400, scoped, tag = 'output window, operand 0']
    #allocation3 [shape = 's32[2]{0}', space=sflag, size = 0x8, scoped, tag = 'scoped memory for hier_bert_forward.3']
    %21 = vsyncpa [#allocation3], 0
    %s22 = scalar_lea.sflag [#allocation3], 1
    %23 = vsyncpa %s22, 0
    loop: start=0, step=1, limit=4
    $region2: #{hier_bert_forward.3} parent=1 // loop_pre_header
      _
    $region3: #{hier_bert_forward.3} parent=1 // loop_header
      %s25 = sphi 0, %s29
      %p26 = scmp.ge.s32.totalorder %s25, 4
      %s35 = sphi 0, %s37
      %s38 = sphi 0, %s35
      %s39 = sphi 0, %s38
      %s55 = sphi 0, %s39
      %s59 = sphi 0, %s59
      %s61 = sphi 0, %s59
      %s62 = sphi 0, %s61
      %s76 = sphi 0, %s62
      %s80 = sphi 0, %s80
      %s82 = sphi 0, %s80
      %s83 = sphi 0, %s82
      %s97 = sphi 0, %s83
      %s101 = sphi 0, %s101
      %s103 = sphi 0, %s101
      %s104 = sphi 0, %s103
      %s118 = sphi 0, %s104
      %s122 = sphi 0, %s122
      %s124 = sphi 0, %s122
      %s125 = sphi 0, %s124
      %s139 = sphi 0, %s125
      %s143 = sphi 0, %s143
      %s145 = sphi 0, %s143
      %s146 = sphi 0, %s145
      %s160 = sphi 0, %s146
      %s164 = sphi 0, %s164
      %s166 = sphi 0, %s164
      %s167 = sphi 0, %s166
      %s181 = sphi 0, %s167
      %s185 = sphi 0, %s185
      %s187 = sphi 0, %s185
      %s188 = sphi 0, %s187
      %s202 = sphi 0, %s188
      %s206 = sphi 0, %s206
      %s208 = sphi 0, %s206
      %s209 = sphi 0, %s208
      %s223 = sphi 0, %s209
      %s227 = sphi 0, %s227
      %s229 = sphi 0, %s227
      %s230 = sphi 0, %s229
      %s244 = sphi 0, %s230
      %s248 = sphi 0, %s248
      %s250 = sphi 0, %s248
      %s251 = sphi 0, %s250
      %s265 = sphi 0, %s251
      %s269 = sphi 0, %s269
      %s271 = sphi 0, %s269
      %s272 = sphi 0, %s271
      %s286 = sphi 0, %s272
      %s290 = sphi 0, %s290
      %s292 = sphi 0, %s290
      %s293 = sphi 0, %s292
      %s307 = sphi 0, %s293
      %s311 = sphi 0, %s311
      %s313 = sphi 0, %s311
      %s314 = sphi 0, %s313
      %s328 = sphi 0, %s314
      %s332 = sphi 0, %s332
      %s334 = sphi 0, %s332
      %s335 = sphi 0, %s334
      %s349 = sphi 0, %s335
      %s353 = sphi 0, %s353
      %s355 = sphi 0, %s353
      %s356 = sphi 0, %s355
      %s370 = sphi 0, %s356
      %s376 = sphi 0, %s378
      %s379 = sphi 0, %s376
      %s380 = sphi 0, %s379
      %s396 = sphi 0, %s380
    $region4: #{hier_bert_forward.3} parent=1 // loop_header_branch
      %28 = sbr.rel (%p26) target = $region8
    $region5: #{hier_bert_forward.3} parent=1 // loop_body
      %s30 = ssub.s32 %s25, 1
      %s31 = ssub.s32 %s25, 2
      %s32 = sadd.s32 %s25, 1
      %s33 = ssub.s32 %s25, %s32
      %p34 = scmp.eq.s32.totalorder %s33, 0
      %s36 = sadd.s32 %s35, 1
      %s37 = scalar_select %p34, %s35, %s36
      %p40 = pneg %p34
      %p41 = scmp.eq.s32.totalorder %s25, 1
      %p42 = por %p40, %p41
      %p43 = scmp.ne.s32.totalorder %s35, %s38
      %p44 = scmp.eq.s32.totalorder %s25, 0
      %p45 = por %p43, %p44
      %p46 = scmp.ne.s32.totalorder %s35, %s38
      %p47 = scmp.eq.s32.totalorder %s30, 1
      %p48 = por %p46, %p47
      %p49 = scmp.ne.s32.totalorder %s38, %s39
      %p50 = scmp.eq.s32.totalorder %s30, 0
      %p51 = por %p49, %p50
      %p52 = scmp.ne.s32.totalorder %s38, %s39
      %p53 = scmp.eq.s32.totalorder %s31, 1
      %p54 = por %p52, %p53
      %p56 = scmp.ne.s32.totalorder %s39, %s55
      %p57 = scmp.eq.s32.totalorder %s31, 0
      %p58 = por %p56, %p57
      %s60 = sadd.s32 %s59, 1
      %p63 = scmp.eq.s32.totalorder %s25, 1
      %p64 = scmp.ne.s32.totalorder %s59, %s61
      %p65 = scmp.eq.s32.totalorder %s25, 0
      %p66 = por %p64, %p65
      %p67 = scmp.ne.s32.totalorder %s59, %s61
      %p68 = scmp.eq.s32.totalorder %s30, 1
      %p69 = por %p67, %p68
      %p70 = scmp.ne.s32.totalorder %s61, %s62
      %p71 = scmp.eq.s32.totalorder %s30, 0
      %p72 = por %p70, %p71
      %p73 = scmp.ne.s32.totalorder %s61, %s62
      %p74 = scmp.eq.s32.totalorder %s31, 1
      %p75 = por %p73, %p74
      %p77 = scmp.ne.s32.totalorder %s62, %s76
      %p78 = scmp.eq.s32.totalorder %s31, 0
      %p79 = por %p77, %p78
      %s81 = sadd.s32 %s80, 1
      %p84 = scmp.eq.s32.totalorder %s25, 1
      %p85 = scmp.ne.s32.totalorder %s80, %s82
      %p86 = scmp.eq.s32.totalorder %s25, 0
      %p87 = por %p85, %p86
      %p88 = scmp.ne.s32.totalorder %s80, %s82
      %p89 = scmp.eq.s32.totalorder %s30, 1
      %p90 = por %p88, %p89
      %p91 = scmp.ne.s32.totalorder %s82, %s83
      %p92 = scmp.eq.s32.totalorder %s30, 0
      %p93 = por %p91, %p92
      %p94 = scmp.ne.s32.totalorder %s82, %s83
      %p95 = scmp.eq.s32.totalorder %s31, 1
      %p96 = por %p94, %p95
      %p98 = scmp.ne.s32.totalorder %s83, %s97
      %p99 = scmp.eq.s32.totalorder %s31, 0
      %p100 = por %p98, %p99
      %s102 = sadd.s32 %s101, 1
      %p105 = scmp.eq.s32.totalorder %s25, 1
      %p106 = scmp.ne.s32.totalorder %s101, %s103
      %p107 = scmp.eq.s32.totalorder %s25, 0
      %p108 = por %p106, %p107
      %p109 = scmp.ne.s32.totalorder %s101, %s103
      %p110 = scmp.eq.s32.totalorder %s30, 1
      %p111 = por %p109, %p110
      %p112 = scmp.ne.s32.totalorder %s103, %s104
      %p113 = scmp.eq.s32.totalorder %s30, 0
      %p114 = por %p112, %p113
      %p115 = scmp.ne.s32.totalorder %s103, %s104
      %p116 = scmp.eq.s32.totalorder %s31, 1
      %p117 = por %p115, %p116
      %p119 = scmp.ne.s32.totalorder %s104, %s118
      %p120 = scmp.eq.s32.totalorder %s31, 0
      %p121 = por %p119, %p120
      %s123 = sadd.s32 %s122, 1
      %p126 = scmp.eq.s32.totalorder %s25, 1
      %p127 = scmp.ne.s32.totalorder %s122, %s124
      %p128 = scmp.eq.s32.totalorder %s25, 0
      %p129 = por %p127, %p128
      %p130 = scmp.ne.s32.totalorder %s122, %s124
      %p131 = scmp.eq.s32.totalorder %s30, 1
      %p132 = por %p130, %p131
      %p133 = scmp.ne.s32.totalorder %s124, %s125
      %p134 = scmp.eq.s32.totalorder %s30, 0
      %p135 = por %p133, %p134
      %p136 = scmp.ne.s32.totalorder %s124, %s125
      %p137 = scmp.eq.s32.totalorder %s31, 1
      %p138 = por %p136, %p137
      %p140 = scmp.ne.s32.totalorder %s125, %s139
      %p141 = scmp.eq.s32.totalorder %s31, 0
      %p142 = por %p140, %p141
      %s144 = sadd.s32 %s143, 1
      %p147 = scmp.eq.s32.totalorder %s25, 1
      %p148 = scmp.ne.s32.totalorder %s143, %s145
      %p149 = scmp.eq.s32.totalorder %s25, 0
      %p150 = por %p148, %p149
      %p151 = scmp.ne.s32.totalorder %s143, %s145
      %p152 = scmp.eq.s32.totalorder %s30, 1
      %p153 = por %p151, %p152
      %p154 = scmp.ne.s32.totalorder %s145, %s146
      %p155 = scmp.eq.s32.totalorder %s30, 0
      %p156 = por %p154, %p155
      %p157 = scmp.ne.s32.totalorder %s145, %s146
      %p158 = scmp.eq.s32.totalorder %s31, 1
      %p159 = por %p157, %p158
      %p161 = scmp.ne.s32.totalorder %s146, %s160
      %p162 = scmp.eq.s32.totalorder %s31, 0
      %p163 = por %p161, %p162
      %s165 = sadd.s32 %s164, 1
      %p168 = scmp.eq.s32.totalorder %s25, 1
      %p169 = scmp.ne.s32.totalorder %s164, %s166
      %p170 = scmp.eq.s32.totalorder %s25, 0
      %p171 = por %p169, %p170
      %p172 = scmp.ne.s32.totalorder %s164, %s166
      %p173 = scmp.eq.s32.totalorder %s30, 1
      %p174 = por %p172, %p173
      %p175 = scmp.ne.s32.totalorder %s166, %s167
      %p176 = scmp.eq.s32.totalorder %s30, 0
      %p177 = por %p175, %p176
      %p178 = scmp.ne.s32.totalorder %s166, %s167
      %p179 = scmp.eq.s32.totalorder %s31, 1
      %p180 = por %p178, %p179
      %p182 = scmp.ne.s32.totalorder %s167, %s181
      %p183 = scmp.eq.s32.totalorder %s31, 0
      %p184 = por %p182, %p183
      %s186 = sadd.s32 %s185, 1
      %p189 = scmp.eq.s32.totalorder %s25, 1
      %p190 = scmp.ne.s32.totalorder %s185, %s187
      %p191 = scmp.eq.s32.totalorder %s25, 0
      %p192 = por %p190, %p191
      %p193 = scmp.ne.s32.totalorder %s185, %s187
      %p194 = scmp.eq.s32.totalorder %s30, 1
      %p195 = por %p193, %p194
      %p196 = scmp.ne.s32.totalorder %s187, %s188
      %p197 = scmp.eq.s32.totalorder %s30, 0
      %p198 = por %p196, %p197
      %p199 = scmp.ne.s32.totalorder %s187, %s188
      %p200 = scmp.eq.s32.totalorder %s31, 1
      %p201 = por %p199, %p200
      %p203 = scmp.ne.s32.totalorder %s188, %s202
      %p204 = scmp.eq.s32.totalorder %s31, 0
      %p205 = por %p203, %p204
      %s207 = sadd.s32 %s206, 1
      %p210 = scmp.eq.s32.totalorder %s25, 1
      %p211 = scmp.ne.s32.totalorder %s206, %s208
      %p212 = scmp.eq.s32.totalorder %s25, 0
      %p213 = por %p211, %p212
      %p214 = scmp.ne.s32.totalorder %s206, %s208
      %p215 = scmp.eq.s32.totalorder %s30, 1
      %p216 = por %p214, %p215
      %p217 = scmp.ne.s32.totalorder %s208, %s209
      %p218 = scmp.eq.s32.totalorder %s30, 0
      %p219 = por %p217, %p218
      %p220 = scmp.ne.s32.totalorder %s208, %s209
      %p221 = scmp.eq.s32.totalorder %s31, 1
      %p222 = por %p220, %p221
      %p224 = scmp.ne.s32.totalorder %s209, %s223
      %p225 = scmp.eq.s32.totalorder %s31, 0
      %p226 = por %p224, %p225
      %s228 = sadd.s32 %s227, 1
      %p231 = scmp.eq.s32.totalorder %s25, 1
      %p232 = scmp.ne.s32.totalorder %s227, %s229
      %p233 = scmp.eq.s32.totalorder %s25, 0
      %p234 = por %p232, %p233
      %p235 = scmp.ne.s32.totalorder %s227, %s229
      %p236 = scmp.eq.s32.totalorder %s30, 1
      %p237 = por %p235, %p236
      %p238 = scmp.ne.s32.totalorder %s229, %s230
      %p239 = scmp.eq.s32.totalorder %s30, 0
      %p240 = por %p238, %p239
      %p241 = scmp.ne.s32.totalorder %s229, %s230
      %p242 = scmp.eq.s32.totalorder %s31, 1
      %p243 = por %p241, %p242
      %p245 = scmp.ne.s32.totalorder %s230, %s244
      %p246 = scmp.eq.s32.totalorder %s31, 0
      %p247 = por %p245, %p246
      %s249 = sadd.s32 %s248, 1
      %p252 = scmp.eq.s32.totalorder %s25, 1
      %p253 = scmp.ne.s32.totalorder %s248, %s250
      %p254 = scmp.eq.s32.totalorder %s25, 0
      %p255 = por %p253, %p254
      %p256 = scmp.ne.s32.totalorder %s248, %s250
      %p257 = scmp.eq.s32.totalorder %s30, 1
      %p258 = por %p256, %p257
      %p259 = scmp.ne.s32.totalorder %s250, %s251
      %p260 = scmp.eq.s32.totalorder %s30, 0
      %p261 = por %p259, %p260
      %p262 = scmp.ne.s32.totalorder %s250, %s251
      %p263 = scmp.eq.s32.totalorder %s31, 1
      %p264 = por %p262, %p263
      %p266 = scmp.ne.s32.totalorder %s251, %s265
      %p267 = scmp.eq.s32.totalorder %s31, 0
      %p268 = por %p266, %p267
      %s270 = sadd.s32 %s269, 1
      %p273 = scmp.eq.s32.totalorder %s25, 1
      %p274 = scmp.ne.s32.totalorder %s269, %s271
      %p275 = scmp.eq.s32.totalorder %s25, 0
      %p276 = por %p274, %p275
      %p277 = scmp.ne.s32.totalorder %s269, %s271
      %p278 = scmp.eq.s32.totalorder %s30, 1
      %p279 = por %p277, %p278
      %p280 = scmp.ne.s32.totalorder %s271, %s272
      %p281 = scmp.eq.s32.totalorder %s30, 0
      %p282 = por %p280, %p281
      %p283 = scmp.ne.s32.totalorder %s271, %s272
      %p284 = scmp.eq.s32.totalorder %s31, 1
      %p285 = por %p283, %p284
      %p287 = scmp.ne.s32.totalorder %s272, %s286
      %p288 = scmp.eq.s32.totalorder %s31, 0
      %p289 = por %p287, %p288
      %s291 = sadd.s32 %s290, 1
      %p294 = scmp.eq.s32.totalorder %s25, 1
      %p295 = scmp.ne.s32.totalorder %s290, %s292
      %p296 = scmp.eq.s32.totalorder %s25, 0
      %p297 = por %p295, %p296
      %p298 = scmp.ne.s32.totalorder %s290, %s292
      %p299 = scmp.eq.s32.totalorder %s30, 1
      %p300 = por %p298, %p299
      %p301 = scmp.ne.s32.totalorder %s292, %s293
      %p302 = scmp.eq.s32.totalorder %s30, 0
      %p303 = por %p301, %p302
      %p304 = scmp.ne.s32.totalorder %s292, %s293
      %p305 = scmp.eq.s32.totalorder %s31, 1
      %p306 = por %p304, %p305
      %p308 = scmp.ne.s32.totalorder %s293, %s307
      %p309 = scmp.eq.s32.totalorder %s31, 0
      %p310 = por %p308, %p309
      %s312 = sadd.s32 %s311, 1
      %p315 = scmp.eq.s32.totalorder %s25, 1
      %p316 = scmp.ne.s32.totalorder %s311, %s313
      %p317 = scmp.eq.s32.totalorder %s25, 0
      %p318 = por %p316, %p317
      %p319 = scmp.ne.s32.totalorder %s311, %s313
      %p320 = scmp.eq.s32.totalorder %s30, 1
      %p321 = por %p319, %p320
      %p322 = scmp.ne.s32.totalorder %s313, %s314
      %p323 = scmp.eq.s32.totalorder %s30, 0
      %p324 = por %p322, %p323
      %p325 = scmp.ne.s32.totalorder %s313, %s314
      %p326 = scmp.eq.s32.totalorder %s31, 1
      %p327 = por %p325, %p326
      %p329 = scmp.ne.s32.totalorder %s314, %s328
      %p330 = scmp.eq.s32.totalorder %s31, 0
      %p331 = por %p329, %p330
      %s333 = sadd.s32 %s332, 1
      %p336 = scmp.eq.s32.totalorder %s25, 1
      %p337 = scmp.ne.s32.totalorder %s332, %s334
      %p338 = scmp.eq.s32.totalorder %s25, 0
      %p339 = por %p337, %p338
      %p340 = scmp.ne.s32.totalorder %s332, %s334
      %p341 = scmp.eq.s32.totalorder %s30, 1
      %p342 = por %p340, %p341
      %p343 = scmp.ne.s32.totalorder %s334, %s335
      %p344 = scmp.eq.s32.totalorder %s30, 0
      %p345 = por %p343, %p344
      %p346 = scmp.ne.s32.totalorder %s334, %s335
      %p347 = scmp.eq.s32.totalorder %s31, 1
      %p348 = por %p346, %p347
      %p350 = scmp.ne.s32.totalorder %s335, %s349
      %p351 = scmp.eq.s32.totalorder %s31, 0
      %p352 = por %p350, %p351
      %s354 = sadd.s32 %s353, 1
      %p357 = scmp.eq.s32.totalorder %s25, 1
      %p358 = scmp.ne.s32.totalorder %s353, %s355
      %p359 = scmp.eq.s32.totalorder %s25, 0
      %p360 = por %p358, %p359
      %p361 = scmp.ne.s32.totalorder %s353, %s355
      %p362 = scmp.eq.s32.totalorder %s30, 1
      %p363 = por %p361, %p362
      %p364 = scmp.ne.s32.totalorder %s355, %s356
      %p365 = scmp.eq.s32.totalorder %s30, 0
      %p366 = por %p364, %p365
      %p367 = scmp.ne.s32.totalorder %s355, %s356
      %p368 = scmp.eq.s32.totalorder %s31, 1
      %p369 = por %p367, %p368
      %p371 = scmp.ne.s32.totalorder %s356, %s370
      %p372 = scmp.eq.s32.totalorder %s31, 0
      %p373 = por %p371, %p372
      %s374 = ssub.s32 %s25, %s32
      %p375 = scmp.eq.s32.totalorder %s374, 0
      %s377 = sadd.s32 %s376, 1
      %s378 = scalar_select %p375, %s376, %s377
      %p381 = pneg %p375
      %p382 = scmp.eq.s32.totalorder %s25, 1
      %p383 = por %p381, %p382
      %p384 = scmp.ne.s32.totalorder %s376, %s379
      %p385 = scmp.eq.s32.totalorder %s25, 0
      %p386 = por %p384, %p385
      %p387 = scmp.ne.s32.totalorder %s376, %s379
      %p388 = scmp.eq.s32.totalorder %s30, 1
      %p389 = por %p387, %p388
      %p390 = scmp.ne.s32.totalorder %s379, %s380
      %p391 = scmp.eq.s32.totalorder %s30, 0
      %p392 = por %p390, %p391
      %p393 = scmp.ne.s32.totalorder %s379, %s380
      %p394 = scmp.eq.s32.totalorder %s31, 1
      %p395 = por %p393, %p394
      %p397 = scmp.ne.s32.totalorder %s380, %s396
      %p398 = scmp.eq.s32.totalorder %s31, 0
      %p399 = por %p397, %p398
      %p400 = scmp.le.s32.totalorder 1, %s25
      %p401 = scmp.lt.s32.totalorder %s25, 3
      %p402 = pnand %p400, %p401
      %p403 = pneg %p402
      // Predicated region
      $region9: #{hier_bert_forward.3} parent=5 // pred_check
        _
      $region10: #{hier_bert_forward.3} parent=5 // pred_check_branch
        %405 = sbr.rel (%p402) target = $region12
      $region11: #{hier_bert_forward.3} parent=5 // pred_region
        %s406 = ssub.s32 %s25, 1
        // Predicated region
        $region13: #{hier_bert_forward.3} parent=11 // pred_check
          %p407 = pneg %p72
        $region14: #{hier_bert_forward.3} parent=11 // pred_check_branch
          %409 = sbr.rel (%p407) target = $region16
        $region15: #{hier_bert_forward.3} parent=11 // pred_region
          _
        $region16: #{hier_bert_forward.3} parent=11 // pred_fallthru
          _
        // Predicated region
        $region17: #{hier_bert_forward.3} parent=11 // pred_check
          %p410 = pneg %p93
        $region18: #{hier_bert_forward.3} parent=11 // pred_check_branch
          %412 = sbr.rel (%p410) target = $region20
        $region19: #{hier_bert_forward.3} parent=11 // pred_region
          _
        $region20: #{hier_bert_forward.3} parent=11 // pred_fallthru
          _
        // Predicated region
        $region21: #{hier_bert_forward.3} parent=11 // pred_check
          %p413 = pneg %p114
        $region22: #{hier_bert_forward.3} parent=11 // pred_check_branch
          %415 = sbr.rel (%p413) target = $region24
        $region23: #{hier_bert_forward.3} parent=11 // pred_region
          _
        $region24: #{hier_bert_forward.3} parent=11 // pred_fallthru
          _
        // Predicated region
        $region25: #{hier_bert_forward.3} parent=11 // pred_check
          %p416 = pneg %p135
        $region26: #{hier_bert_forward.3} parent=11 // pred_check_branch
          %418 = sbr.rel (%p416) target = $region28
        $region27: #{hier_bert_forward.3} parent=11 // pred_region
          _
        $region28: #{hier_bert_forward.3} parent=11 // pred_fallthru
          _
        // Predicated region
        $region29: #{hier_bert_forward.3} parent=11 // pred_check
          %p419 = pneg %p156
        $region30: #{hier_bert_forward.3} parent=11 // pred_check_branch
          %421 = sbr.rel (%p419) target = $region32
        $region31: #{hier_bert_forward.3} parent=11 // pred_region
          _
        $region32: #{hier_bert_forward.3} parent=11 // pred_fallthru
          _
        // Predicated region
        $region33: #{hier_bert_forward.3} parent=11 // pred_check
          %p422 = pneg %p177
        $region34: #{hier_bert_forward.3} parent=11 // pred_check_branch
          %424 = sbr.rel (%p422) target = $region36
        $region35: #{hier_bert_forward.3} parent=11 // pred_region
          _
        $region36: #{hier_bert_forward.3} parent=11 // pred_fallthru
          _
        // Predicated region
        $region37: #{hier_bert_forward.3} parent=11 // pred_check
          %p425 = pneg %p198
        $region38: #{hier_bert_forward.3} parent=11 // pred_check_branch
          %427 = sbr.rel (%p425) target = $region40
        $region39: #{hier_bert_forward.3} parent=11 // pred_region
          _
        $region40: #{hier_bert_forward.3} parent=11 // pred_fallthru
          _
        // Predicated region
        $region41: #{hier_bert_forward.3} parent=11 // pred_check
          %p428 = pneg %p219
        $region42: #{hier_bert_forward.3} parent=11 // pred_check_branch
          %430 = sbr.rel (%p428) target = $region44
        $region43: #{hier_bert_forward.3} parent=11 // pred_region
          _
        $region44: #{hier_bert_forward.3} parent=11 // pred_fallthru
          _
        // Predicated region
        $region45: #{hier_bert_forward.3} parent=11 // pred_check
          %p431 = pneg %p240
        $region46: #{hier_bert_forward.3} parent=11 // pred_check_branch
          %433 = sbr.rel (%p431) target = $region48
        $region47: #{hier_bert_forward.3} parent=11 // pred_region
          _
        $region48: #{hier_bert_forward.3} parent=11 // pred_fallthru
          _
        // Predicated region
        $region49: #{hier_bert_forward.3} parent=11 // pred_check
          %p434 = pneg %p261
        $region50: #{hier_bert_forward.3} parent=11 // pred_check_branch
          %436 = sbr.rel (%p434) target = $region52
        $region51: #{hier_bert_forward.3} parent=11 // pred_region
          _
        $region52: #{hier_bert_forward.3} parent=11 // pred_fallthru
          _
        // Predicated region
        $region53: #{hier_bert_forward.3} parent=11 // pred_check
          %p437 = pneg %p282
        $region54: #{hier_bert_forward.3} parent=11 // pred_check_branch
          %439 = sbr.rel (%p437) target = $region56
        $region55: #{hier_bert_forward.3} parent=11 // pred_region
          _
        $region56: #{hier_bert_forward.3} parent=11 // pred_fallthru
          _
        // Predicated region
        $region57: #{hier_bert_forward.3} parent=11 // pred_check
          %p440 = pneg %p303
        $region58: #{hier_bert_forward.3} parent=11 // pred_check_branch
          %442 = sbr.rel (%p440) target = $region60
        $region59: #{hier_bert_forward.3} parent=11 // pred_region
          _
        $region60: #{hier_bert_forward.3} parent=11 // pred_fallthru
          _
        // Predicated region
        $region61: #{hier_bert_forward.3} parent=11 // pred_check
          %p443 = pneg %p324
        $region62: #{hier_bert_forward.3} parent=11 // pred_check_branch
          %445 = sbr.rel (%p443) target = $region64
        $region63: #{hier_bert_forward.3} parent=11 // pred_region
          _
        $region64: #{hier_bert_forward.3} parent=11 // pred_fallthru
          _
        // Predicated region
        $region65: #{hier_bert_forward.3} parent=11 // pred_check
          %p446 = pneg %p345
        $region66: #{hier_bert_forward.3} parent=11 // pred_check_branch
          %448 = sbr.rel (%p446) target = $region68
        $region67: #{hier_bert_forward.3} parent=11 // pred_region
          _
        $region68: #{hier_bert_forward.3} parent=11 // pred_fallthru
          _
        // Predicated region
        $region69: #{hier_bert_forward.3} parent=11 // pred_check
          %p449 = pneg %p366
        $region70: #{hier_bert_forward.3} parent=11 // pred_check_branch
          %451 = sbr.rel (%p449) target = $region72
        $region71: #{hier_bert_forward.3} parent=11 // pred_region
          _
        $region72: #{hier_bert_forward.3} parent=11 // pred_fallthru
          _
      $region12: #{hier_bert_forward.3} parent=5 // pred_fallthru
        _
      %p452 = scmp.lt.s32.totalorder %s25, 2
      // Predicated region
      $region73: #{hier_bert_forward.3} parent=5 // pred_check
        %p453 = pneg %p452
      $region74: #{hier_bert_forward.3} parent=5 // pred_check_branch
        %455 = sbr.rel (%p453) target = $region76
      $region75: #{hier_bert_forward.3} parent=5 // pred_region
        // Predicated region
        $region77: #{hier_bert_forward.3} parent=75 // pred_check
          %p456 = pneg %p45
        $region78: #{hier_bert_forward.3} parent=75 // pred_check_branch
          %458 = sbr.rel (%p456) target = $region80
        $region79: #{hier_bert_forward.3} parent=75 // pred_region
          %p459 = scmp.lt.s32.totalorder %s25, 1
          %s460 = scalar_select %p459, %s25, 1
          %s461 = smul.addr %s460, 4
          %s462 = scalar_lea.vmem %s0, %s461
        $region80: #{hier_bert_forward.3} parent=75 // pred_fallthru
          _
      $region76: #{hier_bert_forward.3} parent=5 // pred_fallthru
        _
      %p463 = scmp.le.s32.totalorder 1, %s25
      %p464 = scmp.lt.s32.totalorder %s25, 3
      %p465 = pnand %p463, %p464
      %p466 = pneg %p465
      // Predicated region
      $region81: #{hier_bert_forward.3} parent=5 // pred_check
        _
      $region82: #{hier_bert_forward.3} parent=5 // pred_check_branch
        %468 = sbr.rel (%p465) target = $region84
      $region83: #{hier_bert_forward.3} parent=5 // pred_region
        %s469 = ssub.s32 %s25, 1
        %p470 = scmp.lt.s32.totalorder %s30, 1
        %s471 = scalar_select %p470, %s30, 1
        %s472 = smul.addr %s471, 4
        %s473 = scalar_lea.vmem %s0, %s472
        %p474 = pneg %p51
        %p475 = pneg %p48
        %p476 = pneg %p72
        %p477 = pneg %p69
        %p478 = pneg %p93
        %p479 = pneg %p90
        %p480 = pneg %p114
        %p481 = pneg %p111
        %p482 = pneg %p135
        %p483 = pneg %p132
        %p484 = pneg %p156
        %p485 = pneg %p153
        %p486 = pneg %p177
        %p487 = pneg %p174
        %p488 = pneg %p198
        %p489 = pneg %p195
        %p490 = pneg %p219
        %p491 = pneg %p216
        %p492 = pneg %p240
        %p493 = pneg %p237
        %p494 = pneg %p261
        %p495 = pneg %p258
        %p496 = pneg %p282
        %p497 = pneg %p279
        %p498 = pneg %p303
        %p499 = pneg %p300
        %p500 = pneg %p324
        %p501 = pneg %p321
        %p502 = pneg %p345
        %p503 = pneg %p342
        %p504 = pneg %p366
        %p505 = pneg %p363
        %p506 = pneg %p392
        %p507 = pneg %p389
        %s508 = sand.u32 %s379, 1
        %s509 = scalar_lea.sflag [#allocation3], %s508
        %s510 = sand.u32 %s379, 1
        %s511 = scalar_lea.vmem [#allocation2], %s510
        %p512 = scmp.lt.s32.totalorder %s30, 1
        %s513 = scalar_select %p512, %s30, 1
        %s514 = smul.addr %s513, 4
        %s515 = scalar_lea.vmem %s0, %s514
        %v517 = vld [vmem:[%s515] sm:$0x7]
        %v518 = vld [vmem:[%s1] sm:$0x7]
        %v519 = vadd.f32 %v517, %v518
        %v520 = vld [vmem:[%s2] sm:$0xf]
        %v521 = vld [vmem:[%s2 + $0x4] sm:$0xf]
        %v522 = vld [vmem:[%s2 + $0x8] sm:$0xf]
        %v523 = vld [vmem:[%s2 + $0xc] sm:$0xf]
        %v524 = vld [vmem:[%s3] sm:$0x1]
        %v525 = vld [vmem:[%s4] sm:$0xf]
        %v526 = vld [vmem:[%s4 + $0x4] sm:$0xf]
        %v527 = vld [vmem:[%s4 + $0x8] sm:$0xf]
        %v528 = vld [vmem:[%s4 + $0xc] sm:$0xf]
        %v529 = vld [vmem:[%s5] sm:$0x1]
        %v530 = vld [vmem:[%s6] sm:$0x1]
        %v531 = vld [vmem:[%s7] sm:$0x1]
        %v532 = vld [vmem:[%s8] sm:$0xf]
        %v533 = vld [vmem:[%s8 + $0x4] sm:$0xf]
        %v534 = vld [vmem:[%s8 + $0x8] sm:$0xf]
        %v535 = vld [vmem:[%s8 + $0xc] sm:$0xf]
        %v536 = vld [vmem:[%s9] sm:$0x1]
        %v537 = vld [vmem:[%s10] sm:$0xf]
        %v538 = vld [vmem:[%s10 + $0x4] sm:$0xf]
        %v539 = vld [vmem:[%s10 + $0x8] sm:$0xf]
        %v540 = vld [vmem:[%s10 + $0xc] sm:$0xf]
        %v541 = vld [vmem:[%s10 + $0x10] sm:$0xf]
        %v542 = vld [vmem:[%s10 + $0x14] sm:$0xf]
        %v543 = vld [vmem:[%s10 + $0x18] sm:$0xf]
        %v544 = vld [vmem:[%s10 + $0x1c] sm:$0xf]
        %v545 = vld [vmem:[%s11] sm:$0x1]
        %v546 = vld [vmem:[%s12] sm:$0x1]
        %v547 = vld [vmem:[%s13] sm:$0x1]
        %v548 = vpack.c.bf16 %v519, %v519
        %v550 = vperm.slane %v524, 0
        %v556 = vunpack.c.l.b16 %v520
        %v557 = vunpack.c.l.b16 %v521
        %v558 = vunpack.c.l.b16 %v522
        %v559 = vunpack.c.l.b16 %v523
        %v560 = vpack.c.b16 %v557, %v556
        %v561 = vpack.c.b16 %v559, %v558
        %vm564 = vcmask 261120
        %v566 = vsel %vm564, %v548, 0
        %568 = vmatpush.bf16.msra.mxu0 0
        %569 = vmatpush.bf16.msra.mxu0 0
        %570 = vmatpush.bf16.msra.mxu0 0
        %571 = vmatpush.bf16.msra.mxu0 0
        %572 = vmatpush.bf16.msra.mxu0 0
        %573 = vmatpush.bf16.msra.mxu0 0
        %574 = vmatpush.bf16.msra.mxu0 %v561
        %575 = vmatpush.bf16.msra.mxu0 %v560
        %576 = vmatmul.bf16.gmra.mxu0 %v566
        %v577 = vpop.f32.mrf.mxu0
        %v578 = vadd.f32 %v550, %v577
        %v579 = vpop.f32.mrf.mxu0
        %580 = vdwg.mxu0
        %582 = vrot.lane.b32.xlu0 %v578, 96
        %v583 = vpop.permute.xlu0 %582
        %vm584 = vcmask 64512
        %v585 = vsel %vm584, %v578, 0
        %v587 = vsel %vm584, %v583, 0
        %589 = vmatpush.xpose.msra.mxu0 0.0
        %590 = vmatpush.xpose.msra.mxu0 0.0
        %591 = vmatpush.xpose.msra.mxu0 0.0
        %592 = vmatpush.xpose.msra.mxu0 0.0
        %593 = vmatpush.xpose.msra.mxu0 0.0
        %594 = vmatpush.xpose.msra.mxu0 0.0
        %595 = vmatpush.xpose.msra.mxu0 0.0
        %596 = vmatpush.xpose.msra.mxu0 0.0
        %597 = vmatpush.xpose.msra.mxu0 0.0
        %598 = vmatpush.xpose.msra.mxu0 0.0
        %599 = vmatpush.xpose.msra.mxu0 0.0
        %600 = vmatpush.xpose.msra.mxu0 0.0
        %601 = vmatpush.xpose.msra.mxu0 0.0
        %602 = vmatpush.xpose.msra.mxu0 0.0
        %603 = vmatpush.xpose.msra.mxu0 0.0
        %604 = vmatpush.xpose.msra.mxu0 %v587
        %605 = vmatmul.f32.gmra.mxu0 %v585
        %v606 = vpop.f32.mrf.mxu0
        %v607 = vadd.f32 0.0, %v606
        %608 = vdwg.mxu0
        %v609 = vmul.f32 %v607, 0.35355338
        %vm610 = vcmask 18432
        %v611 = vsel %vm610, %v609, -inf
        %612 = vmax.xlane.f32.xlu0 %v611
        %v613 = vpop.xlane.xlu0 %612
        %v614 = vsub.f32 %v609, %v613
        %v615 = vmul.f32 %v614, 1.442695
        %v616 = vpow.pop %v615
        %v617 = vsel %vm610, %v616, 0.0
        %618 = vadd.xlane.f32.xlu0 %v617
        %v619 = vpop.xlane.xlu0 %618
        %v620 = vrcp.pop %v619
        %v621 = vmul.f32 %v616, %v620
        %622 = vrot.lane.b32.xlu0 %v578, 64
        %v623 = vpop.permute.xlu0 %622
        %vm624 = vcmask 23552
        %v626 = vsel %vm624, %v621, 0
        %vm628 = vcmask 1042432
        %v629 = vsel %vm628, %v623, 0
        %631 = vmatpush.msra.mxu0 0.0
        %632 = vmatpush.msra.mxu0 0.0
        %633 = vmatpush.msra.mxu0 0.0
        %634 = vmatpush.msra.mxu0 0.0
        %635 = vmatpush.msra.mxu0 0.0
        %636 = vmatpush.msra.mxu0 0.0
        %637 = vmatpush.msra.mxu0 0.0
        %638 = vmatpush.msra.mxu0 0.0
        %639 = vmatpush.msra.mxu0 0.0
        %640 = vmatpush.msra.mxu0 0.0
        %641 = vmatpush.msra.mxu0 0.0
        %642 = vmatpush.msra.mxu0 0.0
        %643 = vmatpush.msra.mxu0 0.0
        %644 = vmatpush.msra.mxu0 0.0
        %645 = vmatpush.msra.mxu0 0.0
        %646 = vmatpush.msra.mxu0 %v629
        %647 = vmatmul.f32.gmra.mxu0 %v626
        %v648 = vpop.f32.mrf.mxu0
        %v649 = vadd.f32 0.0, %v648
        %650 = vdwg.mxu0
        %v651 = vpack.c.bf16 %v649, %v649
        %v653 = vsel %vm584, %v651, 0
        %vm655 = vcmask 1043456
        %v657 = vsel %vm655, %v525, 0
        %659 = vmatpush.bf16.msra.mxu0 0
        %660 = vmatpush.bf16.msra.mxu0 0
        %661 = vmatpush.bf16.msra.mxu0 0
        %662 = vmatpush.bf16.msra.mxu0 0
        %663 = vmatpush.bf16.msra.mxu0 0
        %664 = vmatpush.bf16.msra.mxu0 0
        %665 = vmatpush.bf16.msra.mxu0 0
        %666 = vmatpush.bf16.msra.mxu0 %v657
        %667 = vmatmul.bf16.gmra.mxu0 %v653
        %v668 = vpop.f32.mrf.mxu0
        %v669 = vadd.f32 0.0, %v668
        %v670 = vpop.f32.mrf.mxu0
        %671 = vdwg.mxu0
        %v673 = vperm.slane %v529, 0
        %v675 = vadd.f32 %v673, %v669
        %676 = vrot.lane.b32.xlu0 %v578, 120
        %v677 = vpop.permute.xlu0 %676
        %678 = vrot.lane.b32.xlu0 %v578, 88
        %v679 = vpop.permute.xlu0 %678
        %v680 = vsel %vm584, %v677, 0
        %v682 = vsel %vm584, %v679, 0
        %684 = vmatpush.xpose.msra.mxu0 0.0
        %685 = vmatpush.xpose.msra.mxu0 0.0
        %686 = vmatpush.xpose.msra.mxu0 0.0
        %687 = vmatpush.xpose.msra.mxu0 0.0
        %688 = vmatpush.xpose.msra.mxu0 0.0
        %689 = vmatpush.xpose.msra.mxu0 0.0
        %690 = vmatpush.xpose.msra.mxu0 0.0
        %691 = vmatpush.xpose.msra.mxu0 0.0
        %692 = vmatpush.xpose.msra.mxu0 0.0
        %693 = vmatpush.xpose.msra.mxu0 0.0
        %694 = vmatpush.xpose.msra.mxu0 0.0
        %695 = vmatpush.xpose.msra.mxu0 0.0
        %696 = vmatpush.xpose.msra.mxu0 0.0
        %697 = vmatpush.xpose.msra.mxu0 0.0
        %698 = vmatpush.xpose.msra.mxu0 0.0
        %699 = vmatpush.xpose.msra.mxu0 %v682
        %700 = vmatmul.f32.gmra.mxu0 %v680
        %v701 = vpop.f32.mrf.mxu0
        %v702 = vadd.f32 0.0, %v701
        %703 = vdwg.mxu0
        %v704 = vmul.f32 %v702, 0.35355338
        %v705 = vsel %vm610, %v704, -inf
        %706 = vmax.xlane.f32.xlu0 %v705
        %v707 = vpop.xlane.xlu0 %706
        %v708 = vsub.f32 %v704, %v707
        %v709 = vmul.f32 %v708, 1.442695
        %v710 = vpow.pop %v709
        %v711 = vsel %vm610, %v710, 0.0
        %712 = vadd.xlane.f32.xlu0 %v711
        %v713 = vpop.xlane.xlu0 %712
        %v714 = vrcp.pop %v713
        %v715 = vmul.f32 %v710, %v714
        %716 = vrot.lane.b32.xlu0 %v578, 56
        %v717 = vpop.permute.xlu0 %716
        %v719 = vsel %vm624, %v715, 0
        %v721 = vsel %vm628, %v717, 0
        %723 = vmatpush.msra.mxu0 0.0
        %724 = vmatpush.msra.mxu0 0.0
        %725 = vmatpush.msra.mxu0 0.0
        %726 = vmatpush.msra.mxu0 0.0
        %727 = vmatpush.msra.mxu0 0.0
        %728 = vmatpush.msra.mxu0 0.0
        %729 = vmatpush.msra.mxu0 0.0
        %730 = vmatpush.msra.mxu0 0.0
        %731 = vmatpush.msra.mxu0 0.0
        %732 = vmatpush.msra.mxu0 0.0
        %733 = vmatpush.msra.mxu0 0.0
        %734 = vmatpush.msra.mxu0 0.0
        %735 = vmatpush.msra.mxu0 0.0
        %736 = vmatpush.msra.mxu0 0.0
        %737 = vmatpush.msra.mxu0 0.0
        %738 = vmatpush.msra.mxu0 %v721
        %739 = vmatmul.f32.gmra.mxu0 %v719
        %v740 = vpop.f32.mrf.mxu0
        %v741 = vadd.f32 0.0, %v740
        %742 = vdwg.mxu0
        %v743 = vpack.c.bf16 %v741, %v741
        %v745 = vsel %vm584, %v743, 0
        %v748 = vsel %vm655, %v526, 0
        %750 = vmatpush.bf16.msra.mxu0 0
        %751 = vmatpush.bf16.msra.mxu0 0
        %752 = vmatpush.bf16.msra.mxu0 0
        %753 = vmatpush.bf16.msra.mxu0 0
        %754 = vmatpush.bf16.msra.mxu0 0
        %755 = vmatpush.bf16.msra.mxu0 0
        %756 = vmatpush.bf16.msra.mxu0 0
        %757 = vmatpush.bf16.msra.mxu0 %v748
        %758 = vmatmul.bf16.gmra.mxu0 %v745
        %v759 = vpop.f32.mrf.mxu0
        %v760 = vadd.f32 0.0, %v759
        %v761 = vpop.f32.mrf.mxu0
        %762 = vdwg.mxu0
        %v763 = vadd.f32 %v675, %v760
        %764 = vrot.lane.b32.xlu0 %v578, 112
        %v765 = vpop.permute.xlu0 %764
        %766 = vrot.lane.b32.xlu0 %v578, 80
        %v767 = vpop.permute.xlu0 %766
        %v768 = vsel %vm584, %v765, 0
        %v770 = vsel %vm584, %v767, 0
        %772 = vmatpush.xpose.msra.mxu0 0.0
        %773 = vmatpush.xpose.msra.mxu0 0.0
        %774 = vmatpush.xpose.msra.mxu0 0.0
        %775 = vmatpush.xpose.msra.mxu0 0.0
        %776 = vmatpush.xpose.msra.mxu0 0.0
        %777 = vmatpush.xpose.msra.mxu0 0.0
        %778 = vmatpush.xpose.msra.mxu0 0.0
        %779 = vmatpush.xpose.msra.mxu0 0.0
        %780 = vmatpush.xpose.msra.mxu0 0.0
        %781 = vmatpush.xpose.msra.mxu0 0.0
        %782 = vmatpush.xpose.msra.mxu0 0.0
        %783 = vmatpush.xpose.msra.mxu0 0.0
        %784 = vmatpush.xpose.msra.mxu0 0.0
        %785 = vmatpush.xpose.msra.mxu0 0.0
        %786 = vmatpush.xpose.msra.mxu0 0.0
        %787 = vmatpush.xpose.msra.mxu0 %v770
        %788 = vmatmul.f32.gmra.mxu0 %v768
        %v789 = vpop.f32.mrf.mxu0
        %v790 = vadd.f32 0.0, %v789
        %791 = vdwg.mxu0
        %v792 = vmul.f32 %v790, 0.35355338
        %v793 = vsel %vm610, %v792, -inf
        %794 = vmax.xlane.f32.xlu0 %v793
        %v795 = vpop.xlane.xlu0 %794
        %v796 = vsub.f32 %v792, %v795
        %v797 = vmul.f32 %v796, 1.442695
        %v798 = vpow.pop %v797
        %v799 = vsel %vm610, %v798, 0.0
        %800 = vadd.xlane.f32.xlu0 %v799
        %v801 = vpop.xlane.xlu0 %800
        %v802 = vrcp.pop %v801
        %v803 = vmul.f32 %v798, %v802
        %804 = vrot.lane.b32.xlu0 %v578, 48
        %v805 = vpop.permute.xlu0 %804
        %v807 = vsel %vm624, %v803, 0
        %v809 = vsel %vm628, %v805, 0
        %811 = vmatpush.msra.mxu0 0.0
        %812 = vmatpush.msra.mxu0 0.0
        %813 = vmatpush.msra.mxu0 0.0
        %814 = vmatpush.msra.mxu0 0.0
        %815 = vmatpush.msra.mxu0 0.0
        %816 = vmatpush.msra.mxu0 0.0
        %817 = vmatpush.msra.mxu0 0.0
        %818 = vmatpush.msra.mxu0 0.0
        %819 = vmatpush.msra.mxu0 0.0
        %820 = vmatpush.msra.mxu0 0.0
        %821 = vmatpush.msra.mxu0 0.0
        %822 = vmatpush.msra.mxu0 0.0
        %823 = vmatpush.msra.mxu0 0.0
        %824 = vmatpush.msra.mxu0 0.0
        %825 = vmatpush.msra.mxu0 0.0
        %826 = vmatpush.msra.mxu0 %v809
        %827 = vmatmul.f32.gmra.mxu0 %v807
        %v828 = vpop.f32.mrf.mxu0
        %v829 = vadd.f32 0.0, %v828
        %830 = vdwg.mxu0
        %v831 = vpack.c.bf16 %v829, %v829
        %v833 = vsel %vm584, %v831, 0
        %v836 = vsel %vm655, %v527, 0
        %838 = vmatpush.bf16.msra.mxu0 0
        %839 = vmatpush.bf16.msra.mxu0 0
        %840 = vmatpush.bf16.msra.mxu0 0
        %841 = vmatpush.bf16.msra.mxu0 0
        %842 = vmatpush.bf16.msra.mxu0 0
        %843 = vmatpush.bf16.msra.mxu0 0
        %844 = vmatpush.bf16.msra.mxu0 0
        %845 = vmatpush.bf16.msra.mxu0 %v836
        %846 = vmatmul.bf16.gmra.mxu0 %v833
        %v847 = vpop.f32.mrf.mxu0
        %v848 = vadd.f32 0.0, %v847
        %v849 = vpop.f32.mrf.mxu0
        %850 = vdwg.mxu0
        %v851 = vadd.f32 %v763, %v848
        %852 = vrot.lane.b32.xlu0 %v578, 104
        %v853 = vpop.permute.xlu0 %852
        %854 = vrot.lane.b32.xlu0 %v578, 72
        %v855 = vpop.permute.xlu0 %854
        %v856 = vsel %vm584, %v853, 0
        %v858 = vsel %vm584, %v855, 0
        %860 = vmatpush.xpose.msra.mxu0 0.0
        %861 = vmatpush.xpose.msra.mxu0 0.0
        %862 = vmatpush.xpose.msra.mxu0 0.0
        %863 = vmatpush.xpose.msra.mxu0 0.0
        %864 = vmatpush.xpose.msra.mxu0 0.0
        %865 = vmatpush.xpose.msra.mxu0 0.0
        %866 = vmatpush.xpose.msra.mxu0 0.0
        %867 = vmatpush.xpose.msra.mxu0 0.0
        %868 = vmatpush.xpose.msra.mxu0 0.0
        %869 = vmatpush.xpose.msra.mxu0 0.0
        %870 = vmatpush.xpose.msra.mxu0 0.0
        %871 = vmatpush.xpose.msra.mxu0 0.0
        %872 = vmatpush.xpose.msra.mxu0 0.0
        %873 = vmatpush.xpose.msra.mxu0 0.0
        %874 = vmatpush.xpose.msra.mxu0 0.0
        %875 = vmatpush.xpose.msra.mxu0 %v858
        %876 = vmatmul.f32.gmra.mxu0 %v856
        %v877 = vpop.f32.mrf.mxu0
        %v878 = vadd.f32 0.0, %v877
        %879 = vdwg.mxu0
        %v880 = vmul.f32 %v878, 0.35355338
        %v881 = vsel %vm610, %v880, -inf
        %882 = vmax.xlane.f32.xlu0 %v881
        %v883 = vpop.xlane.xlu0 %882
        %v884 = vsub.f32 %v880, %v883
        %v885 = vmul.f32 %v884, 1.442695
        %v886 = vpow.pop %v885
        %v887 = vsel %vm610, %v886, 0.0
        %888 = vadd.xlane.f32.xlu0 %v887
        %v889 = vpop.xlane.xlu0 %888
        %v890 = vrcp.pop %v889
        %v891 = vmul.f32 %v886, %v890
        %892 = vrot.lane.b32.xlu0 %v578, 40
        %v893 = vpop.permute.xlu0 %892
        %v895 = vsel %vm624, %v891, 0
        %v897 = vsel %vm628, %v893, 0
        %899 = vmatpush.msra.mxu0 0.0
        %900 = vmatpush.msra.mxu0 0.0
        %901 = vmatpush.msra.mxu0 0.0
        %902 = vmatpush.msra.mxu0 0.0
        %903 = vmatpush.msra.mxu0 0.0
        %904 = vmatpush.msra.mxu0 0.0
        %905 = vmatpush.msra.mxu0 0.0
        %906 = vmatpush.msra.mxu0 0.0
        %907 = vmatpush.msra.mxu0 0.0
        %908 = vmatpush.msra.mxu0 0.0
        %909 = vmatpush.msra.mxu0 0.0
        %910 = vmatpush.msra.mxu0 0.0
        %911 = vmatpush.msra.mxu0 0.0
        %912 = vmatpush.msra.mxu0 0.0
        %913 = vmatpush.msra.mxu0 0.0
        %914 = vmatpush.msra.mxu0 %v897
        %915 = vmatmul.f32.gmra.mxu0 %v895
        %v916 = vpop.f32.mrf.mxu0
        %v917 = vadd.f32 0.0, %v916
        %918 = vdwg.mxu0
        %v919 = vpack.c.bf16 %v917, %v917
        %v921 = vsel %vm584, %v919, 0
        %v924 = vsel %vm655, %v528, 0
        %926 = vmatpush.bf16.msra.mxu0 0
        %927 = vmatpush.bf16.msra.mxu0 0
        %928 = vmatpush.bf16.msra.mxu0 0
        %929 = vmatpush.bf16.msra.mxu0 0
        %930 = vmatpush.bf16.msra.mxu0 0
        %931 = vmatpush.bf16.msra.mxu0 0
        %932 = vmatpush.bf16.msra.mxu0 0
        %933 = vmatpush.bf16.msra.mxu0 %v924
        %934 = vmatmul.bf16.gmra.mxu0 %v921
        %v935 = vpop.f32.mrf.mxu0
        %v936 = vadd.f32 0.0, %v935
        %v937 = vpop.f32.mrf.mxu0
        %938 = vdwg.mxu0
        %v939 = vadd.f32 %v851, %v936
        %v940 = vadd.f32 %v519, %v939
        %vm941 = vcmask 256000
        %v942 = vsel %vm941, %v940, 0.0
        %943 = vadd.xlane.f32.xlu0 %v942
        %v944 = vpop.xlane.xlu0 %943
        %v945 = vrcp.pop 32.0
        %v946 = vmul.f32 32.0, %v945
        %v947 = vsub.f32 1.0, %v946
        %v948 = vmul.f32 %v945, %v947
        %v949 = vadd.f32 %v945, %v948
        %vm950 = vweird.f32 %v945
        %v951 = vsel %vm950, %v945, %v949
        %v952 = vmul.f32 %v944, %v951
        %v953 = vsub.f32 %v940, %v952
        %v954 = vmul.f32 %v953, %v953
        %v955 = vsel %vm941, %v954, 0.0
        %956 = vadd.xlane.f32.xlu0 %v955
        %v957 = vpop.xlane.xlu0 %956
        %v958 = vmul.f32 %v957, %v951
        %v959 = vadd.f32 %v958, 1e-12
        %v960 = vrsqrt.pop %v959
        %v961 = vmul.f32 %v960, %v959
        %v962 = vmul.f32 %v961, %v960
        %v963 = vmul.f32 0.5, %v962
        %v964 = vsub.f32 1.5, %v963
        %v965 = vmul.f32 %v960, %v964
        %vm966 = vweird.f32 %v959
        %vm967 = vweird.f32 %v960
        %vm968 = vmor %vm966, %vm967
        %v969 = vsel %vm968, %v960, %v965
        %v970 = vmul.f32 %v953, %v969
        %v972 = vperm.slane %v530, 0
        %v974 = vmul.f32 %v970, %v972
        %v976 = vperm.slane %v531, 0
        %v978 = vadd.f32 %v974, %v976
        %v979 = vpack.c.bf16 %v978, %v978
        %v981 = vperm.slane %v536, 0
        %v987 = vunpack.c.l.b16 %v532
        %v988 = vunpack.c.l.b16 %v533
        %v989 = vunpack.c.l.b16 %v534
        %v990 = vunpack.c.l.b16 %v535
        %v991 = vpack.c.b16 %v988, %v987
        %v992 = vpack.c.b16 %v990, %v989
        %v996 = vsel %vm564, %v979, 0
        %998 = vmatpush.bf16.msra.mxu0 0
        %999 = vmatpush.bf16.msra.mxu0 0
        %1000 = vmatpush.bf16.msra.mxu0 0
        %1001 = vmatpush.bf16.msra.mxu0 0
        %1002 = vmatpush.bf16.msra.mxu0 0
        %1003 = vmatpush.bf16.msra.mxu0 0
        %1004 = vmatpush.bf16.msra.mxu0 %v992
        %1005 = vmatpush.bf16.msra.mxu0 %v991
        %1006 = vmatmul.bf16.gmra.mxu0 %v996
        %v1007 = vpop.f32.mrf.mxu0
        %v1008 = vadd.f32 %v981, %v1007
        %v1009 = vpop.f32.mrf.mxu0
        %1010 = vdwg.mxu0
        %v1011 = vmul.f32 %v1008, 0.5
        %v1012 = vmul.f32 %v1008, 0.044715
        %v1013 = vmul.f32 %v1012, %v1008
        %v1014 = vmul.f32 %v1013, %v1008
        %v1015 = vadd.f32 %v1008, %v1014
        %v1016 = vmul.f32 %v1015, 0.7978846
        %v1017 = vtanh.pop %v1016
        %v1018 = vadd.f32 %v1017, 1.0
        %v1019 = vmul.f32 %v1011, %v1018
        %v1020 = vpack.c.bf16 %v1019, %v1019
        %v1022 = vperm.slane %v545, 0
        %v1032 = vunpack.c.l.b16 %v537
        %v1033 = vunpack.c.l.b16 %v538
        %v1034 = vunpack.c.l.b16 %v539
        %v1035 = vunpack.c.l.b16 %v540
        %v1036 = vunpack.c.l.b16 %v541
        %v1037 = vunpack.c.l.b16 %v542
        %v1038 = vunpack.c.l.b16 %v543
        %v1039 = vunpack.c.l.b16 %v544
        %v1040 = vpack.c.b16 %v1033, %v1032
        %v1041 = vpack.c.b16 %v1035, %v1034
        %v1042 = vpack.c.b16 %v1037, %v1036
        %v1043 = vpack.c.b16 %v1039, %v1038
        %vm1048 = vcmask 523264
        %v1050 = vsel %vm1048, %v1020, 0
        %1052 = vmatpush.bf16.msra.mxu0 0
        %1053 = vmatpush.bf16.msra.mxu0 0
        %1054 = vmatpush.bf16.msra.mxu0 0
        %1055 = vmatpush.bf16.msra.mxu0 0
        %1056 = vmatpush.bf16.msra.mxu0 %v1043
        %1057 = vmatpush.bf16.msra.mxu0 %v1042
        %1058 = vmatpush.bf16.msra.mxu0 %v1041
        %1059 = vmatpush.bf16.msra.mxu0 %v1040
        %1060 = vmatmul.bf16.gmra.mxu0 %v1050
        %v1061 = vpop.f32.mrf.mxu0
        %v1062 = vadd.f32 %v1022, %v1061
        %v1063 = vpop.f32.mrf.mxu0
        %1064 = vdwg.mxu0
        %v1065 = vadd.f32 %v978, %v1062
        %v1066 = vsel %vm941, %v1065, 0.0
        %1067 = vadd.xlane.f32.xlu0 %v1066
        %v1068 = vpop.xlane.xlu0 %1067
        %v1069 = vmul.f32 %v1068, %v951
        %v1070 = vsub.f32 %v1065, %v1069
        %v1071 = vmul.f32 %v1070, %v1070
        %v1072 = vsel %vm941, %v1071, 0.0
        %1073 = vadd.xlane.f32.xlu0 %v1072
        %v1074 = vpop.xlane.xlu0 %1073
        %v1075 = vmul.f32 %v1074, %v951
        %v1076 = vadd.f32 %v1075, 1e-12
        %v1077 = vrsqrt.pop %v1076
        %v1078 = vmul.f32 %v1077, %v1076
        %v1079 = vmul.f32 %v1078, %v1077
        %v1080 = vmul.f32 0.5, %v1079
        %v1081 = vsub.f32 1.5, %v1080
        %v1082 = vmul.f32 %v1077, %v1081
        %vm1083 = vweird.f32 %v1076
        %vm1084 = vweird.f32 %v1077
        %vm1085 = vmor %vm1083, %vm1084
        %v1086 = vsel %vm1085, %v1077, %v1082
        %v1087 = vmul.f32 %v1070, %v1086
        %v1089 = vperm.slane %v546, 0
        %v1091 = vmul.f32 %v1087, %v1089
        %v1093 = vperm.slane %v547, 0
        %v1095 = vadd.f32 %v1091, %v1093
        %s1096 = scalar_lea.vmem %s2, 16
        %v1097 = vld [vmem:[%s1096] sm:$0xf]
        %v1098 = vld [vmem:[%s1096 + $0x4] sm:$0xf]
        %v1099 = vld [vmem:[%s1096 + $0x8] sm:$0xf]
        %v1100 = vld [vmem:[%s1096 + $0xc] sm:$0xf]
        %s1101 = scalar_lea.vmem %s3, 1
        %v1102 = vld [vmem:[%s1101] sm:$0x1]
        %s1103 = scalar_lea.vmem %s4, 16
        %v1104 = vld [vmem:[%s1103] sm:$0xf]
        %v1105 = vld [vmem:[%s1103 + $0x4] sm:$0xf]
        %v1106 = vld [vmem:[%s1103 + $0x8] sm:$0xf]
        %v1107 = vld [vmem:[%s1103 + $0xc] sm:$0xf]
        %s1108 = scalar_lea.vmem %s5, 1
        %v1109 = vld [vmem:[%s1108] sm:$0x1]
        %s1110 = scalar_lea.vmem %s6, 1
        %v1111 = vld [vmem:[%s1110] sm:$0x1]
        %s1112 = scalar_lea.vmem %s7, 1
        %v1113 = vld [vmem:[%s1112] sm:$0x1]
        %s1114 = scalar_lea.vmem %s8, 16
        %v1115 = vld [vmem:[%s1114] sm:$0xf]
        %v1116 = vld [vmem:[%s1114 + $0x4] sm:$0xf]
        %v1117 = vld [vmem:[%s1114 + $0x8] sm:$0xf]
        %v1118 = vld [vmem:[%s1114 + $0xc] sm:$0xf]
        %s1119 = scalar_lea.vmem %s9, 1
        %v1120 = vld [vmem:[%s1119] sm:$0x1]
        %s1121 = scalar_lea.vmem %s10, 32
        %v1122 = vld [vmem:[%s1121] sm:$0xf]
        %v1123 = vld [vmem:[%s1121 + $0x4] sm:$0xf]
        %v1124 = vld [vmem:[%s1121 + $0x8] sm:$0xf]
        %v1125 = vld [vmem:[%s1121 + $0xc] sm:$0xf]
        %v1126 = vld [vmem:[%s1121 + $0x10] sm:$0xf]
        %v1127 = vld [vmem:[%s1121 + $0x14] sm:$0xf]
        %v1128 = vld [vmem:[%s1121 + $0x18] sm:$0xf]
        %v1129 = vld [vmem:[%s1121 + $0x1c] sm:$0xf]
        %s1130 = scalar_lea.vmem %s11, 1
        %v1131 = vld [vmem:[%s1130] sm:$0x1]
        %s1132 = scalar_lea.vmem %s12, 1
        %v1133 = vld [vmem:[%s1132] sm:$0x1]
        %s1134 = scalar_lea.vmem %s13, 1
        %v1135 = vld [vmem:[%s1134] sm:$0x1]
        %v1136 = vpack.c.bf16 %v1095, %v1095
        %v1138 = vperm.slane %v1102, 0
        %v1144 = vunpack.c.l.b16 %v1097
        %v1145 = vunpack.c.l.b16 %v1098
        %v1146 = vunpack.c.l.b16 %v1099
        %v1147 = vunpack.c.l.b16 %v1100
        %v1148 = vpack.c.b16 %v1145, %v1144
        %v1149 = vpack.c.b16 %v1147, %v1146
        %v1153 = vsel %vm564, %v1136, 0
        %1155 = vmatpush.bf16.msra.mxu0 0
        %1156 = vmatpush.bf16.msra.mxu0 0
        %1157 = vmatpush.bf16.msra.mxu0 0
        %1158 = vmatpush.bf16.msra.mxu0 0
        %1159 = vmatpush.bf16.msra.mxu0 0
        %1160 = vmatpush.bf16.msra.mxu0 0
        %1161 = vmatpush.bf16.msra.mxu0 %v1149
        %1162 = vmatpush.bf16.msra.mxu0 %v1148
        %1163 = vmatmul.bf16.gmra.mxu0 %v1153
        %v1164 = vpop.f32.mrf.mxu0
        %v1165 = vadd.f32 %v1138, %v1164
        %v1166 = vpop.f32.mrf.mxu0
        %1167 = vdwg.mxu0
        %1169 = vrot.lane.b32.xlu0 %v1165, 96
        %v1170 = vpop.permute.xlu0 %1169
        %v1171 = vsel %vm584, %v1165, 0
        %v1173 = vsel %vm584, %v1170, 0
        %1175 = vmatpush.xpose.msra.mxu0 0.0
        %1176 = vmatpush.xpose.msra.mxu0 0.0
        %1177 = vmatpush.xpose.msra.mxu0 0.0
        %1178 = vmatpush.xpose.msra.mxu0 0.0
        %1179 = vmatpush.xpose.msra.mxu0 0.0
        %1180 = vmatpush.xpose.msra.mxu0 0.0
        %1181 = vmatpush.xpose.msra.mxu0 0.0
        %1182 = vmatpush.xpose.msra.mxu0 0.0
        %1183 = vmatpush.xpose.msra.mxu0 0.0
        %1184 = vmatpush.xpose.msra.mxu0 0.0
        %1185 = vmatpush.xpose.msra.mxu0 0.0
        %1186 = vmatpush.xpose.msra.mxu0 0.0
        %1187 = vmatpush.xpose.msra.mxu0 0.0
        %1188 = vmatpush.xpose.msra.mxu0 0.0
        %1189 = vmatpush.xpose.msra.mxu0 0.0
        %1190 = vmatpush.xpose.msra.mxu0 %v1173
        %1191 = vmatmul.f32.gmra.mxu0 %v1171
        %v1192 = vpop.f32.mrf.mxu0
        %v1193 = vadd.f32 0.0, %v1192
        %1194 = vdwg.mxu0
        %v1195 = vmul.f32 %v1193, 0.35355338
        %v1196 = vsel %vm610, %v1195, -inf
        %1197 = vmax.xlane.f32.xlu0 %v1196
        %v1198 = vpop.xlane.xlu0 %1197
        %v1199 = vsub.f32 %v1195, %v1198
        %v1200 = vmul.f32 %v1199, 1.442695
        %v1201 = vpow.pop %v1200
        %v1202 = vsel %vm610, %v1201, 0.0
        %1203 = vadd.xlane.f32.xlu0 %v1202
        %v1204 = vpop.xlane.xlu0 %1203
        %v1205 = vrcp.pop %v1204
        %v1206 = vmul.f32 %v1201, %v1205
        %1207 = vrot.lane.b32.xlu0 %v1165, 64
        %v1208 = vpop.permute.xlu0 %1207
        %v1210 = vsel %vm624, %v1206, 0
        %v1212 = vsel %vm628, %v1208, 0
        %1214 = vmatpush.msra.mxu0 0.0
        %1215 = vmatpush.msra.mxu0 0.0
        %1216 = vmatpush.msra.mxu0 0.0
        %1217 = vmatpush.msra.mxu0 0.0
        %1218 = vmatpush.msra.mxu0 0.0
        %1219 = vmatpush.msra.mxu0 0.0
        %1220 = vmatpush.msra.mxu0 0.0
        %1221 = vmatpush.msra.mxu0 0.0
        %1222 = vmatpush.msra.mxu0 0.0
        %1223 = vmatpush.msra.mxu0 0.0
        %1224 = vmatpush.msra.mxu0 0.0
        %1225 = vmatpush.msra.mxu0 0.0
        %1226 = vmatpush.msra.mxu0 0.0
        %1227 = vmatpush.msra.mxu0 0.0
        %1228 = vmatpush.msra.mxu0 0.0
        %1229 = vmatpush.msra.mxu0 %v1212
        %1230 = vmatmul.f32.gmra.mxu0 %v1210
        %v1231 = vpop.f32.mrf.mxu0
        %v1232 = vadd.f32 0.0, %v1231
        %1233 = vdwg.mxu0
        %v1234 = vpack.c.bf16 %v1232, %v1232
        %v1236 = vsel %vm584, %v1234, 0
        %v1239 = vsel %vm655, %v1104, 0
        %1241 = vmatpush.bf16.msra.mxu0 0
        %1242 = vmatpush.bf16.msra.mxu0 0
        %1243 = vmatpush.bf16.msra.mxu0 0
        %1244 = vmatpush.bf16.msra.mxu0 0
        %1245 = vmatpush.bf16.msra.mxu0 0
        %1246 = vmatpush.bf16.msra.mxu0 0
        %1247 = vmatpush.bf16.msra.mxu0 0
        %1248 = vmatpush.bf16.msra.mxu0 %v1239
        %1249 = vmatmul.bf16.gmra.mxu0 %v1236
        %v1250 = vpop.f32.mrf.mxu0
        %v1251 = vadd.f32 0.0, %v1250
        %v1252 = vpop.f32.mrf.mxu0
        %1253 = vdwg.mxu0
        %v1255 = vperm.slane %v1109, 0
        %v1257 = vadd.f32 %v1255, %v1251
        %1258 = vrot.lane.b32.xlu0 %v1165, 120
        %v1259 = vpop.permute.xlu0 %1258
        %1260 = vrot.lane.b32.xlu0 %v1165, 88
        %v1261 = vpop.permute.xlu0 %1260
        %v1262 = vsel %vm584, %v1259, 0
        %v1264 = vsel %vm584, %v1261, 0
        %1266 = vmatpush.xpose.msra.mxu0 0.0
        %1267 = vmatpush.xpose.msra.mxu0 0.0
        %1268 = vmatpush.xpose.msra.mxu0 0.0
        %1269 = vmatpush.xpose.msra.mxu0 0.0
        %1270 = vmatpush.xpose.msra.mxu0 0.0
        %1271 = vmatpush.xpose.msra.mxu0 0.0
        %1272 = vmatpush.xpose.msra.mxu0 0.0
        %1273 = vmatpush.xpose.msra.mxu0 0.0
        %1274 = vmatpush.xpose.msra.mxu0 0.0
        %1275 = vmatpush.xpose.msra.mxu0 0.0
        %1276 = vmatpush.xpose.msra.mxu0 0.0
        %1277 = vmatpush.xpose.msra.mxu0 0.0
        %1278 = vmatpush.xpose.msra.mxu0 0.0
        %1279 = vmatpush.xpose.msra.mxu0 0.0
        %1280 = vmatpush.xpose.msra.mxu0 0.0
        %1281 = vmatpush.xpose.msra.mxu0 %v1264
        %1282 = vmatmul.f32.gmra.mxu0 %v1262
        %v1283 = vpop.f32.mrf.mxu0
        %v1284 = vadd.f32 0.0, %v1283
        %1285 = vdwg.mxu0
        %v1286 = vmul.f32 %v1284, 0.35355338
        %v1287 = vsel %vm610, %v1286, -inf
        %1288 = vmax.xlane.f32.xlu0 %v1287
        %v1289 = vpop.xlane.xlu0 %1288
        %v1290 = vsub.f32 %v1286, %v1289
        %v1291 = vmul.f32 %v1290, 1.442695
        %v1292 = vpow.pop %v1291
        %v1293 = vsel %vm610, %v1292, 0.0
        %1294 = vadd.xlane.f32.xlu0 %v1293
        %v1295 = vpop.xlane.xlu0 %1294
        %v1296 = vrcp.pop %v1295
        %v1297 = vmul.f32 %v1292, %v1296
        %1298 = vrot.lane.b32.xlu0 %v1165, 56
        %v1299 = vpop.permute.xlu0 %1298
        %v1301 = vsel %vm624, %v1297, 0
        %v1303 = vsel %vm628, %v1299, 0
        %1305 = vmatpush.msra.mxu0 0.0
        %1306 = vmatpush.msra.mxu0 0.0
        %1307 = vmatpush.msra.mxu0 0.0
        %1308 = vmatpush.msra.mxu0 0.0
        %1309 = vmatpush.msra.mxu0 0.0
        %1310 = vmatpush.msra.mxu0 0.0
        %1311 = vmatpush.msra.mxu0 0.0
        %1312 = vmatpush.msra.mxu0 0.0
        %1313 = vmatpush.msra.mxu0 0.0
        %1314 = vmatpush.msra.mxu0 0.0
        %1315 = vmatpush.msra.mxu0 0.0
        %1316 = vmatpush.msra.mxu0 0.0
        %1317 = vmatpush.msra.mxu0 0.0
        %1318 = vmatpush.msra.mxu0 0.0
        %1319 = vmatpush.msra.mxu0 0.0
        %1320 = vmatpush.msra.mxu0 %v1303
        %1321 = vmatmul.f32.gmra.mxu0 %v1301
        %v1322 = vpop.f32.mrf.mxu0
        %v1323 = vadd.f32 0.0, %v1322
        %1324 = vdwg.mxu0
        %v1325 = vpack.c.bf16 %v1323, %v1323
        %v1327 = vsel %vm584, %v1325, 0
        %v1330 = vsel %vm655, %v1105, 0
        %1332 = vmatpush.bf16.msra.mxu0 0
        %1333 = vmatpush.bf16.msra.mxu0 0
        %1334 = vmatpush.bf16.msra.mxu0 0
        %1335 = vmatpush.bf16.msra.mxu0 0
        %1336 = vmatpush.bf16.msra.mxu0 0
        %1337 = vmatpush.bf16.msra.mxu0 0
        %1338 = vmatpush.bf16.msra.mxu0 0
        %1339 = vmatpush.bf16.msra.mxu0 %v1330
        %1340 = vmatmul.bf16.gmra.mxu0 %v1327
        %v1341 = vpop.f32.mrf.mxu0
        %v1342 = vadd.f32 0.0, %v1341
        %v1343 = vpop.f32.mrf.mxu0
        %1344 = vdwg.mxu0
        %v1345 = vadd.f32 %v1257, %v1342
        %1346 = vrot.lane.b32.xlu0 %v1165, 112
        %v1347 = vpop.permute.xlu0 %1346
        %1348 = vrot.lane.b32.xlu0 %v1165, 80
        %v1349 = vpop.permute.xlu0 %1348
        %v1350 = vsel %vm584, %v1347, 0
        %v1352 = vsel %vm584, %v1349, 0
        %1354 = vmatpush.xpose.msra.mxu0 0.0
        %1355 = vmatpush.xpose.msra.mxu0 0.0
        %1356 = vmatpush.xpose.msra.mxu0 0.0
        %1357 = vmatpush.xpose.msra.mxu0 0.0
        %1358 = vmatpush.xpose.msra.mxu0 0.0
        %1359 = vmatpush.xpose.msra.mxu0 0.0
        %1360 = vmatpush.xpose.msra.mxu0 0.0
        %1361 = vmatpush.xpose.msra.mxu0 0.0
        %1362 = vmatpush.xpose.msra.mxu0 0.0
        %1363 = vmatpush.xpose.msra.mxu0 0.0
        %1364 = vmatpush.xpose.msra.mxu0 0.0
        %1365 = vmatpush.xpose.msra.mxu0 0.0
        %1366 = vmatpush.xpose.msra.mxu0 0.0
        %1367 = vmatpush.xpose.msra.mxu0 0.0
        %1368 = vmatpush.xpose.msra.mxu0 0.0
        %1369 = vmatpush.xpose.msra.mxu0 %v1352
        %1370 = vmatmul.f32.gmra.mxu0 %v1350
        %v1371 = vpop.f32.mrf.mxu0
        %v1372 = vadd.f32 0.0, %v1371
        %1373 = vdwg.mxu0
        %v1374 = vmul.f32 %v1372, 0.35355338
        %v1375 = vsel %vm610, %v1374, -inf
        %1376 = vmax.xlane.f32.xlu0 %v1375
        %v1377 = vpop.xlane.xlu0 %1376
        %v1378 = vsub.f32 %v1374, %v1377
        %v1379 = vmul.f32 %v1378, 1.442695
        %v1380 = vpow.pop %v1379
        %v1381 = vsel %vm610, %v1380, 0.0
        %1382 = vadd.xlane.f32.xlu0 %v1381
        %v1383 = vpop.xlane.xlu0 %1382
        %v1384 = vrcp.pop %v1383
        %v1385 = vmul.f32 %v1380, %v1384
        %1386 = vrot.lane.b32.xlu0 %v1165, 48
        %v1387 = vpop.permute.xlu0 %1386
        %v1389 = vsel %vm624, %v1385, 0
        %v1391 = vsel %vm628, %v1387, 0
        %1393 = vmatpush.msra.mxu0 0.0
        %1394 = vmatpush.msra.mxu0 0.0
        %1395 = vmatpush.msra.mxu0 0.0
        %1396 = vmatpush.msra.mxu0 0.0
        %1397 = vmatpush.msra.mxu0 0.0
        %1398 = vmatpush.msra.mxu0 0.0
        %1399 = vmatpush.msra.mxu0 0.0
        %1400 = vmatpush.msra.mxu0 0.0
        %1401 = vmatpush.msra.mxu0 0.0
        %1402 = vmatpush.msra.mxu0 0.0
        %1403 = vmatpush.msra.mxu0 0.0
        %1404 = vmatpush.msra.mxu0 0.0
        %1405 = vmatpush.msra.mxu0 0.0
        %1406 = vmatpush.msra.mxu0 0.0
        %1407 = vmatpush.msra.mxu0 0.0
        %1408 = vmatpush.msra.mxu0 %v1391
        %1409 = vmatmul.f32.gmra.mxu0 %v1389
        %v1410 = vpop.f32.mrf.mxu0
        %v1411 = vadd.f32 0.0, %v1410
        %1412 = vdwg.mxu0
        %v1413 = vpack.c.bf16 %v1411, %v1411
        %v1415 = vsel %vm584, %v1413, 0
        %v1418 = vsel %vm655, %v1106, 0
        %1420 = vmatpush.bf16.msra.mxu0 0
        %1421 = vmatpush.bf16.msra.mxu0 0
        %1422 = vmatpush.bf16.msra.mxu0 0
        %1423 = vmatpush.bf16.msra.mxu0 0
        %1424 = vmatpush.bf16.msra.mxu0 0
        %1425 = vmatpush.bf16.msra.mxu0 0
        %1426 = vmatpush.bf16.msra.mxu0 0
        %1427 = vmatpush.bf16.msra.mxu0 %v1418
        %1428 = vmatmul.bf16.gmra.mxu0 %v1415
        %v1429 = vpop.f32.mrf.mxu0
        %v1430 = vadd.f32 0.0, %v1429
        %v1431 = vpop.f32.mrf.mxu0
        %1432 = vdwg.mxu0
        %v1433 = vadd.f32 %v1345, %v1430
        %1434 = vrot.lane.b32.xlu0 %v1165, 104
        %v1435 = vpop.permute.xlu0 %1434
        %1436 = vrot.lane.b32.xlu0 %v1165, 72
        %v1437 = vpop.permute.xlu0 %1436
        %v1438 = vsel %vm584, %v1435, 0
        %v1440 = vsel %vm584, %v1437, 0
        %1442 = vmatpush.xpose.msra.mxu0 0.0
        %1443 = vmatpush.xpose.msra.mxu0 0.0
        %1444 = vmatpush.xpose.msra.mxu0 0.0
        %1445 = vmatpush.xpose.msra.mxu0 0.0
        %1446 = vmatpush.xpose.msra.mxu0 0.0
        %1447 = vmatpush.xpose.msra.mxu0 0.0
        %1448 = vmatpush.xpose.msra.mxu0 0.0
        %1449 = vmatpush.xpose.msra.mxu0 0.0
        %1450 = vmatpush.xpose.msra.mxu0 0.0
        %1451 = vmatpush.xpose.msra.mxu0 0.0
        %1452 = vmatpush.xpose.msra.mxu0 0.0
        %1453 = vmatpush.xpose.msra.mxu0 0.0
        %1454 = vmatpush.xpose.msra.mxu0 0.0
        %1455 = vmatpush.xpose.msra.mxu0 0.0
        %1456 = vmatpush.xpose.msra.mxu0 0.0
        %1457 = vmatpush.xpose.msra.mxu0 %v1440
        %1458 = vmatmul.f32.gmra.mxu0 %v1438
        %v1459 = vpop.f32.mrf.mxu0
        %v1460 = vadd.f32 0.0, %v1459
        %1461 = vdwg.mxu0
        %v1462 = vmul.f32 %v1460, 0.35355338
        %v1463 = vsel %vm610, %v1462, -inf
        %1464 = vmax.xlane.f32.xlu0 %v1463
        %v1465 = vpop.xlane.xlu0 %1464
        %v1466 = vsub.f32 %v1462, %v1465
        %v1467 = vmul.f32 %v1466, 1.442695
        %v1468 = vpow.pop %v1467
        %v1469 = vsel %vm610, %v1468, 0.0
        %1470 = vadd.xlane.f32.xlu0 %v1469
        %v1471 = vpop.xlane.xlu0 %1470
        %v1472 = vrcp.pop %v1471
        %v1473 = vmul.f32 %v1468, %v1472
        %1474 = vrot.lane.b32.xlu0 %v1165, 40
        %v1475 = vpop.permute.xlu0 %1474
        %v1477 = vsel %vm624, %v1473, 0
        %v1479 = vsel %vm628, %v1475, 0
        %1481 = vmatpush.msra.mxu0 0.0
        %1482 = vmatpush.msra.mxu0 0.0
        %1483 = vmatpush.msra.mxu0 0.0
        %1484 = vmatpush.msra.mxu0 0.0
        %1485 = vmatpush.msra.mxu0 0.0
        %1486 = vmatpush.msra.mxu0 0.0
        %1487 = vmatpush.msra.mxu0 0.0
        %1488 = vmatpush.msra.mxu0 0.0
        %1489 = vmatpush.msra.mxu0 0.0
        %1490 = vmatpush.msra.mxu0 0.0
        %1491 = vmatpush.msra.mxu0 0.0
        %1492 = vmatpush.msra.mxu0 0.0
        %1493 = vmatpush.msra.mxu0 0.0
        %1494 = vmatpush.msra.mxu0 0.0
        %1495 = vmatpush.msra.mxu0 0.0
        %1496 = vmatpush.msra.mxu0 %v1479
        %1497 = vmatmul.f32.gmra.mxu0 %v1477
        %v1498 = vpop.f32.mrf.mxu0
        %v1499 = vadd.f32 0.0, %v1498
        %1500 = vdwg.mxu0
        %v1501 = vpack.c.bf16 %v1499, %v1499
        %v1503 = vsel %vm584, %v1501, 0
        %v1506 = vsel %vm655, %v1107, 0
        %1508 = vmatpush.bf16.msra.mxu0 0
        %1509 = vmatpush.bf16.msra.mxu0 0
        %1510 = vmatpush.bf16.msra.mxu0 0
        %1511 = vmatpush.bf16.msra.mxu0 0
        %1512 = vmatpush.bf16.msra.mxu0 0
        %1513 = vmatpush.bf16.msra.mxu0 0
        %1514 = vmatpush.bf16.msra.mxu0 0
        %1515 = vmatpush.bf16.msra.mxu0 %v1506
        %1516 = vmatmul.bf16.gmra.mxu0 %v1503
        %v1517 = vpop.f32.mrf.mxu0
        %v1518 = vadd.f32 0.0, %v1517
        %v1519 = vpop.f32.mrf.mxu0
        %1520 = vdwg.mxu0
        %v1521 = vadd.f32 %v1433, %v1518
        %v1522 = vadd.f32 %v1095, %v1521
        %v1523 = vsel %vm941, %v1522, 0.0
        %1524 = vadd.xlane.f32.xlu0 %v1523
        %v1525 = vpop.xlane.xlu0 %1524
        %v1526 = vmul.f32 %v1525, %v951
        %v1527 = vsub.f32 %v1522, %v1526
        %v1528 = vmul.f32 %v1527, %v1527
        %v1529 = vsel %vm941, %v1528, 0.0
        %1530 = vadd.xlane.f32.xlu0 %v1529
        %v1531 = vpop.xlane.xlu0 %1530
        %v1532 = vmul.f32 %v1531, %v951
        %v1533 = vadd.f32 %v1532, 1e-12
        %v1534 = vrsqrt.pop %v1533
        %v1535 = vmul.f32 %v1534, %v1533
        %v1536 = vmul.f32 %v1535, %v1534
        %v1537 = vmul.f32 0.5, %v1536
        %v1538 = vsub.f32 1.5, %v1537
        %v1539 = vmul.f32 %v1534, %v1538
        %vm1540 = vweird.f32 %v1533
        %vm1541 = vweird.f32 %v1534
        %vm1542 = vmor %vm1540, %vm1541
        %v1543 = vsel %vm1542, %v1534, %v1539
        %v1544 = vmul.f32 %v1527, %v1543
        %v1546 = vperm.slane %v1111, 0
        %v1548 = vmul.f32 %v1544, %v1546
        %v1550 = vperm.slane %v1113, 0
        %v1552 = vadd.f32 %v1548, %v1550
        %v1553 = vpack.c.bf16 %v1552, %v1552
        %v1555 = vperm.slane %v1120, 0
        %v1561 = vunpack.c.l.b16 %v1115
        %v1562 = vunpack.c.l.b16 %v1116
        %v1563 = vunpack.c.l.b16 %v1117
        %v1564 = vunpack.c.l.b16 %v1118
        %v1565 = vpack.c.b16 %v1562, %v1561
        %v1566 = vpack.c.b16 %v1564, %v1563
        %v1570 = vsel %vm564, %v1553, 0
        %1572 = vmatpush.bf16.msra.mxu0 0
        %1573 = vmatpush.bf16.msra.mxu0 0
        %1574 = vmatpush.bf16.msra.mxu0 0
        %1575 = vmatpush.bf16.msra.mxu0 0
        %1576 = vmatpush.bf16.msra.mxu0 0
        %1577 = vmatpush.bf16.msra.mxu0 0
        %1578 = vmatpush.bf16.msra.mxu0 %v1566
        %1579 = vmatpush.bf16.msra.mxu0 %v1565
        %1580 = vmatmul.bf16.gmra.mxu0 %v1570
        %v1581 = vpop.f32.mrf.mxu0
        %v1582 = vadd.f32 %v1555, %v1581
        %v1583 = vpop.f32.mrf.mxu0
        %1584 = vdwg.mxu0
        %v1585 = vmul.f32 %v1582, 0.5
        %v1586 = vmul.f32 %v1582, 0.044715
        %v1587 = vmul.f32 %v1586, %v1582
        %v1588 = vmul.f32 %v1587, %v1582
        %v1589 = vadd.f32 %v1582, %v1588
        %v1590 = vmul.f32 %v1589, 0.7978846
        %v1591 = vtanh.pop %v1590
        %v1592 = vadd.f32 %v1591, 1.0
        %v1593 = vmul.f32 %v1585, %v1592
        %v1594 = vpack.c.bf16 %v1593, %v1593
        %v1596 = vperm.slane %v1131, 0
        %v1606 = vunpack.c.l.b16 %v1122
        %v1607 = vunpack.c.l.b16 %v1123
        %v1608 = vunpack.c.l.b16 %v1124
        %v1609 = vunpack.c.l.b16 %v1125
        %v1610 = vunpack.c.l.b16 %v1126
        %v1611 = vunpack.c.l.b16 %v1127
        %v1612 = vunpack.c.l.b16 %v1128
        %v1613 = vunpack.c.l.b16 %v1129
        %v1614 = vpack.c.b16 %v1607, %v1606
        %v1615 = vpack.c.b16 %v1609, %v1608
        %v1616 = vpack.c.b16 %v1611, %v1610
        %v1617 = vpack.c.b16 %v1613, %v1612
        %v1623 = vsel %vm1048, %v1594, 0
        %1625 = vmatpush.bf16.msra.mxu0 0
        %1626 = vmatpush.bf16.msra.mxu0 0
        %1627 = vmatpush.bf16.msra.mxu0 0
        %1628 = vmatpush.bf16.msra.mxu0 0
        %1629 = vmatpush.bf16.msra.mxu0 %v1617
        %1630 = vmatpush.bf16.msra.mxu0 %v1616
        %1631 = vmatpush.bf16.msra.mxu0 %v1615
        %1632 = vmatpush.bf16.msra.mxu0 %v1614
        %1633 = vmatmul.bf16.gmra.mxu0 %v1623
        %v1634 = vpop.f32.mrf.mxu0
        %v1635 = vadd.f32 %v1596, %v1634
        %v1636 = vpop.f32.mrf.mxu0
        %1637 = vdwg.mxu0
        %v1638 = vadd.f32 %v1552, %v1635
        %v1639 = vsel %vm941, %v1638, 0.0
        %1640 = vadd.xlane.f32.xlu0 %v1639
        %v1641 = vpop.xlane.xlu0 %1640
        %v1642 = vmul.f32 %v1641, %v951
        %v1643 = vsub.f32 %v1638, %v1642
        %v1644 = vmul.f32 %v1643, %v1643
        %v1645 = vsel %vm941, %v1644, 0.0
        %1646 = vadd.xlane.f32.xlu0 %v1645
        %v1647 = vpop.xlane.xlu0 %1646
        %v1648 = vmul.f32 %v1647, %v951
        %v1649 = vadd.f32 %v1648, 1e-12
        %v1650 = vrsqrt.pop %v1649
        %v1651 = vmul.f32 %v1650, %v1649
        %v1652 = vmul.f32 %v1651, %v1650
        %v1653 = vmul.f32 0.5, %v1652
        %v1654 = vsub.f32 1.5, %v1653
        %v1655 = vmul.f32 %v1650, %v1654
        %vm1656 = vweird.f32 %v1649
        %vm1657 = vweird.f32 %v1650
        %vm1658 = vmor %vm1656, %vm1657
        %v1659 = vsel %vm1658, %v1650, %v1655
        %v1660 = vmul.f32 %v1643, %v1659
        %v1662 = vperm.slane %v1133, 0
        %v1664 = vmul.f32 %v1660, %v1662
        %v1666 = vperm.slane %v1135, 0
        %v1668 = vadd.f32 %v1664, %v1666
        %v1670 = vsel %vm624, 0.33333334, 0
        %v1673 = vsel %vm628, %v1668, 0
        %1675 = vmatpush.msra.mxu0 0.0
        %1676 = vmatpush.msra.mxu0 0.0
        %1677 = vmatpush.msra.mxu0 0.0
        %1678 = vmatpush.msra.mxu0 0.0
        %1679 = vmatpush.msra.mxu0 0.0
        %1680 = vmatpush.msra.mxu0 0.0
        %1681 = vmatpush.msra.mxu0 0.0
        %1682 = vmatpush.msra.mxu0 0.0
        %1683 = vmatpush.msra.mxu0 0.0
        %1684 = vmatpush.msra.mxu0 0.0
        %1685 = vmatpush.msra.mxu0 0.0
        %1686 = vmatpush.msra.mxu0 0.0
        %1687 = vmatpush.msra.mxu0 0.0
        %1688 = vmatpush.msra.mxu0 0.0
        %1689 = vmatpush.msra.mxu0 0.0
        %1690 = vmatpush.msra.mxu0 %v1673
        %1691 = vmatmul.f32.gmra.mxu0 %v1670
        %v1692 = vpop.f32.mrf.mxu0
        %v1693 = vadd.f32 0.0, %v1692
        %1694 = vdwg.mxu0
        %v1695 = vld [vmem:[%s14] sm:$0xf]
        %v1696 = vld [vmem:[%s14 + $0x4] sm:$0xf]
        %v1697 = vld [vmem:[%s14 + $0x8] sm:$0xf]
        %v1698 = vld [vmem:[%s14 + $0xc] sm:$0xf]
        %v1699 = vpack.c.bf16 %v1693, %v1693
        %v1700 = vld [vmem:[%s15] sm:$0x1]
        %v1705 = vunpack.c.l.b16 %v1695
        %v1706 = vunpack.c.l.b16 %v1696
        %v1707 = vunpack.c.l.b16 %v1697
        %v1708 = vunpack.c.l.b16 %v1698
        %v1709 = vpack.c.b16 %v1706, %v1705
        %v1710 = vpack.c.b16 %v1708, %v1707
        %v1714 = vsel %vm564, %v1699, 0
        %1716 = vmatpush.bf16.msra.mxu0 0
        %1717 = vmatpush.bf16.msra.mxu0 0
        %1718 = vmatpush.bf16.msra.mxu0 0
        %1719 = vmatpush.bf16.msra.mxu0 0
        %1720 = vmatpush.bf16.msra.mxu0 0
        %1721 = vmatpush.bf16.msra.mxu0 0
        %1722 = vmatpush.bf16.msra.mxu0 %v1710
        %1723 = vmatpush.bf16.msra.mxu0 %v1709
        %1724 = vmatmul.bf16.gmra.mxu0 %v1714
        %v1725 = vpop.f32.mrf.mxu0
        %v1726 = vadd.f32 %v1700, %v1725
        %v1727 = vpop.f32.mrf.mxu0
        %1728 = vdwg.mxu0
        %vm1729 = vcmask 24576
        %1730 = vst.msk [vmem:[%s511] sm:$0x1] %vm1729, %v1726
        %s1731 = sand.u32 %s379, 1
        %s1732 = scalar_lea.sflag [#allocation3], %s1731
        %s1733 = sand.u32 %s379, 1
        %s1734 = scalar_lea.vmem [#allocation2], %s1733
        // Predicated region
        $region85: #{hier_bert_forward.3} parent=83 // pred_check
          %p1735 = pneg %p389
        $region86: #{hier_bert_forward.3} parent=83 // pred_check_branch
          %1737 = sbr.rel (%p1735) target = $region88
        $region87: #{hier_bert_forward.3} parent=83 // pred_region
          %1739 = vsyncadd %s1732, 0
          %s1740 = scalar_lea.hbm %s16, %s30
          %s1742 = sshll.u32 %s1734, 4
          %s1743 = int_to_ptr.vmem [resolvable:$true] %s1742
          %s1744 = sshll.u32 %s1740, 4
          %s1745 = int_to_ptr.hbm [resolvable:$true] %s1744
          %1747 = dma.vmem_to_hbm [thread:$0]  %s1743, 16, %s1745, %s1732
        $region88: #{hier_bert_forward.3} parent=83 // pred_fallthru
          _
      $region84: #{hier_bert_forward.3} parent=5 // pred_fallthru
        _
      %p1748 = scmp.le.s32.totalorder 2, %s25
      // Predicated region
      $region89: #{hier_bert_forward.3} parent=5 // pred_check
        %p1749 = pneg %p1748
      $region90: #{hier_bert_forward.3} parent=5 // pred_check_branch
        %1751 = sbr.rel (%p1749) target = $region92
      $region91: #{hier_bert_forward.3} parent=5 // pred_region
        %s1752 = ssub.s32 %s25, 2
        // Predicated region
        $region93: #{hier_bert_forward.3} parent=91 // pred_check
          %p1753 = pneg %p395
        $region94: #{hier_bert_forward.3} parent=91 // pred_check_branch
          %1755 = sbr.rel (%p1753) target = $region96
        $region95: #{hier_bert_forward.3} parent=91 // pred_region
          %s1756 = sand.u32 %s380, 1
          %s1757 = scalar_lea.sflag [#allocation3], %s1756
          %s1758 = sand.u32 %s380, 1
          %s1759 = scalar_lea.vmem [#allocation2], %s1758
          %1761 = dma.done %s1757, 16
        $region96: #{hier_bert_forward.3} parent=91 // pred_fallthru
          _
      $region92: #{hier_bert_forward.3} parent=5 // pred_fallthru
        _
    $region6: #{hier_bert_forward.3} parent=1 // loop_footer
      %s29 = sadd.s32 1, %s25
    $region7: #{hier_bert_forward.3} parent=1 // loop_footer_branch
      %24 = sbr.rel target = $region3
    $region8: #{hier_bert_forward.3} parent=1 // loop_exit
      _
    %1762 = vsyncpa [#allocation3], 1
    %s1763 = scalar_lea.sflag [#allocation3], 1
    %1764 = vsyncpa %s1763, 1

// kernel: hier_bert_forward.2
$region0: #{hier_bert_forward.2}
  #allocation0 [shape = 'u32[]', space=smem, size = 0x4, offset = 0x4, fixed_abs, tag = 'smem constant byte address 0x4 - core index']
  #allocation1 [shape = 'u32[72,128]{1,0:T(1,128)}', space=vmem, size = 0x9000, scoped, tag = 'internal scratch']
  %s0 = inlined_call_operand.vmem [shape: f32[2,24,32], index: 0, kind: input, shape index: {}]
  %s1 = inlined_call_operand.vmem [shape: f32[2,3,1,8], index: 1, kind: input, shape index: {}]
  %s2 = inlined_call_operand.vmem [shape: f32[1,32], index: 2, kind: input, shape index: {}]
  %s3 = inlined_call_operand.vmem [shape: f32[1,32], index: 3, kind: input, shape index: {}]
  %s4 = inlined_call_operand.vmem [shape: bf16[2,32,96], index: 4, kind: input, shape index: {}]
  %s5 = inlined_call_operand.vmem [shape: f32[2,1,96], index: 5, kind: input, shape index: {}]
  %s6 = inlined_call_operand.vmem [shape: bf16[2,4,8,32], index: 6, kind: input, shape index: {}]
  %s7 = inlined_call_operand.vmem [shape: f32[2,1,32], index: 7, kind: input, shape index: {}]
  %s8 = inlined_call_operand.vmem [shape: f32[2,1,32], index: 8, kind: input, shape index: {}]
  %s9 = inlined_call_operand.vmem [shape: f32[2,1,32], index: 9, kind: input, shape index: {}]
  %s10 = inlined_call_operand.vmem [shape: bf16[2,32,64], index: 10, kind: input, shape index: {}]
  %s11 = inlined_call_operand.vmem [shape: f32[2,1,64], index: 11, kind: input, shape index: {}]
  %s12 = inlined_call_operand.vmem [shape: bf16[2,64,32], index: 12, kind: input, shape index: {}]
  %s13 = inlined_call_operand.vmem [shape: f32[2,1,32], index: 13, kind: input, shape index: {}]
  %s14 = inlined_call_operand.vmem [shape: f32[2,1,32], index: 14, kind: input, shape index: {}]
  %s15 = inlined_call_operand.vmem [shape: f32[2,1,32], index: 15, kind: input, shape index: {}]
  %s16 = inlined_call_operand.vmem [shape: bf16[32,32], index: 16, kind: input, shape index: {}]
  %s17 = inlined_call_operand.vmem [shape: f32[1,32], index: 17, kind: input, shape index: {}]
  %s18 = inlined_call_operand.vmem [shape: f32[2,3,32], index: 18, kind: output, shape index: {}]
  %s19 = sld [smem:[#allocation0]]
  $region105: #{hier_bert_forward.2} parent=0
    _
  %s21 = ssub.s32 1, %s19
  %s22 = scalar_select 0, %s21, %s19
  loop: start=0, step=1, limit=4
  $region2: #{hier_bert_forward.2} parent=0 // loop_pre_header
    _
  $region3: #{hier_bert_forward.2} parent=0 // loop_header
    %s24 = sphi 0, %s28
    %p25 = scmp.ge.s32.totalorder %s24, 4
    %s34 = sphi 0, %s36
    %s37 = sphi 0, %s34
    %s38 = sphi 0, %s37
    %s54 = sphi 0, %s38
    %s60 = sphi 0, %s62
    %s63 = sphi 0, %s60
    %s64 = sphi 0, %s63
    %s80 = sphi 0, %s64
    %s84 = sphi 0, %s84
    %s86 = sphi 0, %s84
    %s87 = sphi 0, %s86
    %s101 = sphi 0, %s87
    %s105 = sphi 0, %s105
    %s107 = sphi 0, %s105
    %s108 = sphi 0, %s107
    %s122 = sphi 0, %s108
    %s126 = sphi 0, %s126
    %s128 = sphi 0, %s126
    %s129 = sphi 0, %s128
    %s143 = sphi 0, %s129
    %s147 = sphi 0, %s147
    %s149 = sphi 0, %s147
    %s150 = sphi 0, %s149
    %s164 = sphi 0, %s150
    %s168 = sphi 0, %s168
    %s170 = sphi 0, %s168
    %s171 = sphi 0, %s170
    %s185 = sphi 0, %s171
    %s189 = sphi 0, %s189
    %s191 = sphi 0, %s189
    %s192 = sphi 0, %s191
    %s206 = sphi 0, %s192
    %s210 = sphi 0, %s210
    %s212 = sphi 0, %s210
    %s213 = sphi 0, %s212
    %s227 = sphi 0, %s213
    %s231 = sphi 0, %s231
    %s233 = sphi 0, %s231
    %s234 = sphi 0, %s233
    %s248 = sphi 0, %s234
    %s252 = sphi 0, %s252
    %s254 = sphi 0, %s252
    %s255 = sphi 0, %s254
    %s269 = sphi 0, %s255
    %s273 = sphi 0, %s273
    %s275 = sphi 0, %s273
    %s276 = sphi 0, %s275
    %s290 = sphi 0, %s276
    %s294 = sphi 0, %s294
    %s296 = sphi 0, %s294
    %s297 = sphi 0, %s296
    %s311 = sphi 0, %s297
    %s315 = sphi 0, %s315
    %s317 = sphi 0, %s315
    %s318 = sphi 0, %s317
    %s332 = sphi 0, %s318
    %s336 = sphi 0, %s336
    %s338 = sphi 0, %s336
    %s339 = sphi 0, %s338
    %s353 = sphi 0, %s339
    %s357 = sphi 0, %s357
    %s359 = sphi 0, %s357
    %s360 = sphi 0, %s359
    %s374 = sphi 0, %s360
    %s378 = sphi 0, %s378
    %s380 = sphi 0, %s378
    %s381 = sphi 0, %s380
    %s395 = sphi 0, %s381
    %s399 = sphi 0, %s399
    %s401 = sphi 0, %s399
    %s402 = sphi 0, %s401
    %s416 = sphi 0, %s402
    %s422 = sphi 0, %s424
    %s425 = sphi 0, %s422
    %s426 = sphi 0, %s425
    %s442 = sphi 0, %s426
  $region4: #{hier_bert_forward.2} parent=0 // loop_header_branch
    %27 = sbr.rel (%p25) target = $region8
  $region5: #{hier_bert_forward.2} parent=0 // loop_body
    %s29 = ssub.s32 %s24, 1
    %s30 = ssub.s32 %s24, 2
    %s31 = sadd.s32 %s24, 1
    %s32 = ssub.s32 %s24, %s31
    %p33 = scmp.eq.s32.totalorder %s32, 0
    %s35 = sadd.s32 %s34, 1
    %s36 = scalar_select %p33, %s34, %s35
    %p39 = pneg %p33
    %p40 = scmp.eq.s32.totalorder %s24, 1
    %p41 = por %p39, %p40
    %p42 = scmp.ne.s32.totalorder %s34, %s37
    %p43 = scmp.eq.s32.totalorder %s24, 0
    %p44 = por %p42, %p43
    %p45 = scmp.ne.s32.totalorder %s34, %s37
    %p46 = scmp.eq.s32.totalorder %s29, 1
    %p47 = por %p45, %p46
    %p48 = scmp.ne.s32.totalorder %s37, %s38
    %p49 = scmp.eq.s32.totalorder %s29, 0
    %p50 = por %p48, %p49
    %p51 = scmp.ne.s32.totalorder %s37, %s38
    %p52 = scmp.eq.s32.totalorder %s30, 1
    %p53 = por %p51, %p52
    %p55 = scmp.ne.s32.totalorder %s38, %s54
    %p56 = scmp.eq.s32.totalorder %s30, 0
    %p57 = por %p55, %p56
    %s58 = ssub.s32 %s24, %s31
    %p59 = scmp.eq.s32.totalorder %s58, 0
    %s61 = sadd.s32 %s60, 1
    %s62 = scalar_select %p59, %s60, %s61
    %p65 = pneg %p59
    %p66 = scmp.eq.s32.totalorder %s24, 1
    %p67 = por %p65, %p66
    %p68 = scmp.ne.s32.totalorder %s60, %s63
    %p69 = scmp.eq.s32.totalorder %s24, 0
    %p70 = por %p68, %p69
    %p71 = scmp.ne.s32.totalorder %s60, %s63
    %p72 = scmp.eq.s32.totalorder %s29, 1
    %p73 = por %p71, %p72
    %p74 = scmp.ne.s32.totalorder %s63, %s64
    %p75 = scmp.eq.s32.totalorder %s29, 0
    %p76 = por %p74, %p75
    %p77 = scmp.ne.s32.totalorder %s63, %s64
    %p78 = scmp.eq.s32.totalorder %s30, 1
    %p79 = por %p77, %p78
    %p81 = scmp.ne.s32.totalorder %s64, %s80
    %p82 = scmp.eq.s32.totalorder %s30, 0
    %p83 = por %p81, %p82
    %s85 = sadd.s32 %s84, 1
    %p88 = scmp.eq.s32.totalorder %s24, 1
    %p89 = scmp.ne.s32.totalorder %s84, %s86
    %p90 = scmp.eq.s32.totalorder %s24, 0
    %p91 = por %p89, %p90
    %p92 = scmp.ne.s32.totalorder %s84, %s86
    %p93 = scmp.eq.s32.totalorder %s29, 1
    %p94 = por %p92, %p93
    %p95 = scmp.ne.s32.totalorder %s86, %s87
    %p96 = scmp.eq.s32.totalorder %s29, 0
    %p97 = por %p95, %p96
    %p98 = scmp.ne.s32.totalorder %s86, %s87
    %p99 = scmp.eq.s32.totalorder %s30, 1
    %p100 = por %p98, %p99
    %p102 = scmp.ne.s32.totalorder %s87, %s101
    %p103 = scmp.eq.s32.totalorder %s30, 0
    %p104 = por %p102, %p103
    %s106 = sadd.s32 %s105, 1
    %p109 = scmp.eq.s32.totalorder %s24, 1
    %p110 = scmp.ne.s32.totalorder %s105, %s107
    %p111 = scmp.eq.s32.totalorder %s24, 0
    %p112 = por %p110, %p111
    %p113 = scmp.ne.s32.totalorder %s105, %s107
    %p114 = scmp.eq.s32.totalorder %s29, 1
    %p115 = por %p113, %p114
    %p116 = scmp.ne.s32.totalorder %s107, %s108
    %p117 = scmp.eq.s32.totalorder %s29, 0
    %p118 = por %p116, %p117
    %p119 = scmp.ne.s32.totalorder %s107, %s108
    %p120 = scmp.eq.s32.totalorder %s30, 1
    %p121 = por %p119, %p120
    %p123 = scmp.ne.s32.totalorder %s108, %s122
    %p124 = scmp.eq.s32.totalorder %s30, 0
    %p125 = por %p123, %p124
    %s127 = sadd.s32 %s126, 1
    %p130 = scmp.eq.s32.totalorder %s24, 1
    %p131 = scmp.ne.s32.totalorder %s126, %s128
    %p132 = scmp.eq.s32.totalorder %s24, 0
    %p133 = por %p131, %p132
    %p134 = scmp.ne.s32.totalorder %s126, %s128
    %p135 = scmp.eq.s32.totalorder %s29, 1
    %p136 = por %p134, %p135
    %p137 = scmp.ne.s32.totalorder %s128, %s129
    %p138 = scmp.eq.s32.totalorder %s29, 0
    %p139 = por %p137, %p138
    %p140 = scmp.ne.s32.totalorder %s128, %s129
    %p141 = scmp.eq.s32.totalorder %s30, 1
    %p142 = por %p140, %p141
    %p144 = scmp.ne.s32.totalorder %s129, %s143
    %p145 = scmp.eq.s32.totalorder %s30, 0
    %p146 = por %p144, %p145
    %s148 = sadd.s32 %s147, 1
    %p151 = scmp.eq.s32.totalorder %s24, 1
    %p152 = scmp.ne.s32.totalorder %s147, %s149
    %p153 = scmp.eq.s32.totalorder %s24, 0
    %p154 = por %p152, %p153
    %p155 = scmp.ne.s32.totalorder %s147, %s149
    %p156 = scmp.eq.s32.totalorder %s29, 1
    %p157 = por %p155, %p156
    %p158 = scmp.ne.s32.totalorder %s149, %s150
    %p159 = scmp.eq.s32.totalorder %s29, 0
    %p160 = por %p158, %p159
    %p161 = scmp.ne.s32.totalorder %s149, %s150
    %p162 = scmp.eq.s32.totalorder %s30, 1
    %p163 = por %p161, %p162
    %p165 = scmp.ne.s32.totalorder %s150, %s164
    %p166 = scmp.eq.s32.totalorder %s30, 0
    %p167 = por %p165, %p166
    %s169 = sadd.s32 %s168, 1
    %p172 = scmp.eq.s32.totalorder %s24, 1
    %p173 = scmp.ne.s32.totalorder %s168, %s170
    %p174 = scmp.eq.s32.totalorder %s24, 0
    %p175 = por %p173, %p174
    %p176 = scmp.ne.s32.totalorder %s168, %s170
    %p177 = scmp.eq.s32.totalorder %s29, 1
    %p178 = por %p176, %p177
    %p179 = scmp.ne.s32.totalorder %s170, %s171
    %p180 = scmp.eq.s32.totalorder %s29, 0
    %p181 = por %p179, %p180
    %p182 = scmp.ne.s32.totalorder %s170, %s171
    %p183 = scmp.eq.s32.totalorder %s30, 1
    %p184 = por %p182, %p183
    %p186 = scmp.ne.s32.totalorder %s171, %s185
    %p187 = scmp.eq.s32.totalorder %s30, 0
    %p188 = por %p186, %p187
    %s190 = sadd.s32 %s189, 1
    %p193 = scmp.eq.s32.totalorder %s24, 1
    %p194 = scmp.ne.s32.totalorder %s189, %s191
    %p195 = scmp.eq.s32.totalorder %s24, 0
    %p196 = por %p194, %p195
    %p197 = scmp.ne.s32.totalorder %s189, %s191
    %p198 = scmp.eq.s32.totalorder %s29, 1
    %p199 = por %p197, %p198
    %p200 = scmp.ne.s32.totalorder %s191, %s192
    %p201 = scmp.eq.s32.totalorder %s29, 0
    %p202 = por %p200, %p201
    %p203 = scmp.ne.s32.totalorder %s191, %s192
    %p204 = scmp.eq.s32.totalorder %s30, 1
    %p205 = por %p203, %p204
    %p207 = scmp.ne.s32.totalorder %s192, %s206
    %p208 = scmp.eq.s32.totalorder %s30, 0
    %p209 = por %p207, %p208
    %s211 = sadd.s32 %s210, 1
    %p214 = scmp.eq.s32.totalorder %s24, 1
    %p215 = scmp.ne.s32.totalorder %s210, %s212
    %p216 = scmp.eq.s32.totalorder %s24, 0
    %p217 = por %p215, %p216
    %p218 = scmp.ne.s32.totalorder %s210, %s212
    %p219 = scmp.eq.s32.totalorder %s29, 1
    %p220 = por %p218, %p219
    %p221 = scmp.ne.s32.totalorder %s212, %s213
    %p222 = scmp.eq.s32.totalorder %s29, 0
    %p223 = por %p221, %p222
    %p224 = scmp.ne.s32.totalorder %s212, %s213
    %p225 = scmp.eq.s32.totalorder %s30, 1
    %p226 = por %p224, %p225
    %p228 = scmp.ne.s32.totalorder %s213, %s227
    %p229 = scmp.eq.s32.totalorder %s30, 0
    %p230 = por %p228, %p229
    %s232 = sadd.s32 %s231, 1
    %p235 = scmp.eq.s32.totalorder %s24, 1
    %p236 = scmp.ne.s32.totalorder %s231, %s233
    %p237 = scmp.eq.s32.totalorder %s24, 0
    %p238 = por %p236, %p237
    %p239 = scmp.ne.s32.totalorder %s231, %s233
    %p240 = scmp.eq.s32.totalorder %s29, 1
    %p241 = por %p239, %p240
    %p242 = scmp.ne.s32.totalorder %s233, %s234
    %p243 = scmp.eq.s32.totalorder %s29, 0
    %p244 = por %p242, %p243
    %p245 = scmp.ne.s32.totalorder %s233, %s234
    %p246 = scmp.eq.s32.totalorder %s30, 1
    %p247 = por %p245, %p246
    %p249 = scmp.ne.s32.totalorder %s234, %s248
    %p250 = scmp.eq.s32.totalorder %s30, 0
    %p251 = por %p249, %p250
    %s253 = sadd.s32 %s252, 1
    %p256 = scmp.eq.s32.totalorder %s24, 1
    %p257 = scmp.ne.s32.totalorder %s252, %s254
    %p258 = scmp.eq.s32.totalorder %s24, 0
    %p259 = por %p257, %p258
    %p260 = scmp.ne.s32.totalorder %s252, %s254
    %p261 = scmp.eq.s32.totalorder %s29, 1
    %p262 = por %p260, %p261
    %p263 = scmp.ne.s32.totalorder %s254, %s255
    %p264 = scmp.eq.s32.totalorder %s29, 0
    %p265 = por %p263, %p264
    %p266 = scmp.ne.s32.totalorder %s254, %s255
    %p267 = scmp.eq.s32.totalorder %s30, 1
    %p268 = por %p266, %p267
    %p270 = scmp.ne.s32.totalorder %s255, %s269
    %p271 = scmp.eq.s32.totalorder %s30, 0
    %p272 = por %p270, %p271
    %s274 = sadd.s32 %s273, 1
    %p277 = scmp.eq.s32.totalorder %s24, 1
    %p278 = scmp.ne.s32.totalorder %s273, %s275
    %p279 = scmp.eq.s32.totalorder %s24, 0
    %p280 = por %p278, %p279
    %p281 = scmp.ne.s32.totalorder %s273, %s275
    %p282 = scmp.eq.s32.totalorder %s29, 1
    %p283 = por %p281, %p282
    %p284 = scmp.ne.s32.totalorder %s275, %s276
    %p285 = scmp.eq.s32.totalorder %s29, 0
    %p286 = por %p284, %p285
    %p287 = scmp.ne.s32.totalorder %s275, %s276
    %p288 = scmp.eq.s32.totalorder %s30, 1
    %p289 = por %p287, %p288
    %p291 = scmp.ne.s32.totalorder %s276, %s290
    %p292 = scmp.eq.s32.totalorder %s30, 0
    %p293 = por %p291, %p292
    %s295 = sadd.s32 %s294, 1
    %p298 = scmp.eq.s32.totalorder %s24, 1
    %p299 = scmp.ne.s32.totalorder %s294, %s296
    %p300 = scmp.eq.s32.totalorder %s24, 0
    %p301 = por %p299, %p300
    %p302 = scmp.ne.s32.totalorder %s294, %s296
    %p303 = scmp.eq.s32.totalorder %s29, 1
    %p304 = por %p302, %p303
    %p305 = scmp.ne.s32.totalorder %s296, %s297
    %p306 = scmp.eq.s32.totalorder %s29, 0
    %p307 = por %p305, %p306
    %p308 = scmp.ne.s32.totalorder %s296, %s297
    %p309 = scmp.eq.s32.totalorder %s30, 1
    %p310 = por %p308, %p309
    %p312 = scmp.ne.s32.totalorder %s297, %s311
    %p313 = scmp.eq.s32.totalorder %s30, 0
    %p314 = por %p312, %p313
    %s316 = sadd.s32 %s315, 1
    %p319 = scmp.eq.s32.totalorder %s24, 1
    %p320 = scmp.ne.s32.totalorder %s315, %s317
    %p321 = scmp.eq.s32.totalorder %s24, 0
    %p322 = por %p320, %p321
    %p323 = scmp.ne.s32.totalorder %s315, %s317
    %p324 = scmp.eq.s32.totalorder %s29, 1
    %p325 = por %p323, %p324
    %p326 = scmp.ne.s32.totalorder %s317, %s318
    %p327 = scmp.eq.s32.totalorder %s29, 0
    %p328 = por %p326, %p327
    %p329 = scmp.ne.s32.totalorder %s317, %s318
    %p330 = scmp.eq.s32.totalorder %s30, 1
    %p331 = por %p329, %p330
    %p333 = scmp.ne.s32.totalorder %s318, %s332
    %p334 = scmp.eq.s32.totalorder %s30, 0
    %p335 = por %p333, %p334
    %s337 = sadd.s32 %s336, 1
    %p340 = scmp.eq.s32.totalorder %s24, 1
    %p341 = scmp.ne.s32.totalorder %s336, %s338
    %p342 = scmp.eq.s32.totalorder %s24, 0
    %p343 = por %p341, %p342
    %p344 = scmp.ne.s32.totalorder %s336, %s338
    %p345 = scmp.eq.s32.totalorder %s29, 1
    %p346 = por %p344, %p345
    %p347 = scmp.ne.s32.totalorder %s338, %s339
    %p348 = scmp.eq.s32.totalorder %s29, 0
    %p349 = por %p347, %p348
    %p350 = scmp.ne.s32.totalorder %s338, %s339
    %p351 = scmp.eq.s32.totalorder %s30, 1
    %p352 = por %p350, %p351
    %p354 = scmp.ne.s32.totalorder %s339, %s353
    %p355 = scmp.eq.s32.totalorder %s30, 0
    %p356 = por %p354, %p355
    %s358 = sadd.s32 %s357, 1
    %p361 = scmp.eq.s32.totalorder %s24, 1
    %p362 = scmp.ne.s32.totalorder %s357, %s359
    %p363 = scmp.eq.s32.totalorder %s24, 0
    %p364 = por %p362, %p363
    %p365 = scmp.ne.s32.totalorder %s357, %s359
    %p366 = scmp.eq.s32.totalorder %s29, 1
    %p367 = por %p365, %p366
    %p368 = scmp.ne.s32.totalorder %s359, %s360
    %p369 = scmp.eq.s32.totalorder %s29, 0
    %p370 = por %p368, %p369
    %p371 = scmp.ne.s32.totalorder %s359, %s360
    %p372 = scmp.eq.s32.totalorder %s30, 1
    %p373 = por %p371, %p372
    %p375 = scmp.ne.s32.totalorder %s360, %s374
    %p376 = scmp.eq.s32.totalorder %s30, 0
    %p377 = por %p375, %p376
    %s379 = sadd.s32 %s378, 1
    %p382 = scmp.eq.s32.totalorder %s24, 1
    %p383 = scmp.ne.s32.totalorder %s378, %s380
    %p384 = scmp.eq.s32.totalorder %s24, 0
    %p385 = por %p383, %p384
    %p386 = scmp.ne.s32.totalorder %s378, %s380
    %p387 = scmp.eq.s32.totalorder %s29, 1
    %p388 = por %p386, %p387
    %p389 = scmp.ne.s32.totalorder %s380, %s381
    %p390 = scmp.eq.s32.totalorder %s29, 0
    %p391 = por %p389, %p390
    %p392 = scmp.ne.s32.totalorder %s380, %s381
    %p393 = scmp.eq.s32.totalorder %s30, 1
    %p394 = por %p392, %p393
    %p396 = scmp.ne.s32.totalorder %s381, %s395
    %p397 = scmp.eq.s32.totalorder %s30, 0
    %p398 = por %p396, %p397
    %s400 = sadd.s32 %s399, 1
    %p403 = scmp.eq.s32.totalorder %s24, 1
    %p404 = scmp.ne.s32.totalorder %s399, %s401
    %p405 = scmp.eq.s32.totalorder %s24, 0
    %p406 = por %p404, %p405
    %p407 = scmp.ne.s32.totalorder %s399, %s401
    %p408 = scmp.eq.s32.totalorder %s29, 1
    %p409 = por %p407, %p408
    %p410 = scmp.ne.s32.totalorder %s401, %s402
    %p411 = scmp.eq.s32.totalorder %s29, 0
    %p412 = por %p410, %p411
    %p413 = scmp.ne.s32.totalorder %s401, %s402
    %p414 = scmp.eq.s32.totalorder %s30, 1
    %p415 = por %p413, %p414
    %p417 = scmp.ne.s32.totalorder %s402, %s416
    %p418 = scmp.eq.s32.totalorder %s30, 0
    %p419 = por %p417, %p418
    %s420 = ssub.s32 %s24, %s31
    %p421 = scmp.eq.s32.totalorder %s420, 0
    %s423 = sadd.s32 %s422, 1
    %s424 = scalar_select %p421, %s422, %s423
    %p427 = pneg %p421
    %p428 = scmp.eq.s32.totalorder %s24, 1
    %p429 = por %p427, %p428
    %p430 = scmp.ne.s32.totalorder %s422, %s425
    %p431 = scmp.eq.s32.totalorder %s24, 0
    %p432 = por %p430, %p431
    %p433 = scmp.ne.s32.totalorder %s422, %s425
    %p434 = scmp.eq.s32.totalorder %s29, 1
    %p435 = por %p433, %p434
    %p436 = scmp.ne.s32.totalorder %s425, %s426
    %p437 = scmp.eq.s32.totalorder %s29, 0
    %p438 = por %p436, %p437
    %p439 = scmp.ne.s32.totalorder %s425, %s426
    %p440 = scmp.eq.s32.totalorder %s30, 1
    %p441 = por %p439, %p440
    %p443 = scmp.ne.s32.totalorder %s426, %s442
    %p444 = scmp.eq.s32.totalorder %s30, 0
    %p445 = por %p443, %p444
    %p446 = scmp.le.s32.totalorder 1, %s24
    %p447 = scmp.lt.s32.totalorder %s24, 3
    %p448 = pnand %p446, %p447
    %p449 = pneg %p448
    // Predicated region
    $region9: #{hier_bert_forward.2} parent=5 // pred_check
      _
    $region10: #{hier_bert_forward.2} parent=5 // pred_check_branch
      %451 = sbr.rel (%p448) target = $region12
    $region11: #{hier_bert_forward.2} parent=5 // pred_region
      %s452 = ssub.s32 %s24, 1
      // Predicated region
      $region13: #{hier_bert_forward.2} parent=11 // pred_check
        %p453 = pneg %p97
      $region14: #{hier_bert_forward.2} parent=11 // pred_check_branch
        %455 = sbr.rel (%p453) target = $region16
      $region15: #{hier_bert_forward.2} parent=11 // pred_region
        _
      $region16: #{hier_bert_forward.2} parent=11 // pred_fallthru
        _
      // Predicated region
      $region17: #{hier_bert_forward.2} parent=11 // pred_check
        %p456 = pneg %p118
      $region18: #{hier_bert_forward.2} parent=11 // pred_check_branch
        %458 = sbr.rel (%p456) target = $region20
      $region19: #{hier_bert_forward.2} parent=11 // pred_region
        _
      $region20: #{hier_bert_forward.2} parent=11 // pred_fallthru
        _
      // Predicated region
      $region21: #{hier_bert_forward.2} parent=11 // pred_check
        %p459 = pneg %p139
      $region22: #{hier_bert_forward.2} parent=11 // pred_check_branch
        %461 = sbr.rel (%p459) target = $region24
      $region23: #{hier_bert_forward.2} parent=11 // pred_region
        _
      $region24: #{hier_bert_forward.2} parent=11 // pred_fallthru
        _
      // Predicated region
      $region25: #{hier_bert_forward.2} parent=11 // pred_check
        %p462 = pneg %p160
      $region26: #{hier_bert_forward.2} parent=11 // pred_check_branch
        %464 = sbr.rel (%p462) target = $region28
      $region27: #{hier_bert_forward.2} parent=11 // pred_region
        _
      $region28: #{hier_bert_forward.2} parent=11 // pred_fallthru
        _
      // Predicated region
      $region29: #{hier_bert_forward.2} parent=11 // pred_check
        %p465 = pneg %p181
      $region30: #{hier_bert_forward.2} parent=11 // pred_check_branch
        %467 = sbr.rel (%p465) target = $region32
      $region31: #{hier_bert_forward.2} parent=11 // pred_region
        _
      $region32: #{hier_bert_forward.2} parent=11 // pred_fallthru
        _
      // Predicated region
      $region33: #{hier_bert_forward.2} parent=11 // pred_check
        %p468 = pneg %p202
      $region34: #{hier_bert_forward.2} parent=11 // pred_check_branch
        %470 = sbr.rel (%p468) target = $region36
      $region35: #{hier_bert_forward.2} parent=11 // pred_region
        _
      $region36: #{hier_bert_forward.2} parent=11 // pred_fallthru
        _
      // Predicated region
      $region37: #{hier_bert_forward.2} parent=11 // pred_check
        %p471 = pneg %p223
      $region38: #{hier_bert_forward.2} parent=11 // pred_check_branch
        %473 = sbr.rel (%p471) target = $region40
      $region39: #{hier_bert_forward.2} parent=11 // pred_region
        _
      $region40: #{hier_bert_forward.2} parent=11 // pred_fallthru
        _
      // Predicated region
      $region41: #{hier_bert_forward.2} parent=11 // pred_check
        %p474 = pneg %p244
      $region42: #{hier_bert_forward.2} parent=11 // pred_check_branch
        %476 = sbr.rel (%p474) target = $region44
      $region43: #{hier_bert_forward.2} parent=11 // pred_region
        _
      $region44: #{hier_bert_forward.2} parent=11 // pred_fallthru
        _
      // Predicated region
      $region45: #{hier_bert_forward.2} parent=11 // pred_check
        %p477 = pneg %p265
      $region46: #{hier_bert_forward.2} parent=11 // pred_check_branch
        %479 = sbr.rel (%p477) target = $region48
      $region47: #{hier_bert_forward.2} parent=11 // pred_region
        _
      $region48: #{hier_bert_forward.2} parent=11 // pred_fallthru
        _
      // Predicated region
      $region49: #{hier_bert_forward.2} parent=11 // pred_check
        %p480 = pneg %p286
      $region50: #{hier_bert_forward.2} parent=11 // pred_check_branch
        %482 = sbr.rel (%p480) target = $region52
      $region51: #{hier_bert_forward.2} parent=11 // pred_region
        _
      $region52: #{hier_bert_forward.2} parent=11 // pred_fallthru
        _
      // Predicated region
      $region53: #{hier_bert_forward.2} parent=11 // pred_check
        %p483 = pneg %p307
      $region54: #{hier_bert_forward.2} parent=11 // pred_check_branch
        %485 = sbr.rel (%p483) target = $region56
      $region55: #{hier_bert_forward.2} parent=11 // pred_region
        _
      $region56: #{hier_bert_forward.2} parent=11 // pred_fallthru
        _
      // Predicated region
      $region57: #{hier_bert_forward.2} parent=11 // pred_check
        %p486 = pneg %p328
      $region58: #{hier_bert_forward.2} parent=11 // pred_check_branch
        %488 = sbr.rel (%p486) target = $region60
      $region59: #{hier_bert_forward.2} parent=11 // pred_region
        _
      $region60: #{hier_bert_forward.2} parent=11 // pred_fallthru
        _
      // Predicated region
      $region61: #{hier_bert_forward.2} parent=11 // pred_check
        %p489 = pneg %p349
      $region62: #{hier_bert_forward.2} parent=11 // pred_check_branch
        %491 = sbr.rel (%p489) target = $region64
      $region63: #{hier_bert_forward.2} parent=11 // pred_region
        _
      $region64: #{hier_bert_forward.2} parent=11 // pred_fallthru
        _
      // Predicated region
      $region65: #{hier_bert_forward.2} parent=11 // pred_check
        %p492 = pneg %p370
      $region66: #{hier_bert_forward.2} parent=11 // pred_check_branch
        %494 = sbr.rel (%p492) target = $region68
      $region67: #{hier_bert_forward.2} parent=11 // pred_region
        _
      $region68: #{hier_bert_forward.2} parent=11 // pred_fallthru
        _
      // Predicated region
      $region69: #{hier_bert_forward.2} parent=11 // pred_check
        %p495 = pneg %p391
      $region70: #{hier_bert_forward.2} parent=11 // pred_check_branch
        %497 = sbr.rel (%p495) target = $region72
      $region71: #{hier_bert_forward.2} parent=11 // pred_region
        _
      $region72: #{hier_bert_forward.2} parent=11 // pred_fallthru
        _
      // Predicated region
      $region73: #{hier_bert_forward.2} parent=11 // pred_check
        %p498 = pneg %p412
      $region74: #{hier_bert_forward.2} parent=11 // pred_check_branch
        %500 = sbr.rel (%p498) target = $region76
      $region75: #{hier_bert_forward.2} parent=11 // pred_region
        _
      $region76: #{hier_bert_forward.2} parent=11 // pred_fallthru
        _
    $region12: #{hier_bert_forward.2} parent=5 // pred_fallthru
      _
    %p501 = scmp.lt.s32.totalorder %s24, 2
    // Predicated region
    $region77: #{hier_bert_forward.2} parent=5 // pred_check
      %p502 = pneg %p501
    $region78: #{hier_bert_forward.2} parent=5 // pred_check_branch
      %504 = sbr.rel (%p502) target = $region80
    $region79: #{hier_bert_forward.2} parent=5 // pred_region
      // Predicated region
      $region81: #{hier_bert_forward.2} parent=79 // pred_check
        %p505 = pneg %p44
      $region82: #{hier_bert_forward.2} parent=79 // pred_check_branch
        %507 = sbr.rel (%p505) target = $region84
      $region83: #{hier_bert_forward.2} parent=79 // pred_region
        %p508 = scmp.lt.s32.totalorder %s24, 1
        %s509 = scalar_select %p508, %s24, 1
        %s510 = smul.addr %s509, 3
        %s511 = smul.addr %s510, 8
        %s512 = scalar_lea.vmem %s0, %s511
      $region84: #{hier_bert_forward.2} parent=79 // pred_fallthru
        _
      // Predicated region
      $region85: #{hier_bert_forward.2} parent=79 // pred_check
        %p513 = pneg %p70
      $region86: #{hier_bert_forward.2} parent=79 // pred_check_branch
        %515 = sbr.rel (%p513) target = $region88
      $region87: #{hier_bert_forward.2} parent=79 // pred_region
        %p516 = scmp.lt.s32.totalorder %s24, 1
        %s517 = scalar_select %p516, %s24, 1
        %s518 = smul.addr %s517, 3
        %s519 = scalar_lea.vmem %s1, %s518
      $region88: #{hier_bert_forward.2} parent=79 // pred_fallthru
        _
    $region80: #{hier_bert_forward.2} parent=5 // pred_fallthru
      _
    %p520 = scmp.le.s32.totalorder 1, %s24
    %p521 = scmp.lt.s32.totalorder %s24, 3
    %p522 = pnand %p520, %p521
    %p523 = pneg %p522
    // Predicated region
    $region89: #{hier_bert_forward.2} parent=5 // pred_check
      _
    $region90: #{hier_bert_forward.2} parent=5 // pred_check_branch
      %525 = sbr.rel (%p522) target = $region92
    $region91: #{hier_bert_forward.2} parent=5 // pred_region
      %s526 = ssub.s32 %s24, 1
      %p527 = scmp.lt.s32.totalorder %s29, 1
      %s528 = scalar_select %p527, %s29, 1
      %s529 = smul.addr %s528, 3
      %s530 = smul.addr %s529, 8
      %s531 = scalar_lea.vmem %s0, %s530
      %p532 = pneg %p50
      %p533 = pneg %p47
      %p534 = scmp.lt.s32.totalorder %s29, 1
      %s535 = scalar_select %p534, %s29, 1
      %s536 = smul.addr %s535, 3
      %s537 = scalar_lea.vmem %s1, %s536
      %p538 = pneg %p76
      %p539 = pneg %p73
      %p540 = pneg %p97
      %p541 = pneg %p94
      %p542 = pneg %p118
      %p543 = pneg %p115
      %p544 = pneg %p139
      %p545 = pneg %p136
      %p546 = pneg %p160
      %p547 = pneg %p157
      %p548 = pneg %p181
      %p549 = pneg %p178
      %p550 = pneg %p202
      %p551 = pneg %p199
      %p552 = pneg %p223
      %p553 = pneg %p220
      %p554 = pneg %p244
      %p555 = pneg %p241
      %p556 = pneg %p265
      %p557 = pneg %p262
      %p558 = pneg %p286
      %p559 = pneg %p283
      %p560 = pneg %p307
      %p561 = pneg %p304
      %p562 = pneg %p328
      %p563 = pneg %p325
      %p564 = pneg %p349
      %p565 = pneg %p346
      %p566 = pneg %p370
      %p567 = pneg %p367
      %p568 = pneg %p391
      %p569 = pneg %p388
      %p570 = pneg %p412
      %p571 = pneg %p409
      %p572 = pneg %p438
      %p573 = pneg %p435
      %p574 = scmp.lt.s32.totalorder %s29, 1
      %s575 = scalar_select %p574, %s29, 1
      %s576 = smul.addr %s575, 4
      %s577 = scalar_lea.vmem %s18, %s576
      %p578 = scmp.lt.s32.totalorder %s29, 1
      %s579 = scalar_select %p578, %s29, 1
      %s580 = smul.addr %s579, 3
      %s581 = smul.addr %s580, 8
      %s582 = scalar_lea.vmem %s0, %s581
      %p583 = scmp.lt.s32.totalorder %s29, 1
      %s584 = scalar_select %p583, %s29, 1
      %s585 = smul.addr %s584, 3
      %s586 = scalar_lea.vmem %s1, %s585
      %p587 = scmp.lt.s32.totalorder %s29, 1
      %s588 = scalar_select %p587, %s29, 1
      %s589 = smul.addr %s588, 4
      %s590 = scalar_lea.vmem %s18, %s589
      %v592 = vld [vmem:[%s582] sm:$0xff]
      %v593 = vld [vmem:[%s582 + $0x8] sm:$0xff]
      %v594 = vld [vmem:[%s582 + $0x10] sm:$0xff]
      %v595 = vld [vmem:[%s2] sm:$0x1]
      %v596 = vld [vmem:[%s3] sm:$0x1]
      %vm597 = vcmask 261120
      %v598 = vsel %vm597, %v592, 0.0
      %599 = vadd.xlane.f32.xlu0 %v598
      %v600 = vpop.xlane.xlu0 %599
      %v601 = vsel %vm597, %v593, 0.0
      %602 = vadd.xlane.f32.xlu0 %v601
      %v603 = vpop.xlane.xlu0 %602
      %v604 = vsel %vm597, %v594, 0.0
      %605 = vadd.xlane.f32.xlu0 %v604
      %v606 = vpop.xlane.xlu0 %605
      %v607 = vrcp.pop 32.0
      %v608 = vmul.f32 32.0, %v607
      %v609 = vsub.f32 1.0, %v608
      %v610 = vmul.f32 %v607, %v609
      %v611 = vadd.f32 %v607, %v610
      %vm612 = vweird.f32 %v607
      %v613 = vsel %vm612, %v607, %v611
      %v614 = vmul.f32 %v600, %v613
      %v615 = vmul.f32 %v603, %v613
      %v616 = vmul.f32 %v606, %v613
      %v617 = vsub.f32 %v592, %v614
      %v618 = vsub.f32 %v593, %v615
      %v619 = vsub.f32 %v594, %v616
      %v620 = vmul.f32 %v617, %v617
      %v621 = vmul.f32 %v618, %v618
      %v622 = vmul.f32 %v619, %v619
      %v623 = vsel %vm597, %v620, 0.0
      %624 = vadd.xlane.f32.xlu0 %v623
      %v625 = vpop.xlane.xlu0 %624
      %v626 = vsel %vm597, %v621, 0.0
      %627 = vadd.xlane.f32.xlu0 %v626
      %v628 = vpop.xlane.xlu0 %627
      %v629 = vsel %vm597, %v622, 0.0
      %630 = vadd.xlane.f32.xlu0 %v629
      %v631 = vpop.xlane.xlu0 %630
      %v632 = vmul.f32 %v625, %v613
      %v633 = vmul.f32 %v628, %v613
      %v634 = vmul.f32 %v631, %v613
      %v635 = vadd.f32 %v632, 1e-12
      %v636 = vadd.f32 %v633, 1e-12
      %v637 = vadd.f32 %v634, 1e-12
      %v638 = vrsqrt.pop %v635
      %v639 = vmul.f32 %v638, %v635
      %v640 = vmul.f32 %v639, %v638
      %v641 = vmul.f32 0.5, %v640
      %v642 = vsub.f32 1.5, %v641
      %v643 = vmul.f32 %v638, %v642
      %vm644 = vweird.f32 %v635
      %vm645 = vweird.f32 %v638
      %vm646 = vmor %vm644, %vm645
      %v647 = vsel %vm646, %v638, %v643
      %v648 = vrsqrt.pop %v636
      %v649 = vmul.f32 %v648, %v636
      %v650 = vmul.f32 %v649, %v648
      %v651 = vmul.f32 0.5, %v650
      %v652 = vsub.f32 1.5, %v651
      %v653 = vmul.f32 %v648, %v652
      %vm654 = vweird.f32 %v636
      %vm655 = vweird.f32 %v648
      %vm656 = vmor %vm654, %vm655
      %v657 = vsel %vm656, %v648, %v653
      %v658 = vrsqrt.pop %v637
      %v659 = vmul.f32 %v658, %v637
      %v660 = vmul.f32 %v659, %v658
      %v661 = vmul.f32 0.5, %v660
      %v662 = vsub.f32 1.5, %v661
      %v663 = vmul.f32 %v658, %v662
      %vm664 = vweird.f32 %v637
      %vm665 = vweird.f32 %v658
      %vm666 = vmor %vm664, %vm665
      %v667 = vsel %vm666, %v658, %v663
      %v668 = vmul.f32 %v617, %v647
      %v669 = vmul.f32 %v618, %v657
      %v670 = vmul.f32 %v619, %v667
      %v672 = vperm.slane %v595, 0
      %v674 = vmul.f32 %v668, %v672
      %v675 = vmul.f32 %v669, %v672
      %v676 = vmul.f32 %v670, %v672
      %v678 = vperm.slane %v596, 0
      %v680 = vadd.f32 %v674, %v678
      %v681 = vadd.f32 %v675, %v678
      %v682 = vadd.f32 %v676, %v678
      %v683 = vld [vmem:[%s586] sm:$0x1]
      %v684 = vld [vmem:[%s586 + $0x1] sm:$0x1]
      %v685 = vld [vmem:[%s586 + $0x2] sm:$0x1]
      %v686 = vld [vmem:[%s4] sm:$0xf]
      %v687 = vld [vmem:[%s4 + $0x4] sm:$0xf]
      %v688 = vld [vmem:[%s4 + $0x8] sm:$0xf]
      %v689 = vld [vmem:[%s4 + $0xc] sm:$0xf]
      %v690 = vld [vmem:[%s5] sm:$0x1]
      %v691 = vld [vmem:[%s6] sm:$0xf]
      %v692 = vld [vmem:[%s6 + $0x4] sm:$0xf]
      %v693 = vld [vmem:[%s6 + $0x8] sm:$0xf]
      %v694 = vld [vmem:[%s6 + $0xc] sm:$0xf]
      %v695 = vld [vmem:[%s7] sm:$0x1]
      %v696 = vld [vmem:[%s8] sm:$0x1]
      %v697 = vld [vmem:[%s9] sm:$0x1]
      %v698 = vld [vmem:[%s10] sm:$0xf]
      %v699 = vld [vmem:[%s10 + $0x4] sm:$0xf]
      %v700 = vld [vmem:[%s10 + $0x8] sm:$0xf]
      %v701 = vld [vmem:[%s10 + $0xc] sm:$0xf]
      %v702 = vld [vmem:[%s11] sm:$0x1]
      %v703 = vld [vmem:[%s12] sm:$0xf]
      %v704 = vld [vmem:[%s12 + $0x4] sm:$0xf]
      %v705 = vld [vmem:[%s12 + $0x8] sm:$0xf]
      %v706 = vld [vmem:[%s12 + $0xc] sm:$0xf]
      %v707 = vld [vmem:[%s12 + $0x10] sm:$0xf]
      %v708 = vld [vmem:[%s12 + $0x14] sm:$0xf]
      %v709 = vld [vmem:[%s12 + $0x18] sm:$0xf]
      %v710 = vld [vmem:[%s12 + $0x1c] sm:$0xf]
      %v711 = vld [vmem:[%s13] sm:$0x1]
      %v712 = vld [vmem:[%s14] sm:$0x1]
      %v713 = vld [vmem:[%s15] sm:$0x1]
      %v714 = vpack.c.bf16 %v681, %v680
      %v715 = vpack.c.bf16 %v682, %v682
      %v717 = vperm.slane %v690, 0
      %v723 = vunpack.c.l.b16 %v686
      %v724 = vunpack.c.l.b16 %v687
      %v725 = vunpack.c.l.b16 %v688
      %v726 = vunpack.c.l.b16 %v689
      %v727 = vpack.c.b16 %v724, %v723
      %v728 = vpack.c.b16 %v726, %v725
      %v732 = vsel %vm597, %v714, 0
      %v735 = vsel %vm597, %v715, 0
      %737 = vmatpush.bf16.msra.mxu0 0
      %738 = vmatpush.bf16.msra.mxu0 0
      %739 = vmatpush.bf16.msra.mxu0 0
      %740 = vmatpush.bf16.msra.mxu0 0
      %741 = vmatpush.bf16.msra.mxu0 0
      %742 = vmatpush.bf16.msra.mxu0 0
      %743 = vmatpush.bf16.msra.mxu0 %v728
      %744 = vmatpush.bf16.msra.mxu0 %v727
      %745 = vmatmul.bf16.gmra.mxu0 %v732
      %v746 = vpop.f32.mrf.mxu0
      %v747 = vadd.f32 %v717, %v746
      %v748 = vpop.f32.mrf.mxu0
      %v749 = vadd.f32 %v717, %v748
      %750 = vmatmul.bf16.gmra.mxu0 %v735
      %v751 = vpop.f32.mrf.mxu0
      %v752 = vadd.f32 %v717, %v751
      %v753 = vpop.f32.mrf.mxu0
      %754 = vdwg.mxu0
      %756 = vrot.lane.b32.xlu0 %v747, 96
      %v757 = vpop.permute.xlu0 %756
      %vm758 = vcmask 64512
      %v759 = vsel %vm758, %v747, 0
      %v761 = vsel %vm758, %v757, 0
      %763 = vmatpush.xpose.msra.mxu0 0.0
      %764 = vmatpush.xpose.msra.mxu0 0.0
      %765 = vmatpush.xpose.msra.mxu0 0.0
      %766 = vmatpush.xpose.msra.mxu0 0.0
      %767 = vmatpush.xpose.msra.mxu0 0.0
      %768 = vmatpush.xpose.msra.mxu0 0.0
      %769 = vmatpush.xpose.msra.mxu0 0.0
      %770 = vmatpush.xpose.msra.mxu0 0.0
      %771 = vmatpush.xpose.msra.mxu0 0.0
      %772 = vmatpush.xpose.msra.mxu0 0.0
      %773 = vmatpush.xpose.msra.mxu0 0.0
      %774 = vmatpush.xpose.msra.mxu0 0.0
      %775 = vmatpush.xpose.msra.mxu0 0.0
      %776 = vmatpush.xpose.msra.mxu0 0.0
      %777 = vmatpush.xpose.msra.mxu0 0.0
      %778 = vmatpush.xpose.msra.mxu0 %v761
      %779 = vmatmul.f32.gmra.mxu0 %v759
      %v780 = vpop.f32.mrf.mxu0
      %v781 = vadd.f32 0.0, %v780
      %782 = vdwg.mxu0
      %784 = vrot.lane.b32.xlu0 %v749, 96
      %v785 = vpop.permute.xlu0 %784
      %v786 = vsel %vm758, %v749, 0
      %v788 = vsel %vm758, %v785, 0
      %790 = vmatpush.xpose.msra.mxu0 0.0
      %791 = vmatpush.xpose.msra.mxu0 0.0
      %792 = vmatpush.xpose.msra.mxu0 0.0
      %793 = vmatpush.xpose.msra.mxu0 0.0
      %794 = vmatpush.xpose.msra.mxu0 0.0
      %795 = vmatpush.xpose.msra.mxu0 0.0
      %796 = vmatpush.xpose.msra.mxu0 0.0
      %797 = vmatpush.xpose.msra.mxu0 0.0
      %798 = vmatpush.xpose.msra.mxu0 0.0
      %799 = vmatpush.xpose.msra.mxu0 0.0
      %800 = vmatpush.xpose.msra.mxu0 0.0
      %801 = vmatpush.xpose.msra.mxu0 0.0
      %802 = vmatpush.xpose.msra.mxu0 0.0
      %803 = vmatpush.xpose.msra.mxu0 0.0
      %804 = vmatpush.xpose.msra.mxu0 0.0
      %805 = vmatpush.xpose.msra.mxu0 %v788
      %806 = vmatmul.f32.gmra.mxu0 %v786
      %v807 = vpop.f32.mrf.mxu0
      %v808 = vadd.f32 0.0, %v807
      %809 = vdwg.mxu0
      %811 = vrot.lane.b32.xlu0 %v752, 96
      %v812 = vpop.permute.xlu0 %811
      %v813 = vsel %vm758, %v752, 0
      %v815 = vsel %vm758, %v812, 0
      %817 = vmatpush.xpose.msra.mxu0 0.0
      %818 = vmatpush.xpose.msra.mxu0 0.0
      %819 = vmatpush.xpose.msra.mxu0 0.0
      %820 = vmatpush.xpose.msra.mxu0 0.0
      %821 = vmatpush.xpose.msra.mxu0 0.0
      %822 = vmatpush.xpose.msra.mxu0 0.0
      %823 = vmatpush.xpose.msra.mxu0 0.0
      %824 = vmatpush.xpose.msra.mxu0 0.0
      %825 = vmatpush.xpose.msra.mxu0 0.0
      %826 = vmatpush.xpose.msra.mxu0 0.0
      %827 = vmatpush.xpose.msra.mxu0 0.0
      %828 = vmatpush.xpose.msra.mxu0 0.0
      %829 = vmatpush.xpose.msra.mxu0 0.0
      %830 = vmatpush.xpose.msra.mxu0 0.0
      %831 = vmatpush.xpose.msra.mxu0 0.0
      %832 = vmatpush.xpose.msra.mxu0 %v815
      %833 = vmatmul.f32.gmra.mxu0 %v813
      %v834 = vpop.f32.mrf.mxu0
      %v835 = vadd.f32 0.0, %v834
      %836 = vdwg.mxu0
      %v837 = vmul.f32 %v781, 0.35355338
      %v838 = vmul.f32 %v808, 0.35355338
      %v839 = vmul.f32 %v835, 0.35355338
      %v843 = vperm.slane %v683, 0
      %v844 = vperm.slane %v684, 0
      %v845 = vperm.slane %v685, 0
      %v849 = vadd.f32 %v837, %v843
      %v850 = vadd.f32 %v838, %v844
      %v851 = vadd.f32 %v839, %v845
      %v852 = vsel %vm758, %v849, -inf
      %853 = vmax.xlane.f32.xlu0 %v852
      %v854 = vpop.xlane.xlu0 %853
      %v855 = vsel %vm758, %v850, -inf
      %856 = vmax.xlane.f32.xlu0 %v855
      %v857 = vpop.xlane.xlu0 %856
      %v858 = vsel %vm758, %v851, -inf
      %859 = vmax.xlane.f32.xlu0 %v858
      %v860 = vpop.xlane.xlu0 %859
      %v861 = vsub.f32 %v849, %v854
      %v862 = vsub.f32 %v850, %v857
      %v863 = vsub.f32 %v851, %v860
      %v864 = vmul.f32 %v861, 1.442695
      %v865 = vpow.pop %v864
      %v866 = vmul.f32 %v862, 1.442695
      %v867 = vpow.pop %v866
      %v868 = vmul.f32 %v863, 1.442695
      %v869 = vpow.pop %v868
      %v870 = vsel %vm758, %v865, 0.0
      %871 = vadd.xlane.f32.xlu0 %v870
      %v872 = vpop.xlane.xlu0 %871
      %v873 = vsel %vm758, %v867, 0.0
      %874 = vadd.xlane.f32.xlu0 %v873
      %v875 = vpop.xlane.xlu0 %874
      %v876 = vsel %vm758, %v869, 0.0
      %877 = vadd.xlane.f32.xlu0 %v876
      %v878 = vpop.xlane.xlu0 %877
      %v879 = vrcp.pop %v872
      %v880 = vrcp.pop %v875
      %v881 = vrcp.pop %v878
      %v882 = vmul.f32 %v865, %v879
      %v883 = vmul.f32 %v867, %v880
      %v884 = vmul.f32 %v869, %v881
      %885 = vrot.lane.b32.xlu0 %v747, 64
      %v886 = vpop.permute.xlu0 %885
      %v889 = vsel %vm758, %v882, 0
      %891 = vmatpush.msra.mxu0 0.0
      %892 = vmatpush.msra.mxu0 0.0
      %893 = vmatpush.msra.mxu0 0.0
      %894 = vmatpush.msra.mxu0 0.0
      %895 = vmatpush.msra.mxu0 0.0
      %896 = vmatpush.msra.mxu0 0.0
      %897 = vmatpush.msra.mxu0 0.0
      %898 = vmatpush.msra.mxu0 0.0
      %899 = vmatpush.msra.mxu0 0.0
      %900 = vmatpush.msra.mxu0 0.0
      %901 = vmatpush.msra.mxu0 0.0
      %902 = vmatpush.msra.mxu0 0.0
      %903 = vmatpush.msra.mxu0 0.0
      %904 = vmatpush.msra.mxu0 0.0
      %905 = vmatpush.msra.mxu0 0.0
      %906 = vmatpush.msra.mxu0 %v886
      %907 = vmatmul.f32.gmra.mxu0 %v889
      %v908 = vpop.f32.mrf.mxu0
      %v909 = vadd.f32 0.0, %v908
      %910 = vdwg.mxu0
      %911 = vrot.lane.b32.xlu0 %v749, 64
      %v912 = vpop.permute.xlu0 %911
      %v915 = vsel %vm758, %v883, 0
      %917 = vmatpush.msra.mxu0 0.0
      %918 = vmatpush.msra.mxu0 0.0
      %919 = vmatpush.msra.mxu0 0.0
      %920 = vmatpush.msra.mxu0 0.0
      %921 = vmatpush.msra.mxu0 0.0
      %922 = vmatpush.msra.mxu0 0.0
      %923 = vmatpush.msra.mxu0 0.0
      %924 = vmatpush.msra.mxu0 0.0
      %925 = vmatpush.msra.mxu0 0.0
      %926 = vmatpush.msra.mxu0 0.0
      %927 = vmatpush.msra.mxu0 0.0
      %928 = vmatpush.msra.mxu0 0.0
      %929 = vmatpush.msra.mxu0 0.0
      %930 = vmatpush.msra.mxu0 0.0
      %931 = vmatpush.msra.mxu0 0.0
      %932 = vmatpush.msra.mxu0 %v912
      %933 = vmatmul.f32.gmra.mxu0 %v915
      %v934 = vpop.f32.mrf.mxu0
      %v935 = vadd.f32 0.0, %v934
      %936 = vdwg.mxu0
      %937 = vrot.lane.b32.xlu0 %v752, 64
      %v938 = vpop.permute.xlu0 %937
      %v941 = vsel %vm758, %v884, 0
      %943 = vmatpush.msra.mxu0 0.0
      %944 = vmatpush.msra.mxu0 0.0
      %945 = vmatpush.msra.mxu0 0.0
      %946 = vmatpush.msra.mxu0 0.0
      %947 = vmatpush.msra.mxu0 0.0
      %948 = vmatpush.msra.mxu0 0.0
      %949 = vmatpush.msra.mxu0 0.0
      %950 = vmatpush.msra.mxu0 0.0
      %951 = vmatpush.msra.mxu0 0.0
      %952 = vmatpush.msra.mxu0 0.0
      %953 = vmatpush.msra.mxu0 0.0
      %954 = vmatpush.msra.mxu0 0.0
      %955 = vmatpush.msra.mxu0 0.0
      %956 = vmatpush.msra.mxu0 0.0
      %957 = vmatpush.msra.mxu0 0.0
      %958 = vmatpush.msra.mxu0 %v938
      %959 = vmatmul.f32.gmra.mxu0 %v941
      %v960 = vpop.f32.mrf.mxu0
      %v961 = vadd.f32 0.0, %v960
      %962 = vdwg.mxu0
      %v963 = vpack.c.bf16 %v935, %v909
      %v964 = vpack.c.bf16 %v961, %v961
      %v966 = vsel %vm758, %v963, 0
      %v969 = vsel %vm758, %v964, 0
      %vm971 = vcmask 1043456
      %v973 = vsel %vm971, %v691, 0
      %975 = vmatpush.bf16.msra.mxu0 0
      %976 = vmatpush.bf16.msra.mxu0 0
      %977 = vmatpush.bf16.msra.mxu0 0
      %978 = vmatpush.bf16.msra.mxu0 0
      %979 = vmatpush.bf16.msra.mxu0 0
      %980 = vmatpush.bf16.msra.mxu0 0
      %981 = vmatpush.bf16.msra.mxu0 0
      %982 = vmatpush.bf16.msra.mxu0 %v973
      %983 = vmatmul.bf16.gmra.mxu0 %v966
      %v984 = vpop.f32.mrf.mxu0
      %v985 = vadd.f32 0.0, %v984
      %v986 = vpop.f32.mrf.mxu0
      %v987 = vadd.f32 0.0, %v986
      %988 = vmatmul.bf16.gmra.mxu0 %v969
      %v989 = vpop.f32.mrf.mxu0
      %v990 = vadd.f32 0.0, %v989
      %v991 = vpop.f32.mrf.mxu0
      %992 = vdwg.mxu0
      %v994 = vperm.slane %v695, 0
      %v996 = vadd.f32 %v994, %v985
      %v997 = vadd.f32 %v994, %v987
      %v998 = vadd.f32 %v994, %v990
      %999 = vrot.lane.b32.xlu0 %v747, 120
      %v1000 = vpop.permute.xlu0 %999
      %1001 = vrot.lane.b32.xlu0 %v747, 88
      %v1002 = vpop.permute.xlu0 %1001
      %v1003 = vsel %vm758, %v1000, 0
      %v1005 = vsel %vm758, %v1002, 0
      %1007 = vmatpush.xpose.msra.mxu0 0.0
      %1008 = vmatpush.xpose.msra.mxu0 0.0
      %1009 = vmatpush.xpose.msra.mxu0 0.0
      %1010 = vmatpush.xpose.msra.mxu0 0.0
      %1011 = vmatpush.xpose.msra.mxu0 0.0
      %1012 = vmatpush.xpose.msra.mxu0 0.0
      %1013 = vmatpush.xpose.msra.mxu0 0.0
      %1014 = vmatpush.xpose.msra.mxu0 0.0
      %1015 = vmatpush.xpose.msra.mxu0 0.0
      %1016 = vmatpush.xpose.msra.mxu0 0.0
      %1017 = vmatpush.xpose.msra.mxu0 0.0
      %1018 = vmatpush.xpose.msra.mxu0 0.0
      %1019 = vmatpush.xpose.msra.mxu0 0.0
      %1020 = vmatpush.xpose.msra.mxu0 0.0
      %1021 = vmatpush.xpose.msra.mxu0 0.0
      %1022 = vmatpush.xpose.msra.mxu0 %v1005
      %1023 = vmatmul.f32.gmra.mxu0 %v1003
      %v1024 = vpop.f32.mrf.mxu0
      %v1025 = vadd.f32 0.0, %v1024
      %1026 = vdwg.mxu0
      %1027 = vrot.lane.b32.xlu0 %v749, 120
      %v1028 = vpop.permute.xlu0 %1027
      %1029 = vrot.lane.b32.xlu0 %v749, 88
      %v1030 = vpop.permute.xlu0 %1029
      %v1031 = vsel %vm758, %v1028, 0
      %v1033 = vsel %vm758, %v1030, 0
      %1035 = vmatpush.xpose.msra.mxu0 0.0
      %1036 = vmatpush.xpose.msra.mxu0 0.0
      %1037 = vmatpush.xpose.msra.mxu0 0.0
      %1038 = vmatpush.xpose.msra.mxu0 0.0
      %1039 = vmatpush.xpose.msra.mxu0 0.0
      %1040 = vmatpush.xpose.msra.mxu0 0.0
      %1041 = vmatpush.xpose.msra.mxu0 0.0
      %1042 = vmatpush.xpose.msra.mxu0 0.0
      %1043 = vmatpush.xpose.msra.mxu0 0.0
      %1044 = vmatpush.xpose.msra.mxu0 0.0
      %1045 = vmatpush.xpose.msra.mxu0 0.0
      %1046 = vmatpush.xpose.msra.mxu0 0.0
      %1047 = vmatpush.xpose.msra.mxu0 0.0
      %1048 = vmatpush.xpose.msra.mxu0 0.0
      %1049 = vmatpush.xpose.msra.mxu0 0.0
      %1050 = vmatpush.xpose.msra.mxu0 %v1033
      %1051 = vmatmul.f32.gmra.mxu0 %v1031
      %v1052 = vpop.f32.mrf.mxu0
      %v1053 = vadd.f32 0.0, %v1052
      %1054 = vdwg.mxu0
      %1055 = vrot.lane.b32.xlu0 %v752, 120
      %v1056 = vpop.permute.xlu0 %1055
      %1057 = vrot.lane.b32.xlu0 %v752, 88
      %v1058 = vpop.permute.xlu0 %1057
      %v1059 = vsel %vm758, %v1056, 0
      %v1061 = vsel %vm758, %v1058, 0
      %1063 = vmatpush.xpose.msra.mxu0 0.0
      %1064 = vmatpush.xpose.msra.mxu0 0.0
      %1065 = vmatpush.xpose.msra.mxu0 0.0
      %1066 = vmatpush.xpose.msra.mxu0 0.0
      %1067 = vmatpush.xpose.msra.mxu0 0.0
      %1068 = vmatpush.xpose.msra.mxu0 0.0
      %1069 = vmatpush.xpose.msra.mxu0 0.0
      %1070 = vmatpush.xpose.msra.mxu0 0.0
      %1071 = vmatpush.xpose.msra.mxu0 0.0
      %1072 = vmatpush.xpose.msra.mxu0 0.0
      %1073 = vmatpush.xpose.msra.mxu0 0.0
      %1074 = vmatpush.xpose.msra.mxu0 0.0
      %1075 = vmatpush.xpose.msra.mxu0 0.0
      %1076 = vmatpush.xpose.msra.mxu0 0.0
      %1077 = vmatpush.xpose.msra.mxu0 0.0
      %1078 = vmatpush.xpose.msra.mxu0 %v1061
      %1079 = vmatmul.f32.gmra.mxu0 %v1059
      %v1080 = vpop.f32.mrf.mxu0
      %v1081 = vadd.f32 0.0, %v1080
      %1082 = vdwg.mxu0
      %v1083 = vmul.f32 %v1025, 0.35355338
      %v1084 = vmul.f32 %v1053, 0.35355338
      %v1085 = vmul.f32 %v1081, 0.35355338
      %v1086 = vadd.f32 %v1083, %v843
      %v1087 = vadd.f32 %v1084, %v844
      %v1088 = vadd.f32 %v1085, %v845
      %v1089 = vsel %vm758, %v1086, -inf
      %1090 = vmax.xlane.f32.xlu0 %v1089
      %v1091 = vpop.xlane.xlu0 %1090
      %v1092 = vsel %vm758, %v1087, -inf
      %1093 = vmax.xlane.f32.xlu0 %v1092
      %v1094 = vpop.xlane.xlu0 %1093
      %v1095 = vsel %vm758, %v1088, -inf
      %1096 = vmax.xlane.f32.xlu0 %v1095
      %v1097 = vpop.xlane.xlu0 %1096
      %v1098 = vsub.f32 %v1086, %v1091
      %v1099 = vsub.f32 %v1087, %v1094
      %v1100 = vsub.f32 %v1088, %v1097
      %v1101 = vmul.f32 %v1098, 1.442695
      %v1102 = vpow.pop %v1101
      %v1103 = vmul.f32 %v1099, 1.442695
      %v1104 = vpow.pop %v1103
      %v1105 = vmul.f32 %v1100, 1.442695
      %v1106 = vpow.pop %v1105
      %v1107 = vsel %vm758, %v1102, 0.0
      %1108 = vadd.xlane.f32.xlu0 %v1107
      %v1109 = vpop.xlane.xlu0 %1108
      %v1110 = vsel %vm758, %v1104, 0.0
      %1111 = vadd.xlane.f32.xlu0 %v1110
      %v1112 = vpop.xlane.xlu0 %1111
      %v1113 = vsel %vm758, %v1106, 0.0
      %1114 = vadd.xlane.f32.xlu0 %v1113
      %v1115 = vpop.xlane.xlu0 %1114
      %v1116 = vrcp.pop %v1109
      %v1117 = vrcp.pop %v1112
      %v1118 = vrcp.pop %v1115
      %v1119 = vmul.f32 %v1102, %v1116
      %v1120 = vmul.f32 %v1104, %v1117
      %v1121 = vmul.f32 %v1106, %v1118
      %1122 = vrot.lane.b32.xlu0 %v747, 56
      %v1123 = vpop.permute.xlu0 %1122
      %v1126 = vsel %vm758, %v1119, 0
      %1128 = vmatpush.msra.mxu0 0.0
      %1129 = vmatpush.msra.mxu0 0.0
      %1130 = vmatpush.msra.mxu0 0.0
      %1131 = vmatpush.msra.mxu0 0.0
      %1132 = vmatpush.msra.mxu0 0.0
      %1133 = vmatpush.msra.mxu0 0.0
      %1134 = vmatpush.msra.mxu0 0.0
      %1135 = vmatpush.msra.mxu0 0.0
      %1136 = vmatpush.msra.mxu0 0.0
      %1137 = vmatpush.msra.mxu0 0.0
      %1138 = vmatpush.msra.mxu0 0.0
      %1139 = vmatpush.msra.mxu0 0.0
      %1140 = vmatpush.msra.mxu0 0.0
      %1141 = vmatpush.msra.mxu0 0.0
      %1142 = vmatpush.msra.mxu0 0.0
      %1143 = vmatpush.msra.mxu0 %v1123
      %1144 = vmatmul.f32.gmra.mxu0 %v1126
      %v1145 = vpop.f32.mrf.mxu0
      %v1146 = vadd.f32 0.0, %v1145
      %1147 = vdwg.mxu0
      %1148 = vrot.lane.b32.xlu0 %v749, 56
      %v1149 = vpop.permute.xlu0 %1148
      %v1152 = vsel %vm758, %v1120, 0
      %1154 = vmatpush.msra.mxu0 0.0
      %1155 = vmatpush.msra.mxu0 0.0
      %1156 = vmatpush.msra.mxu0 0.0
      %1157 = vmatpush.msra.mxu0 0.0
      %1158 = vmatpush.msra.mxu0 0.0
      %1159 = vmatpush.msra.mxu0 0.0
      %1160 = vmatpush.msra.mxu0 0.0
      %1161 = vmatpush.msra.mxu0 0.0
      %1162 = vmatpush.msra.mxu0 0.0
      %1163 = vmatpush.msra.mxu0 0.0
      %1164 = vmatpush.msra.mxu0 0.0
      %1165 = vmatpush.msra.mxu0 0.0
      %1166 = vmatpush.msra.mxu0 0.0
      %1167 = vmatpush.msra.mxu0 0.0
      %1168 = vmatpush.msra.mxu0 0.0
      %1169 = vmatpush.msra.mxu0 %v1149
      %1170 = vmatmul.f32.gmra.mxu0 %v1152
      %v1171 = vpop.f32.mrf.mxu0
      %v1172 = vadd.f32 0.0, %v1171
      %1173 = vdwg.mxu0
      %1174 = vrot.lane.b32.xlu0 %v752, 56
      %v1175 = vpop.permute.xlu0 %1174
      %v1178 = vsel %vm758, %v1121, 0
      %1180 = vmatpush.msra.mxu0 0.0
      %1181 = vmatpush.msra.mxu0 0.0
      %1182 = vmatpush.msra.mxu0 0.0
      %1183 = vmatpush.msra.mxu0 0.0
      %1184 = vmatpush.msra.mxu0 0.0
      %1185 = vmatpush.msra.mxu0 0.0
      %1186 = vmatpush.msra.mxu0 0.0
      %1187 = vmatpush.msra.mxu0 0.0
      %1188 = vmatpush.msra.mxu0 0.0
      %1189 = vmatpush.msra.mxu0 0.0
      %1190 = vmatpush.msra.mxu0 0.0
      %1191 = vmatpush.msra.mxu0 0.0
      %1192 = vmatpush.msra.mxu0 0.0
      %1193 = vmatpush.msra.mxu0 0.0
      %1194 = vmatpush.msra.mxu0 0.0
      %1195 = vmatpush.msra.mxu0 %v1175
      %1196 = vmatmul.f32.gmra.mxu0 %v1178
      %v1197 = vpop.f32.mrf.mxu0
      %v1198 = vadd.f32 0.0, %v1197
      %1199 = vdwg.mxu0
      %v1200 = vpack.c.bf16 %v1172, %v1146
      %v1201 = vpack.c.bf16 %v1198, %v1198
      %v1203 = vsel %vm758, %v1200, 0
      %v1206 = vsel %vm758, %v1201, 0
      %v1209 = vsel %vm971, %v692, 0
      %1211 = vmatpush.bf16.msra.mxu0 0
      %1212 = vmatpush.bf16.msra.mxu0 0
      %1213 = vmatpush.bf16.msra.mxu0 0
      %1214 = vmatpush.bf16.msra.mxu0 0
      %1215 = vmatpush.bf16.msra.mxu0 0
      %1216 = vmatpush.bf16.msra.mxu0 0
      %1217 = vmatpush.bf16.msra.mxu0 0
      %1218 = vmatpush.bf16.msra.mxu0 %v1209
      %1219 = vmatmul.bf16.gmra.mxu0 %v1203
      %v1220 = vpop.f32.mrf.mxu0
      %v1221 = vadd.f32 0.0, %v1220
      %v1222 = vpop.f32.mrf.mxu0
      %v1223 = vadd.f32 0.0, %v1222
      %1224 = vmatmul.bf16.gmra.mxu0 %v1206
      %v1225 = vpop.f32.mrf.mxu0
      %v1226 = vadd.f32 0.0, %v1225
      %v1227 = vpop.f32.mrf.mxu0
      %1228 = vdwg.mxu0
      %v1229 = vadd.f32 %v996, %v1221
      %v1230 = vadd.f32 %v997, %v1223
      %v1231 = vadd.f32 %v998, %v1226
      %1232 = vrot.lane.b32.xlu0 %v747, 112
      %v1233 = vpop.permute.xlu0 %1232
      %1234 = vrot.lane.b32.xlu0 %v747, 80
      %v1235 = vpop.permute.xlu0 %1234
      %v1236 = vsel %vm758, %v1233, 0
      %v1238 = vsel %vm758, %v1235, 0
      %1240 = vmatpush.xpose.msra.mxu0 0.0
      %1241 = vmatpush.xpose.msra.mxu0 0.0
      %1242 = vmatpush.xpose.msra.mxu0 0.0
      %1243 = vmatpush.xpose.msra.mxu0 0.0
      %1244 = vmatpush.xpose.msra.mxu0 0.0
      %1245 = vmatpush.xpose.msra.mxu0 0.0
      %1246 = vmatpush.xpose.msra.mxu0 0.0
      %1247 = vmatpush.xpose.msra.mxu0 0.0
      %1248 = vmatpush.xpose.msra.mxu0 0.0
      %1249 = vmatpush.xpose.msra.mxu0 0.0
      %1250 = vmatpush.xpose.msra.mxu0 0.0
      %1251 = vmatpush.xpose.msra.mxu0 0.0
      %1252 = vmatpush.xpose.msra.mxu0 0.0
      %1253 = vmatpush.xpose.msra.mxu0 0.0
      %1254 = vmatpush.xpose.msra.mxu0 0.0
      %1255 = vmatpush.xpose.msra.mxu0 %v1238
      %1256 = vmatmul.f32.gmra.mxu0 %v1236
      %v1257 = vpop.f32.mrf.mxu0
      %v1258 = vadd.f32 0.0, %v1257
      %1259 = vdwg.mxu0
      %1260 = vrot.lane.b32.xlu0 %v749, 112
      %v1261 = vpop.permute.xlu0 %1260
      %1262 = vrot.lane.b32.xlu0 %v749, 80
      %v1263 = vpop.permute.xlu0 %1262
      %v1264 = vsel %vm758, %v1261, 0
      %v1266 = vsel %vm758, %v1263, 0
      %1268 = vmatpush.xpose.msra.mxu0 0.0
      %1269 = vmatpush.xpose.msra.mxu0 0.0
      %1270 = vmatpush.xpose.msra.mxu0 0.0
      %1271 = vmatpush.xpose.msra.mxu0 0.0
      %1272 = vmatpush.xpose.msra.mxu0 0.0
      %1273 = vmatpush.xpose.msra.mxu0 0.0
      %1274 = vmatpush.xpose.msra.mxu0 0.0
      %1275 = vmatpush.xpose.msra.mxu0 0.0
      %1276 = vmatpush.xpose.msra.mxu0 0.0
      %1277 = vmatpush.xpose.msra.mxu0 0.0
      %1278 = vmatpush.xpose.msra.mxu0 0.0
      %1279 = vmatpush.xpose.msra.mxu0 0.0
      %1280 = vmatpush.xpose.msra.mxu0 0.0
      %1281 = vmatpush.xpose.msra.mxu0 0.0
      %1282 = vmatpush.xpose.msra.mxu0 0.0
      %1283 = vmatpush.xpose.msra.mxu0 %v1266
      %1284 = vmatmul.f32.gmra.mxu0 %v1264
      %v1285 = vpop.f32.mrf.mxu0
      %v1286 = vadd.f32 0.0, %v1285
      %1287 = vdwg.mxu0
      %1288 = vrot.lane.b32.xlu0 %v752, 112
      %v1289 = vpop.permute.xlu0 %1288
      %1290 = vrot.lane.b32.xlu0 %v752, 80
      %v1291 = vpop.permute.xlu0 %1290
      %v1292 = vsel %vm758, %v1289, 0
      %v1294 = vsel %vm758, %v1291, 0
      %1296 = vmatpush.xpose.msra.mxu0 0.0
      %1297 = vmatpush.xpose.msra.mxu0 0.0
      %1298 = vmatpush.xpose.msra.mxu0 0.0
      %1299 = vmatpush.xpose.msra.mxu0 0.0
      %1300 = vmatpush.xpose.msra.mxu0 0.0
      %1301 = vmatpush.xpose.msra.mxu0 0.0
      %1302 = vmatpush.xpose.msra.mxu0 0.0
      %1303 = vmatpush.xpose.msra.mxu0 0.0
      %1304 = vmatpush.xpose.msra.mxu0 0.0
      %1305 = vmatpush.xpose.msra.mxu0 0.0
      %1306 = vmatpush.xpose.msra.mxu0 0.0
      %1307 = vmatpush.xpose.msra.mxu0 0.0
      %1308 = vmatpush.xpose.msra.mxu0 0.0
      %1309 = vmatpush.xpose.msra.mxu0 0.0
      %1310 = vmatpush.xpose.msra.mxu0 0.0
      %1311 = vmatpush.xpose.msra.mxu0 %v1294
      %1312 = vmatmul.f32.gmra.mxu0 %v1292
      %v1313 = vpop.f32.mrf.mxu0
      %v1314 = vadd.f32 0.0, %v1313
      %1315 = vdwg.mxu0
      %v1316 = vmul.f32 %v1258, 0.35355338
      %v1317 = vmul.f32 %v1286, 0.35355338
      %v1318 = vmul.f32 %v1314, 0.35355338
      %v1319 = vadd.f32 %v1316, %v843
      %v1320 = vadd.f32 %v1317, %v844
      %v1321 = vadd.f32 %v1318, %v845
      %v1322 = vsel %vm758, %v1319, -inf
      %1323 = vmax.xlane.f32.xlu0 %v1322
      %v1324 = vpop.xlane.xlu0 %1323
      %v1325 = vsel %vm758, %v1320, -inf
      %1326 = vmax.xlane.f32.xlu0 %v1325
      %v1327 = vpop.xlane.xlu0 %1326
      %v1328 = vsel %vm758, %v1321, -inf
      %1329 = vmax.xlane.f32.xlu0 %v1328
      %v1330 = vpop.xlane.xlu0 %1329
      %v1331 = vsub.f32 %v1319, %v1324
      %v1332 = vsub.f32 %v1320, %v1327
      %v1333 = vsub.f32 %v1321, %v1330
      %v1334 = vmul.f32 %v1331, 1.442695
      %v1335 = vpow.pop %v1334
      %v1336 = vmul.f32 %v1332, 1.442695
      %v1337 = vpow.pop %v1336
      %v1338 = vmul.f32 %v1333, 1.442695
      %v1339 = vpow.pop %v1338
      %v1340 = vsel %vm758, %v1335, 0.0
      %1341 = vadd.xlane.f32.xlu0 %v1340
      %v1342 = vpop.xlane.xlu0 %1341
      %v1343 = vsel %vm758, %v1337, 0.0
      %1344 = vadd.xlane.f32.xlu0 %v1343
      %v1345 = vpop.xlane.xlu0 %1344
      %v1346 = vsel %vm758, %v1339, 0.0
      %1347 = vadd.xlane.f32.xlu0 %v1346
      %v1348 = vpop.xlane.xlu0 %1347
      %v1349 = vrcp.pop %v1342
      %v1350 = vrcp.pop %v1345
      %v1351 = vrcp.pop %v1348
      %v1352 = vmul.f32 %v1335, %v1349
      %v1353 = vmul.f32 %v1337, %v1350
      %v1354 = vmul.f32 %v1339, %v1351
      %1355 = vrot.lane.b32.xlu0 %v747, 48
      %v1356 = vpop.permute.xlu0 %1355
      %v1359 = vsel %vm758, %v1352, 0
      %1361 = vmatpush.msra.mxu0 0.0
      %1362 = vmatpush.msra.mxu0 0.0
      %1363 = vmatpush.msra.mxu0 0.0
      %1364 = vmatpush.msra.mxu0 0.0
      %1365 = vmatpush.msra.mxu0 0.0
      %1366 = vmatpush.msra.mxu0 0.0
      %1367 = vmatpush.msra.mxu0 0.0
      %1368 = vmatpush.msra.mxu0 0.0
      %1369 = vmatpush.msra.mxu0 0.0
      %1370 = vmatpush.msra.mxu0 0.0
      %1371 = vmatpush.msra.mxu0 0.0
      %1372 = vmatpush.msra.mxu0 0.0
      %1373 = vmatpush.msra.mxu0 0.0
      %1374 = vmatpush.msra.mxu0 0.0
      %1375 = vmatpush.msra.mxu0 0.0
      %1376 = vmatpush.msra.mxu0 %v1356
      %1377 = vmatmul.f32.gmra.mxu0 %v1359
      %v1378 = vpop.f32.mrf.mxu0
      %v1379 = vadd.f32 0.0, %v1378
      %1380 = vdwg.mxu0
      %1381 = vrot.lane.b32.xlu0 %v749, 48
      %v1382 = vpop.permute.xlu0 %1381
      %v1385 = vsel %vm758, %v1353, 0
      %1387 = vmatpush.msra.mxu0 0.0
      %1388 = vmatpush.msra.mxu0 0.0
      %1389 = vmatpush.msra.mxu0 0.0
      %1390 = vmatpush.msra.mxu0 0.0
      %1391 = vmatpush.msra.mxu0 0.0
      %1392 = vmatpush.msra.mxu0 0.0
      %1393 = vmatpush.msra.mxu0 0.0
      %1394 = vmatpush.msra.mxu0 0.0
      %1395 = vmatpush.msra.mxu0 0.0
      %1396 = vmatpush.msra.mxu0 0.0
      %1397 = vmatpush.msra.mxu0 0.0
      %1398 = vmatpush.msra.mxu0 0.0
      %1399 = vmatpush.msra.mxu0 0.0
      %1400 = vmatpush.msra.mxu0 0.0
      %1401 = vmatpush.msra.mxu0 0.0
      %1402 = vmatpush.msra.mxu0 %v1382
      %1403 = vmatmul.f32.gmra.mxu0 %v1385
      %v1404 = vpop.f32.mrf.mxu0
      %v1405 = vadd.f32 0.0, %v1404
      %1406 = vdwg.mxu0
      %1407 = vrot.lane.b32.xlu0 %v752, 48
      %v1408 = vpop.permute.xlu0 %1407
      %v1411 = vsel %vm758, %v1354, 0
      %1413 = vmatpush.msra.mxu0 0.0
      %1414 = vmatpush.msra.mxu0 0.0
      %1415 = vmatpush.msra.mxu0 0.0
      %1416 = vmatpush.msra.mxu0 0.0
      %1417 = vmatpush.msra.mxu0 0.0
      %1418 = vmatpush.msra.mxu0 0.0
      %1419 = vmatpush.msra.mxu0 0.0
      %1420 = vmatpush.msra.mxu0 0.0
      %1421 = vmatpush.msra.mxu0 0.0
      %1422 = vmatpush.msra.mxu0 0.0
      %1423 = vmatpush.msra.mxu0 0.0
      %1424 = vmatpush.msra.mxu0 0.0
      %1425 = vmatpush.msra.mxu0 0.0
      %1426 = vmatpush.msra.mxu0 0.0
      %1427 = vmatpush.msra.mxu0 0.0
      %1428 = vmatpush.msra.mxu0 %v1408
      %1429 = vmatmul.f32.gmra.mxu0 %v1411
      %v1430 = vpop.f32.mrf.mxu0
      %v1431 = vadd.f32 0.0, %v1430
      %1432 = vdwg.mxu0
      %v1433 = vpack.c.bf16 %v1405, %v1379
      %v1434 = vpack.c.bf16 %v1431, %v1431
      %v1436 = vsel %vm758, %v1433, 0
      %v1439 = vsel %vm758, %v1434, 0
      %v1442 = vsel %vm971, %v693, 0
      %1444 = vmatpush.bf16.msra.mxu0 0
      %1445 = vmatpush.bf16.msra.mxu0 0
      %1446 = vmatpush.bf16.msra.mxu0 0
      %1447 = vmatpush.bf16.msra.mxu0 0
      %1448 = vmatpush.bf16.msra.mxu0 0
      %1449 = vmatpush.bf16.msra.mxu0 0
      %1450 = vmatpush.bf16.msra.mxu0 0
      %1451 = vmatpush.bf16.msra.mxu0 %v1442
      %1452 = vmatmul.bf16.gmra.mxu0 %v1436
      %v1453 = vpop.f32.mrf.mxu0
      %v1454 = vadd.f32 0.0, %v1453
      %v1455 = vpop.f32.mrf.mxu0
      %v1456 = vadd.f32 0.0, %v1455
      %1457 = vmatmul.bf16.gmra.mxu0 %v1439
      %v1458 = vpop.f32.mrf.mxu0
      %v1459 = vadd.f32 0.0, %v1458
      %v1460 = vpop.f32.mrf.mxu0
      %1461 = vdwg.mxu0
      %v1462 = vadd.f32 %v1229, %v1454
      %v1463 = vadd.f32 %v1230, %v1456
      %v1464 = vadd.f32 %v1231, %v1459
      %1465 = vrot.lane.b32.xlu0 %v747, 104
      %v1466 = vpop.permute.xlu0 %1465
      %1467 = vrot.lane.b32.xlu0 %v747, 72
      %v1468 = vpop.permute.xlu0 %1467
      %v1469 = vsel %vm758, %v1466, 0
      %v1471 = vsel %vm758, %v1468, 0
      %1473 = vmatpush.xpose.msra.mxu0 0.0
      %1474 = vmatpush.xpose.msra.mxu0 0.0
      %1475 = vmatpush.xpose.msra.mxu0 0.0
      %1476 = vmatpush.xpose.msra.mxu0 0.0
      %1477 = vmatpush.xpose.msra.mxu0 0.0
      %1478 = vmatpush.xpose.msra.mxu0 0.0
      %1479 = vmatpush.xpose.msra.mxu0 0.0
      %1480 = vmatpush.xpose.msra.mxu0 0.0
      %1481 = vmatpush.xpose.msra.mxu0 0.0
      %1482 = vmatpush.xpose.msra.mxu0 0.0
      %1483 = vmatpush.xpose.msra.mxu0 0.0
      %1484 = vmatpush.xpose.msra.mxu0 0.0
      %1485 = vmatpush.xpose.msra.mxu0 0.0
      %1486 = vmatpush.xpose.msra.mxu0 0.0
      %1487 = vmatpush.xpose.msra.mxu0 0.0
      %1488 = vmatpush.xpose.msra.mxu0 %v1471
      %1489 = vmatmul.f32.gmra.mxu0 %v1469
      %v1490 = vpop.f32.mrf.mxu0
      %v1491 = vadd.f32 0.0, %v1490
      %1492 = vdwg.mxu0
      %1493 = vrot.lane.b32.xlu0 %v749, 104
      %v1494 = vpop.permute.xlu0 %1493
      %1495 = vrot.lane.b32.xlu0 %v749, 72
      %v1496 = vpop.permute.xlu0 %1495
      %v1497 = vsel %vm758, %v1494, 0
      %v1499 = vsel %vm758, %v1496, 0
      %1501 = vmatpush.xpose.msra.mxu0 0.0
      %1502 = vmatpush.xpose.msra.mxu0 0.0
      %1503 = vmatpush.xpose.msra.mxu0 0.0
      %1504 = vmatpush.xpose.msra.mxu0 0.0
      %1505 = vmatpush.xpose.msra.mxu0 0.0
      %1506 = vmatpush.xpose.msra.mxu0 0.0
      %1507 = vmatpush.xpose.msra.mxu0 0.0
      %1508 = vmatpush.xpose.msra.mxu0 0.0
      %1509 = vmatpush.xpose.msra.mxu0 0.0
      %1510 = vmatpush.xpose.msra.mxu0 0.0
      %1511 = vmatpush.xpose.msra.mxu0 0.0
      %1512 = vmatpush.xpose.msra.mxu0 0.0
      %1513 = vmatpush.xpose.msra.mxu0 0.0
      %1514 = vmatpush.xpose.msra.mxu0 0.0
      %1515 = vmatpush.xpose.msra.mxu0 0.0
      %1516 = vmatpush.xpose.msra.mxu0 %v1499
      %1517 = vmatmul.f32.gmra.mxu0 %v1497
      %v1518 = vpop.f32.mrf.mxu0
      %v1519 = vadd.f32 0.0, %v1518
      %1520 = vdwg.mxu0
      %1521 = vrot.lane.b32.xlu0 %v752, 104
      %v1522 = vpop.permute.xlu0 %1521
      %1523 = vrot.lane.b32.xlu0 %v752, 72
      %v1524 = vpop.permute.xlu0 %1523
      %v1525 = vsel %vm758, %v1522, 0
      %v1527 = vsel %vm758, %v1524, 0
      %1529 = vmatpush.xpose.msra.mxu0 0.0
      %1530 = vmatpush.xpose.msra.mxu0 0.0
      %1531 = vmatpush.xpose.msra.mxu0 0.0
      %1532 = vmatpush.xpose.msra.mxu0 0.0
      %1533 = vmatpush.xpose.msra.mxu0 0.0
      %1534 = vmatpush.xpose.msra.mxu0 0.0
      %1535 = vmatpush.xpose.msra.mxu0 0.0
      %1536 = vmatpush.xpose.msra.mxu0 0.0
      %1537 = vmatpush.xpose.msra.mxu0 0.0
      %1538 = vmatpush.xpose.msra.mxu0 0.0
      %1539 = vmatpush.xpose.msra.mxu0 0.0
      %1540 = vmatpush.xpose.msra.mxu0 0.0
      %1541 = vmatpush.xpose.msra.mxu0 0.0
      %1542 = vmatpush.xpose.msra.mxu0 0.0
      %1543 = vmatpush.xpose.msra.mxu0 0.0
      %1544 = vmatpush.xpose.msra.mxu0 %v1527
      %1545 = vmatmul.f32.gmra.mxu0 %v1525
      %v1546 = vpop.f32.mrf.mxu0
      %v1547 = vadd.f32 0.0, %v1546
      %1548 = vdwg.mxu0
      %v1549 = vmul.f32 %v1491, 0.35355338
      %v1550 = vmul.f32 %v1519, 0.35355338
      %v1551 = vmul.f32 %v1547, 0.35355338
      %v1552 = vadd.f32 %v1549, %v843
      %v1553 = vadd.f32 %v1550, %v844
      %v1554 = vadd.f32 %v1551, %v845
      %v1555 = vsel %vm758, %v1552, -inf
      %1556 = vmax.xlane.f32.xlu0 %v1555
      %v1557 = vpop.xlane.xlu0 %1556
      %v1558 = vsel %vm758, %v1553, -inf
      %1559 = vmax.xlane.f32.xlu0 %v1558
      %v1560 = vpop.xlane.xlu0 %1559
      %v1561 = vsel %vm758, %v1554, -inf
      %1562 = vmax.xlane.f32.xlu0 %v1561
      %v1563 = vpop.xlane.xlu0 %1562
      %v1564 = vsub.f32 %v1552, %v1557
      %v1565 = vsub.f32 %v1553, %v1560
      %v1566 = vsub.f32 %v1554, %v1563
      %v1567 = vmul.f32 %v1564, 1.442695
      %v1568 = vpow.pop %v1567
      %v1569 = vmul.f32 %v1565, 1.442695
      %v1570 = vpow.pop %v1569
      %v1571 = vmul.f32 %v1566, 1.442695
      %v1572 = vpow.pop %v1571
      %v1573 = vsel %vm758, %v1568, 0.0
      %1574 = vadd.xlane.f32.xlu0 %v1573
      %v1575 = vpop.xlane.xlu0 %1574
      %v1576 = vsel %vm758, %v1570, 0.0
      %1577 = vadd.xlane.f32.xlu0 %v1576
      %v1578 = vpop.xlane.xlu0 %1577
      %v1579 = vsel %vm758, %v1572, 0.0
      %1580 = vadd.xlane.f32.xlu0 %v1579
      %v1581 = vpop.xlane.xlu0 %1580
      %v1582 = vrcp.pop %v1575
      %v1583 = vrcp.pop %v1578
      %v1584 = vrcp.pop %v1581
      %v1585 = vmul.f32 %v1568, %v1582
      %v1586 = vmul.f32 %v1570, %v1583
      %v1587 = vmul.f32 %v1572, %v1584
      %1588 = vrot.lane.b32.xlu0 %v747, 40
      %v1589 = vpop.permute.xlu0 %1588
      %v1592 = vsel %vm758, %v1585, 0
      %1594 = vmatpush.msra.mxu0 0.0
      %1595 = vmatpush.msra.mxu0 0.0
      %1596 = vmatpush.msra.mxu0 0.0
      %1597 = vmatpush.msra.mxu0 0.0
      %1598 = vmatpush.msra.mxu0 0.0
      %1599 = vmatpush.msra.mxu0 0.0
      %1600 = vmatpush.msra.mxu0 0.0
      %1601 = vmatpush.msra.mxu0 0.0
      %1602 = vmatpush.msra.mxu0 0.0
      %1603 = vmatpush.msra.mxu0 0.0
      %1604 = vmatpush.msra.mxu0 0.0
      %1605 = vmatpush.msra.mxu0 0.0
      %1606 = vmatpush.msra.mxu0 0.0
      %1607 = vmatpush.msra.mxu0 0.0
      %1608 = vmatpush.msra.mxu0 0.0
      %1609 = vmatpush.msra.mxu0 %v1589
      %1610 = vmatmul.f32.gmra.mxu0 %v1592
      %v1611 = vpop.f32.mrf.mxu0
      %v1612 = vadd.f32 0.0, %v1611
      %1613 = vdwg.mxu0
      %1614 = vrot.lane.b32.xlu0 %v749, 40
      %v1615 = vpop.permute.xlu0 %1614
      %v1618 = vsel %vm758, %v1586, 0
      %1620 = vmatpush.msra.mxu0 0.0
      %1621 = vmatpush.msra.mxu0 0.0
      %1622 = vmatpush.msra.mxu0 0.0
      %1623 = vmatpush.msra.mxu0 0.0
      %1624 = vmatpush.msra.mxu0 0.0
      %1625 = vmatpush.msra.mxu0 0.0
      %1626 = vmatpush.msra.mxu0 0.0
      %1627 = vmatpush.msra.mxu0 0.0
      %1628 = vmatpush.msra.mxu0 0.0
      %1629 = vmatpush.msra.mxu0 0.0
      %1630 = vmatpush.msra.mxu0 0.0
      %1631 = vmatpush.msra.mxu0 0.0
      %1632 = vmatpush.msra.mxu0 0.0
      %1633 = vmatpush.msra.mxu0 0.0
      %1634 = vmatpush.msra.mxu0 0.0
      %1635 = vmatpush.msra.mxu0 %v1615
      %1636 = vmatmul.f32.gmra.mxu0 %v1618
      %v1637 = vpop.f32.mrf.mxu0
      %v1638 = vadd.f32 0.0, %v1637
      %1639 = vdwg.mxu0
      %1640 = vrot.lane.b32.xlu0 %v752, 40
      %v1641 = vpop.permute.xlu0 %1640
      %v1644 = vsel %vm758, %v1587, 0
      %1646 = vmatpush.msra.mxu0 0.0
      %1647 = vmatpush.msra.mxu0 0.0
      %1648 = vmatpush.msra.mxu0 0.0
      %1649 = vmatpush.msra.mxu0 0.0
      %1650 = vmatpush.msra.mxu0 0.0
      %1651 = vmatpush.msra.mxu0 0.0
      %1652 = vmatpush.msra.mxu0 0.0
      %1653 = vmatpush.msra.mxu0 0.0
      %1654 = vmatpush.msra.mxu0 0.0
      %1655 = vmatpush.msra.mxu0 0.0
      %1656 = vmatpush.msra.mxu0 0.0
      %1657 = vmatpush.msra.mxu0 0.0
      %1658 = vmatpush.msra.mxu0 0.0
      %1659 = vmatpush.msra.mxu0 0.0
      %1660 = vmatpush.msra.mxu0 0.0
      %1661 = vmatpush.msra.mxu0 %v1641
      %1662 = vmatmul.f32.gmra.mxu0 %v1644
      %v1663 = vpop.f32.mrf.mxu0
      %v1664 = vadd.f32 0.0, %v1663
      %1665 = vdwg.mxu0
      %v1666 = vpack.c.bf16 %v1638, %v1612
      %v1667 = vpack.c.bf16 %v1664, %v1664
      %v1669 = vsel %vm758, %v1666, 0
      %v1672 = vsel %vm758, %v1667, 0
      %v1675 = vsel %vm971, %v694, 0
      %1677 = vmatpush.bf16.msra.mxu0 0
      %1678 = vmatpush.bf16.msra.mxu0 0
      %1679 = vmatpush.bf16.msra.mxu0 0
      %1680 = vmatpush.bf16.msra.mxu0 0
      %1681 = vmatpush.bf16.msra.mxu0 0
      %1682 = vmatpush.bf16.msra.mxu0 0
      %1683 = vmatpush.bf16.msra.mxu0 0
      %1684 = vmatpush.bf16.msra.mxu0 %v1675
      %1685 = vmatmul.bf16.gmra.mxu0 %v1669
      %v1686 = vpop.f32.mrf.mxu0
      %v1687 = vadd.f32 0.0, %v1686
      %v1688 = vpop.f32.mrf.mxu0
      %v1689 = vadd.f32 0.0, %v1688
      %1690 = vmatmul.bf16.gmra.mxu0 %v1672
      %v1691 = vpop.f32.mrf.mxu0
      %v1692 = vadd.f32 0.0, %v1691
      %v1693 = vpop.f32.mrf.mxu0
      %1694 = vdwg.mxu0
      %v1695 = vadd.f32 %v1462, %v1687
      %v1696 = vadd.f32 %v1463, %v1689
      %v1697 = vadd.f32 %v1464, %v1692
      %v1698 = vadd.f32 %v680, %v1695
      %v1699 = vadd.f32 %v681, %v1696
      %v1700 = vadd.f32 %v682, %v1697
      %v1701 = vsel %vm597, %v1698, 0.0
      %1702 = vadd.xlane.f32.xlu0 %v1701
      %v1703 = vpop.xlane.xlu0 %1702
      %v1704 = vsel %vm597, %v1699, 0.0
      %1705 = vadd.xlane.f32.xlu0 %v1704
      %v1706 = vpop.xlane.xlu0 %1705
      %v1707 = vsel %vm597, %v1700, 0.0
      %1708 = vadd.xlane.f32.xlu0 %v1707
      %v1709 = vpop.xlane.xlu0 %1708
      %v1710 = vmul.f32 %v1703, %v613
      %v1711 = vmul.f32 %v1706, %v613
      %v1712 = vmul.f32 %v1709, %v613
      %v1713 = vsub.f32 %v1698, %v1710
      %v1714 = vsub.f32 %v1699, %v1711
      %v1715 = vsub.f32 %v1700, %v1712
      %v1716 = vmul.f32 %v1713, %v1713
      %v1717 = vmul.f32 %v1714, %v1714
      %v1718 = vmul.f32 %v1715, %v1715
      %v1719 = vsel %vm597, %v1716, 0.0
      %1720 = vadd.xlane.f32.xlu0 %v1719
      %v1721 = vpop.xlane.xlu0 %1720
      %v1722 = vsel %vm597, %v1717, 0.0
      %1723 = vadd.xlane.f32.xlu0 %v1722
      %v1724 = vpop.xlane.xlu0 %1723
      %v1725 = vsel %vm597, %v1718, 0.0
      %1726 = vadd.xlane.f32.xlu0 %v1725
      %v1727 = vpop.xlane.xlu0 %1726
      %v1728 = vmul.f32 %v1721, %v613
      %v1729 = vmul.f32 %v1724, %v613
      %v1730 = vmul.f32 %v1727, %v613
      %v1731 = vadd.f32 %v1728, 1e-12
      %v1732 = vadd.f32 %v1729, 1e-12
      %v1733 = vadd.f32 %v1730, 1e-12
      %v1734 = vrsqrt.pop %v1731
      %v1735 = vmul.f32 %v1734, %v1731
      %v1736 = vmul.f32 %v1735, %v1734
      %v1737 = vmul.f32 0.5, %v1736
      %v1738 = vsub.f32 1.5, %v1737
      %v1739 = vmul.f32 %v1734, %v1738
      %vm1740 = vweird.f32 %v1731
      %vm1741 = vweird.f32 %v1734
      %vm1742 = vmor %vm1740, %vm1741
      %v1743 = vsel %vm1742, %v1734, %v1739
      %v1744 = vrsqrt.pop %v1732
      %v1745 = vmul.f32 %v1744, %v1732
      %v1746 = vmul.f32 %v1745, %v1744
      %v1747 = vmul.f32 0.5, %v1746
      %v1748 = vsub.f32 1.5, %v1747
      %v1749 = vmul.f32 %v1744, %v1748
      %vm1750 = vweird.f32 %v1732
      %vm1751 = vweird.f32 %v1744
      %vm1752 = vmor %vm1750, %vm1751
      %v1753 = vsel %vm1752, %v1744, %v1749
      %v1754 = vrsqrt.pop %v1733
      %v1755 = vmul.f32 %v1754, %v1733
      %v1756 = vmul.f32 %v1755, %v1754
      %v1757 = vmul.f32 0.5, %v1756
      %v1758 = vsub.f32 1.5, %v1757
      %v1759 = vmul.f32 %v1754, %v1758
      %vm1760 = vweird.f32 %v1733
      %vm1761 = vweird.f32 %v1754
      %vm1762 = vmor %vm1760, %vm1761
      %v1763 = vsel %vm1762, %v1754, %v1759
      %v1764 = vmul.f32 %v1713, %v1743
      %v1765 = vmul.f32 %v1714, %v1753
      %v1766 = vmul.f32 %v1715, %v1763
      %v1768 = vperm.slane %v696, 0
      %v1770 = vmul.f32 %v1764, %v1768
      %v1771 = vmul.f32 %v1765, %v1768
      %v1772 = vmul.f32 %v1766, %v1768
      %v1774 = vperm.slane %v697, 0
      %v1776 = vadd.f32 %v1770, %v1774
      %v1777 = vadd.f32 %v1771, %v1774
      %v1778 = vadd.f32 %v1772, %v1774
      %v1779 = vpack.c.bf16 %v1777, %v1776
      %v1780 = vpack.c.bf16 %v1778, %v1778
      %v1782 = vperm.slane %v702, 0
      %v1788 = vunpack.c.l.b16 %v698
      %v1789 = vunpack.c.l.b16 %v699
      %v1790 = vunpack.c.l.b16 %v700
      %v1791 = vunpack.c.l.b16 %v701
      %v1792 = vpack.c.b16 %v1789, %v1788
      %v1793 = vpack.c.b16 %v1791, %v1790
      %v1797 = vsel %vm597, %v1779, 0
      %v1800 = vsel %vm597, %v1780, 0
      %1802 = vmatpush.bf16.msra.mxu0 0
      %1803 = vmatpush.bf16.msra.mxu0 0
      %1804 = vmatpush.bf16.msra.mxu0 0
      %1805 = vmatpush.bf16.msra.mxu0 0
      %1806 = vmatpush.bf16.msra.mxu0 0
      %1807 = vmatpush.bf16.msra.mxu0 0
      %1808 = vmatpush.bf16.msra.mxu0 %v1793
      %1809 = vmatpush.bf16.msra.mxu0 %v1792
      %1810 = vmatmul.bf16.gmra.mxu0 %v1797
      %v1811 = vpop.f32.mrf.mxu0
      %v1812 = vadd.f32 %v1782, %v1811
      %v1813 = vpop.f32.mrf.mxu0
      %v1814 = vadd.f32 %v1782, %v1813
      %1815 = vmatmul.bf16.gmra.mxu0 %v1800
      %v1816 = vpop.f32.mrf.mxu0
      %v1817 = vadd.f32 %v1782, %v1816
      %v1818 = vpop.f32.mrf.mxu0
      %1819 = vdwg.mxu0
      %v1820 = vmul.f32 %v1812, 0.5
      %v1821 = vmul.f32 %v1814, 0.5
      %v1822 = vmul.f32 %v1817, 0.5
      %v1823 = vmul.f32 %v1812, 0.044715
      %v1824 = vmul.f32 %v1814, 0.044715
      %v1825 = vmul.f32 %v1817, 0.044715
      %v1826 = vmul.f32 %v1823, %v1812
      %v1827 = vmul.f32 %v1824, %v1814
      %v1828 = vmul.f32 %v1825, %v1817
      %v1829 = vmul.f32 %v1826, %v1812
      %v1830 = vmul.f32 %v1827, %v1814
      %v1831 = vmul.f32 %v1828, %v1817
      %v1832 = vadd.f32 %v1812, %v1829
      %v1833 = vadd.f32 %v1814, %v1830
      %v1834 = vadd.f32 %v1817, %v1831
      %v1835 = vmul.f32 %v1832, 0.7978846
      %v1836 = vmul.f32 %v1833, 0.7978846
      %v1837 = vmul.f32 %v1834, 0.7978846
      %v1838 = vtanh.pop %v1835
      %v1839 = vtanh.pop %v1836
      %v1840 = vtanh.pop %v1837
      %v1841 = vadd.f32 %v1838, 1.0
      %v1842 = vadd.f32 %v1839, 1.0
      %v1843 = vadd.f32 %v1840, 1.0
      %v1844 = vmul.f32 %v1820, %v1841
      %v1845 = vmul.f32 %v1821, %v1842
      %v1846 = vmul.f32 %v1822, %v1843
      %v1847 = vpack.c.bf16 %v1845, %v1844
      %v1848 = vpack.c.bf16 %v1846, %v1846
      %v1850 = vperm.slane %v711, 0
      %v1860 = vunpack.c.l.b16 %v703
      %v1861 = vunpack.c.l.b16 %v704
      %v1862 = vunpack.c.l.b16 %v705
      %v1863 = vunpack.c.l.b16 %v706
      %v1864 = vunpack.c.l.b16 %v707
      %v1865 = vunpack.c.l.b16 %v708
      %v1866 = vunpack.c.l.b16 %v709
      %v1867 = vunpack.c.l.b16 %v710
      %v1868 = vpack.c.b16 %v1861, %v1860
      %v1869 = vpack.c.b16 %v1863, %v1862
      %v1870 = vpack.c.b16 %v1865, %v1864
      %v1871 = vpack.c.b16 %v1867, %v1866
      %vm1876 = vcmask 523264
      %v1878 = vsel %vm1876, %v1847, 0
      %v1881 = vsel %vm1876, %v1848, 0
      %1883 = vmatpush.bf16.msra.mxu0 0
      %1884 = vmatpush.bf16.msra.mxu0 0
      %1885 = vmatpush.bf16.msra.mxu0 0
      %1886 = vmatpush.bf16.msra.mxu0 0
      %1887 = vmatpush.bf16.msra.mxu0 %v1871
      %1888 = vmatpush.bf16.msra.mxu0 %v1870
      %1889 = vmatpush.bf16.msra.mxu0 %v1869
      %1890 = vmatpush.bf16.msra.mxu0 %v1868
      %1891 = vmatmul.bf16.gmra.mxu0 %v1878
      %v1892 = vpop.f32.mrf.mxu0
      %v1893 = vadd.f32 %v1850, %v1892
      %v1894 = vpop.f32.mrf.mxu0
      %v1895 = vadd.f32 %v1850, %v1894
      %1896 = vmatmul.bf16.gmra.mxu0 %v1881
      %v1897 = vpop.f32.mrf.mxu0
      %v1898 = vadd.f32 %v1850, %v1897
      %v1899 = vpop.f32.mrf.mxu0
      %1900 = vdwg.mxu0
      %v1901 = vadd.f32 %v1776, %v1893
      %v1902 = vadd.f32 %v1777, %v1895
      %v1903 = vadd.f32 %v1778, %v1898
      %v1904 = vsel %vm597, %v1901, 0.0
      %1905 = vadd.xlane.f32.xlu0 %v1904
      %v1906 = vpop.xlane.xlu0 %1905
      %v1907 = vsel %vm597, %v1902, 0.0
      %1908 = vadd.xlane.f32.xlu0 %v1907
      %v1909 = vpop.xlane.xlu0 %1908
      %v1910 = vsel %vm597, %v1903, 0.0
      %1911 = vadd.xlane.f32.xlu0 %v1910
      %v1912 = vpop.xlane.xlu0 %1911
      %v1913 = vmul.f32 %v1906, %v613
      %v1914 = vmul.f32 %v1909, %v613
      %v1915 = vmul.f32 %v1912, %v613
      %v1916 = vsub.f32 %v1901, %v1913
      %v1917 = vsub.f32 %v1902, %v1914
      %v1918 = vsub.f32 %v1903, %v1915
      %v1919 = vmul.f32 %v1916, %v1916
      %v1920 = vmul.f32 %v1917, %v1917
      %v1921 = vmul.f32 %v1918, %v1918
      %v1922 = vsel %vm597, %v1919, 0.0
      %1923 = vadd.xlane.f32.xlu0 %v1922
      %v1924 = vpop.xlane.xlu0 %1923
      %v1925 = vsel %vm597, %v1920, 0.0
      %1926 = vadd.xlane.f32.xlu0 %v1925
      %v1927 = vpop.xlane.xlu0 %1926
      %v1928 = vsel %vm597, %v1921, 0.0
      %1929 = vadd.xlane.f32.xlu0 %v1928
      %v1930 = vpop.xlane.xlu0 %1929
      %v1931 = vmul.f32 %v1924, %v613
      %v1932 = vmul.f32 %v1927, %v613
      %v1933 = vmul.f32 %v1930, %v613
      %v1934 = vadd.f32 %v1931, 1e-12
      %v1935 = vadd.f32 %v1932, 1e-12
      %v1936 = vadd.f32 %v1933, 1e-12
      %v1937 = vrsqrt.pop %v1934
      %v1938 = vmul.f32 %v1937, %v1934
      %v1939 = vmul.f32 %v1938, %v1937
      %v1940 = vmul.f32 0.5, %v1939
      %v1941 = vsub.f32 1.5, %v1940
      %v1942 = vmul.f32 %v1937, %v1941
      %vm1943 = vweird.f32 %v1934
      %vm1944 = vweird.f32 %v1937
      %vm1945 = vmor %vm1943, %vm1944
      %v1946 = vsel %vm1945, %v1937, %v1942
      %v1947 = vrsqrt.pop %v1935
      %v1948 = vmul.f32 %v1947, %v1935
      %v1949 = vmul.f32 %v1948, %v1947
      %v1950 = vmul.f32 0.5, %v1949
      %v1951 = vsub.f32 1.5, %v1950
      %v1952 = vmul.f32 %v1947, %v1951
      %vm1953 = vweird.f32 %v1935
      %vm1954 = vweird.f32 %v1947
      %vm1955 = vmor %vm1953, %vm1954
      %v1956 = vsel %vm1955, %v1947, %v1952
      %v1957 = vrsqrt.pop %v1936
      %v1958 = vmul.f32 %v1957, %v1936
      %v1959 = vmul.f32 %v1958, %v1957
      %v1960 = vmul.f32 0.5, %v1959
      %v1961 = vsub.f32 1.5, %v1960
      %v1962 = vmul.f32 %v1957, %v1961
      %vm1963 = vweird.f32 %v1936
      %vm1964 = vweird.f32 %v1957
      %vm1965 = vmor %vm1963, %vm1964
      %v1966 = vsel %vm1965, %v1957, %v1962
      %v1967 = vmul.f32 %v1916, %v1946
      %v1968 = vmul.f32 %v1917, %v1956
      %v1969 = vmul.f32 %v1918, %v1966
      %v1971 = vperm.slane %v712, 0
      %v1973 = vmul.f32 %v1967, %v1971
      %v1974 = vmul.f32 %v1968, %v1971
      %v1975 = vmul.f32 %v1969, %v1971
      %v1977 = vperm.slane %v713, 0
      %v1979 = vadd.f32 %v1973, %v1977
      %v1980 = vadd.f32 %v1974, %v1977
      %v1981 = vadd.f32 %v1975, %v1977
      %s1982 = scalar_lea.vmem %s4, 16
      %v1983 = vld [vmem:[%s1982] sm:$0xf]
      %v1984 = vld [vmem:[%s1982 + $0x4] sm:$0xf]
      %v1985 = vld [vmem:[%s1982 + $0x8] sm:$0xf]
      %v1986 = vld [vmem:[%s1982 + $0xc] sm:$0xf]
      %s1987 = scalar_lea.vmem %s5, 1
      %v1988 = vld [vmem:[%s1987] sm:$0x1]
      %s1989 = scalar_lea.vmem %s6, 16
      %v1990 = vld [vmem:[%s1989] sm:$0xf]
      %v1991 = vld [vmem:[%s1989 + $0x4] sm:$0xf]
      %v1992 = vld [vmem:[%s1989 + $0x8] sm:$0xf]
      %v1993 = vld [vmem:[%s1989 + $0xc] sm:$0xf]
      %s1994 = scalar_lea.vmem %s7, 1
      %v1995 = vld [vmem:[%s1994] sm:$0x1]
      %s1996 = scalar_lea.vmem %s8, 1
      %v1997 = vld [vmem:[%s1996] sm:$0x1]
      %s1998 = scalar_lea.vmem %s9, 1
      %v1999 = vld [vmem:[%s1998] sm:$0x1]
      %s2000 = scalar_lea.vmem %s10, 16
      %v2001 = vld [vmem:[%s2000] sm:$0xf]
      %v2002 = vld [vmem:[%s2000 + $0x4] sm:$0xf]
      %v2003 = vld [vmem:[%s2000 + $0x8] sm:$0xf]
      %v2004 = vld [vmem:[%s2000 + $0xc] sm:$0xf]
      %s2005 = scalar_lea.vmem %s11, 1
      %v2006 = vld [vmem:[%s2005] sm:$0x1]
      %s2007 = scalar_lea.vmem %s12, 32
      %v2008 = vld [vmem:[%s2007] sm:$0xf]
      %v2009 = vld [vmem:[%s2007 + $0x4] sm:$0xf]
      %v2010 = vld [vmem:[%s2007 + $0x8] sm:$0xf]
      %v2011 = vld [vmem:[%s2007 + $0xc] sm:$0xf]
      %v2012 = vld [vmem:[%s2007 + $0x10] sm:$0xf]
      %v2013 = vld [vmem:[%s2007 + $0x14] sm:$0xf]
      %v2014 = vld [vmem:[%s2007 + $0x18] sm:$0xf]
      %v2015 = vld [vmem:[%s2007 + $0x1c] sm:$0xf]
      %s2016 = scalar_lea.vmem %s13, 1
      %v2017 = vld [vmem:[%s2016] sm:$0x1]
      %s2018 = scalar_lea.vmem %s14, 1
      %v2019 = vld [vmem:[%s2018] sm:$0x1]
      %s2020 = scalar_lea.vmem %s15, 1
      %v2021 = vld [vmem:[%s2020] sm:$0x1]
      %v2022 = vpack.c.bf16 %v1980, %v1979
      %v2023 = vpack.c.bf16 %v1981, %v1981
      %v2025 = vperm.slane %v1988, 0
      %v2031 = vunpack.c.l.b16 %v1983
      %v2032 = vunpack.c.l.b16 %v1984
      %v2033 = vunpack.c.l.b16 %v1985
      %v2034 = vunpack.c.l.b16 %v1986
      %v2035 = vpack.c.b16 %v2032, %v2031
      %v2036 = vpack.c.b16 %v2034, %v2033
      %v2040 = vsel %vm597, %v2022, 0
      %v2043 = vsel %vm597, %v2023, 0
      %2045 = vmatpush.bf16.msra.mxu0 0
      %2046 = vmatpush.bf16.msra.mxu0 0
      %2047 = vmatpush.bf16.msra.mxu0 0
      %2048 = vmatpush.bf16.msra.mxu0 0
      %2049 = vmatpush.bf16.msra.mxu0 0
      %2050 = vmatpush.bf16.msra.mxu0 0
      %2051 = vmatpush.bf16.msra.mxu0 %v2036
      %2052 = vmatpush.bf16.msra.mxu0 %v2035
      %2053 = vmatmul.bf16.gmra.mxu0 %v2040
      %v2054 = vpop.f32.mrf.mxu0
      %v2055 = vadd.f32 %v2025, %v2054
      %v2056 = vpop.f32.mrf.mxu0
      %v2057 = vadd.f32 %v2025, %v2056
      %2058 = vmatmul.bf16.gmra.mxu0 %v2043
      %v2059 = vpop.f32.mrf.mxu0
      %v2060 = vadd.f32 %v2025, %v2059
      %v2061 = vpop.f32.mrf.mxu0
      %2062 = vdwg.mxu0
      %2064 = vrot.lane.b32.xlu0 %v2055, 96
      %v2065 = vpop.permute.xlu0 %2064
      %v2066 = vsel %vm758, %v2055, 0
      %v2068 = vsel %vm758, %v2065, 0
      %2070 = vmatpush.xpose.msra.mxu0 0.0
      %2071 = vmatpush.xpose.msra.mxu0 0.0
      %2072 = vmatpush.xpose.msra.mxu0 0.0
      %2073 = vmatpush.xpose.msra.mxu0 0.0
      %2074 = vmatpush.xpose.msra.mxu0 0.0
      %2075 = vmatpush.xpose.msra.mxu0 0.0
      %2076 = vmatpush.xpose.msra.mxu0 0.0
      %2077 = vmatpush.xpose.msra.mxu0 0.0
      %2078 = vmatpush.xpose.msra.mxu0 0.0
      %2079 = vmatpush.xpose.msra.mxu0 0.0
      %2080 = vmatpush.xpose.msra.mxu0 0.0
      %2081 = vmatpush.xpose.msra.mxu0 0.0
      %2082 = vmatpush.xpose.msra.mxu0 0.0
      %2083 = vmatpush.xpose.msra.mxu0 0.0
      %2084 = vmatpush.xpose.msra.mxu0 0.0
      %2085 = vmatpush.xpose.msra.mxu0 %v2068
      %2086 = vmatmul.f32.gmra.mxu0 %v2066
      %v2087 = vpop.f32.mrf.mxu0
      %v2088 = vadd.f32 0.0, %v2087
      %2089 = vdwg.mxu0
      %2091 = vrot.lane.b32.xlu0 %v2057, 96
      %v2092 = vpop.permute.xlu0 %2091
      %v2093 = vsel %vm758, %v2057, 0
      %v2095 = vsel %vm758, %v2092, 0
      %2097 = vmatpush.xpose.msra.mxu0 0.0
      %2098 = vmatpush.xpose.msra.mxu0 0.0
      %2099 = vmatpush.xpose.msra.mxu0 0.0
      %2100 = vmatpush.xpose.msra.mxu0 0.0
      %2101 = vmatpush.xpose.msra.mxu0 0.0
      %2102 = vmatpush.xpose.msra.mxu0 0.0
      %2103 = vmatpush.xpose.msra.mxu0 0.0
      %2104 = vmatpush.xpose.msra.mxu0 0.0
      %2105 = vmatpush.xpose.msra.mxu0 0.0
      %2106 = vmatpush.xpose.msra.mxu0 0.0
      %2107 = vmatpush.xpose.msra.mxu0 0.0
      %2108 = vmatpush.xpose.msra.mxu0 0.0
      %2109 = vmatpush.xpose.msra.mxu0 0.0
      %2110 = vmatpush.xpose.msra.mxu0 0.0
      %2111 = vmatpush.xpose.msra.mxu0 0.0
      %2112 = vmatpush.xpose.msra.mxu0 %v2095
      %2113 = vmatmul.f32.gmra.mxu0 %v2093
      %v2114 = vpop.f32.mrf.mxu0
      %v2115 = vadd.f32 0.0, %v2114
      %2116 = vdwg.mxu0
      %2118 = vrot.lane.b32.xlu0 %v2060, 96
      %v2119 = vpop.permute.xlu0 %2118
      %v2120 = vsel %vm758, %v2060, 0
      %v2122 = vsel %vm758, %v2119, 0
      %2124 = vmatpush.xpose.msra.mxu0 0.0
      %2125 = vmatpush.xpose.msra.mxu0 0.0
      %2126 = vmatpush.xpose.msra.mxu0 0.0
      %2127 = vmatpush.xpose.msra.mxu0 0.0
      %2128 = vmatpush.xpose.msra.mxu0 0.0
      %2129 = vmatpush.xpose.msra.mxu0 0.0
      %2130 = vmatpush.xpose.msra.mxu0 0.0
      %2131 = vmatpush.xpose.msra.mxu0 0.0
      %2132 = vmatpush.xpose.msra.mxu0 0.0
      %2133 = vmatpush.xpose.msra.mxu0 0.0
      %2134 = vmatpush.xpose.msra.mxu0 0.0
      %2135 = vmatpush.xpose.msra.mxu0 0.0
      %2136 = vmatpush.xpose.msra.mxu0 0.0
      %2137 = vmatpush.xpose.msra.mxu0 0.0
      %2138 = vmatpush.xpose.msra.mxu0 0.0
      %2139 = vmatpush.xpose.msra.mxu0 %v2122
      %2140 = vmatmul.f32.gmra.mxu0 %v2120
      %v2141 = vpop.f32.mrf.mxu0
      %v2142 = vadd.f32 0.0, %v2141
      %2143 = vdwg.mxu0
      %v2144 = vmul.f32 %v2088, 0.35355338
      %v2145 = vmul.f32 %v2115, 0.35355338
      %v2146 = vmul.f32 %v2142, 0.35355338
      %v2147 = vadd.f32 %v2144, %v843
      %v2148 = vadd.f32 %v2145, %v844
      %v2149 = vadd.f32 %v2146, %v845
      %v2150 = vsel %vm758, %v2147, -inf
      %2151 = vmax.xlane.f32.xlu0 %v2150
      %v2152 = vpop.xlane.xlu0 %2151
      %v2153 = vsel %vm758, %v2148, -inf
      %2154 = vmax.xlane.f32.xlu0 %v2153
      %v2155 = vpop.xlane.xlu0 %2154
      %v2156 = vsel %vm758, %v2149, -inf
      %2157 = vmax.xlane.f32.xlu0 %v2156
      %v2158 = vpop.xlane.xlu0 %2157
      %v2159 = vsub.f32 %v2147, %v2152
      %v2160 = vsub.f32 %v2148, %v2155
      %v2161 = vsub.f32 %v2149, %v2158
      %v2162 = vmul.f32 %v2159, 1.442695
      %v2163 = vpow.pop %v2162
      %v2164 = vmul.f32 %v2160, 1.442695
      %v2165 = vpow.pop %v2164
      %v2166 = vmul.f32 %v2161, 1.442695
      %v2167 = vpow.pop %v2166
      %v2168 = vsel %vm758, %v2163, 0.0
      %2169 = vadd.xlane.f32.xlu0 %v2168
      %v2170 = vpop.xlane.xlu0 %2169
      %v2171 = vsel %vm758, %v2165, 0.0
      %2172 = vadd.xlane.f32.xlu0 %v2171
      %v2173 = vpop.xlane.xlu0 %2172
      %v2174 = vsel %vm758, %v2167, 0.0
      %2175 = vadd.xlane.f32.xlu0 %v2174
      %v2176 = vpop.xlane.xlu0 %2175
      %v2177 = vrcp.pop %v2170
      %v2178 = vrcp.pop %v2173
      %v2179 = vrcp.pop %v2176
      %v2180 = vmul.f32 %v2163, %v2177
      %v2181 = vmul.f32 %v2165, %v2178
      %v2182 = vmul.f32 %v2167, %v2179
      %2183 = vrot.lane.b32.xlu0 %v2055, 64
      %v2184 = vpop.permute.xlu0 %2183
      %v2187 = vsel %vm758, %v2180, 0
      %2189 = vmatpush.msra.mxu0 0.0
      %2190 = vmatpush.msra.mxu0 0.0
      %2191 = vmatpush.msra.mxu0 0.0
      %2192 = vmatpush.msra.mxu0 0.0
      %2193 = vmatpush.msra.mxu0 0.0
      %2194 = vmatpush.msra.mxu0 0.0
      %2195 = vmatpush.msra.mxu0 0.0
      %2196 = vmatpush.msra.mxu0 0.0
      %2197 = vmatpush.msra.mxu0 0.0
      %2198 = vmatpush.msra.mxu0 0.0
      %2199 = vmatpush.msra.mxu0 0.0
      %2200 = vmatpush.msra.mxu0 0.0
      %2201 = vmatpush.msra.mxu0 0.0
      %2202 = vmatpush.msra.mxu0 0.0
      %2203 = vmatpush.msra.mxu0 0.0
      %2204 = vmatpush.msra.mxu0 %v2184
      %2205 = vmatmul.f32.gmra.mxu0 %v2187
      %v2206 = vpop.f32.mrf.mxu0
      %v2207 = vadd.f32 0.0, %v2206
      %2208 = vdwg.mxu0
      %2209 = vrot.lane.b32.xlu0 %v2057, 64
      %v2210 = vpop.permute.xlu0 %2209
      %v2213 = vsel %vm758, %v2181, 0
      %2215 = vmatpush.msra.mxu0 0.0
      %2216 = vmatpush.msra.mxu0 0.0
      %2217 = vmatpush.msra.mxu0 0.0
      %2218 = vmatpush.msra.mxu0 0.0
      %2219 = vmatpush.msra.mxu0 0.0
      %2220 = vmatpush.msra.mxu0 0.0
      %2221 = vmatpush.msra.mxu0 0.0
      %2222 = vmatpush.msra.mxu0 0.0
      %2223 = vmatpush.msra.mxu0 0.0
      %2224 = vmatpush.msra.mxu0 0.0
      %2225 = vmatpush.msra.mxu0 0.0
      %2226 = vmatpush.msra.mxu0 0.0
      %2227 = vmatpush.msra.mxu0 0.0
      %2228 = vmatpush.msra.mxu0 0.0
      %2229 = vmatpush.msra.mxu0 0.0
      %2230 = vmatpush.msra.mxu0 %v2210
      %2231 = vmatmul.f32.gmra.mxu0 %v2213
      %v2232 = vpop.f32.mrf.mxu0
      %v2233 = vadd.f32 0.0, %v2232
      %2234 = vdwg.mxu0
      %2235 = vrot.lane.b32.xlu0 %v2060, 64
      %v2236 = vpop.permute.xlu0 %2235
      %v2239 = vsel %vm758, %v2182, 0
      %2241 = vmatpush.msra.mxu0 0.0
      %2242 = vmatpush.msra.mxu0 0.0
      %2243 = vmatpush.msra.mxu0 0.0
      %2244 = vmatpush.msra.mxu0 0.0
      %2245 = vmatpush.msra.mxu0 0.0
      %2246 = vmatpush.msra.mxu0 0.0
      %2247 = vmatpush.msra.mxu0 0.0
      %2248 = vmatpush.msra.mxu0 0.0
      %2249 = vmatpush.msra.mxu0 0.0
      %2250 = vmatpush.msra.mxu0 0.0
      %2251 = vmatpush.msra.mxu0 0.0
      %2252 = vmatpush.msra.mxu0 0.0
      %2253 = vmatpush.msra.mxu0 0.0
      %2254 = vmatpush.msra.mxu0 0.0
      %2255 = vmatpush.msra.mxu0 0.0
      %2256 = vmatpush.msra.mxu0 %v2236
      %2257 = vmatmul.f32.gmra.mxu0 %v2239
      %v2258 = vpop.f32.mrf.mxu0
      %v2259 = vadd.f32 0.0, %v2258
      %2260 = vdwg.mxu0
      %v2261 = vpack.c.bf16 %v2233, %v2207
      %v2262 = vpack.c.bf16 %v2259, %v2259
      %v2264 = vsel %vm758, %v2261, 0
      %v2267 = vsel %vm758, %v2262, 0
      %v2270 = vsel %vm971, %v1990, 0
      %2272 = vmatpush.bf16.msra.mxu0 0
      %2273 = vmatpush.bf16.msra.mxu0 0
      %2274 = vmatpush.bf16.msra.mxu0 0
      %2275 = vmatpush.bf16.msra.mxu0 0
      %2276 = vmatpush.bf16.msra.mxu0 0
      %2277 = vmatpush.bf16.msra.mxu0 0
      %2278 = vmatpush.bf16.msra.mxu0 0
      %2279 = vmatpush.bf16.msra.mxu0 %v2270
      %2280 = vmatmul.bf16.gmra.mxu0 %v2264
      %v2281 = vpop.f32.mrf.mxu0
      %v2282 = vadd.f32 0.0, %v2281
      %v2283 = vpop.f32.mrf.mxu0
      %v2284 = vadd.f32 0.0, %v2283
      %2285 = vmatmul.bf16.gmra.mxu0 %v2267
      %v2286 = vpop.f32.mrf.mxu0
      %v2287 = vadd.f32 0.0, %v2286
      %v2288 = vpop.f32.mrf.mxu0
      %2289 = vdwg.mxu0
      %v2291 = vperm.slane %v1995, 0
      %v2293 = vadd.f32 %v2291, %v2282
      %v2294 = vadd.f32 %v2291, %v2284
      %v2295 = vadd.f32 %v2291, %v2287
      %2296 = vrot.lane.b32.xlu0 %v2055, 120
      %v2297 = vpop.permute.xlu0 %2296
      %2298 = vrot.lane.b32.xlu0 %v2055, 88
      %v2299 = vpop.permute.xlu0 %2298
      %v2300 = vsel %vm758, %v2297, 0
      %v2302 = vsel %vm758, %v2299, 0
      %2304 = vmatpush.xpose.msra.mxu0 0.0
      %2305 = vmatpush.xpose.msra.mxu0 0.0
      %2306 = vmatpush.xpose.msra.mxu0 0.0
      %2307 = vmatpush.xpose.msra.mxu0 0.0
      %2308 = vmatpush.xpose.msra.mxu0 0.0
      %2309 = vmatpush.xpose.msra.mxu0 0.0
      %2310 = vmatpush.xpose.msra.mxu0 0.0
      %2311 = vmatpush.xpose.msra.mxu0 0.0
      %2312 = vmatpush.xpose.msra.mxu0 0.0
      %2313 = vmatpush.xpose.msra.mxu0 0.0
      %2314 = vmatpush.xpose.msra.mxu0 0.0
      %2315 = vmatpush.xpose.msra.mxu0 0.0
      %2316 = vmatpush.xpose.msra.mxu0 0.0
      %2317 = vmatpush.xpose.msra.mxu0 0.0
      %2318 = vmatpush.xpose.msra.mxu0 0.0
      %2319 = vmatpush.xpose.msra.mxu0 %v2302
      %2320 = vmatmul.f32.gmra.mxu0 %v2300
      %v2321 = vpop.f32.mrf.mxu0
      %v2322 = vadd.f32 0.0, %v2321
      %2323 = vdwg.mxu0
      %2324 = vrot.lane.b32.xlu0 %v2057, 120
      %v2325 = vpop.permute.xlu0 %2324
      %2326 = vrot.lane.b32.xlu0 %v2057, 88
      %v2327 = vpop.permute.xlu0 %2326
      %v2328 = vsel %vm758, %v2325, 0
      %v2330 = vsel %vm758, %v2327, 0
      %2332 = vmatpush.xpose.msra.mxu0 0.0
      %2333 = vmatpush.xpose.msra.mxu0 0.0
      %2334 = vmatpush.xpose.msra.mxu0 0.0
      %2335 = vmatpush.xpose.msra.mxu0 0.0
      %2336 = vmatpush.xpose.msra.mxu0 0.0
      %2337 = vmatpush.xpose.msra.mxu0 0.0
      %2338 = vmatpush.xpose.msra.mxu0 0.0
      %2339 = vmatpush.xpose.msra.mxu0 0.0
      %2340 = vmatpush.xpose.msra.mxu0 0.0
      %2341 = vmatpush.xpose.msra.mxu0 0.0
      %2342 = vmatpush.xpose.msra.mxu0 0.0
      %2343 = vmatpush.xpose.msra.mxu0 0.0
      %2344 = vmatpush.xpose.msra.mxu0 0.0
      %2345 = vmatpush.xpose.msra.mxu0 0.0
      %2346 = vmatpush.xpose.msra.mxu0 0.0
      %2347 = vmatpush.xpose.msra.mxu0 %v2330
      %2348 = vmatmul.f32.gmra.mxu0 %v2328
      %v2349 = vpop.f32.mrf.mxu0
      %v2350 = vadd.f32 0.0, %v2349
      %2351 = vdwg.mxu0
      %2352 = vrot.lane.b32.xlu0 %v2060, 120
      %v2353 = vpop.permute.xlu0 %2352
      %2354 = vrot.lane.b32.xlu0 %v2060, 88
      %v2355 = vpop.permute.xlu0 %2354
      %v2356 = vsel %vm758, %v2353, 0
      %v2358 = vsel %vm758, %v2355, 0
      %2360 = vmatpush.xpose.msra.mxu0 0.0
      %2361 = vmatpush.xpose.msra.mxu0 0.0
      %2362 = vmatpush.xpose.msra.mxu0 0.0
      %2363 = vmatpush.xpose.msra.mxu0 0.0
      %2364 = vmatpush.xpose.msra.mxu0 0.0
      %2365 = vmatpush.xpose.msra.mxu0 0.0
      %2366 = vmatpush.xpose.msra.mxu0 0.0
      %2367 = vmatpush.xpose.msra.mxu0 0.0
      %2368 = vmatpush.xpose.msra.mxu0 0.0
      %2369 = vmatpush.xpose.msra.mxu0 0.0
      %2370 = vmatpush.xpose.msra.mxu0 0.0
      %2371 = vmatpush.xpose.msra.mxu0 0.0
      %2372 = vmatpush.xpose.msra.mxu0 0.0
      %2373 = vmatpush.xpose.msra.mxu0 0.0
      %2374 = vmatpush.xpose.msra.mxu0 0.0
      %2375 = vmatpush.xpose.msra.mxu0 %v2358
      %2376 = vmatmul.f32.gmra.mxu0 %v2356
      %v2377 = vpop.f32.mrf.mxu0
      %v2378 = vadd.f32 0.0, %v2377
      %2379 = vdwg.mxu0
      %v2380 = vmul.f32 %v2322, 0.35355338
      %v2381 = vmul.f32 %v2350, 0.35355338
      %v2382 = vmul.f32 %v2378, 0.35355338
      %v2383 = vadd.f32 %v2380, %v843
      %v2384 = vadd.f32 %v2381, %v844
      %v2385 = vadd.f32 %v2382, %v845
      %v2386 = vsel %vm758, %v2383, -inf
      %2387 = vmax.xlane.f32.xlu0 %v2386
      %v2388 = vpop.xlane.xlu0 %2387
      %v2389 = vsel %vm758, %v2384, -inf
      %2390 = vmax.xlane.f32.xlu0 %v2389
      %v2391 = vpop.xlane.xlu0 %2390
      %v2392 = vsel %vm758, %v2385, -inf
      %2393 = vmax.xlane.f32.xlu0 %v2392
      %v2394 = vpop.xlane.xlu0 %2393
      %v2395 = vsub.f32 %v2383, %v2388
      %v2396 = vsub.f32 %v2384, %v2391
      %v2397 = vsub.f32 %v2385, %v2394
      %v2398 = vmul.f32 %v2395, 1.442695
      %v2399 = vpow.pop %v2398
      %v2400 = vmul.f32 %v2396, 1.442695
      %v2401 = vpow.pop %v2400
      %v2402 = vmul.f32 %v2397, 1.442695
      %v2403 = vpow.pop %v2402
      %v2404 = vsel %vm758, %v2399, 0.0
      %2405 = vadd.xlane.f32.xlu0 %v2404
      %v2406 = vpop.xlane.xlu0 %2405
      %v2407 = vsel %vm758, %v2401, 0.0
      %2408 = vadd.xlane.f32.xlu0 %v2407
      %v2409 = vpop.xlane.xlu0 %2408
      %v2410 = vsel %vm758, %v2403, 0.0
      %2411 = vadd.xlane.f32.xlu0 %v2410
      %v2412 = vpop.xlane.xlu0 %2411
      %v2413 = vrcp.pop %v2406
      %v2414 = vrcp.pop %v2409
      %v2415 = vrcp.pop %v2412
      %v2416 = vmul.f32 %v2399, %v2413
      %v2417 = vmul.f32 %v2401, %v2414
      %v2418 = vmul.f32 %v2403, %v2415
      %2419 = vrot.lane.b32.xlu0 %v2055, 56
      %v2420 = vpop.permute.xlu0 %2419
      %v2423 = vsel %vm758, %v2416, 0
      %2425 = vmatpush.msra.mxu0 0.0
      %2426 = vmatpush.msra.mxu0 0.0
      %2427 = vmatpush.msra.mxu0 0.0
      %2428 = vmatpush.msra.mxu0 0.0
      %2429 = vmatpush.msra.mxu0 0.0
      %2430 = vmatpush.msra.mxu0 0.0
      %2431 = vmatpush.msra.mxu0 0.0
      %2432 = vmatpush.msra.mxu0 0.0
      %2433 = vmatpush.msra.mxu0 0.0
      %2434 = vmatpush.msra.mxu0 0.0
      %2435 = vmatpush.msra.mxu0 0.0
      %2436 = vmatpush.msra.mxu0 0.0
      %2437 = vmatpush.msra.mxu0 0.0
      %2438 = vmatpush.msra.mxu0 0.0
      %2439 = vmatpush.msra.mxu0 0.0
      %2440 = vmatpush.msra.mxu0 %v2420
      %2441 = vmatmul.f32.gmra.mxu0 %v2423
      %v2442 = vpop.f32.mrf.mxu0
      %v2443 = vadd.f32 0.0, %v2442
      %2444 = vdwg.mxu0
      %2445 = vrot.lane.b32.xlu0 %v2057, 56
      %v2446 = vpop.permute.xlu0 %2445
      %v2449 = vsel %vm758, %v2417, 0
      %2451 = vmatpush.msra.mxu0 0.0
      %2452 = vmatpush.msra.mxu0 0.0
      %2453 = vmatpush.msra.mxu0 0.0
      %2454 = vmatpush.msra.mxu0 0.0
      %2455 = vmatpush.msra.mxu0 0.0
      %2456 = vmatpush.msra.mxu0 0.0
      %2457 = vmatpush.msra.mxu0 0.0
      %2458 = vmatpush.msra.mxu0 0.0
      %2459 = vmatpush.msra.mxu0 0.0
      %2460 = vmatpush.msra.mxu0 0.0
      %2461 = vmatpush.msra.mxu0 0.0
      %2462 = vmatpush.msra.mxu0 0.0
      %2463 = vmatpush.msra.mxu0 0.0
      %2464 = vmatpush.msra.mxu0 0.0
      %2465 = vmatpush.msra.mxu0 0.0
      %2466 = vmatpush.msra.mxu0 %v2446
      %2467 = vmatmul.f32.gmra.mxu0 %v2449
      %v2468 = vpop.f32.mrf.mxu0
      %v2469 = vadd.f32 0.0, %v2468
      %2470 = vdwg.mxu0
      %2471 = vrot.lane.b32.xlu0 %v2060, 56
      %v2472 = vpop.permute.xlu0 %2471
      %v2475 = vsel %vm758, %v2418, 0
      %2477 = vmatpush.msra.mxu0 0.0
      %2478 = vmatpush.msra.mxu0 0.0
      %2479 = vmatpush.msra.mxu0 0.0
      %2480 = vmatpush.msra.mxu0 0.0
      %2481 = vmatpush.msra.mxu0 0.0
      %2482 = vmatpush.msra.mxu0 0.0
      %2483 = vmatpush.msra.mxu0 0.0
      %2484 = vmatpush.msra.mxu0 0.0
      %2485 = vmatpush.msra.mxu0 0.0
      %2486 = vmatpush.msra.mxu0 0.0
      %2487 = vmatpush.msra.mxu0 0.0
      %2488 = vmatpush.msra.mxu0 0.0
      %2489 = vmatpush.msra.mxu0 0.0
      %2490 = vmatpush.msra.mxu0 0.0
      %2491 = vmatpush.msra.mxu0 0.0
      %2492 = vmatpush.msra.mxu0 %v2472
      %2493 = vmatmul.f32.gmra.mxu0 %v2475
      %v2494 = vpop.f32.mrf.mxu0
      %v2495 = vadd.f32 0.0, %v2494
      %2496 = vdwg.mxu0
      %v2497 = vpack.c.bf16 %v2469, %v2443
      %v2498 = vpack.c.bf16 %v2495, %v2495
      %v2500 = vsel %vm758, %v2497, 0
      %v2503 = vsel %vm758, %v2498, 0
      %v2506 = vsel %vm971, %v1991, 0
      %2508 = vmatpush.bf16.msra.mxu0 0
      %2509 = vmatpush.bf16.msra.mxu0 0
      %2510 = vmatpush.bf16.msra.mxu0 0
      %2511 = vmatpush.bf16.msra.mxu0 0
      %2512 = vmatpush.bf16.msra.mxu0 0
      %2513 = vmatpush.bf16.msra.mxu0 0
      %2514 = vmatpush.bf16.msra.mxu0 0
      %2515 = vmatpush.bf16.msra.mxu0 %v2506
      %2516 = vmatmul.bf16.gmra.mxu0 %v2500
      %v2517 = vpop.f32.mrf.mxu0
      %v2518 = vadd.f32 0.0, %v2517
      %v2519 = vpop.f32.mrf.mxu0
      %v2520 = vadd.f32 0.0, %v2519
      %2521 = vmatmul.bf16.gmra.mxu0 %v2503
      %v2522 = vpop.f32.mrf.mxu0
      %v2523 = vadd.f32 0.0, %v2522
      %v2524 = vpop.f32.mrf.mxu0
      %2525 = vdwg.mxu0
      %v2526 = vadd.f32 %v2293, %v2518
      %v2527 = vadd.f32 %v2294, %v2520
      %v2528 = vadd.f32 %v2295, %v2523
      %2529 = vrot.lane.b32.xlu0 %v2055, 112
      %v2530 = vpop.permute.xlu0 %2529
      %2531 = vrot.lane.b32.xlu0 %v2055, 80
      %v2532 = vpop.permute.xlu0 %2531
      %v2533 = vsel %vm758, %v2530, 0
      %v2535 = vsel %vm758, %v2532, 0
      %2537 = vmatpush.xpose.msra.mxu0 0.0
      %2538 = vmatpush.xpose.msra.mxu0 0.0
      %2539 = vmatpush.xpose.msra.mxu0 0.0
      %2540 = vmatpush.xpose.msra.mxu0 0.0
      %2541 = vmatpush.xpose.msra.mxu0 0.0
      %2542 = vmatpush.xpose.msra.mxu0 0.0
      %2543 = vmatpush.xpose.msra.mxu0 0.0
      %2544 = vmatpush.xpose.msra.mxu0 0.0
      %2545 = vmatpush.xpose.msra.mxu0 0.0
      %2546 = vmatpush.xpose.msra.mxu0 0.0
      %2547 = vmatpush.xpose.msra.mxu0 0.0
      %2548 = vmatpush.xpose.msra.mxu0 0.0
      %2549 = vmatpush.xpose.msra.mxu0 0.0
      %2550 = vmatpush.xpose.msra.mxu0 0.0
      %2551 = vmatpush.xpose.msra.mxu0 0.0
      %2552 = vmatpush.xpose.msra.mxu0 %v2535
      %2553 = vmatmul.f32.gmra.mxu0 %v2533
      %v2554 = vpop.f32.mrf.mxu0
      %v2555 = vadd.f32 0.0, %v2554
      %2556 = vdwg.mxu0
      %2557 = vrot.lane.b32.xlu0 %v2057, 112
      %v2558 = vpop.permute.xlu0 %2557
      %2559 = vrot.lane.b32.xlu0 %v2057, 80
      %v2560 = vpop.permute.xlu0 %2559
      %v2561 = vsel %vm758, %v2558, 0
      %v2563 = vsel %vm758, %v2560, 0
      %2565 = vmatpush.xpose.msra.mxu0 0.0
      %2566 = vmatpush.xpose.msra.mxu0 0.0
      %2567 = vmatpush.xpose.msra.mxu0 0.0
      %2568 = vmatpush.xpose.msra.mxu0 0.0
      %2569 = vmatpush.xpose.msra.mxu0 0.0
      %2570 = vmatpush.xpose.msra.mxu0 0.0
      %2571 = vmatpush.xpose.msra.mxu0 0.0
      %2572 = vmatpush.xpose.msra.mxu0 0.0
      %2573 = vmatpush.xpose.msra.mxu0 0.0
      %2574 = vmatpush.xpose.msra.mxu0 0.0
      %2575 = vmatpush.xpose.msra.mxu0 0.0
      %2576 = vmatpush.xpose.msra.mxu0 0.0
      %2577 = vmatpush.xpose.msra.mxu0 0.0
      %2578 = vmatpush.xpose.msra.mxu0 0.0
      %2579 = vmatpush.xpose.msra.mxu0 0.0
      %2580 = vmatpush.xpose.msra.mxu0 %v2563
      %2581 = vmatmul.f32.gmra.mxu0 %v2561
      %v2582 = vpop.f32.mrf.mxu0
      %v2583 = vadd.f32 0.0, %v2582
      %2584 = vdwg.mxu0
      %2585 = vrot.lane.b32.xlu0 %v2060, 112
      %v2586 = vpop.permute.xlu0 %2585
      %2587 = vrot.lane.b32.xlu0 %v2060, 80
      %v2588 = vpop.permute.xlu0 %2587
      %v2589 = vsel %vm758, %v2586, 0
      %v2591 = vsel %vm758, %v2588, 0
      %2593 = vmatpush.xpose.msra.mxu0 0.0
      %2594 = vmatpush.xpose.msra.mxu0 0.0
      %2595 = vmatpush.xpose.msra.mxu0 0.0
      %2596 = vmatpush.xpose.msra.mxu0 0.0
      %2597 = vmatpush.xpose.msra.mxu0 0.0
      %2598 = vmatpush.xpose.msra.mxu0 0.0
      %2599 = vmatpush.xpose.msra.mxu0 0.0
      %2600 = vmatpush.xpose.msra.mxu0 0.0
      %2601 = vmatpush.xpose.msra.mxu0 0.0
      %2602 = vmatpush.xpose.msra.mxu0 0.0
      %2603 = vmatpush.xpose.msra.mxu0 0.0
      %2604 = vmatpush.xpose.msra.mxu0 0.0
      %2605 = vmatpush.xpose.msra.mxu0 0.0
      %2606 = vmatpush.xpose.msra.mxu0 0.0
      %2607 = vmatpush.xpose.msra.mxu0 0.0
      %2608 = vmatpush.xpose.msra.mxu0 %v2591
      %2609 = vmatmul.f32.gmra.mxu0 %v2589
      %v2610 = vpop.f32.mrf.mxu0
      %v2611 = vadd.f32 0.0, %v2610
      %2612 = vdwg.mxu0
      %v2613 = vmul.f32 %v2555, 0.35355338
      %v2614 = vmul.f32 %v2583, 0.35355338
      %v2615 = vmul.f32 %v2611, 0.35355338
      %v2616 = vadd.f32 %v2613, %v843
      %v2617 = vadd.f32 %v2614, %v844
      %v2618 = vadd.f32 %v2615, %v845
      %v2619 = vsel %vm758, %v2616, -inf
      %2620 = vmax.xlane.f32.xlu0 %v2619
      %v2621 = vpop.xlane.xlu0 %2620
      %v2622 = vsel %vm758, %v2617, -inf
      %2623 = vmax.xlane.f32.xlu0 %v2622
      %v2624 = vpop.xlane.xlu0 %2623
      %v2625 = vsel %vm758, %v2618, -inf
      %2626 = vmax.xlane.f32.xlu0 %v2625
      %v2627 = vpop.xlane.xlu0 %2626
      %v2628 = vsub.f32 %v2616, %v2621
      %v2629 = vsub.f32 %v2617, %v2624
      %v2630 = vsub.f32 %v2618, %v2627
      %v2631 = vmul.f32 %v2628, 1.442695
      %v2632 = vpow.pop %v2631
      %v2633 = vmul.f32 %v2629, 1.442695
      %v2634 = vpow.pop %v2633
      %v2635 = vmul.f32 %v2630, 1.442695
      %v2636 = vpow.pop %v2635
      %v2637 = vsel %vm758, %v2632, 0.0
      %2638 = vadd.xlane.f32.xlu0 %v2637
      %v2639 = vpop.xlane.xlu0 %2638
      %v2640 = vsel %vm758, %v2634, 0.0
      %2641 = vadd.xlane.f32.xlu0 %v2640
      %v2642 = vpop.xlane.xlu0 %2641
      %v2643 = vsel %vm758, %v2636, 0.0
      %2644 = vadd.xlane.f32.xlu0 %v2643
      %v2645 = vpop.xlane.xlu0 %2644
      %v2646 = vrcp.pop %v2639
      %v2647 = vrcp.pop %v2642
      %v2648 = vrcp.pop %v2645
      %v2649 = vmul.f32 %v2632, %v2646
      %v2650 = vmul.f32 %v2634, %v2647
      %v2651 = vmul.f32 %v2636, %v2648
      %2652 = vrot.lane.b32.xlu0 %v2055, 48
      %v2653 = vpop.permute.xlu0 %2652
      %v2656 = vsel %vm758, %v2649, 0
      %2658 = vmatpush.msra.mxu0 0.0
      %2659 = vmatpush.msra.mxu0 0.0
      %2660 = vmatpush.msra.mxu0 0.0
      %2661 = vmatpush.msra.mxu0 0.0
      %2662 = vmatpush.msra.mxu0 0.0
      %2663 = vmatpush.msra.mxu0 0.0
      %2664 = vmatpush.msra.mxu0 0.0
      %2665 = vmatpush.msra.mxu0 0.0
      %2666 = vmatpush.msra.mxu0 0.0
      %2667 = vmatpush.msra.mxu0 0.0
      %2668 = vmatpush.msra.mxu0 0.0
      %2669 = vmatpush.msra.mxu0 0.0
      %2670 = vmatpush.msra.mxu0 0.0
      %2671 = vmatpush.msra.mxu0 0.0
      %2672 = vmatpush.msra.mxu0 0.0
      %2673 = vmatpush.msra.mxu0 %v2653
      %2674 = vmatmul.f32.gmra.mxu0 %v2656
      %v2675 = vpop.f32.mrf.mxu0
      %v2676 = vadd.f32 0.0, %v2675
      %2677 = vdwg.mxu0
      %2678 = vrot.lane.b32.xlu0 %v2057, 48
      %v2679 = vpop.permute.xlu0 %2678
      %v2682 = vsel %vm758, %v2650, 0
      %2684 = vmatpush.msra.mxu0 0.0
      %2685 = vmatpush.msra.mxu0 0.0
      %2686 = vmatpush.msra.mxu0 0.0
      %2687 = vmatpush.msra.mxu0 0.0
      %2688 = vmatpush.msra.mxu0 0.0
      %2689 = vmatpush.msra.mxu0 0.0
      %2690 = vmatpush.msra.mxu0 0.0
      %2691 = vmatpush.msra.mxu0 0.0
      %2692 = vmatpush.msra.mxu0 0.0
      %2693 = vmatpush.msra.mxu0 0.0
      %2694 = vmatpush.msra.mxu0 0.0
      %2695 = vmatpush.msra.mxu0 0.0
      %2696 = vmatpush.msra.mxu0 0.0
      %2697 = vmatpush.msra.mxu0 0.0
      %2698 = vmatpush.msra.mxu0 0.0
      %2699 = vmatpush.msra.mxu0 %v2679
      %2700 = vmatmul.f32.gmra.mxu0 %v2682
      %v2701 = vpop.f32.mrf.mxu0
      %v2702 = vadd.f32 0.0, %v2701
      %2703 = vdwg.mxu0
      %2704 = vrot.lane.b32.xlu0 %v2060, 48
      %v2705 = vpop.permute.xlu0 %2704
      %v2708 = vsel %vm758, %v2651, 0
      %2710 = vmatpush.msra.mxu0 0.0
      %2711 = vmatpush.msra.mxu0 0.0
      %2712 = vmatpush.msra.mxu0 0.0
      %2713 = vmatpush.msra.mxu0 0.0
      %2714 = vmatpush.msra.mxu0 0.0
      %2715 = vmatpush.msra.mxu0 0.0
      %2716 = vmatpush.msra.mxu0 0.0
      %2717 = vmatpush.msra.mxu0 0.0
      %2718 = vmatpush.msra.mxu0 0.0
      %2719 = vmatpush.msra.mxu0 0.0
      %2720 = vmatpush.msra.mxu0 0.0
      %2721 = vmatpush.msra.mxu0 0.0
      %2722 = vmatpush.msra.mxu0 0.0
      %2723 = vmatpush.msra.mxu0 0.0
      %2724 = vmatpush.msra.mxu0 0.0
      %2725 = vmatpush.msra.mxu0 %v2705
      %2726 = vmatmul.f32.gmra.mxu0 %v2708
      %v2727 = vpop.f32.mrf.mxu0
      %v2728 = vadd.f32 0.0, %v2727
      %2729 = vdwg.mxu0
      %v2730 = vpack.c.bf16 %v2702, %v2676
      %v2731 = vpack.c.bf16 %v2728, %v2728
      %v2733 = vsel %vm758, %v2730, 0
      %v2736 = vsel %vm758, %v2731, 0
      %v2739 = vsel %vm971, %v1992, 0
      %2741 = vmatpush.bf16.msra.mxu0 0
      %2742 = vmatpush.bf16.msra.mxu0 0
      %2743 = vmatpush.bf16.msra.mxu0 0
      %2744 = vmatpush.bf16.msra.mxu0 0
      %2745 = vmatpush.bf16.msra.mxu0 0
      %2746 = vmatpush.bf16.msra.mxu0 0
      %2747 = vmatpush.bf16.msra.mxu0 0
      %2748 = vmatpush.bf16.msra.mxu0 %v2739
      %2749 = vmatmul.bf16.gmra.mxu0 %v2733
      %v2750 = vpop.f32.mrf.mxu0
      %v2751 = vadd.f32 0.0, %v2750
      %v2752 = vpop.f32.mrf.mxu0
      %v2753 = vadd.f32 0.0, %v2752
      %2754 = vmatmul.bf16.gmra.mxu0 %v2736
      %v2755 = vpop.f32.mrf.mxu0
      %v2756 = vadd.f32 0.0, %v2755
      %v2757 = vpop.f32.mrf.mxu0
      %2758 = vdwg.mxu0
      %v2759 = vadd.f32 %v2526, %v2751
      %v2760 = vadd.f32 %v2527, %v2753
      %v2761 = vadd.f32 %v2528, %v2756
      %2762 = vrot.lane.b32.xlu0 %v2055, 104
      %v2763 = vpop.permute.xlu0 %2762
      %2764 = vrot.lane.b32.xlu0 %v2055, 72
      %v2765 = vpop.permute.xlu0 %2764
      %v2766 = vsel %vm758, %v2763, 0
      %v2768 = vsel %vm758, %v2765, 0
      %2770 = vmatpush.xpose.msra.mxu0 0.0
      %2771 = vmatpush.xpose.msra.mxu0 0.0
      %2772 = vmatpush.xpose.msra.mxu0 0.0
      %2773 = vmatpush.xpose.msra.mxu0 0.0
      %2774 = vmatpush.xpose.msra.mxu0 0.0
      %2775 = vmatpush.xpose.msra.mxu0 0.0
      %2776 = vmatpush.xpose.msra.mxu0 0.0
      %2777 = vmatpush.xpose.msra.mxu0 0.0
      %2778 = vmatpush.xpose.msra.mxu0 0.0
      %2779 = vmatpush.xpose.msra.mxu0 0.0
      %2780 = vmatpush.xpose.msra.mxu0 0.0
      %2781 = vmatpush.xpose.msra.mxu0 0.0
      %2782 = vmatpush.xpose.msra.mxu0 0.0
      %2783 = vmatpush.xpose.msra.mxu0 0.0
      %2784 = vmatpush.xpose.msra.mxu0 0.0
      %2785 = vmatpush.xpose.msra.mxu0 %v2768
      %2786 = vmatmul.f32.gmra.mxu0 %v2766
      %v2787 = vpop.f32.mrf.mxu0
      %v2788 = vadd.f32 0.0, %v2787
      %2789 = vdwg.mxu0
      %2790 = vrot.lane.b32.xlu0 %v2057, 104
      %v2791 = vpop.permute.xlu0 %2790
      %2792 = vrot.lane.b32.xlu0 %v2057, 72
      %v2793 = vpop.permute.xlu0 %2792
      %v2794 = vsel %vm758, %v2791, 0
      %v2796 = vsel %vm758, %v2793, 0
      %2798 = vmatpush.xpose.msra.mxu0 0.0
      %2799 = vmatpush.xpose.msra.mxu0 0.0
      %2800 = vmatpush.xpose.msra.mxu0 0.0
      %2801 = vmatpush.xpose.msra.mxu0 0.0
      %2802 = vmatpush.xpose.msra.mxu0 0.0
      %2803 = vmatpush.xpose.msra.mxu0 0.0
      %2804 = vmatpush.xpose.msra.mxu0 0.0
      %2805 = vmatpush.xpose.msra.mxu0 0.0
      %2806 = vmatpush.xpose.msra.mxu0 0.0
      %2807 = vmatpush.xpose.msra.mxu0 0.0
      %2808 = vmatpush.xpose.msra.mxu0 0.0
      %2809 = vmatpush.xpose.msra.mxu0 0.0
      %2810 = vmatpush.xpose.msra.mxu0 0.0
      %2811 = vmatpush.xpose.msra.mxu0 0.0
      %2812 = vmatpush.xpose.msra.mxu0 0.0
      %2813 = vmatpush.xpose.msra.mxu0 %v2796
      %2814 = vmatmul.f32.gmra.mxu0 %v2794
      %v2815 = vpop.f32.mrf.mxu0
      %v2816 = vadd.f32 0.0, %v2815
      %2817 = vdwg.mxu0
      %2818 = vrot.lane.b32.xlu0 %v2060, 104
      %v2819 = vpop.permute.xlu0 %2818
      %2820 = vrot.lane.b32.xlu0 %v2060, 72
      %v2821 = vpop.permute.xlu0 %2820
      %v2822 = vsel %vm758, %v2819, 0
      %v2824 = vsel %vm758, %v2821, 0
      %2826 = vmatpush.xpose.msra.mxu0 0.0
      %2827 = vmatpush.xpose.msra.mxu0 0.0
      %2828 = vmatpush.xpose.msra.mxu0 0.0
      %2829 = vmatpush.xpose.msra.mxu0 0.0
      %2830 = vmatpush.xpose.msra.mxu0 0.0
      %2831 = vmatpush.xpose.msra.mxu0 0.0
      %2832 = vmatpush.xpose.msra.mxu0 0.0
      %2833 = vmatpush.xpose.msra.mxu0 0.0
      %2834 = vmatpush.xpose.msra.mxu0 0.0
      %2835 = vmatpush.xpose.msra.mxu0 0.0
      %2836 = vmatpush.xpose.msra.mxu0 0.0
      %2837 = vmatpush.xpose.msra.mxu0 0.0
      %2838 = vmatpush.xpose.msra.mxu0 0.0
      %2839 = vmatpush.xpose.msra.mxu0 0.0
      %2840 = vmatpush.xpose.msra.mxu0 0.0
      %2841 = vmatpush.xpose.msra.mxu0 %v2824
      %2842 = vmatmul.f32.gmra.mxu0 %v2822
      %v2843 = vpop.f32.mrf.mxu0
      %v2844 = vadd.f32 0.0, %v2843
      %2845 = vdwg.mxu0
      %v2846 = vmul.f32 %v2788, 0.35355338
      %v2847 = vmul.f32 %v2816, 0.35355338
      %v2848 = vmul.f32 %v2844, 0.35355338
      %v2849 = vadd.f32 %v2846, %v843
      %v2850 = vadd.f32 %v2847, %v844
      %v2851 = vadd.f32 %v2848, %v845
      %v2852 = vsel %vm758, %v2849, -inf
      %2853 = vmax.xlane.f32.xlu0 %v2852
      %v2854 = vpop.xlane.xlu0 %2853
      %v2855 = vsel %vm758, %v2850, -inf
      %2856 = vmax.xlane.f32.xlu0 %v2855
      %v2857 = vpop.xlane.xlu0 %2856
      %v2858 = vsel %vm758, %v2851, -inf
      %2859 = vmax.xlane.f32.xlu0 %v2858
      %v2860 = vpop.xlane.xlu0 %2859
      %v2861 = vsub.f32 %v2849, %v2854
      %v2862 = vsub.f32 %v2850, %v2857
      %v2863 = vsub.f32 %v2851, %v2860
      %v2864 = vmul.f32 %v2861, 1.442695
      %v2865 = vpow.pop %v2864
      %v2866 = vmul.f32 %v2862, 1.442695
      %v2867 = vpow.pop %v2866
      %v2868 = vmul.f32 %v2863, 1.442695
      %v2869 = vpow.pop %v2868
      %v2870 = vsel %vm758, %v2865, 0.0
      %2871 = vadd.xlane.f32.xlu0 %v2870
      %v2872 = vpop.xlane.xlu0 %2871
      %v2873 = vsel %vm758, %v2867, 0.0
      %2874 = vadd.xlane.f32.xlu0 %v2873
      %v2875 = vpop.xlane.xlu0 %2874
      %v2876 = vsel %vm758, %v2869, 0.0
      %2877 = vadd.xlane.f32.xlu0 %v2876
      %v2878 = vpop.xlane.xlu0 %2877
      %v2879 = vrcp.pop %v2872
      %v2880 = vrcp.pop %v2875
      %v2881 = vrcp.pop %v2878
      %v2882 = vmul.f32 %v2865, %v2879
      %v2883 = vmul.f32 %v2867, %v2880
      %v2884 = vmul.f32 %v2869, %v2881
      %2885 = vrot.lane.b32.xlu0 %v2055, 40
      %v2886 = vpop.permute.xlu0 %2885
      %v2889 = vsel %vm758, %v2882, 0
      %2891 = vmatpush.msra.mxu0 0.0
      %2892 = vmatpush.msra.mxu0 0.0
      %2893 = vmatpush.msra.mxu0 0.0
      %2894 = vmatpush.msra.mxu0 0.0
      %2895 = vmatpush.msra.mxu0 0.0
      %2896 = vmatpush.msra.mxu0 0.0
      %2897 = vmatpush.msra.mxu0 0.0
      %2898 = vmatpush.msra.mxu0 0.0
      %2899 = vmatpush.msra.mxu0 0.0
      %2900 = vmatpush.msra.mxu0 0.0
      %2901 = vmatpush.msra.mxu0 0.0
      %2902 = vmatpush.msra.mxu0 0.0
      %2903 = vmatpush.msra.mxu0 0.0
      %2904 = vmatpush.msra.mxu0 0.0
      %2905 = vmatpush.msra.mxu0 0.0
      %2906 = vmatpush.msra.mxu0 %v2886
      %2907 = vmatmul.f32.gmra.mxu0 %v2889
      %v2908 = vpop.f32.mrf.mxu0
      %v2909 = vadd.f32 0.0, %v2908
      %2910 = vdwg.mxu0
      %2911 = vrot.lane.b32.xlu0 %v2057, 40
      %v2912 = vpop.permute.xlu0 %2911
      %v2915 = vsel %vm758, %v2883, 0
      %2917 = vmatpush.msra.mxu0 0.0
      %2918 = vmatpush.msra.mxu0 0.0
      %2919 = vmatpush.msra.mxu0 0.0
      %2920 = vmatpush.msra.mxu0 0.0
      %2921 = vmatpush.msra.mxu0 0.0
      %2922 = vmatpush.msra.mxu0 0.0
      %2923 = vmatpush.msra.mxu0 0.0
      %2924 = vmatpush.msra.mxu0 0.0
      %2925 = vmatpush.msra.mxu0 0.0
      %2926 = vmatpush.msra.mxu0 0.0
      %2927 = vmatpush.msra.mxu0 0.0
      %2928 = vmatpush.msra.mxu0 0.0
      %2929 = vmatpush.msra.mxu0 0.0
      %2930 = vmatpush.msra.mxu0 0.0
      %2931 = vmatpush.msra.mxu0 0.0
      %2932 = vmatpush.msra.mxu0 %v2912
      %2933 = vmatmul.f32.gmra.mxu0 %v2915
      %v2934 = vpop.f32.mrf.mxu0
      %v2935 = vadd.f32 0.0, %v2934
      %2936 = vdwg.mxu0
      %2937 = vrot.lane.b32.xlu0 %v2060, 40
      %v2938 = vpop.permute.xlu0 %2937
      %v2941 = vsel %vm758, %v2884, 0
      %2943 = vmatpush.msra.mxu0 0.0
      %2944 = vmatpush.msra.mxu0 0.0
      %2945 = vmatpush.msra.mxu0 0.0
      %2946 = vmatpush.msra.mxu0 0.0
      %2947 = vmatpush.msra.mxu0 0.0
      %2948 = vmatpush.msra.mxu0 0.0
      %2949 = vmatpush.msra.mxu0 0.0
      %2950 = vmatpush.msra.mxu0 0.0
      %2951 = vmatpush.msra.mxu0 0.0
      %2952 = vmatpush.msra.mxu0 0.0
      %2953 = vmatpush.msra.mxu0 0.0
      %2954 = vmatpush.msra.mxu0 0.0
      %2955 = vmatpush.msra.mxu0 0.0
      %2956 = vmatpush.msra.mxu0 0.0
      %2957 = vmatpush.msra.mxu0 0.0
      %2958 = vmatpush.msra.mxu0 %v2938
      %2959 = vmatmul.f32.gmra.mxu0 %v2941
      %v2960 = vpop.f32.mrf.mxu0
      %v2961 = vadd.f32 0.0, %v2960
      %2962 = vdwg.mxu0
      %v2963 = vpack.c.bf16 %v2935, %v2909
      %v2964 = vpack.c.bf16 %v2961, %v2961
      %v2966 = vsel %vm758, %v2963, 0
      %v2969 = vsel %vm758, %v2964, 0
      %v2972 = vsel %vm971, %v1993, 0
      %2974 = vmatpush.bf16.msra.mxu0 0
      %2975 = vmatpush.bf16.msra.mxu0 0
      %2976 = vmatpush.bf16.msra.mxu0 0
      %2977 = vmatpush.bf16.msra.mxu0 0
      %2978 = vmatpush.bf16.msra.mxu0 0
      %2979 = vmatpush.bf16.msra.mxu0 0
      %2980 = vmatpush.bf16.msra.mxu0 0
      %2981 = vmatpush.bf16.msra.mxu0 %v2972
      %2982 = vmatmul.bf16.gmra.mxu0 %v2966
      %v2983 = vpop.f32.mrf.mxu0
      %v2984 = vadd.f32 0.0, %v2983
      %v2985 = vpop.f32.mrf.mxu0
      %v2986 = vadd.f32 0.0, %v2985
      %2987 = vmatmul.bf16.gmra.mxu0 %v2969
      %v2988 = vpop.f32.mrf.mxu0
      %v2989 = vadd.f32 0.0, %v2988
      %v2990 = vpop.f32.mrf.mxu0
      %2991 = vdwg.mxu0
      %v2992 = vadd.f32 %v2759, %v2984
      %v2993 = vadd.f32 %v2760, %v2986
      %v2994 = vadd.f32 %v2761, %v2989
      %v2995 = vadd.f32 %v1979, %v2992
      %v2996 = vadd.f32 %v1980, %v2993
      %v2997 = vadd.f32 %v1981, %v2994
      %v2998 = vsel %vm597, %v2995, 0.0
      %2999 = vadd.xlane.f32.xlu0 %v2998
      %v3000 = vpop.xlane.xlu0 %2999
      %v3001 = vsel %vm597, %v2996, 0.0
      %3002 = vadd.xlane.f32.xlu0 %v3001
      %v3003 = vpop.xlane.xlu0 %3002
      %v3004 = vsel %vm597, %v2997, 0.0
      %3005 = vadd.xlane.f32.xlu0 %v3004
      %v3006 = vpop.xlane.xlu0 %3005
      %v3007 = vmul.f32 %v3000, %v613
      %v3008 = vmul.f32 %v3003, %v613
      %v3009 = vmul.f32 %v3006, %v613
      %v3010 = vsub.f32 %v2995, %v3007
      %v3011 = vsub.f32 %v2996, %v3008
      %v3012 = vsub.f32 %v2997, %v3009
      %v3013 = vmul.f32 %v3010, %v3010
      %v3014 = vmul.f32 %v3011, %v3011
      %v3015 = vmul.f32 %v3012, %v3012
      %v3016 = vsel %vm597, %v3013, 0.0
      %3017 = vadd.xlane.f32.xlu0 %v3016
      %v3018 = vpop.xlane.xlu0 %3017
      %v3019 = vsel %vm597, %v3014, 0.0
      %3020 = vadd.xlane.f32.xlu0 %v3019
      %v3021 = vpop.xlane.xlu0 %3020
      %v3022 = vsel %vm597, %v3015, 0.0
      %3023 = vadd.xlane.f32.xlu0 %v3022
      %v3024 = vpop.xlane.xlu0 %3023
      %v3025 = vmul.f32 %v3018, %v613
      %v3026 = vmul.f32 %v3021, %v613
      %v3027 = vmul.f32 %v3024, %v613
      %v3028 = vadd.f32 %v3025, 1e-12
      %v3029 = vadd.f32 %v3026, 1e-12
      %v3030 = vadd.f32 %v3027, 1e-12
      %v3031 = vrsqrt.pop %v3028
      %v3032 = vmul.f32 %v3031, %v3028
      %v3033 = vmul.f32 %v3032, %v3031
      %v3034 = vmul.f32 0.5, %v3033
      %v3035 = vsub.f32 1.5, %v3034
      %v3036 = vmul.f32 %v3031, %v3035
      %vm3037 = vweird.f32 %v3028
      %vm3038 = vweird.f32 %v3031
      %vm3039 = vmor %vm3037, %vm3038
      %v3040 = vsel %vm3039, %v3031, %v3036
      %v3041 = vrsqrt.pop %v3029
      %v3042 = vmul.f32 %v3041, %v3029
      %v3043 = vmul.f32 %v3042, %v3041
      %v3044 = vmul.f32 0.5, %v3043
      %v3045 = vsub.f32 1.5, %v3044
      %v3046 = vmul.f32 %v3041, %v3045
      %vm3047 = vweird.f32 %v3029
      %vm3048 = vweird.f32 %v3041
      %vm3049 = vmor %vm3047, %vm3048
      %v3050 = vsel %vm3049, %v3041, %v3046
      %v3051 = vrsqrt.pop %v3030
      %v3052 = vmul.f32 %v3051, %v3030
      %v3053 = vmul.f32 %v3052, %v3051
      %v3054 = vmul.f32 0.5, %v3053
      %v3055 = vsub.f32 1.5, %v3054
      %v3056 = vmul.f32 %v3051, %v3055
      %vm3057 = vweird.f32 %v3030
      %vm3058 = vweird.f32 %v3051
      %vm3059 = vmor %vm3057, %vm3058
      %v3060 = vsel %vm3059, %v3051, %v3056
      %v3061 = vmul.f32 %v3010, %v3040
      %v3062 = vmul.f32 %v3011, %v3050
      %v3063 = vmul.f32 %v3012, %v3060
      %v3065 = vperm.slane %v1997, 0
      %v3067 = vmul.f32 %v3061, %v3065
      %v3068 = vmul.f32 %v3062, %v3065
      %v3069 = vmul.f32 %v3063, %v3065
      %v3071 = vperm.slane %v1999, 0
      %v3073 = vadd.f32 %v3067, %v3071
      %v3074 = vadd.f32 %v3068, %v3071
      %v3075 = vadd.f32 %v3069, %v3071
      %v3076 = vpack.c.bf16 %v3074, %v3073
      %v3077 = vpack.c.bf16 %v3075, %v3075
      %v3079 = vperm.slane %v2006, 0
      %v3085 = vunpack.c.l.b16 %v2001
      %v3086 = vunpack.c.l.b16 %v2002
      %v3087 = vunpack.c.l.b16 %v2003
      %v3088 = vunpack.c.l.b16 %v2004
      %v3089 = vpack.c.b16 %v3086, %v3085
      %v3090 = vpack.c.b16 %v3088, %v3087
      %v3094 = vsel %vm597, %v3076, 0
      %v3097 = vsel %vm597, %v3077, 0
      %3099 = vmatpush.bf16.msra.mxu0 0
      %3100 = vmatpush.bf16.msra.mxu0 0
      %3101 = vmatpush.bf16.msra.mxu0 0
      %3102 = vmatpush.bf16.msra.mxu0 0
      %3103 = vmatpush.bf16.msra.mxu0 0
      %3104 = vmatpush.bf16.msra.mxu0 0
      %3105 = vmatpush.bf16.msra.mxu0 %v3090
      %3106 = vmatpush.bf16.msra.mxu0 %v3089
      %3107 = vmatmul.bf16.gmra.mxu0 %v3094
      %v3108 = vpop.f32.mrf.mxu0
      %v3109 = vadd.f32 %v3079, %v3108
      %v3110 = vpop.f32.mrf.mxu0
      %v3111 = vadd.f32 %v3079, %v3110
      %3112 = vmatmul.bf16.gmra.mxu0 %v3097
      %v3113 = vpop.f32.mrf.mxu0
      %v3114 = vadd.f32 %v3079, %v3113
      %v3115 = vpop.f32.mrf.mxu0
      %3116 = vdwg.mxu0
      %v3117 = vmul.f32 %v3109, 0.5
      %v3118 = vmul.f32 %v3111, 0.5
      %v3119 = vmul.f32 %v3114, 0.5
      %v3120 = vmul.f32 %v3109, 0.044715
      %v3121 = vmul.f32 %v3111, 0.044715
      %v3122 = vmul.f32 %v3114, 0.044715
      %v3123 = vmul.f32 %v3120, %v3109
      %v3124 = vmul.f32 %v3121, %v3111
      %v3125 = vmul.f32 %v3122, %v3114
      %v3126 = vmul.f32 %v3123, %v3109
      %v3127 = vmul.f32 %v3124, %v3111
      %v3128 = vmul.f32 %v3125, %v3114
      %v3129 = vadd.f32 %v3109, %v3126
      %v3130 = vadd.f32 %v3111, %v3127
      %v3131 = vadd.f32 %v3114, %v3128
      %v3132 = vmul.f32 %v3129, 0.7978846
      %v3133 = vmul.f32 %v3130, 0.7978846
      %v3134 = vmul.f32 %v3131, 0.7978846
      %v3135 = vtanh.pop %v3132
      %v3136 = vtanh.pop %v3133
      %v3137 = vtanh.pop %v3134
      %v3138 = vadd.f32 %v3135, 1.0
      %v3139 = vadd.f32 %v3136, 1.0
      %v3140 = vadd.f32 %v3137, 1.0
      %v3141 = vmul.f32 %v3117, %v3138
      %v3142 = vmul.f32 %v3118, %v3139
      %v3143 = vmul.f32 %v3119, %v3140
      %v3144 = vpack.c.bf16 %v3142, %v3141
      %v3145 = vpack.c.bf16 %v3143, %v3143
      %v3147 = vperm.slane %v2017, 0
      %v3157 = vunpack.c.l.b16 %v2008
      %v3158 = vunpack.c.l.b16 %v2009
      %v3159 = vunpack.c.l.b16 %v2010
      %v3160 = vunpack.c.l.b16 %v2011
      %v3161 = vunpack.c.l.b16 %v2012
      %v3162 = vunpack.c.l.b16 %v2013
      %v3163 = vunpack.c.l.b16 %v2014
      %v3164 = vunpack.c.l.b16 %v2015
      %v3165 = vpack.c.b16 %v3158, %v3157
      %v3166 = vpack.c.b16 %v3160, %v3159
      %v3167 = vpack.c.b16 %v3162, %v3161
      %v3168 = vpack.c.b16 %v3164, %v3163
      %v3174 = vsel %vm1876, %v3144, 0
      %v3177 = vsel %vm1876, %v3145, 0
      %3179 = vmatpush.bf16.msra.mxu0 0
      %3180 = vmatpush.bf16.msra.mxu0 0
      %3181 = vmatpush.bf16.msra.mxu0 0
      %3182 = vmatpush.bf16.msra.mxu0 0
      %3183 = vmatpush.bf16.msra.mxu0 %v3168
      %3184 = vmatpush.bf16.msra.mxu0 %v3167
      %3185 = vmatpush.bf16.msra.mxu0 %v3166
      %3186 = vmatpush.bf16.msra.mxu0 %v3165
      %3187 = vmatmul.bf16.gmra.mxu0 %v3174
      %v3188 = vpop.f32.mrf.mxu0
      %v3189 = vadd.f32 %v3147, %v3188
      %v3190 = vpop.f32.mrf.mxu0
      %v3191 = vadd.f32 %v3147, %v3190
      %3192 = vmatmul.bf16.gmra.mxu0 %v3177
      %v3193 = vpop.f32.mrf.mxu0
      %v3194 = vadd.f32 %v3147, %v3193
      %v3195 = vpop.f32.mrf.mxu0
      %3196 = vdwg.mxu0
      %v3197 = vadd.f32 %v3073, %v3189
      %v3198 = vadd.f32 %v3074, %v3191
      %v3199 = vadd.f32 %v3075, %v3194
      %v3200 = vsel %vm597, %v3197, 0.0
      %3201 = vadd.xlane.f32.xlu0 %v3200
      %v3202 = vpop.xlane.xlu0 %3201
      %v3203 = vsel %vm597, %v3198, 0.0
      %3204 = vadd.xlane.f32.xlu0 %v3203
      %v3205 = vpop.xlane.xlu0 %3204
      %v3206 = vsel %vm597, %v3199, 0.0
      %3207 = vadd.xlane.f32.xlu0 %v3206
      %v3208 = vpop.xlane.xlu0 %3207
      %v3209 = vmul.f32 %v3202, %v613
      %v3210 = vmul.f32 %v3205, %v613
      %v3211 = vmul.f32 %v3208, %v613
      %v3212 = vsub.f32 %v3197, %v3209
      %v3213 = vsub.f32 %v3198, %v3210
      %v3214 = vsub.f32 %v3199, %v3211
      %v3215 = vmul.f32 %v3212, %v3212
      %v3216 = vmul.f32 %v3213, %v3213
      %v3217 = vmul.f32 %v3214, %v3214
      %v3218 = vsel %vm597, %v3215, 0.0
      %3219 = vadd.xlane.f32.xlu0 %v3218
      %v3220 = vpop.xlane.xlu0 %3219
      %v3221 = vsel %vm597, %v3216, 0.0
      %3222 = vadd.xlane.f32.xlu0 %v3221
      %v3223 = vpop.xlane.xlu0 %3222
      %v3224 = vsel %vm597, %v3217, 0.0
      %3225 = vadd.xlane.f32.xlu0 %v3224
      %v3226 = vpop.xlane.xlu0 %3225
      %v3227 = vmul.f32 %v3220, %v613
      %v3228 = vmul.f32 %v3223, %v613
      %v3229 = vmul.f32 %v3226, %v613
      %v3230 = vadd.f32 %v3227, 1e-12
      %v3231 = vadd.f32 %v3228, 1e-12
      %v3232 = vadd.f32 %v3229, 1e-12
      %v3233 = vrsqrt.pop %v3230
      %v3234 = vmul.f32 %v3233, %v3230
      %v3235 = vmul.f32 %v3234, %v3233
      %v3236 = vmul.f32 0.5, %v3235
      %v3237 = vsub.f32 1.5, %v3236
      %v3238 = vmul.f32 %v3233, %v3237
      %vm3239 = vweird.f32 %v3230
      %vm3240 = vweird.f32 %v3233
      %vm3241 = vmor %vm3239, %vm3240
      %v3242 = vsel %vm3241, %v3233, %v3238
      %v3243 = vrsqrt.pop %v3231
      %v3244 = vmul.f32 %v3243, %v3231
      %v3245 = vmul.f32 %v3244, %v3243
      %v3246 = vmul.f32 0.5, %v3245
      %v3247 = vsub.f32 1.5, %v3246
      %v3248 = vmul.f32 %v3243, %v3247
      %vm3249 = vweird.f32 %v3231
      %vm3250 = vweird.f32 %v3243
      %vm3251 = vmor %vm3249, %vm3250
      %v3252 = vsel %vm3251, %v3243, %v3248
      %v3253 = vrsqrt.pop %v3232
      %v3254 = vmul.f32 %v3253, %v3232
      %v3255 = vmul.f32 %v3254, %v3253
      %v3256 = vmul.f32 0.5, %v3255
      %v3257 = vsub.f32 1.5, %v3256
      %v3258 = vmul.f32 %v3253, %v3257
      %vm3259 = vweird.f32 %v3232
      %vm3260 = vweird.f32 %v3253
      %vm3261 = vmor %vm3259, %vm3260
      %v3262 = vsel %vm3261, %v3253, %v3258
      %v3263 = vmul.f32 %v3212, %v3242
      %v3264 = vmul.f32 %v3213, %v3252
      %v3265 = vmul.f32 %v3214, %v3262
      %v3267 = vperm.slane %v2019, 0
      %v3269 = vmul.f32 %v3263, %v3267
      %v3270 = vmul.f32 %v3264, %v3267
      %v3271 = vmul.f32 %v3265, %v3267
      %v3273 = vperm.slane %v2021, 0
      %v3275 = vadd.f32 %v3269, %v3273
      %v3276 = vadd.f32 %v3270, %v3273
      %v3277 = vadd.f32 %v3271, %v3273
      %v3278 = vlaneseq
      %v3279 = vand.u32 %v3278, 127
      %v3280 = vlaneseq
      %v3281 = vshrl.u32 %v3280, 7
      %v3282 = vmul.u32 %v3281, 8
      %vm3283 = vcmp.eq.s32.totalorder %v3279, %v3282
      %v3284 = vsel %vm3283, 1, 0
      %v3285 = vcvt.s32.f32 %v3284
      %vm3286 = vcmask 195584
      %v3288 = vsel %vm3286, %v3285, 0
      %3290 = vmatpush.msra.mxu0 0.0
      %3291 = vmatpush.msra.mxu0 0.0
      %3292 = vmatpush.msra.mxu0 0.0
      %3293 = vmatpush.msra.mxu0 0.0
      %3294 = vmatpush.msra.mxu0 0.0
      %3295 = vmatpush.msra.mxu0 0.0
      %3296 = vmatpush.msra.mxu0 0.0
      %3297 = vmatpush.msra.mxu0 0.0
      %3298 = vmatpush.msra.mxu0 0.0
      %3299 = vmatpush.msra.mxu0 0.0
      %3300 = vmatpush.msra.mxu0 0.0
      %3301 = vmatpush.msra.mxu0 0.0
      %3302 = vmatpush.msra.mxu0 0.0
      %3303 = vmatpush.msra.mxu0 %v3277
      %3304 = vmatpush.msra.mxu0 %v3276
      %3305 = vmatpush.msra.mxu0 %v3275
      %3306 = vmatmul.f32.gmra.mxu0 %v3288
      %v3307 = vpop.f32.mrf.mxu0
      %v3308 = vadd.f32 0.0, %v3307
      %3309 = vdwg.mxu0
      %v3310 = vld [vmem:[%s16] sm:$0xf]
      %v3311 = vld [vmem:[%s16 + $0x4] sm:$0xf]
      %v3312 = vld [vmem:[%s16 + $0x8] sm:$0xf]
      %v3313 = vld [vmem:[%s16 + $0xc] sm:$0xf]
      %v3314 = vpack.c.bf16 %v3308, %v3308
      %v3315 = vld [vmem:[%s17] sm:$0x1]
      %v3317 = vperm.slane %v3315, 0
      %v3323 = vunpack.c.l.b16 %v3310
      %v3324 = vunpack.c.l.b16 %v3311
      %v3325 = vunpack.c.l.b16 %v3312
      %v3326 = vunpack.c.l.b16 %v3313
      %v3327 = vpack.c.b16 %v3324, %v3323
      %v3328 = vpack.c.b16 %v3326, %v3325
      %v3332 = vsel %vm597, %v3314, 0
      %3334 = vmatpush.bf16.msra.mxu0 0
      %3335 = vmatpush.bf16.msra.mxu0 0
      %3336 = vmatpush.bf16.msra.mxu0 0
      %3337 = vmatpush.bf16.msra.mxu0 0
      %3338 = vmatpush.bf16.msra.mxu0 0
      %3339 = vmatpush.bf16.msra.mxu0 0
      %3340 = vmatpush.bf16.msra.mxu0 %v3328
      %3341 = vmatpush.bf16.msra.mxu0 %v3327
      %3342 = vmatmul.bf16.gmra.mxu0 %v3332
      %v3343 = vpop.f32.mrf.mxu0
      %v3344 = vadd.f32 %v3317, %v3343
      %v3345 = vpop.f32.mrf.mxu0
      %3346 = vdwg.mxu0
      %v3347 = vtanh.pop %v3344
      %vm3348 = vcmask 256000
      %3349 = vst.msk [vmem:[%s590] sm:$0x7] %vm3348, %v3347
      %p3350 = scmp.lt.s32.totalorder %s29, 1
      %s3351 = scalar_select %p3350, %s29, 1
      %s3352 = smul.addr %s3351, 4
      %s3353 = scalar_lea.vmem %s18, %s3352
      // Predicated region
      $region93: #{hier_bert_forward.2} parent=91 // pred_check
        %p3354 = pneg %p435
      $region94: #{hier_bert_forward.2} parent=91 // pred_check_branch
        %3356 = sbr.rel (%p3354) target = $region96
      $region95: #{hier_bert_forward.2} parent=91 // pred_region
        _
      $region96: #{hier_bert_forward.2} parent=91 // pred_fallthru
        _
    $region92: #{hier_bert_forward.2} parent=5 // pred_fallthru
      _
    %p3357 = scmp.le.s32.totalorder 2, %s24
    // Predicated region
    $region97: #{hier_bert_forward.2} parent=5 // pred_check
      %p3358 = pneg %p3357
    $region98: #{hier_bert_forward.2} parent=5 // pred_check_branch
      %3360 = sbr.rel (%p3358) target = $region100
    $region99: #{hier_bert_forward.2} parent=5 // pred_region
      %s3361 = ssub.s32 %s24, 2
      // Predicated region
      $region101: #{hier_bert_forward.2} parent=99 // pred_check
        %p3362 = pneg %p441
      $region102: #{hier_bert_forward.2} parent=99 // pred_check_branch
        %3364 = sbr.rel (%p3362) target = $region104
      $region103: #{hier_bert_forward.2} parent=99 // pred_region
        %p3365 = scmp.lt.s32.totalorder %s30, 1
        %s3366 = scalar_select %p3365, %s30, 1
        %s3367 = smul.addr %s3366, 4
        %s3368 = scalar_lea.vmem %s18, %s3367
      $region104: #{hier_bert_forward.2} parent=99 // pred_fallthru
        _
    $region100: #{hier_bert_forward.2} parent=5 // pred_fallthru
      _
  $region6: #{hier_bert_forward.2} parent=0 // loop_footer
    %s28 = sadd.s32 1, %s24
  $region7: #{hier_bert_forward.2} parent=0 // loop_footer_branch
    %23 = sbr.rel target = $region3
  $region8: #{hier_bert_forward.2} parent=0 // loop_exit
    _

</llo_original>
